<compile_context>
chip_gen: v7x
topology: tpu7x:2x2x1
jax: 0.10.0
libtpu: 0.0.40
codegen_flags: <defaults>
</compile_context>

<pallas_src>
import math

import jax
import jax.numpy as jnp
from jax.experimental import pallas as pl
from jax.experimental.pallas import tpu as pltpu


# ----------------------------------------------------------------------------
# Kernel. For one tile of TB batch rows, all scales are processed in a single
# statically-unrolled chain; the running out_low never leaves VMEM.
#
# Slab orderings (all 2-D, lane-dense):
#   input  T_k slab : width C*L_k, column index = c*L_k + l   ("(c,l)" order)
#   output Z_k slab : width L_k*C, column index = l*C + c     ("(l,c)" order)
#   P_k  (C*L_k, L_k*C): permutation, (c,l) -> (l,c)
#   U_i  (L_in*C, C*L_out): Linear1 weight (x) I_C, consumes (l,c), emits (c,o)
#   V_i  (C*L_out, L_out*C): Linear2 weight (x) I_C, consumes (c,o), emits (o,c)
# ----------------------------------------------------------------------------
def _make_chain_kernel(num_scales):
    dsl = num_scales - 1  # number of up-sampling steps

    def kernel(*refs):
        t_refs = refs[:num_scales]                              # (TB, C*L_k)
        p_refs = refs[num_scales:2 * num_scales]                # permutations
        s_refs = refs[2 * num_scales:2 * num_scales + 4 * dsl]  # U, b1, V, b2
        o_refs = refs[2 * num_scales + 4 * dsl:]                # (TB, L_k*C)

        f32 = jnp.float32
        inv_sqrt2 = f32(0.7071067811865476)

        def pdot(a, b):
            return jnp.dot(a, b, preferred_element_type=f32)

        # coarsest scale: permute to (l,c) order, store, keep as running state
        z = pdot(t_refs[dsl][...].astype(f32), p_refs[dsl][...].astype(f32))
        o_refs[dsl][...] = z.astype(o_refs[dsl].dtype)

        for i in range(dsl):
            k_high = dsl - 1 - i
            u = s_refs[4 * i + 0][...].astype(f32)    # (L_in*C, C*L_out)
            b1 = s_refs[4 * i + 1][...].astype(f32)   # (1, C*L_out)
            v = s_refs[4 * i + 2][...].astype(f32)    # (C*L_out, L_out*C)
            b2 = s_refs[4 * i + 3][...].astype(f32)   # (1, L_out*C)

            h = pdot(z, u) + b1
            # exact (erf) GELU — matches torch.nn.GELU() default
            g = 0.5 * h * (1.0 + jax.lax.erf(h * inv_sqrt2))
            y = pdot(g, v) + b2
            # residual (high-resolution trend), permuted to output order
            r = pdot(t_refs[k_high][...].astype(f32),
                     p_refs[k_high][...].astype(f32))
            z = r + y
            o_refs[k_high][...] = z.astype(o_refs[k_high].dtype)

    return kernel


# ----------------------------------------------------------------------------
# Row-tile choice: ~target bytes per grid step, >= min_steps grid steps when
# possible, aligned to the dtype's sublane packing, and dividing B exactly so
# no pad / slice-back HBM copies are needed.
# ----------------------------------------------------------------------------
def _choose_tb(B, bytes_per_row, row_align, min_steps, target_step_bytes):
    if B <= row_align:
        return B
    tb_target = max(row_align, -(-target_step_bytes // max(bytes_per_row, 1)))
    tb_depth = max(row_align, B // max(min_steps, 1))
    cap = min(tb_target, tb_depth, B)
    cap = max(row_align, (cap // row_align) * row_align)
    for d in range(cap, row_align - 1, -row_align):
        if B % d == 0:
            return d
    return cap  # no aligned divisor -> padding fallback


# ----------------------------------------------------------------------------
# Precompute the slab matrices (done once per parameter set; tiny einsums).
# ----------------------------------------------------------------------------
def _build_slab_mats(params, L, C):
    dsl = len(params)
    eye_c = jnp.eye(C, dtype=jnp.float32)
    perms = []
    for k in range(dsl + 1):
        eye_l = jnp.eye(L[k], dtype=jnp.float32)
        p = jnp.einsum('lm,cd->clmd', eye_l, eye_c).reshape(C * L[k], L[k] * C)
        perms.append(p)
    steps = []
    for (w1t, b1, w2t, b2) in params:
        l_in, l_out = int(w1t.shape[0]), int(w1t.shape[1])
        u = jnp.einsum('lo,cd->lcdo', w1t.astype(jnp.float32), eye_c)
        u = u.reshape(l_in * C, C * l_out)
        v = jnp.einsum('po,cd->cpod', w2t.astype(jnp.float32), eye_c)
        v = v.reshape(C * l_out, l_out * C)
        b1t = jnp.tile(b1.astype(jnp.float32), C).reshape(1, C * l_out)
        b2p = jnp.repeat(b2.astype(jnp.float32), C).reshape(1, l_out * C)
        steps.append((u, b1t, v, b2p))
    return perms, steps


# ----------------------------------------------------------------------------
# Wrapper: one pallas_call for the whole scale chain.
# trend_list[k]: [B, C, L_k], L_k = seq_len // dsw**k, k = 0 .. dsl
# returns list of [B, L_k, C] in original scale order (as the torch module).
# ----------------------------------------------------------------------------
def multi_scale_trend_mixing(trend_list, params, *, target_step_bytes=2 << 20,
                             min_grid_steps=8):
    num_scales = len(trend_list)
    dsl = num_scales - 1
    assert dsl >= 1 and len(params) == dsl

    B, C, _ = trend_list[0].shape
    L = [int(t.shape[-1]) for t in trend_list]
    dtype = trend_list[0].dtype
    itemsize = jnp.dtype(dtype).itemsize

    # lane-dense input slabs: [B, C, L_k] -> [B, C*L_k] (metadata-only reshape)
    slabs = [trend_list[k].reshape(B, C * L[k]) for k in range(num_scales)]

    perms, steps = _build_slab_mats(params, L, C)
    flat_mats = list(perms)
    for s in steps:
        flat_mats += list(s)

    bytes_per_row = 2 * C * sum(L) * itemsize          # streamed in + out / row
    row_align = 8 * max(1, 4 // itemsize)              # 8 f32 / 16 bf16 / 32 i8
    tb = _choose_tb(B, bytes_per_row, row_align, min_grid_steps,
                    target_step_bytes)
    b_pad = pl.cdiv(B, tb) * tb
    if b_pad != B:  # last-resort path; avoided when B has an aligned divisor
        slabs = [jnp.pad(s, ((0, b_pad - B), (0, 0))) for s in slabs]
    grid = (b_pad // tb,)

    in_specs = [pl.BlockSpec((tb, C * L[k]), lambda i: (i, 0))
                for k in range(num_scales)]
    in_specs += [pl.BlockSpec(m.shape, lambda i: (0, 0)) for m in flat_mats]

    out_shape = tuple(jax.ShapeDtypeStruct((b_pad, L[k] * C), dtype)
                      for k in range(num_scales))
    out_specs = tuple(pl.BlockSpec((tb, L[k] * C), lambda i: (i, 0))
                      for k in range(num_scales))

    # advisory cost estimate
    flops = 2 * b_pad * (C * L[dsl]) * (L[dsl] * C)
    trans = 0
    for i in range(dsl):
        l_in, l_out = L[dsl - i], L[dsl - 1 - i]
        flops += 2 * b_pad * ((l_in * C) * (C * l_out)
                              + 2 * (C * l_out) * (l_out * C))
        trans += b_pad * C * l_out
    mat_bytes = sum(math.prod(m.shape) * jnp.dtype(m.dtype).itemsize
                    for m in flat_mats)
    bytes_accessed = 2 * b_pad * C * sum(L) * itemsize + mat_bytes

    # VMEM: double-buffered streamed tiles + resident matrices + slack;
    # floor at the 32 MiB default, cap at 48 MiB (v7x TC VMEM is 64 MiB total).
    stream_tile_bytes = tb * 2 * C * sum(L) * itemsize
    vmem_limit = int(min(max(2 * stream_tile_bytes + 2 * mat_bytes + (4 << 20),
                             32 << 20), 48 << 20))

    outs = pl.pallas_call(
        _make_chain_kernel(num_scales),
        out_shape=out_shape,
        grid=grid,
        in_specs=in_specs,
        out_specs=out_specs,
        compiler_params=pltpu.CompilerParams(
            dimension_semantics=("parallel",),
            vmem_limit_bytes=vmem_limit),
        cost_estimate=pl.CostEstimate(
            flops=int(flops),
            transcendentals=int(trans),
            bytes_accessed=int(bytes_accessed)),
    )(*slabs, *flat_mats)

    out_trend_list = []
    for k in range(num_scales):
        o = outs[k]
        if b_pad != B:
            o = o[:B]
        # (B, L_k*C) -> (B, L_k, C): contiguous split, no transpose, no copy
        out_trend_list.append(o.reshape(B, L[k], C))
    return out_trend_list


# ----------------------------------------------------------------------------
# Parameter construction (deterministic, PyTorch-Linear-like uniform init).
# params[idx] matches up_sampling_layers[idx] (built over reversed(range(dsl))).
# Weights are stored already transposed: [in, out].
# ----------------------------------------------------------------------------
def init_params(key, seq_len, down_sampling_window, down_sampling_layers,
                dtype=jnp.float32):
    params = []
    for idx, i in enumerate(reversed(range(down_sampling_layers))):
        lin_in = seq_len // down_sampling_window ** (i + 1)
        lin_out = seq_len // down_sampling_window ** i
        k = jax.random.fold_in(key, idx)
        k1, k2, k3, k4 = jax.random.split(k, 4)
        b1v = 1.0 / math.sqrt(lin_in)
        b2v = 1.0 / math.sqrt(lin_out)
        w1t = jax.random.uniform(k1, (lin_in, lin_out), dtype, -b1v, b1v)
        b1 = jax.random.uniform(k2, (lin_out,), dtype, -b1v, b1v)
        w2t = jax.random.uniform(k3, (lin_out, lin_out), dtype, -b2v, b2v)
        b2 = jax.random.uniform(k4, (lin_out,), dtype, -b2v, b2v)
        params.append((w1t, b1, w2t, b2))
    return params


# ----------------------------------------------------------------------------
# Pure-JAX reference mirroring MultiScaleTrendMixing.forward exactly.
# ----------------------------------------------------------------------------
def _reference(trend_list, params):
    rev = list(trend_list)[::-1]
    out_low = rev[0]
    out_high = rev[1]
    outs = [jnp.transpose(out_low, (0, 2, 1))]
    inv_sqrt2 = 1.0 / math.sqrt(2.0)
    for i in range(len(rev) - 1):
        w1t, b1, w2t, b2 = params[i]
        h = jnp.einsum('bcl,lo->bco', out_low, w1t,
                       precision=jax.lax.Precision.HIGHEST) + b1
        g = 0.5 * h * (1.0 + jax.lax.erf(h * inv_sqrt2))
        y = jnp.einsum('bco,op->bcp', g, w2t,
                       precision=jax.lax.Precision.HIGHEST) + b2
        out_high = out_high + y
        out_low = out_high
        if i + 2 <= len(rev) - 1:
            out_high = rev[i + 2]
        outs.append(jnp.transpose(out_low, (0, 2, 1)))
    outs.reverse()
    return outs


if __name__ == "__main__":
    # rows = batch * num_nodes (independent); config consistent with the module
    B = 2048                    # e.g. batch 16 x num_nodes 128
    C = 16                      # d_model / channels
    seq_len = 32
    down_sampling_window = 2
    down_sampling_layers = 2    # -> trend_list has 3 scales: L = 32, 16, 8

    key = jax.random.PRNGKey(0)
    kp, kx = jax.random.split(key)

    params = init_params(kp, seq_len, down_sampling_window, down_sampling_layers)

    trend_list = []
    for k in range(down_sampling_layers + 1):
        L_k = seq_len // down_sampling_window ** k
        kx, sub = jax.random.split(kx)
        trend_list.append(jax.random.normal(sub, (B, C, L_k), jnp.float32))

    outs = multi_scale_trend_mixing(trend_list, params)
    outs = [jax.block_until_ready(o) for o in outs]

    # shape check: [B, L_k, C] in original scale order
    expected_shapes = [(B, seq_len // down_sampling_window ** k, C)
                       for k in range(down_sampling_layers + 1)]
    assert [tuple(o.shape) for o in outs] == expected_shapes, \
        ([tuple(o.shape) for o in outs], expected_shapes)

    # numerical check against pure-JAX reference
    refs = _reference(trend_list, params)
    for o, r in zip(outs, refs):
        err = float(jnp.max(jnp.abs(o - r)))
        assert err < 1e-3, f"max abs err {err}"

    print("KERNEL_OK")
</pallas_src>

<mosaic_0001>
module attributes {stable_mosaic.version = 11 : i64} {
  func.func @kernel(%arg0: i32, %arg1: memref<256x512xf32, #tpu.memory_space<vmem>>, %arg2: memref<256x256xf32, #tpu.memory_space<vmem>>, %arg3: memref<256x128xf32, #tpu.memory_space<vmem>>, %arg4: memref<512x512xf32, #tpu.memory_space<vmem>>, %arg5: memref<256x256xf32, #tpu.memory_space<vmem>>, %arg6: memref<128x128xf32, #tpu.memory_space<vmem>>, %arg7: memref<128x256xf32, #tpu.memory_space<vmem>>, %arg8: memref<1x256xf32, #tpu.memory_space<vmem>>, %arg9: memref<256x256xf32, #tpu.memory_space<vmem>>, %arg10: memref<1x256xf32, #tpu.memory_space<vmem>>, %arg11: memref<256x512xf32, #tpu.memory_space<vmem>>, %arg12: memref<1x512xf32, #tpu.memory_space<vmem>>, %arg13: memref<512x512xf32, #tpu.memory_space<vmem>>, %arg14: memref<1x512xf32, #tpu.memory_space<vmem>>, %arg15: memref<256x512xf32, #tpu.memory_space<vmem>>, %arg16: memref<256x256xf32, #tpu.memory_space<vmem>>, %arg17: memref<256x128xf32, #tpu.memory_space<vmem>>) attributes {dimension_semantics = [#tpu.dimension_semantics<parallel>], iteration_bounds = array<i64: 8>, scalar_prefetch = 0 : i64, scratch_operands = 0 : i64, tpu.core_type = #tpu.core_type<tc>, window_params = [{transform_indices = @transform_0, window_bounds = array<i64: 256, 512>}, {transform_indices = @transform_1, window_bounds = array<i64: 256, 256>}, {transform_indices = @transform_2, window_bounds = array<i64: 256, 128>}, {pipeline_mode = #tpu.pipeline_mode<synchronous>, transform_indices = @transform_3, window_bounds = array<i64: 512, 512>}, {pipeline_mode = #tpu.pipeline_mode<synchronous>, transform_indices = @transform_4, window_bounds = array<i64: 256, 256>}, {pipeline_mode = #tpu.pipeline_mode<synchronous>, transform_indices = @transform_5, window_bounds = array<i64: 128, 128>}, {pipeline_mode = #tpu.pipeline_mode<synchronous>, transform_indices = @transform_6, window_bounds = array<i64: 128, 256>}, {pipeline_mode = #tpu.pipeline_mode<synchronous>, transform_indices = @transform_7, window_bounds = array<i64: 1, 256>}, {pipeline_mode = #tpu.pipeline_mode<synchronous>, transform_indices = @transform_8, window_bounds = array<i64: 256, 256>}, {pipeline_mode = #tpu.pipeline_mode<synchronous>, transform_indices = @transform_9, window_bounds = array<i64: 1, 256>}, {pipeline_mode = #tpu.pipeline_mode<synchronous>, transform_indices = @transform_10, window_bounds = array<i64: 256, 512>}, {pipeline_mode = #tpu.pipeline_mode<synchronous>, transform_indices = @transform_11, window_bounds = array<i64: 1, 512>}, {pipeline_mode = #tpu.pipeline_mode<synchronous>, transform_indices = @transform_12, window_bounds = array<i64: 512, 512>}, {pipeline_mode = #tpu.pipeline_mode<synchronous>, transform_indices = @transform_13, window_bounds = array<i64: 1, 512>}, {transform_indices = @transform_14, window_bounds = array<i64: 256, 512>}, {transform_indices = @transform_15, window_bounds = array<i64: 256, 256>}, {transform_indices = @transform_16, window_bounds = array<i64: 256, 128>}]} {
    %c0 = arith.constant 0 : index
    %c0_0 = arith.constant 0 : index
    %0 = vector.load %arg3[%c0, %c0_0] : memref<256x128xf32, #tpu.memory_space<vmem>>, vector<256x128xf32>
    %c0_1 = arith.constant 0 : index
    %c0_2 = arith.constant 0 : index
    %1 = vector.load %arg6[%c0_1, %c0_2] : memref<128x128xf32, #tpu.memory_space<vmem>>, vector<128x128xf32>
    %cst = arith.constant dense<0.000000e+00> : vector<256x128xf32>
    %2 = tpu.matmul %0, %1, %cst {dimension_numbers = #tpu.dot_dimension_numbers<[1], [0], [0], [1], [0, 0, 1, 1], [], []>} : vector<256x128xf32>, vector<128x128xf32>, vector<256x128xf32> -> vector<256x128xf32>
    %c0_3 = arith.constant 0 : index
    %c0_4 = arith.constant 0 : index
    %3 = vector.load %arg17[%c0_3, %c0_4] : memref<256x128xf32, #tpu.memory_space<vmem>>, vector<256x128xf32>
    tpu.vector_store %arg17[%c0_3, %c0_4], %2 {strides = array<i32>} : memref<256x128xf32, #tpu.memory_space<vmem>>, vector<256x128xf32>,
    %c0_5 = arith.constant 0 : index
    %c0_6 = arith.constant 0 : index
    %4 = vector.load %arg7[%c0_5, %c0_6] : memref<128x256xf32, #tpu.memory_space<vmem>>, vector<128x256xf32>
    %c0_7 = arith.constant 0 : index
    %c0_8 = arith.constant 0 : index
    %5 = vector.load %arg8[%c0_7, %c0_8] : memref<1x256xf32, #tpu.memory_space<vmem>>, vector<1x256xf32>
    %c0_9 = arith.constant 0 : index
    %c0_10 = arith.constant 0 : index
    %6 = vector.load %arg9[%c0_9, %c0_10] : memref<256x256xf32, #tpu.memory_space<vmem>>, vector<256x256xf32>
    %c0_11 = arith.constant 0 : index
    %c0_12 = arith.constant 0 : index
    %7 = vector.load %arg10[%c0_11, %c0_12] : memref<1x256xf32, #tpu.memory_space<vmem>>, vector<1x256xf32>
    %cst_13 = arith.constant dense<0.000000e+00> : vector<256x256xf32>
    %8 = tpu.matmul %2, %4, %cst_13 {dimension_numbers = #tpu.dot_dimension_numbers<[1], [0], [0], [1], [0, 0, 1, 1], [], []>} : vector<256x128xf32>, vector<128x256xf32>, vector<256x256xf32> -> vector<256x256xf32>
    %9 = vector.broadcast %5 : vector<1x256xf32> to vector<256x256xf32>
    %10 = arith.addf %8, %9 : vector<256x256xf32>
    %cst_14 = arith.constant 5.000000e-01 : f32
    %11 = vector.broadcast %cst_14 : f32 to vector<256x256xf32>
    %12 = arith.mulf %11, %10 : vector<256x256xf32>
    %cst_15 = arith.constant 0.707106769 : f32
    %13 = vector.broadcast %cst_15 : f32 to vector<256x256xf32>
    %14 = arith.mulf %10, %13 : vector<256x256xf32>
    %15 = math.erf %14 : vector<256x256xf32>
    %cst_16 = arith.constant 1.000000e+00 : f32
    %16 = vector.broadcast %cst_16 : f32 to vector<256x256xf32>
    %17 = arith.addf %16, %15 : vector<256x256xf32>
    %18 = arith.mulf %12, %17 : vector<256x256xf32>
    %cst_17 = arith.constant dense<0.000000e+00> : vector<256x256xf32>
    %19 = tpu.matmul %18, %6, %cst_17 {dimension_numbers = #tpu.dot_dimension_numbers<[1], [0], [0], [1], [0, 0, 1, 1], [], []>} : vector<256x256xf32>, vector<256x256xf32>, vector<256x256xf32> -> vector<256x256xf32>
    %20 = vector.broadcast %7 : vector<1x256xf32> to vector<256x256xf32>
    %21 = arith.addf %19, %20 : vector<256x256xf32>
    %c0_18 = arith.constant 0 : index
    %c0_19 = arith.constant 0 : index
    %22 = vector.load %arg2[%c0_18, %c0_19] : memref<256x256xf32, #tpu.memory_space<vmem>>, vector<256x256xf32>
    %c0_20 = arith.constant 0 : index
    %c0_21 = arith.constant 0 : index
    %23 = vector.load %arg5[%c0_20, %c0_21] : memref<256x256xf32, #tpu.memory_space<vmem>>, vector<256x256xf32>
    %cst_22 = arith.constant dense<0.000000e+00> : vector<256x256xf32>
    %24 = tpu.matmul %22, %23, %cst_22 {dimension_numbers = #tpu.dot_dimension_numbers<[1], [0], [0], [1], [0, 0, 1, 1], [], []>} : vector<256x256xf32>, vector<256x256xf32>, vector<256x256xf32> -> vector<256x256xf32>
    %25 = arith.addf %24, %21 : vector<256x256xf32>
    %c0_23 = arith.constant 0 : index
    %c0_24 = arith.constant 0 : index
    %26 = vector.load %arg16[%c0_23, %c0_24] : memref<256x256xf32, #tpu.memory_space<vmem>>, vector<256x256xf32>
    tpu.vector_store %arg16[%c0_23, %c0_24], %25 {strides = array<i32>} : memref<256x256xf32, #tpu.memory_space<vmem>>, vector<256x256xf32>,
    %c0_25 = arith.constant 0 : index
    %c0_26 = arith.constant 0 : index
    %27 = vector.load %arg11[%c0_25, %c0_26] : memref<256x512xf32, #tpu.memory_space<vmem>>, vector<256x512xf32>
    %c0_27 = arith.constant 0 : index
    %c0_28 = arith.constant 0 : index
    %28 = vector.load %arg12[%c0_27, %c0_28] : memref<1x512xf32, #tpu.memory_space<vmem>>, vector<1x512xf32>
    %c0_29 = arith.constant 0 : index
    %c0_30 = arith.constant 0 : index
    %29 = vector.load %arg13[%c0_29, %c0_30] : memref<512x512xf32, #tpu.memory_space<vmem>>, vector<512x512xf32>
    %c0_31 = arith.constant 0 : index
    %c0_32 = arith.constant 0 : index
    %30 = vector.load %arg14[%c0_31, %c0_32] : memref<1x512xf32, #tpu.memory_space<vmem>>, vector<1x512xf32>
    %cst_33 = arith.constant dense<0.000000e+00> : vector<256x512xf32>
    %31 = tpu.matmul %25, %27, %cst_33 {dimension_numbers = #tpu.dot_dimension_numbers<[1], [0], [0], [1], [0, 0, 1, 1], [], []>} : vector<256x256xf32>, vector<256x512xf32>, vector<256x512xf32> -> vector<256x512xf32>
    %32 = vector.broadcast %28 : vector<1x512xf32> to vector<256x512xf32>
    %33 = arith.addf %31, %32 : vector<256x512xf32>
    %cst_34 = arith.constant 5.000000e-01 : f32
    %34 = vector.broadcast %cst_34 : f32 to vector<256x512xf32>
    %35 = arith.mulf %34, %33 : vector<256x512xf32>
    %cst_35 = arith.constant 0.707106769 : f32
    %36 = vector.broadcast %cst_35 : f32 to vector<256x512xf32>
    %37 = arith.mulf %33, %36 : vector<256x512xf32>
    %38 = math.erf %37 : vector<256x512xf32>
    %cst_36 = arith.constant 1.000000e+00 : f32
    %39 = vector.broadcast %cst_36 : f32 to vector<256x512xf32>
    %40 = arith.addf %39, %38 : vector<256x512xf32>
    %41 = arith.mulf %35, %40 : vector<256x512xf32>
    %cst_37 = arith.constant dense<0.000000e+00> : vector<256x512xf32>
    %42 = tpu.matmul %41, %29, %cst_37 {dimension_numbers = #tpu.dot_dimension_numbers<[1], [0], [0], [1], [0, 0, 1, 1], [], []>} : vector<256x512xf32>, vector<512x512xf32>, vector<256x512xf32> -> vector<256x512xf32>
    %43 = vector.broadcast %30 : vector<1x512xf32> to vector<256x512xf32>
    %44 = arith.addf %42, %43 : vector<256x512xf32>
    %c0_38 = arith.constant 0 : index
    %c0_39 = arith.constant 0 : index
    %45 = vector.load %arg1[%c0_38, %c0_39] : memref<256x512xf32, #tpu.memory_space<vmem>>, vector<256x512xf32>
    %c0_40 = arith.constant 0 : index
    %c0_41 = arith.constant 0 : index
    %46 = vector.load %arg4[%c0_40, %c0_41] : memref<512x512xf32, #tpu.memory_space<vmem>>, vector<512x512xf32>
    %cst_42 = arith.constant dense<0.000000e+00> : vector<256x512xf32>
    %47 = tpu.matmul %45, %46, %cst_42 {dimension_numbers = #tpu.dot_dimension_numbers<[1], [0], [0], [1], [0, 0, 1, 1], [], []>} : vector<256x512xf32>, vector<512x512xf32>, vector<256x512xf32> -> vector<256x512xf32>
    %48 = arith.addf %47, %44 : vector<256x512xf32>
    %c0_43 = arith.constant 0 : index
    %c0_44 = arith.constant 0 : index
    %49 = vector.load %arg15[%c0_43, %c0_44] : memref<256x512xf32, #tpu.memory_space<vmem>>, vector<256x512xf32>
    tpu.vector_store %arg15[%c0_43, %c0_44], %48 {strides = array<i32>} : memref<256x512xf32, #tpu.memory_space<vmem>>, vector<256x512xf32>,
    return
  }
  func.func @transform_0(%arg0: i32) -> (i32, i32) {
    %c0_i32 = arith.constant 0 : i32
    %c0_i32_0 = arith.constant 0 : i32
    return %arg0, %c0_i32 : i32, i32
  }
  func.func @transform_1(%arg0: i32) -> (i32, i32) {
    %c0_i32 = arith.constant 0 : i32
    %c0_i32_0 = arith.constant 0 : i32
    return %arg0, %c0_i32 : i32, i32
  }
  func.func @transform_2(%arg0: i32) -> (i32, i32) {
    %c0_i32 = arith.constant 0 : i32
    %c0_i32_0 = arith.constant 0 : i32
    return %arg0, %c0_i32 : i32, i32
  }
  func.func @transform_3(%arg0: i32) -> (i32, i32) {
    %c0_i32 = arith.constant 0 : i32
    %c0_i32_0 = arith.constant 0 : i32
    %c0_i32_1 = arith.constant 0 : i32
    return %c0_i32, %c0_i32_0 : i32, i32
  }
  func.func @transform_4(%arg0: i32) -> (i32, i32) {
    %c0_i32 = arith.constant 0 : i32
    %c0_i32_0 = arith.constant 0 : i32
    %c0_i32_1 = arith.constant 0 : i32
    return %c0_i32, %c0_i32_0 : i32, i32
  }
  func.func @transform_5(%arg0: i32) -> (i32, i32) {
    %c0_i32 = arith.constant 0 : i32
    %c0_i32_0 = arith.constant 0 : i32
    %c0_i32_1 = arith.constant 0 : i32
    return %c0_i32, %c0_i32_0 : i32, i32
  }
  func.func @transform_6(%arg0: i32) -> (i32, i32) {
    %c0_i32 = arith.constant 0 : i32
    %c0_i32_0 = arith.constant 0 : i32
    %c0_i32_1 = arith.constant 0 : i32
    return %c0_i32, %c0_i32_0 : i32, i32
  }
  func.func @transform_7(%arg0: i32) -> (i32, i32) {
    %c0_i32 = arith.constant 0 : i32
    %c0_i32_0 = arith.constant 0 : i32
    %c0_i32_1 = arith.constant 0 : i32
    return %c0_i32, %c0_i32_0 : i32, i32
  }
  func.func @transform_8(%arg0: i32) -> (i32, i32) {
    %c0_i32 = arith.constant 0 : i32
    %c0_i32_0 = arith.constant 0 : i32
    %c0_i32_1 = arith.constant 0 : i32
    return %c0_i32, %c0_i32_0 : i32, i32
  }
  func.func @transform_9(%arg0: i32) -> (i32, i32) {
    %c0_i32 = arith.constant 0 : i32
    %c0_i32_0 = arith.constant 0 : i32
    %c0_i32_1 = arith.constant 0 : i32
    return %c0_i32, %c0_i32_0 : i32, i32
  }
  func.func @transform_10(%arg0: i32) -> (i32, i32) {
    %c0_i32 = arith.constant 0 : i32
    %c0_i32_0 = arith.constant 0 : i32
    %c0_i32_1 = arith.constant 0 : i32
    return %c0_i32, %c0_i32_0 : i32, i32
  }
  func.func @transform_11(%arg0: i32) -> (i32, i32) {
    %c0_i32 = arith.constant 0 : i32
    %c0_i32_0 = arith.constant 0 : i32
    %c0_i32_1 = arith.constant 0 : i32
    return %c0_i32, %c0_i32_0 : i32, i32
  }
  func.func @transform_12(%arg0: i32) -> (i32, i32) {
    %c0_i32 = arith.constant 0 : i32
    %c0_i32_0 = arith.constant 0 : i32
    %c0_i32_1 = arith.constant 0 : i32
    return %c0_i32, %c0_i32_0 : i32, i32
  }
  func.func @transform_13(%arg0: i32) -> (i32, i32) {
    %c0_i32 = arith.constant 0 : i32
    %c0_i32_0 = arith.constant 0 : i32
    %c0_i32_1 = arith.constant 0 : i32
    return %c0_i32, %c0_i32_0 : i32, i32
  }
  func.func @transform_14(%arg0: i32) -> (i32, i32) {
    %c0_i32 = arith.constant 0 : i32
    %c0_i32_0 = arith.constant 0 : i32
    return %arg0, %c0_i32 : i32, i32
  }
  func.func @transform_15(%arg0: i32) -> (i32, i32) {
    %c0_i32 = arith.constant 0 : i32
    %c0_i32_0 = arith.constant 0 : i32
    return %arg0, %c0_i32 : i32, i32
  }
  func.func @transform_16(%arg0: i32) -> (i32, i32) {
    %c0_i32 = arith.constant 0 : i32
    %c0_i32_0 = arith.constant 0 : i32
    return %arg0, %c0_i32 : i32, i32
  }
}

</mosaic_0001>

<llo_original>
// kernel: tpu_custom_call.1
$region0: #{tpu_custom_call.1}
  #allocation0 [shape = 'u32[]', space=smem, size = 0x4, offset = 0x4, fixed_abs, tag = 'smem constant byte address 0x4 - core index']
  #allocation1 [shape = 'u32[144,128]{1,0:T(1,128)}', space=vmem, size = 0x12000, scoped, tag = 'internal scratch']
  %s0 = inlined_call_operand.hbm [shape: f32[2048,512], index: 0, kind: input, shape index: {}]
  %s1 = inlined_call_operand.hbm [shape: f32[2048,256], index: 1, kind: input, shape index: {}]
  %s2 = inlined_call_operand.hbm [shape: f32[2048,128], index: 2, kind: input, shape index: {}]
  %s3 = inlined_call_operand.hbm [shape: f32[512,512], index: 3, kind: input, shape index: {}]
  %s4 = inlined_call_operand.hbm [shape: f32[256,256], index: 4, kind: input, shape index: {}]
  %s5 = inlined_call_operand.hbm [shape: f32[128,128], index: 5, kind: input, shape index: {}]
  %s6 = inlined_call_operand.hbm [shape: f32[128,256], index: 6, kind: input, shape index: {}]
  %s7 = inlined_call_operand.hbm [shape: f32[1,256], index: 7, kind: input, shape index: {}]
  %s8 = inlined_call_operand.hbm [shape: f32[256,256], index: 8, kind: input, shape index: {}]
  %s9 = inlined_call_operand.hbm [shape: f32[1,256], index: 9, kind: input, shape index: {}]
  %s10 = inlined_call_operand.hbm [shape: f32[256,512], index: 10, kind: input, shape index: {}]
  %s11 = inlined_call_operand.hbm [shape: f32[1,512], index: 11, kind: input, shape index: {}]
  %s12 = inlined_call_operand.hbm [shape: f32[512,512], index: 12, kind: input, shape index: {}]
  %s13 = inlined_call_operand.hbm [shape: f32[1,512], index: 13, kind: input, shape index: {}]
  %s14 = inlined_call_operand.hbm [shape: f32[2048,512], index: 14, kind: output, shape index: {0}]
  %s15 = inlined_call_operand.hbm [shape: f32[2048,256], index: 15, kind: output, shape index: {1}]
  %s16 = inlined_call_operand.hbm [shape: f32[2048,128], index: 16, kind: output, shape index: {2}]
  %17 = xla_tuple %s14, %s15, %s16
  %s18 = sld [smem:[#allocation0]]
  $region161: #{tpu_custom_call.1} parent=0
    _
  %s20 = ssub.s32 1, %s18
  %s21 = scalar_select 0, %s20, %s18
  $region1: #{tpu_custom_call.1} parent=0
    #allocation2 [shape = 'u8[1048576]{0}', space=vmem, size = 0x100000, scoped, tag = 'input window, operand 0']
    #allocation3 [shape = 's32[2]{0}', space=sflag, size = 0x8, scoped, tag = 'scoped memory for tpu_custom_call.1']
    #allocation4 [shape = 's32[2]{0}', space=sflag, size = 0x8, scoped, tag = 'scoped memory for tpu_custom_call.1']
    #allocation5 [shape = 'u8[524288]{0}', space=vmem, size = 0x80000, scoped, tag = 'input window, operand 1']
    #allocation6 [shape = 's32[2]{0}', space=sflag, size = 0x8, scoped, tag = 'scoped memory for tpu_custom_call.1']
    #allocation7 [shape = 'u8[262144]{0}', space=vmem, size = 0x40000, scoped, tag = 'input window, operand 2']
    #allocation8 [shape = 'u8[1048576]{0}', space=vmem, size = 0x100000, scoped, tag = 'input window, operand 3, single buffered']
    #allocation9 [shape = 's32[1]{0}', space=sflag, size = 0x4, scoped, tag = 'scoped memory for tpu_custom_call.1']
    #allocation10 [shape = 'u8[262144]{0}', space=vmem, size = 0x40000, scoped, tag = 'input window, operand 4, single buffered']
    #allocation11 [shape = 'u8[65536]{0}', space=vmem, size = 0x10000, scoped, tag = 'input window, operand 5, single buffered']
    #allocation12 [shape = 's32[1]{0}', space=sflag, size = 0x4, scoped, tag = 'scoped memory for tpu_custom_call.1']
    #allocation13 [shape = 'u8[131072]{0}', space=vmem, size = 0x20000, scoped, tag = 'input window, operand 6, single buffered']
    #allocation14 [shape = 'u8[1024]{0}', space=vmem, size = 0x400, scoped, tag = 'input window, operand 7, single buffered']
    #allocation15 [shape = 's32[1]{0}', space=sflag, size = 0x4, scoped, tag = 'scoped memory for tpu_custom_call.1']
    #allocation16 [shape = 'u8[262144]{0}', space=vmem, size = 0x40000, scoped, tag = 'input window, operand 8, single buffered']
    #allocation17 [shape = 'u8[1024]{0}', space=vmem, size = 0x400, scoped, tag = 'input window, operand 9, single buffered']
    #allocation18 [shape = 's32[1]{0}', space=sflag, size = 0x4, scoped, tag = 'scoped memory for tpu_custom_call.1']
    #allocation19 [shape = 'u8[524288]{0}', space=vmem, size = 0x80000, scoped, tag = 'input window, operand 10, single buffered']
    #allocation20 [shape = 'u8[2048]{0}', space=vmem, size = 0x800, scoped, tag = 'input window, operand 11, single buffered']
    #allocation21 [shape = 's32[1]{0}', space=sflag, size = 0x4, scoped, tag = 'scoped memory for tpu_custom_call.1']
    #allocation22 [shape = 'u8[1048576]{0}', space=vmem, size = 0x100000, scoped, tag = 'input window, operand 12, single buffered']
    #allocation23 [shape = 'u8[2048]{0}', space=vmem, size = 0x800, scoped, tag = 'input window, operand 13, single buffered']
    #allocation24 [shape = 's32[1]{0}', space=sflag, size = 0x4, scoped, tag = 'scoped memory for tpu_custom_call.1']
    #allocation25 [shape = 'u8[1048576]{0}', space=vmem, size = 0x100000, scoped, tag = 'output window, operand 0']
    #allocation26 [shape = 'u8[524288]{0}', space=vmem, size = 0x80000, scoped, tag = 'output window, operand 1']
    #allocation27 [shape = 's32[2]{0}', space=sflag, size = 0x8, scoped, tag = 'scoped memory for tpu_custom_call.1']
    #allocation28 [shape = 'u8[262144]{0}', space=vmem, size = 0x40000, scoped, tag = 'output window, operand 2']
    %22 = vsyncpa [#allocation3], 0
    %s23 = scalar_lea.sflag [#allocation3], 1
    %24 = vsyncpa %s23, 0
    %25 = vsyncpa [#allocation6], 0
    %s26 = scalar_lea.sflag [#allocation6], 1
    %27 = vsyncpa %s26, 0
    %28 = vsyncpa [#allocation9], 0
    %29 = vsyncpa [#allocation12], 0
    %30 = vsyncpa [#allocation15], 0
    %31 = vsyncpa [#allocation18], 0
    %32 = vsyncpa [#allocation21], 0
    %33 = vsyncpa [#allocation24], 0
    %34 = vsyncpa [#allocation4], 0
    %s35 = scalar_lea.sflag [#allocation4], 1
    %36 = vsyncpa %s35, 0
    %37 = vsyncpa [#allocation27], 0
    %s38 = scalar_lea.sflag [#allocation27], 1
    %39 = vsyncpa %s38, 0
    loop: start=0, step=1, limit=10
    $region2: #{tpu_custom_call.1} parent=1 // loop_pre_header
      _
    $region3: #{tpu_custom_call.1} parent=1 // loop_header
      %s41 = sphi 0, %s45
      %p42 = scmp.ge.s32.totalorder %s41, 10
      %s51 = sphi 0, %s53
      %s54 = sphi 0, %s51
      %s55 = sphi 0, %s54
      %s71 = sphi 0, %s55
      %s77 = sphi 0, %s79
      %s80 = sphi 0, %s77
      %s81 = sphi 0, %s80
      %s97 = sphi 0, %s81
      %s103 = sphi 0, %s105
      %s106 = sphi 0, %s103
      %s107 = sphi 0, %s106
      %s123 = sphi 0, %s107
      %s127 = sphi 0, %s127
      %s129 = sphi 0, %s127
      %s130 = sphi 0, %s129
      %s144 = sphi 0, %s130
      %s148 = sphi 0, %s148
      %s150 = sphi 0, %s148
      %s151 = sphi 0, %s150
      %s165 = sphi 0, %s151
      %s169 = sphi 0, %s169
      %s171 = sphi 0, %s169
      %s172 = sphi 0, %s171
      %s186 = sphi 0, %s172
      %s190 = sphi 0, %s190
      %s192 = sphi 0, %s190
      %s193 = sphi 0, %s192
      %s207 = sphi 0, %s193
      %s211 = sphi 0, %s211
      %s213 = sphi 0, %s211
      %s214 = sphi 0, %s213
      %s228 = sphi 0, %s214
      %s232 = sphi 0, %s232
      %s234 = sphi 0, %s232
      %s235 = sphi 0, %s234
      %s249 = sphi 0, %s235
      %s253 = sphi 0, %s253
      %s255 = sphi 0, %s253
      %s256 = sphi 0, %s255
      %s270 = sphi 0, %s256
      %s274 = sphi 0, %s274
      %s276 = sphi 0, %s274
      %s277 = sphi 0, %s276
      %s291 = sphi 0, %s277
      %s295 = sphi 0, %s295
      %s297 = sphi 0, %s295
      %s298 = sphi 0, %s297
      %s312 = sphi 0, %s298
      %s316 = sphi 0, %s316
      %s318 = sphi 0, %s316
      %s319 = sphi 0, %s318
      %s333 = sphi 0, %s319
      %s337 = sphi 0, %s337
      %s339 = sphi 0, %s337
      %s340 = sphi 0, %s339
      %s354 = sphi 0, %s340
      %s360 = sphi 0, %s362
      %s363 = sphi 0, %s360
      %s364 = sphi 0, %s363
      %s380 = sphi 0, %s364
      %s386 = sphi 0, %s388
      %s389 = sphi 0, %s386
      %s390 = sphi 0, %s389
      %s406 = sphi 0, %s390
      %s412 = sphi 0, %s414
      %s415 = sphi 0, %s412
      %s416 = sphi 0, %s415
      %s432 = sphi 0, %s416
    $region4: #{tpu_custom_call.1} parent=1 // loop_header_branch
      %44 = sbr.rel (%p42) target = $region8
    $region5: #{tpu_custom_call.1} parent=1 // loop_body
      %s46 = ssub.s32 %s41, 1
      %s47 = ssub.s32 %s41, 2
      %s48 = sadd.s32 %s41, 1
      %s49 = ssub.s32 %s41, %s48
      %p50 = scmp.eq.s32.totalorder %s49, 0
      %s52 = sadd.s32 %s51, 1
      %s53 = scalar_select %p50, %s51, %s52
      %p56 = pneg %p50
      %p57 = scmp.eq.s32.totalorder %s41, 7
      %p58 = por %p56, %p57
      %p59 = scmp.ne.s32.totalorder %s51, %s54
      %p60 = scmp.eq.s32.totalorder %s41, 0
      %p61 = por %p59, %p60
      %p62 = scmp.ne.s32.totalorder %s51, %s54
      %p63 = scmp.eq.s32.totalorder %s46, 7
      %p64 = por %p62, %p63
      %p65 = scmp.ne.s32.totalorder %s54, %s55
      %p66 = scmp.eq.s32.totalorder %s46, 0
      %p67 = por %p65, %p66
      %p68 = scmp.ne.s32.totalorder %s54, %s55
      %p69 = scmp.eq.s32.totalorder %s47, 7
      %p70 = por %p68, %p69
      %p72 = scmp.ne.s32.totalorder %s55, %s71
      %p73 = scmp.eq.s32.totalorder %s47, 0
      %p74 = por %p72, %p73
      %s75 = ssub.s32 %s41, %s48
      %p76 = scmp.eq.s32.totalorder %s75, 0
      %s78 = sadd.s32 %s77, 1
      %s79 = scalar_select %p76, %s77, %s78
      %p82 = pneg %p76
      %p83 = scmp.eq.s32.totalorder %s41, 7
      %p84 = por %p82, %p83
      %p85 = scmp.ne.s32.totalorder %s77, %s80
      %p86 = scmp.eq.s32.totalorder %s41, 0
      %p87 = por %p85, %p86
      %p88 = scmp.ne.s32.totalorder %s77, %s80
      %p89 = scmp.eq.s32.totalorder %s46, 7
      %p90 = por %p88, %p89
      %p91 = scmp.ne.s32.totalorder %s80, %s81
      %p92 = scmp.eq.s32.totalorder %s46, 0
      %p93 = por %p91, %p92
      %p94 = scmp.ne.s32.totalorder %s80, %s81
      %p95 = scmp.eq.s32.totalorder %s47, 7
      %p96 = por %p94, %p95
      %p98 = scmp.ne.s32.totalorder %s81, %s97
      %p99 = scmp.eq.s32.totalorder %s47, 0
      %p100 = por %p98, %p99
      %s101 = ssub.s32 %s41, %s48
      %p102 = scmp.eq.s32.totalorder %s101, 0
      %s104 = sadd.s32 %s103, 1
      %s105 = scalar_select %p102, %s103, %s104
      %p108 = pneg %p102
      %p109 = scmp.eq.s32.totalorder %s41, 7
      %p110 = por %p108, %p109
      %p111 = scmp.ne.s32.totalorder %s103, %s106
      %p112 = scmp.eq.s32.totalorder %s41, 0
      %p113 = por %p111, %p112
      %p114 = scmp.ne.s32.totalorder %s103, %s106
      %p115 = scmp.eq.s32.totalorder %s46, 7
      %p116 = por %p114, %p115
      %p117 = scmp.ne.s32.totalorder %s106, %s107
      %p118 = scmp.eq.s32.totalorder %s46, 0
      %p119 = por %p117, %p118
      %p120 = scmp.ne.s32.totalorder %s106, %s107
      %p121 = scmp.eq.s32.totalorder %s47, 7
      %p122 = por %p120, %p121
      %p124 = scmp.ne.s32.totalorder %s107, %s123
      %p125 = scmp.eq.s32.totalorder %s47, 0
      %p126 = por %p124, %p125
      %s128 = sadd.s32 %s127, 1
      %p131 = scmp.eq.s32.totalorder %s41, 7
      %p132 = scmp.ne.s32.totalorder %s127, %s129
      %p133 = scmp.eq.s32.totalorder %s41, 0
      %p134 = por %p132, %p133
      %p135 = scmp.ne.s32.totalorder %s127, %s129
      %p136 = scmp.eq.s32.totalorder %s46, 7
      %p137 = por %p135, %p136
      %p138 = scmp.ne.s32.totalorder %s129, %s130
      %p139 = scmp.eq.s32.totalorder %s46, 0
      %p140 = por %p138, %p139
      %p141 = scmp.ne.s32.totalorder %s129, %s130
      %p142 = scmp.eq.s32.totalorder %s47, 7
      %p143 = por %p141, %p142
      %p145 = scmp.ne.s32.totalorder %s130, %s144
      %p146 = scmp.eq.s32.totalorder %s47, 0
      %p147 = por %p145, %p146
      %s149 = sadd.s32 %s148, 1
      %p152 = scmp.eq.s32.totalorder %s41, 7
      %p153 = scmp.ne.s32.totalorder %s148, %s150
      %p154 = scmp.eq.s32.totalorder %s41, 0
      %p155 = por %p153, %p154
      %p156 = scmp.ne.s32.totalorder %s148, %s150
      %p157 = scmp.eq.s32.totalorder %s46, 7
      %p158 = por %p156, %p157
      %p159 = scmp.ne.s32.totalorder %s150, %s151
      %p160 = scmp.eq.s32.totalorder %s46, 0
      %p161 = por %p159, %p160
      %p162 = scmp.ne.s32.totalorder %s150, %s151
      %p163 = scmp.eq.s32.totalorder %s47, 7
      %p164 = por %p162, %p163
      %p166 = scmp.ne.s32.totalorder %s151, %s165
      %p167 = scmp.eq.s32.totalorder %s47, 0
      %p168 = por %p166, %p167
      %s170 = sadd.s32 %s169, 1
      %p173 = scmp.eq.s32.totalorder %s41, 7
      %p174 = scmp.ne.s32.totalorder %s169, %s171
      %p175 = scmp.eq.s32.totalorder %s41, 0
      %p176 = por %p174, %p175
      %p177 = scmp.ne.s32.totalorder %s169, %s171
      %p178 = scmp.eq.s32.totalorder %s46, 7
      %p179 = por %p177, %p178
      %p180 = scmp.ne.s32.totalorder %s171, %s172
      %p181 = scmp.eq.s32.totalorder %s46, 0
      %p182 = por %p180, %p181
      %p183 = scmp.ne.s32.totalorder %s171, %s172
      %p184 = scmp.eq.s32.totalorder %s47, 7
      %p185 = por %p183, %p184
      %p187 = scmp.ne.s32.totalorder %s172, %s186
      %p188 = scmp.eq.s32.totalorder %s47, 0
      %p189 = por %p187, %p188
      %s191 = sadd.s32 %s190, 1
      %p194 = scmp.eq.s32.totalorder %s41, 7
      %p195 = scmp.ne.s32.totalorder %s190, %s192
      %p196 = scmp.eq.s32.totalorder %s41, 0
      %p197 = por %p195, %p196
      %p198 = scmp.ne.s32.totalorder %s190, %s192
      %p199 = scmp.eq.s32.totalorder %s46, 7
      %p200 = por %p198, %p199
      %p201 = scmp.ne.s32.totalorder %s192, %s193
      %p202 = scmp.eq.s32.totalorder %s46, 0
      %p203 = por %p201, %p202
      %p204 = scmp.ne.s32.totalorder %s192, %s193
      %p205 = scmp.eq.s32.totalorder %s47, 7
      %p206 = por %p204, %p205
      %p208 = scmp.ne.s32.totalorder %s193, %s207
      %p209 = scmp.eq.s32.totalorder %s47, 0
      %p210 = por %p208, %p209
      %s212 = sadd.s32 %s211, 1
      %p215 = scmp.eq.s32.totalorder %s41, 7
      %p216 = scmp.ne.s32.totalorder %s211, %s213
      %p217 = scmp.eq.s32.totalorder %s41, 0
      %p218 = por %p216, %p217
      %p219 = scmp.ne.s32.totalorder %s211, %s213
      %p220 = scmp.eq.s32.totalorder %s46, 7
      %p221 = por %p219, %p220
      %p222 = scmp.ne.s32.totalorder %s213, %s214
      %p223 = scmp.eq.s32.totalorder %s46, 0
      %p224 = por %p222, %p223
      %p225 = scmp.ne.s32.totalorder %s213, %s214
      %p226 = scmp.eq.s32.totalorder %s47, 7
      %p227 = por %p225, %p226
      %p229 = scmp.ne.s32.totalorder %s214, %s228
      %p230 = scmp.eq.s32.totalorder %s47, 0
      %p231 = por %p229, %p230
      %s233 = sadd.s32 %s232, 1
      %p236 = scmp.eq.s32.totalorder %s41, 7
      %p237 = scmp.ne.s32.totalorder %s232, %s234
      %p238 = scmp.eq.s32.totalorder %s41, 0
      %p239 = por %p237, %p238
      %p240 = scmp.ne.s32.totalorder %s232, %s234
      %p241 = scmp.eq.s32.totalorder %s46, 7
      %p242 = por %p240, %p241
      %p243 = scmp.ne.s32.totalorder %s234, %s235
      %p244 = scmp.eq.s32.totalorder %s46, 0
      %p245 = por %p243, %p244
      %p246 = scmp.ne.s32.totalorder %s234, %s235
      %p247 = scmp.eq.s32.totalorder %s47, 7
      %p248 = por %p246, %p247
      %p250 = scmp.ne.s32.totalorder %s235, %s249
      %p251 = scmp.eq.s32.totalorder %s47, 0
      %p252 = por %p250, %p251
      %s254 = sadd.s32 %s253, 1
      %p257 = scmp.eq.s32.totalorder %s41, 7
      %p258 = scmp.ne.s32.totalorder %s253, %s255
      %p259 = scmp.eq.s32.totalorder %s41, 0
      %p260 = por %p258, %p259
      %p261 = scmp.ne.s32.totalorder %s253, %s255
      %p262 = scmp.eq.s32.totalorder %s46, 7
      %p263 = por %p261, %p262
      %p264 = scmp.ne.s32.totalorder %s255, %s256
      %p265 = scmp.eq.s32.totalorder %s46, 0
      %p266 = por %p264, %p265
      %p267 = scmp.ne.s32.totalorder %s255, %s256
      %p268 = scmp.eq.s32.totalorder %s47, 7
      %p269 = por %p267, %p268
      %p271 = scmp.ne.s32.totalorder %s256, %s270
      %p272 = scmp.eq.s32.totalorder %s47, 0
      %p273 = por %p271, %p272
      %s275 = sadd.s32 %s274, 1
      %p278 = scmp.eq.s32.totalorder %s41, 7
      %p279 = scmp.ne.s32.totalorder %s274, %s276
      %p280 = scmp.eq.s32.totalorder %s41, 0
      %p281 = por %p279, %p280
      %p282 = scmp.ne.s32.totalorder %s274, %s276
      %p283 = scmp.eq.s32.totalorder %s46, 7
      %p284 = por %p282, %p283
      %p285 = scmp.ne.s32.totalorder %s276, %s277
      %p286 = scmp.eq.s32.totalorder %s46, 0
      %p287 = por %p285, %p286
      %p288 = scmp.ne.s32.totalorder %s276, %s277
      %p289 = scmp.eq.s32.totalorder %s47, 7
      %p290 = por %p288, %p289
      %p292 = scmp.ne.s32.totalorder %s277, %s291
      %p293 = scmp.eq.s32.totalorder %s47, 0
      %p294 = por %p292, %p293
      %s296 = sadd.s32 %s295, 1
      %p299 = scmp.eq.s32.totalorder %s41, 7
      %p300 = scmp.ne.s32.totalorder %s295, %s297
      %p301 = scmp.eq.s32.totalorder %s41, 0
      %p302 = por %p300, %p301
      %p303 = scmp.ne.s32.totalorder %s295, %s297
      %p304 = scmp.eq.s32.totalorder %s46, 7
      %p305 = por %p303, %p304
      %p306 = scmp.ne.s32.totalorder %s297, %s298
      %p307 = scmp.eq.s32.totalorder %s46, 0
      %p308 = por %p306, %p307
      %p309 = scmp.ne.s32.totalorder %s297, %s298
      %p310 = scmp.eq.s32.totalorder %s47, 7
      %p311 = por %p309, %p310
      %p313 = scmp.ne.s32.totalorder %s298, %s312
      %p314 = scmp.eq.s32.totalorder %s47, 0
      %p315 = por %p313, %p314
      %s317 = sadd.s32 %s316, 1
      %p320 = scmp.eq.s32.totalorder %s41, 7
      %p321 = scmp.ne.s32.totalorder %s316, %s318
      %p322 = scmp.eq.s32.totalorder %s41, 0
      %p323 = por %p321, %p322
      %p324 = scmp.ne.s32.totalorder %s316, %s318
      %p325 = scmp.eq.s32.totalorder %s46, 7
      %p326 = por %p324, %p325
      %p327 = scmp.ne.s32.totalorder %s318, %s319
      %p328 = scmp.eq.s32.totalorder %s46, 0
      %p329 = por %p327, %p328
      %p330 = scmp.ne.s32.totalorder %s318, %s319
      %p331 = scmp.eq.s32.totalorder %s47, 7
      %p332 = por %p330, %p331
      %p334 = scmp.ne.s32.totalorder %s319, %s333
      %p335 = scmp.eq.s32.totalorder %s47, 0
      %p336 = por %p334, %p335
      %s338 = sadd.s32 %s337, 1
      %p341 = scmp.eq.s32.totalorder %s41, 7
      %p342 = scmp.ne.s32.totalorder %s337, %s339
      %p343 = scmp.eq.s32.totalorder %s41, 0
      %p344 = por %p342, %p343
      %p345 = scmp.ne.s32.totalorder %s337, %s339
      %p346 = scmp.eq.s32.totalorder %s46, 7
      %p347 = por %p345, %p346
      %p348 = scmp.ne.s32.totalorder %s339, %s340
      %p349 = scmp.eq.s32.totalorder %s46, 0
      %p350 = por %p348, %p349
      %p351 = scmp.ne.s32.totalorder %s339, %s340
      %p352 = scmp.eq.s32.totalorder %s47, 7
      %p353 = por %p351, %p352
      %p355 = scmp.ne.s32.totalorder %s340, %s354
      %p356 = scmp.eq.s32.totalorder %s47, 0
      %p357 = por %p355, %p356
      %s358 = ssub.s32 %s41, %s48
      %p359 = scmp.eq.s32.totalorder %s358, 0
      %s361 = sadd.s32 %s360, 1
      %s362 = scalar_select %p359, %s360, %s361
      %p365 = pneg %p359
      %p366 = scmp.eq.s32.totalorder %s41, 7
      %p367 = por %p365, %p366
      %p368 = scmp.ne.s32.totalorder %s360, %s363
      %p369 = scmp.eq.s32.totalorder %s41, 0
      %p370 = por %p368, %p369
      %p371 = scmp.ne.s32.totalorder %s360, %s363
      %p372 = scmp.eq.s32.totalorder %s46, 7
      %p373 = por %p371, %p372
      %p374 = scmp.ne.s32.totalorder %s363, %s364
      %p375 = scmp.eq.s32.totalorder %s46, 0
      %p376 = por %p374, %p375
      %p377 = scmp.ne.s32.totalorder %s363, %s364
      %p378 = scmp.eq.s32.totalorder %s47, 7
      %p379 = por %p377, %p378
      %p381 = scmp.ne.s32.totalorder %s364, %s380
      %p382 = scmp.eq.s32.totalorder %s47, 0
      %p383 = por %p381, %p382
      %s384 = ssub.s32 %s41, %s48
      %p385 = scmp.eq.s32.totalorder %s384, 0
      %s387 = sadd.s32 %s386, 1
      %s388 = scalar_select %p385, %s386, %s387
      %p391 = pneg %p385
      %p392 = scmp.eq.s32.totalorder %s41, 7
      %p393 = por %p391, %p392
      %p394 = scmp.ne.s32.totalorder %s386, %s389
      %p395 = scmp.eq.s32.totalorder %s41, 0
      %p396 = por %p394, %p395
      %p397 = scmp.ne.s32.totalorder %s386, %s389
      %p398 = scmp.eq.s32.totalorder %s46, 7
      %p399 = por %p397, %p398
      %p400 = scmp.ne.s32.totalorder %s389, %s390
      %p401 = scmp.eq.s32.totalorder %s46, 0
      %p402 = por %p400, %p401
      %p403 = scmp.ne.s32.totalorder %s389, %s390
      %p404 = scmp.eq.s32.totalorder %s47, 7
      %p405 = por %p403, %p404
      %p407 = scmp.ne.s32.totalorder %s390, %s406
      %p408 = scmp.eq.s32.totalorder %s47, 0
      %p409 = por %p407, %p408
      %s410 = ssub.s32 %s41, %s48
      %p411 = scmp.eq.s32.totalorder %s410, 0
      %s413 = sadd.s32 %s412, 1
      %s414 = scalar_select %p411, %s412, %s413
      %p417 = pneg %p411
      %p418 = scmp.eq.s32.totalorder %s41, 7
      %p419 = por %p417, %p418
      %p420 = scmp.ne.s32.totalorder %s412, %s415
      %p421 = scmp.eq.s32.totalorder %s41, 0
      %p422 = por %p420, %p421
      %p423 = scmp.ne.s32.totalorder %s412, %s415
      %p424 = scmp.eq.s32.totalorder %s46, 7
      %p425 = por %p423, %p424
      %p426 = scmp.ne.s32.totalorder %s415, %s416
      %p427 = scmp.eq.s32.totalorder %s46, 0
      %p428 = por %p426, %p427
      %p429 = scmp.ne.s32.totalorder %s415, %s416
      %p430 = scmp.eq.s32.totalorder %s47, 7
      %p431 = por %p429, %p430
      %p433 = scmp.ne.s32.totalorder %s416, %s432
      %p434 = scmp.eq.s32.totalorder %s47, 0
      %p435 = por %p433, %p434
      %p436 = scmp.le.s32.totalorder 1, %s41
      %p437 = scmp.lt.s32.totalorder %s41, 9
      %p438 = pnand %p436, %p437
      %p439 = pneg %p438
      // Predicated region
      $region9: #{tpu_custom_call.1} parent=5 // pred_check
        _
      $region10: #{tpu_custom_call.1} parent=5 // pred_check_branch
        %441 = sbr.rel (%p438) target = $region12
      $region11: #{tpu_custom_call.1} parent=5 // pred_region
        %s442 = ssub.s32 %s41, 1
        // Predicated region
        $region13: #{tpu_custom_call.1} parent=11 // pred_check
          %p443 = pneg %p140
        $region14: #{tpu_custom_call.1} parent=11 // pred_check_branch
          %445 = sbr.rel (%p443) target = $region16
        $region15: #{tpu_custom_call.1} parent=11 // pred_region
          %s447 = ssub.s32 32768, 32768
          %448 = vsyncadd [#allocation9], %s447
          %s449 = sshll.u32 [#allocation8], 4
          %s450 = int_to_ptr.vmem [resolvable:$true] %s449
          %455 = dma.hbm_to_vmem [thread:$0]  %s3, 32768, %s450, [#allocation9], 512, 512, 32
        $region16: #{tpu_custom_call.1} parent=11 // pred_fallthru
          _
        // Predicated region
        $region17: #{tpu_custom_call.1} parent=11 // pred_check
          %p456 = pneg %p161
        $region18: #{tpu_custom_call.1} parent=11 // pred_check_branch
          %458 = sbr.rel (%p456) target = $region20
        $region19: #{tpu_custom_call.1} parent=11 // pred_region
          %s460 = ssub.s32 8192, 8192
          %461 = vsyncadd [#allocation9], %s460
          %s462 = sshll.u32 [#allocation10], 4
          %s463 = int_to_ptr.vmem [resolvable:$true] %s462
          %468 = dma.hbm_to_vmem [thread:$0]  %s4, 8192, %s463, [#allocation9], 256, 256, 16
        $region20: #{tpu_custom_call.1} parent=11 // pred_fallthru
          _
        // Predicated region
        $region21: #{tpu_custom_call.1} parent=11 // pred_check
          %p469 = pneg %p182
        $region22: #{tpu_custom_call.1} parent=11 // pred_check_branch
          %471 = sbr.rel (%p469) target = $region24
        $region23: #{tpu_custom_call.1} parent=11 // pred_region
          %s473 = ssub.s32 2048, 2048
          %474 = vsyncadd [#allocation12], %s473
          %s475 = sshll.u32 [#allocation11], 4
          %s476 = int_to_ptr.vmem [resolvable:$true] %s475
          %481 = dma.hbm_to_vmem [thread:$0]  %s5, 2048, %s476, [#allocation12], 128, 128, 8
        $region24: #{tpu_custom_call.1} parent=11 // pred_fallthru
          _
        // Predicated region
        $region25: #{tpu_custom_call.1} parent=11 // pred_check
          %p482 = pneg %p203
        $region26: #{tpu_custom_call.1} parent=11 // pred_check_branch
          %484 = sbr.rel (%p482) target = $region28
        $region27: #{tpu_custom_call.1} parent=11 // pred_region
          %s486 = ssub.s32 4096, 4096
          %487 = vsyncadd [#allocation12], %s486
          %s488 = sshll.u32 [#allocation13], 4
          %s489 = int_to_ptr.vmem [resolvable:$true] %s488
          %494 = dma.hbm_to_vmem [thread:$0]  %s6, 4096, %s489, [#allocation12], 256, 256, 16
        $region28: #{tpu_custom_call.1} parent=11 // pred_fallthru
          _
        // Predicated region
        $region29: #{tpu_custom_call.1} parent=11 // pred_check
          %p495 = pneg %p224
        $region30: #{tpu_custom_call.1} parent=11 // pred_check_branch
          %497 = sbr.rel (%p495) target = $region32
        $region31: #{tpu_custom_call.1} parent=11 // pred_region
          %s499 = ssub.s32 32, 32
          %500 = vsyncadd [#allocation15], %s499
          %s502 = sshll.u32 [#allocation14], 4
          %s503 = int_to_ptr.vmem [resolvable:$true] %s502
          %505 = dma.hbm_to_vmem [thread:$0]  %s7, 32, %s503, [#allocation15]
        $region32: #{tpu_custom_call.1} parent=11 // pred_fallthru
          _
        // Predicated region
        $region33: #{tpu_custom_call.1} parent=11 // pred_check
          %p506 = pneg %p245
        $region34: #{tpu_custom_call.1} parent=11 // pred_check_branch
          %508 = sbr.rel (%p506) target = $region36
        $region35: #{tpu_custom_call.1} parent=11 // pred_region
          %s510 = ssub.s32 8192, 8192
          %511 = vsyncadd [#allocation15], %s510
          %s512 = sshll.u32 [#allocation16], 4
          %s513 = int_to_ptr.vmem [resolvable:$true] %s512
          %518 = dma.hbm_to_vmem [thread:$0]  %s8, 8192, %s513, [#allocation15], 256, 256, 16
        $region36: #{tpu_custom_call.1} parent=11 // pred_fallthru
          _
        // Predicated region
        $region37: #{tpu_custom_call.1} parent=11 // pred_check
          %p519 = pneg %p266
        $region38: #{tpu_custom_call.1} parent=11 // pred_check_branch
          %521 = sbr.rel (%p519) target = $region40
        $region39: #{tpu_custom_call.1} parent=11 // pred_region
          %s523 = ssub.s32 32, 32
          %524 = vsyncadd [#allocation18], %s523
          %s526 = sshll.u32 [#allocation17], 4
          %s527 = int_to_ptr.vmem [resolvable:$true] %s526
          %529 = dma.hbm_to_vmem [thread:$0]  %s9, 32, %s527, [#allocation18]
        $region40: #{tpu_custom_call.1} parent=11 // pred_fallthru
          _
        // Predicated region
        $region41: #{tpu_custom_call.1} parent=11 // pred_check
          %p530 = pneg %p287
        $region42: #{tpu_custom_call.1} parent=11 // pred_check_branch
          %532 = sbr.rel (%p530) target = $region44
        $region43: #{tpu_custom_call.1} parent=11 // pred_region
          %s534 = ssub.s32 16384, 16384
          %535 = vsyncadd [#allocation18], %s534
          %s536 = sshll.u32 [#allocation19], 4
          %s537 = int_to_ptr.vmem [resolvable:$true] %s536
          %542 = dma.hbm_to_vmem [thread:$0]  %s10, 16384, %s537, [#allocation18], 512, 512, 32
        $region44: #{tpu_custom_call.1} parent=11 // pred_fallthru
          _
        // Predicated region
        $region45: #{tpu_custom_call.1} parent=11 // pred_check
          %p543 = pneg %p308
        $region46: #{tpu_custom_call.1} parent=11 // pred_check_branch
          %545 = sbr.rel (%p543) target = $region48
        $region47: #{tpu_custom_call.1} parent=11 // pred_region
          %s547 = ssub.s32 64, 64
          %548 = vsyncadd [#allocation21], %s547
          %s550 = sshll.u32 [#allocation20], 4
          %s551 = int_to_ptr.vmem [resolvable:$true] %s550
          %553 = dma.hbm_to_vmem [thread:$0]  %s11, 64, %s551, [#allocation21]
        $region48: #{tpu_custom_call.1} parent=11 // pred_fallthru
          _
        // Predicated region
        $region49: #{tpu_custom_call.1} parent=11 // pred_check
          %p554 = pneg %p329
        $region50: #{tpu_custom_call.1} parent=11 // pred_check_branch
          %556 = sbr.rel (%p554) target = $region52
        $region51: #{tpu_custom_call.1} parent=11 // pred_region
          %s558 = ssub.s32 32768, 32768
          %559 = vsyncadd [#allocation21], %s558
          %s560 = sshll.u32 [#allocation22], 4
          %s561 = int_to_ptr.vmem [resolvable:$true] %s560
          %566 = dma.hbm_to_vmem [thread:$0]  %s12, 32768, %s561, [#allocation21], 512, 512, 32
        $region52: #{tpu_custom_call.1} parent=11 // pred_fallthru
          _
        // Predicated region
        $region53: #{tpu_custom_call.1} parent=11 // pred_check
          %p567 = pneg %p350
        $region54: #{tpu_custom_call.1} parent=11 // pred_check_branch
          %569 = sbr.rel (%p567) target = $region56
        $region55: #{tpu_custom_call.1} parent=11 // pred_region
          %s571 = ssub.s32 64, 64
          %572 = vsyncadd [#allocation24], %s571
          %s574 = sshll.u32 [#allocation23], 4
          %s575 = int_to_ptr.vmem [resolvable:$true] %s574
          %577 = dma.hbm_to_vmem [thread:$0]  %s13, 64, %s575, [#allocation24]
        $region56: #{tpu_custom_call.1} parent=11 // pred_fallthru
          _
      $region12: #{tpu_custom_call.1} parent=5 // pred_fallthru
        _
      %p578 = scmp.lt.s32.totalorder %s41, 8
      // Predicated region
      $region57: #{tpu_custom_call.1} parent=5 // pred_check
        %p579 = pneg %p578
      $region58: #{tpu_custom_call.1} parent=5 // pred_check_branch
        %581 = sbr.rel (%p579) target = $region60
      $region59: #{tpu_custom_call.1} parent=5 // pred_region
        // Predicated region
        $region61: #{tpu_custom_call.1} parent=59 // pred_check
          %p582 = pneg %p61
        $region62: #{tpu_custom_call.1} parent=59 // pred_check_branch
          %584 = sbr.rel (%p582) target = $region64
        $region63: #{tpu_custom_call.1} parent=59 // pred_region
          %s585 = sand.u32 %s51, 1
          %s586 = scalar_lea.sflag [#allocation3], %s585
          %s587 = sand.u32 %s51, 1
          %s588 = smul.addr %s587, 1024
          %s589 = scalar_lea.vmem [#allocation2], %s588
          %s590 = smul.u32 32, %s41
          %s592 = ssub.s32 16384, 16384
          %593 = vsyncadd %s586, %s592
          %s594 = smul.addr %s590, 4
          %s595 = smul.addr %s594, 128
          %s596 = scalar_lea.hbm %s0, %s595
          %s597 = sshll.u32 %s589, 4
          %s598 = int_to_ptr.vmem [resolvable:$true] %s597
          %603 = dma.hbm_to_vmem [thread:$0]  %s596, 16384, %s598, %s586, 512, 512, 32
        $region64: #{tpu_custom_call.1} parent=59 // pred_fallthru
          _
        // Predicated region
        $region65: #{tpu_custom_call.1} parent=59 // pred_check
          %p604 = pneg %p87
        $region66: #{tpu_custom_call.1} parent=59 // pred_check_branch
          %606 = sbr.rel (%p604) target = $region68
        $region67: #{tpu_custom_call.1} parent=59 // pred_region
          %s607 = sand.u32 %s41, 1
          %s608 = scalar_lea.sflag [#allocation6], %s607
          %s609 = sand.u32 %s77, 1
          %s610 = smul.addr %s609, 512
          %s611 = scalar_lea.vmem [#allocation5], %s610
          %s612 = smul.u32 32, %s41
          %s614 = ssub.s32 8192, 8192
          %615 = vsyncadd %s608, %s614
          %s616 = smul.addr %s612, 2
          %s617 = smul.addr %s616, 128
          %s618 = scalar_lea.hbm %s1, %s617
          %s619 = sshll.u32 %s611, 4
          %s620 = int_to_ptr.vmem [resolvable:$true] %s619
          %625 = dma.hbm_to_vmem [thread:$0]  %s618, 8192, %s620, %s608, 256, 256, 16
        $region68: #{tpu_custom_call.1} parent=59 // pred_fallthru
          _
        // Predicated region
        $region69: #{tpu_custom_call.1} parent=59 // pred_check
          %p626 = pneg %p113
        $region70: #{tpu_custom_call.1} parent=59 // pred_check_branch
          %628 = sbr.rel (%p626) target = $region72
        $region71: #{tpu_custom_call.1} parent=59 // pred_region
          %s629 = sand.u32 %s41, 1
          %s630 = scalar_lea.sflag [#allocation6], %s629
          %s631 = sand.u32 %s103, 1
          %s632 = smul.addr %s631, 256
          %s633 = scalar_lea.vmem [#allocation7], %s632
          %s634 = smul.u32 32, %s41
          %s636 = ssub.s32 4096, 4096
          %637 = vsyncadd %s630, %s636
          %s638 = smul.addr %s634, 128
          %s639 = scalar_lea.hbm %s2, %s638
          %s640 = sshll.u32 %s633, 4
          %s641 = int_to_ptr.vmem [resolvable:$true] %s640
          %646 = dma.hbm_to_vmem [thread:$0]  %s639, 4096, %s641, %s630, 128, 128, 8
        $region72: #{tpu_custom_call.1} parent=59 // pred_fallthru
          _
      $region60: #{tpu_custom_call.1} parent=5 // pred_fallthru
        _
      %p647 = scmp.le.s32.totalorder 1, %s41
      %p648 = scmp.lt.s32.totalorder %s41, 9
      %p649 = pnand %p647, %p648
      %p650 = pneg %p649
      // Predicated region
      $region73: #{tpu_custom_call.1} parent=5 // pred_check
        _
      $region74: #{tpu_custom_call.1} parent=5 // pred_check_branch
        %652 = sbr.rel (%p649) target = $region76
      $region75: #{tpu_custom_call.1} parent=5 // pred_region
        %s653 = ssub.s32 %s41, 1
        %s654 = sand.u32 %s54, 1
        %s655 = scalar_lea.sflag [#allocation3], %s654
        %s656 = sand.u32 %s54, 1
        %s657 = smul.addr %s656, 1024
        %s658 = scalar_lea.vmem [#allocation2], %s657
        // Predicated region
        $region77: #{tpu_custom_call.1} parent=75 // pred_check
          %p659 = pneg %p67
        $region78: #{tpu_custom_call.1} parent=75 // pred_check_branch
          %661 = sbr.rel (%p659) target = $region80
        $region79: #{tpu_custom_call.1} parent=75 // pred_region
          %662 = dma.done %s655, 16384
        $region80: #{tpu_custom_call.1} parent=75 // pred_fallthru
          _
        %s663 = sand.u32 %s46, 1
        %s664 = scalar_lea.sflag [#allocation6], %s663
        %s665 = sand.u32 %s80, 1
        %s666 = smul.addr %s665, 512
        %s667 = scalar_lea.vmem [#allocation5], %s666
        // Predicated region
        $region81: #{tpu_custom_call.1} parent=75 // pred_check
          %p668 = pneg %p93
        $region82: #{tpu_custom_call.1} parent=75 // pred_check_branch
          %670 = sbr.rel (%p668) target = $region84
        $region83: #{tpu_custom_call.1} parent=75 // pred_region
          %671 = dma.done %s664, 8192
        $region84: #{tpu_custom_call.1} parent=75 // pred_fallthru
          _
        %s672 = sand.u32 %s46, 1
        %s673 = scalar_lea.sflag [#allocation6], %s672
        %s674 = sand.u32 %s106, 1
        %s675 = smul.addr %s674, 256
        %s676 = scalar_lea.vmem [#allocation7], %s675
        // Predicated region
        $region85: #{tpu_custom_call.1} parent=75 // pred_check
          %p677 = pneg %p119
        $region86: #{tpu_custom_call.1} parent=75 // pred_check_branch
          %679 = sbr.rel (%p677) target = $region88
        $region87: #{tpu_custom_call.1} parent=75 // pred_region
          %680 = dma.done %s673, 4096
        $region88: #{tpu_custom_call.1} parent=75 // pred_fallthru
          _
        // Predicated region
        $region89: #{tpu_custom_call.1} parent=75 // pred_check
          %p681 = pneg %p140
        $region90: #{tpu_custom_call.1} parent=75 // pred_check_branch
          %683 = sbr.rel (%p681) target = $region92
        $region91: #{tpu_custom_call.1} parent=75 // pred_region
          %684 = dma.done [#allocation9], 32768
        $region92: #{tpu_custom_call.1} parent=75 // pred_fallthru
          _
        // Predicated region
        $region93: #{tpu_custom_call.1} parent=75 // pred_check
          %p685 = pneg %p161
        $region94: #{tpu_custom_call.1} parent=75 // pred_check_branch
          %687 = sbr.rel (%p685) target = $region96
        $region95: #{tpu_custom_call.1} parent=75 // pred_region
          %688 = dma.done [#allocation9], 8192
        $region96: #{tpu_custom_call.1} parent=75 // pred_fallthru
          _
        // Predicated region
        $region97: #{tpu_custom_call.1} parent=75 // pred_check
          %p689 = pneg %p182
        $region98: #{tpu_custom_call.1} parent=75 // pred_check_branch
          %691 = sbr.rel (%p689) target = $region100
        $region99: #{tpu_custom_call.1} parent=75 // pred_region
          %692 = dma.done [#allocation12], 2048
        $region100: #{tpu_custom_call.1} parent=75 // pred_fallthru
          _
        // Predicated region
        $region101: #{tpu_custom_call.1} parent=75 // pred_check
          %p693 = pneg %p203
        $region102: #{tpu_custom_call.1} parent=75 // pred_check_branch
          %695 = sbr.rel (%p693) target = $region104
        $region103: #{tpu_custom_call.1} parent=75 // pred_region
          %696 = dma.done [#allocation12], 4096
        $region104: #{tpu_custom_call.1} parent=75 // pred_fallthru
          _
        // Predicated region
        $region105: #{tpu_custom_call.1} parent=75 // pred_check
          %p697 = pneg %p224
        $region106: #{tpu_custom_call.1} parent=75 // pred_check_branch
          %699 = sbr.rel (%p697) target = $region108
        $region107: #{tpu_custom_call.1} parent=75 // pred_region
          %700 = dma.done [#allocation15], 32
        $region108: #{tpu_custom_call.1} parent=75 // pred_fallthru
          _
        // Predicated region
        $region109: #{tpu_custom_call.1} parent=75 // pred_check
          %p701 = pneg %p245
        $region110: #{tpu_custom_call.1} parent=75 // pred_check_branch
          %703 = sbr.rel (%p701) target = $region112
        $region111: #{tpu_custom_call.1} parent=75 // pred_region
          %704 = dma.done [#allocation15], 8192
        $region112: #{tpu_custom_call.1} parent=75 // pred_fallthru
          _
        // Predicated region
        $region113: #{tpu_custom_call.1} parent=75 // pred_check
          %p705 = pneg %p266
        $region114: #{tpu_custom_call.1} parent=75 // pred_check_branch
          %707 = sbr.rel (%p705) target = $region116
        $region115: #{tpu_custom_call.1} parent=75 // pred_region
          %708 = dma.done [#allocation18], 32
        $region116: #{tpu_custom_call.1} parent=75 // pred_fallthru
          _
        // Predicated region
        $region117: #{tpu_custom_call.1} parent=75 // pred_check
          %p709 = pneg %p287
        $region118: #{tpu_custom_call.1} parent=75 // pred_check_branch
          %711 = sbr.rel (%p709) target = $region120
        $region119: #{tpu_custom_call.1} parent=75 // pred_region
          %712 = dma.done [#allocation18], 16384
        $region120: #{tpu_custom_call.1} parent=75 // pred_fallthru
          _
        // Predicated region
        $region121: #{tpu_custom_call.1} parent=75 // pred_check
          %p713 = pneg %p308
        $region122: #{tpu_custom_call.1} parent=75 // pred_check_branch
          %715 = sbr.rel (%p713) target = $region124
        $region123: #{tpu_custom_call.1} parent=75 // pred_region
          %716 = dma.done [#allocation21], 64
        $region124: #{tpu_custom_call.1} parent=75 // pred_fallthru
          _
        // Predicated region
        $region125: #{tpu_custom_call.1} parent=75 // pred_check
          %p717 = pneg %p329
        $region126: #{tpu_custom_call.1} parent=75 // pred_check_branch
          %719 = sbr.rel (%p717) target = $region128
        $region127: #{tpu_custom_call.1} parent=75 // pred_region
          %720 = dma.done [#allocation21], 32768
        $region128: #{tpu_custom_call.1} parent=75 // pred_fallthru
          _
        // Predicated region
        $region129: #{tpu_custom_call.1} parent=75 // pred_check
          %p721 = pneg %p350
        $region130: #{tpu_custom_call.1} parent=75 // pred_check_branch
          %723 = sbr.rel (%p721) target = $region132
        $region131: #{tpu_custom_call.1} parent=75 // pred_region
          %724 = dma.done [#allocation24], 64
        $region132: #{tpu_custom_call.1} parent=75 // pred_fallthru
          _
        %s725 = sand.u32 %s54, 1
        %s726 = scalar_lea.sflag [#allocation3], %s725
        %s727 = sand.u32 %s54, 1
        %s728 = smul.addr %s727, 1024
        %s729 = scalar_lea.vmem [#allocation2], %s728
        %p730 = pneg %p67
        %p731 = pneg %p64
        %s732 = sand.u32 %s46, 1
        %s733 = scalar_lea.sflag [#allocation6], %s732
        %s734 = sand.u32 %s80, 1
        %s735 = smul.addr %s734, 512
        %s736 = scalar_lea.vmem [#allocation5], %s735
        %p737 = pneg %p93
        %p738 = pneg %p90
        %s739 = sand.u32 %s46, 1
        %s740 = scalar_lea.sflag [#allocation6], %s739
        %s741 = sand.u32 %s106, 1
        %s742 = smul.addr %s741, 256
        %s743 = scalar_lea.vmem [#allocation7], %s742
        %p744 = pneg %p119
        %p745 = pneg %p116
        %p746 = pneg %p140
        %p747 = pneg %p137
        %p748 = pneg %p161
        %p749 = pneg %p158
        %p750 = pneg %p182
        %p751 = pneg %p179
        %p752 = pneg %p203
        %p753 = pneg %p200
        %p754 = pneg %p224
        %p755 = pneg %p221
        %p756 = pneg %p245
        %p757 = pneg %p242
        %p758 = pneg %p266
        %p759 = pneg %p263
        %p760 = pneg %p287
        %p761 = pneg %p284
        %p762 = pneg %p308
        %p763 = pneg %p305
        %p764 = pneg %p329
        %p765 = pneg %p326
        %p766 = pneg %p350
        %p767 = pneg %p347
        %p768 = pneg %p376
        %p769 = pneg %p373
        %s770 = sand.u32 %s363, 1
        %s771 = scalar_lea.sflag [#allocation4], %s770
        %s772 = sand.u32 %s363, 1
        %s773 = smul.addr %s772, 1024
        %s774 = scalar_lea.vmem [#allocation25], %s773
        %p775 = pneg %p402
        %p776 = pneg %p399
        %s777 = sand.u32 %s46, 1
        %s778 = scalar_lea.sflag [#allocation27], %s777
        %s779 = sand.u32 %s389, 1
        %s780 = smul.addr %s779, 512
        %s781 = scalar_lea.vmem [#allocation26], %s780
        %p782 = pneg %p428
        %p783 = pneg %p425
        %s784 = sand.u32 %s46, 1
        %s785 = scalar_lea.sflag [#allocation27], %s784
        %s786 = sand.u32 %s415, 1
        %s787 = smul.addr %s786, 256
        %s788 = scalar_lea.vmem [#allocation28], %s787
        %s789 = smul.u32 32, %s46
        %s790 = smul.u32 32, %s46
        %s791 = smul.u32 32, %s46
        %s792 = smul.u32 32, %s46
        %s793 = smul.u32 32, %s46
        %s794 = smul.u32 32, %s46
        %v795 = vld [vmem:[%s676] sm:$0xff]
        %v796 = vld [vmem:[%s676 + $0x8] sm:$0xff]
        %v797 = vld [vmem:[%s676 + $0x10] sm:$0xff]
        %v798 = vld [vmem:[%s676 + $0x18] sm:$0xff]
        %v799 = vld [vmem:[%s676 + $0x20] sm:$0xff]
        %v800 = vld [vmem:[%s676 + $0x28] sm:$0xff]
        %v801 = vld [vmem:[%s676 + $0x30] sm:$0xff]
        %v802 = vld [vmem:[%s676 + $0x38] sm:$0xff]
        %v803 = vld [vmem:[%s676 + $0x40] sm:$0xff]
        %v804 = vld [vmem:[%s676 + $0x48] sm:$0xff]
        %v805 = vld [vmem:[%s676 + $0x50] sm:$0xff]
        %v806 = vld [vmem:[%s676 + $0x58] sm:$0xff]
        %v807 = vld [vmem:[%s676 + $0x60] sm:$0xff]
        %v808 = vld [vmem:[%s676 + $0x68] sm:$0xff]
        %v809 = vld [vmem:[%s676 + $0x70] sm:$0xff]
        %v810 = vld [vmem:[%s676 + $0x78] sm:$0xff]
        %v811 = vld [vmem:[%s676 + $0x80] sm:$0xff]
        %v812 = vld [vmem:[%s676 + $0x88] sm:$0xff]
        %v813 = vld [vmem:[%s676 + $0x90] sm:$0xff]
        %v814 = vld [vmem:[%s676 + $0x98] sm:$0xff]
        %v815 = vld [vmem:[%s676 + $0xa0] sm:$0xff]
        %v816 = vld [vmem:[%s676 + $0xa8] sm:$0xff]
        %v817 = vld [vmem:[%s676 + $0xb0] sm:$0xff]
        %v818 = vld [vmem:[%s676 + $0xb8] sm:$0xff]
        %v819 = vld [vmem:[%s676 + $0xc0] sm:$0xff]
        %v820 = vld [vmem:[%s676 + $0xc8] sm:$0xff]
        %v821 = vld [vmem:[%s676 + $0xd0] sm:$0xff]
        %v822 = vld [vmem:[%s676 + $0xd8] sm:$0xff]
        %v823 = vld [vmem:[%s676 + $0xe0] sm:$0xff]
        %v824 = vld [vmem:[%s676 + $0xe8] sm:$0xff]
        %v825 = vld [vmem:[%s676 + $0xf0] sm:$0xff]
        %v826 = vld [vmem:[%s676 + $0xf8] sm:$0xff]
        %v827 = vld [vmem:[#allocation11] sm:$0xff]
        %v828 = vld [vmem:[#allocation11 + $0x8] sm:$0xff]
        %v829 = vld [vmem:[#allocation11 + $0x10] sm:$0xff]
        %v830 = vld [vmem:[#allocation11 + $0x18] sm:$0xff]
        %v831 = vld [vmem:[#allocation11 + $0x20] sm:$0xff]
        %v832 = vld [vmem:[#allocation11 + $0x28] sm:$0xff]
        %v833 = vld [vmem:[#allocation11 + $0x30] sm:$0xff]
        %v834 = vld [vmem:[#allocation11 + $0x38] sm:$0xff]
        %v835 = vld [vmem:[#allocation11 + $0x40] sm:$0xff]
        %v836 = vld [vmem:[#allocation11 + $0x48] sm:$0xff]
        %v837 = vld [vmem:[#allocation11 + $0x50] sm:$0xff]
        %v838 = vld [vmem:[#allocation11 + $0x58] sm:$0xff]
        %v839 = vld [vmem:[#allocation11 + $0x60] sm:$0xff]
        %v840 = vld [vmem:[#allocation11 + $0x68] sm:$0xff]
        %v841 = vld [vmem:[#allocation11 + $0x70] sm:$0xff]
        %v842 = vld [vmem:[#allocation11 + $0x78] sm:$0xff]
        %843 = vmatprep.subr.mxu0 0.0
        %844 = vmatpush1.msra.mxu0 %v827
        %845 = vmatprep.subr.mxu0 0.0
        %846 = vmatpush1.msra.mxu0 %v828
        %847 = vmatprep.subr.mxu0 0.0
        %848 = vmatpush1.msra.mxu0 %v829
        %849 = vmatprep.subr.mxu0 0.0
        %850 = vmatpush1.msra.mxu0 %v830
        %851 = vmatprep.subr.mxu0 0.0
        %852 = vmatpush1.msra.mxu0 %v831
        %853 = vmatprep.subr.mxu0 0.0
        %854 = vmatpush1.msra.mxu0 %v832
        %855 = vmatprep.subr.mxu0 0.0
        %856 = vmatpush1.msra.mxu0 %v833
        %857 = vmatprep.subr.mxu0 0.0
        %858 = vmatpush1.msra.mxu0 %v834
        %859 = vmatprep.subr.mxu0 0.0
        %860 = vmatpush1.msra.mxu0 %v835
        %861 = vmatprep.subr.mxu0 0.0
        %862 = vmatpush1.msra.mxu0 %v836
        %863 = vmatprep.subr.mxu0 0.0
        %864 = vmatpush1.msra.mxu0 %v837
        %865 = vmatprep.subr.mxu0 0.0
        %866 = vmatpush1.msra.mxu0 %v838
        %867 = vmatprep.subr.mxu0 0.0
        %868 = vmatpush1.msra.mxu0 %v839
        %869 = vmatprep.subr.mxu0 0.0
        %870 = vmatpush1.msra.mxu0 %v840
        %871 = vmatprep.subr.mxu0 0.0
        %872 = vmatpush1.msra.mxu0 %v841
        %873 = vmatprep.subr.mxu0 0.0
        %874 = vmatpush1.msra.mxu0 %v842
        %875 = vmatprep.subr.mxu0 0.0
        %876 = vmatpush1.msra.mxu0 0.0
        %877 = vmatprep.subr.mxu0 0.0
        %878 = vmatpush1.msra.mxu0 0.0
        %879 = vmatprep.subr.mxu0 0.0
        %880 = vmatpush1.msra.mxu0 0.0
        %881 = vmatprep.subr.mxu0 0.0
        %882 = vmatpush1.msra.mxu0 0.0
        %883 = vmatprep.subr.mxu0 0.0
        %884 = vmatpush1.msra.mxu0 0.0
        %885 = vmatprep.subr.mxu0 0.0
        %886 = vmatpush1.msra.mxu0 0.0
        %887 = vmatprep.subr.mxu0 0.0
        %888 = vmatpush1.msra.mxu0 0.0
        %889 = vmatprep.subr.mxu0 0.0
        %890 = vmatpush1.msra.mxu0 0.0
        %891 = vmatprep.subr.mxu0 0.0
        %892 = vmatpush1.msra.mxu0 0.0
        %893 = vmatprep.subr.mxu0 0.0
        %894 = vmatpush1.msra.mxu0 0.0
        %895 = vmatprep.subr.mxu0 0.0
        %896 = vmatpush1.msra.mxu0 0.0
        %897 = vmatprep.subr.mxu0 0.0
        %898 = vmatpush1.msra.mxu0 0.0
        %899 = vmatprep.subr.mxu0 0.0
        %900 = vmatpush1.msra.mxu0 0.0
        %901 = vmatprep.subr.mxu0 0.0
        %902 = vmatpush1.msra.mxu0 0.0
        %903 = vmatprep.subr.mxu0 0.0
        %904 = vmatpush1.msra.mxu0 0.0
        %905 = vmatprep.subr.mxu0 0.0
        %906 = vmatpush1.msra.mxu0 0.0
        %907 = vmatprep.mubr.f32.mxu0 0.0
        %908 = vmatmul.mubr.f32.gmra.mrb[0].mxu0 %v795
        %v909 = vpop.f32.mrb[0].mxu0
        %v910 = vadd.f32 0.0, %v909
        %v911 = vpop.f32.mrb[0].mxu0
        %912 = vmatprep.mubr.f32.mxu0 0.0
        %913 = vmatmul.mubr.f32.gmra.mrb[0].mxu0 %v796
        %v914 = vpop.f32.mrb[0].mxu0
        %v915 = vadd.f32 0.0, %v914
        %v916 = vpop.f32.mrb[0].mxu0
        %917 = vmatprep.mubr.f32.mxu0 0.0
        %918 = vmatmul.mubr.f32.gmra.mrb[0].mxu0 %v797
        %v919 = vpop.f32.mrb[0].mxu0
        %v920 = vadd.f32 0.0, %v919
        %v921 = vpop.f32.mrb[0].mxu0
        %922 = vmatprep.mubr.f32.mxu0 0.0
        %923 = vmatmul.mubr.f32.gmra.mrb[0].mxu0 %v798
        %v924 = vpop.f32.mrb[0].mxu0
        %v925 = vadd.f32 0.0, %v924
        %v926 = vpop.f32.mrb[0].mxu0
        %927 = vmatprep.mubr.f32.mxu0 0.0
        %928 = vmatmul.mubr.f32.gmra.mrb[0].mxu0 %v799
        %v929 = vpop.f32.mrb[0].mxu0
        %v930 = vadd.f32 0.0, %v929
        %v931 = vpop.f32.mrb[0].mxu0
        %932 = vmatprep.mubr.f32.mxu0 0.0
        %933 = vmatmul.mubr.f32.gmra.mrb[0].mxu0 %v800
        %v934 = vpop.f32.mrb[0].mxu0
        %v935 = vadd.f32 0.0, %v934
        %v936 = vpop.f32.mrb[0].mxu0
        %937 = vmatprep.mubr.f32.mxu0 0.0
        %938 = vmatmul.mubr.f32.gmra.mrb[0].mxu0 %v801
        %v939 = vpop.f32.mrb[0].mxu0
        %v940 = vadd.f32 0.0, %v939
        %v941 = vpop.f32.mrb[0].mxu0
        %942 = vmatprep.mubr.f32.mxu0 0.0
        %943 = vmatmul.mubr.f32.gmra.mrb[0].mxu0 %v802
        %v944 = vpop.f32.mrb[0].mxu0
        %v945 = vadd.f32 0.0, %v944
        %v946 = vpop.f32.mrb[0].mxu0
        %947 = vmatprep.mubr.f32.mxu0 0.0
        %948 = vmatmul.mubr.f32.gmra.mrb[0].mxu0 %v803
        %v949 = vpop.f32.mrb[0].mxu0
        %v950 = vadd.f32 0.0, %v949
        %v951 = vpop.f32.mrb[0].mxu0
        %952 = vmatprep.mubr.f32.mxu0 0.0
        %953 = vmatmul.mubr.f32.gmra.mrb[0].mxu0 %v804
        %v954 = vpop.f32.mrb[0].mxu0
        %v955 = vadd.f32 0.0, %v954
        %v956 = vpop.f32.mrb[0].mxu0
        %957 = vmatprep.mubr.f32.mxu0 0.0
        %958 = vmatmul.mubr.f32.gmra.mrb[0].mxu0 %v805
        %v959 = vpop.f32.mrb[0].mxu0
        %v960 = vadd.f32 0.0, %v959
        %v961 = vpop.f32.mrb[0].mxu0
        %962 = vmatprep.mubr.f32.mxu0 0.0
        %963 = vmatmul.mubr.f32.gmra.mrb[0].mxu0 %v806
        %v964 = vpop.f32.mrb[0].mxu0
        %v965 = vadd.f32 0.0, %v964
        %v966 = vpop.f32.mrb[0].mxu0
        %967 = vmatprep.mubr.f32.mxu0 0.0
        %968 = vmatmul.mubr.f32.gmra.mrb[0].mxu0 %v807
        %v969 = vpop.f32.mrb[0].mxu0
        %v970 = vadd.f32 0.0, %v969
        %v971 = vpop.f32.mrb[0].mxu0
        %972 = vmatprep.mubr.f32.mxu0 0.0
        %973 = vmatmul.mubr.f32.gmra.mrb[0].mxu0 %v808
        %v974 = vpop.f32.mrb[0].mxu0
        %v975 = vadd.f32 0.0, %v974
        %v976 = vpop.f32.mrb[0].mxu0
        %977 = vmatprep.mubr.f32.mxu0 0.0
        %978 = vmatmul.mubr.f32.gmra.mrb[0].mxu0 %v809
        %v979 = vpop.f32.mrb[0].mxu0
        %v980 = vadd.f32 0.0, %v979
        %v981 = vpop.f32.mrb[0].mxu0
        %982 = vmatprep.mubr.f32.mxu0 0.0
        %983 = vmatmul.mubr.f32.gmra.mrb[0].mxu0 %v810
        %v984 = vpop.f32.mrb[0].mxu0
        %v985 = vadd.f32 0.0, %v984
        %v986 = vpop.f32.mrb[0].mxu0
        %987 = vmatprep.mubr.f32.mxu0 0.0
        %988 = vmatmul.mubr.f32.gmra.mrb[0].mxu0 %v811
        %v989 = vpop.f32.mrb[0].mxu0
        %v990 = vadd.f32 0.0, %v989
        %v991 = vpop.f32.mrb[0].mxu0
        %992 = vmatprep.mubr.f32.mxu0 0.0
        %993 = vmatmul.mubr.f32.gmra.mrb[0].mxu0 %v812
        %v994 = vpop.f32.mrb[0].mxu0
        %v995 = vadd.f32 0.0, %v994
        %v996 = vpop.f32.mrb[0].mxu0
        %997 = vmatprep.mubr.f32.mxu0 0.0
        %998 = vmatmul.mubr.f32.gmra.mrb[0].mxu0 %v813
        %v999 = vpop.f32.mrb[0].mxu0
        %v1000 = vadd.f32 0.0, %v999
        %v1001 = vpop.f32.mrb[0].mxu0
        %1002 = vmatprep.mubr.f32.mxu0 0.0
        %1003 = vmatmul.mubr.f32.gmra.mrb[0].mxu0 %v814
        %v1004 = vpop.f32.mrb[0].mxu0
        %v1005 = vadd.f32 0.0, %v1004
        %v1006 = vpop.f32.mrb[0].mxu0
        %1007 = vmatprep.mubr.f32.mxu0 0.0
        %1008 = vmatmul.mubr.f32.gmra.mrb[0].mxu0 %v815
        %v1009 = vpop.f32.mrb[0].mxu0
        %v1010 = vadd.f32 0.0, %v1009
        %v1011 = vpop.f32.mrb[0].mxu0
        %1012 = vmatprep.mubr.f32.mxu0 0.0
        %1013 = vmatmul.mubr.f32.gmra.mrb[0].mxu0 %v816
        %v1014 = vpop.f32.mrb[0].mxu0
        %v1015 = vadd.f32 0.0, %v1014
        %v1016 = vpop.f32.mrb[0].mxu0
        %1017 = vmatprep.mubr.f32.mxu0 0.0
        %1018 = vmatmul.mubr.f32.gmra.mrb[0].mxu0 %v817
        %v1019 = vpop.f32.mrb[0].mxu0
        %v1020 = vadd.f32 0.0, %v1019
        %v1021 = vpop.f32.mrb[0].mxu0
        %1022 = vmatprep.mubr.f32.mxu0 0.0
        %1023 = vmatmul.mubr.f32.gmra.mrb[0].mxu0 %v818
        %v1024 = vpop.f32.mrb[0].mxu0
        %v1025 = vadd.f32 0.0, %v1024
        %v1026 = vpop.f32.mrb[0].mxu0
        %1027 = vmatprep.mubr.f32.mxu0 0.0
        %1028 = vmatmul.mubr.f32.gmra.mrb[0].mxu0 %v819
        %v1029 = vpop.f32.mrb[0].mxu0
        %v1030 = vadd.f32 0.0, %v1029
        %v1031 = vpop.f32.mrb[0].mxu0
        %1032 = vmatprep.mubr.f32.mxu0 0.0
        %1033 = vmatmul.mubr.f32.gmra.mrb[0].mxu0 %v820
        %v1034 = vpop.f32.mrb[0].mxu0
        %v1035 = vadd.f32 0.0, %v1034
        %v1036 = vpop.f32.mrb[0].mxu0
        %1037 = vmatprep.mubr.f32.mxu0 0.0
        %1038 = vmatmul.mubr.f32.gmra.mrb[0].mxu0 %v821
        %v1039 = vpop.f32.mrb[0].mxu0
        %v1040 = vadd.f32 0.0, %v1039
        %v1041 = vpop.f32.mrb[0].mxu0
        %1042 = vmatprep.mubr.f32.mxu0 0.0
        %1043 = vmatmul.mubr.f32.gmra.mrb[0].mxu0 %v822
        %v1044 = vpop.f32.mrb[0].mxu0
        %v1045 = vadd.f32 0.0, %v1044
        %v1046 = vpop.f32.mrb[0].mxu0
        %1047 = vmatprep.mubr.f32.mxu0 0.0
        %1048 = vmatmul.mubr.f32.gmra.mrb[0].mxu0 %v823
        %v1049 = vpop.f32.mrb[0].mxu0
        %v1050 = vadd.f32 0.0, %v1049
        %v1051 = vpop.f32.mrb[0].mxu0
        %1052 = vmatprep.mubr.f32.mxu0 0.0
        %1053 = vmatmul.mubr.f32.gmra.mrb[0].mxu0 %v824
        %v1054 = vpop.f32.mrb[0].mxu0
        %v1055 = vadd.f32 0.0, %v1054
        %v1056 = vpop.f32.mrb[0].mxu0
        %1057 = vmatprep.mubr.f32.mxu0 0.0
        %1058 = vmatmul.mubr.f32.gmra.mrb[0].mxu0 %v825
        %v1059 = vpop.f32.mrb[0].mxu0
        %v1060 = vadd.f32 0.0, %v1059
        %v1061 = vpop.f32.mrb[0].mxu0
        %1062 = vmatprep.mubr.f32.mxu0 0.0
        %1063 = vmatmul.mubr.f32.gmra.mrb[0].mxu0 %v826
        %v1064 = vpop.f32.mrb[0].mxu0
        %v1065 = vadd.f32 0.0, %v1064
        %v1066 = vpop.f32.mrb[0].mxu0
        %1067 = vdwg.mxu0
        %1068 = vst [vmem:[%s788] sm:$0xff] %v910
        %1069 = vst [vmem:[%s788 + $0x8] sm:$0xff] %v915
        %1070 = vst [vmem:[%s788 + $0x10] sm:$0xff] %v920
        %1071 = vst [vmem:[%s788 + $0x18] sm:$0xff] %v925
        %1072 = vst [vmem:[%s788 + $0x20] sm:$0xff] %v930
        %1073 = vst [vmem:[%s788 + $0x28] sm:$0xff] %v935
        %1074 = vst [vmem:[%s788 + $0x30] sm:$0xff] %v940
        %1075 = vst [vmem:[%s788 + $0x38] sm:$0xff] %v945
        %1076 = vst [vmem:[%s788 + $0x40] sm:$0xff] %v950
        %1077 = vst [vmem:[%s788 + $0x48] sm:$0xff] %v955
        %1078 = vst [vmem:[%s788 + $0x50] sm:$0xff] %v960
        %1079 = vst [vmem:[%s788 + $0x58] sm:$0xff] %v965
        %1080 = vst [vmem:[%s788 + $0x60] sm:$0xff] %v970
        %1081 = vst [vmem:[%s788 + $0x68] sm:$0xff] %v975
        %1082 = vst [vmem:[%s788 + $0x70] sm:$0xff] %v980
        %1083 = vst [vmem:[%s788 + $0x78] sm:$0xff] %v985
        %1084 = vst [vmem:[%s788 + $0x80] sm:$0xff] %v990
        %1085 = vst [vmem:[%s788 + $0x88] sm:$0xff] %v995
        %1086 = vst [vmem:[%s788 + $0x90] sm:$0xff] %v1000
        %1087 = vst [vmem:[%s788 + $0x98] sm:$0xff] %v1005
        %1088 = vst [vmem:[%s788 + $0xa0] sm:$0xff] %v1010
        %1089 = vst [vmem:[%s788 + $0xa8] sm:$0xff] %v1015
        %1090 = vst [vmem:[%s788 + $0xb0] sm:$0xff] %v1020
        %1091 = vst [vmem:[%s788 + $0xb8] sm:$0xff] %v1025
        %1092 = vst [vmem:[%s788 + $0xc0] sm:$0xff] %v1030
        %1093 = vst [vmem:[%s788 + $0xc8] sm:$0xff] %v1035
        %1094 = vst [vmem:[%s788 + $0xd0] sm:$0xff] %v1040
        %1095 = vst [vmem:[%s788 + $0xd8] sm:$0xff] %v1045
        %1096 = vst [vmem:[%s788 + $0xe0] sm:$0xff] %v1050
        %1097 = vst [vmem:[%s788 + $0xe8] sm:$0xff] %v1055
        %1098 = vst [vmem:[%s788 + $0xf0] sm:$0xff] %v1060
        %1099 = vst [vmem:[%s788 + $0xf8] sm:$0xff] %v1065
        %v1100 = vld [vmem:[#allocation13] sm:$0xff]
        %v1101 = vld [vmem:[#allocation13 + $0x8] sm:$0xff]
        %v1102 = vld [vmem:[#allocation13 + $0x10] sm:$0xff]
        %v1103 = vld [vmem:[#allocation13 + $0x18] sm:$0xff]
        %v1104 = vld [vmem:[#allocation13 + $0x20] sm:$0xff]
        %v1105 = vld [vmem:[#allocation13 + $0x28] sm:$0xff]
        %v1106 = vld [vmem:[#allocation13 + $0x30] sm:$0xff]
        %v1107 = vld [vmem:[#allocation13 + $0x38] sm:$0xff]
        %v1108 = vld [vmem:[#allocation13 + $0x40] sm:$0xff]
        %v1109 = vld [vmem:[#allocation13 + $0x48] sm:$0xff]
        %v1110 = vld [vmem:[#allocation13 + $0x50] sm:$0xff]
        %v1111 = vld [vmem:[#allocation13 + $0x58] sm:$0xff]
        %v1112 = vld [vmem:[#allocation13 + $0x60] sm:$0xff]
        %v1113 = vld [vmem:[#allocation13 + $0x68] sm:$0xff]
        %v1114 = vld [vmem:[#allocation13 + $0x70] sm:$0xff]
        %v1115 = vld [vmem:[#allocation13 + $0x78] sm:$0xff]
        %v1116 = vld [vmem:[#allocation13 + $0x80] sm:$0xff]
        %v1117 = vld [vmem:[#allocation13 + $0x88] sm:$0xff]
        %v1118 = vld [vmem:[#allocation13 + $0x90] sm:$0xff]
        %v1119 = vld [vmem:[#allocation13 + $0x98] sm:$0xff]
        %v1120 = vld [vmem:[#allocation13 + $0xa0] sm:$0xff]
        %v1121 = vld [vmem:[#allocation13 + $0xa8] sm:$0xff]
        %v1122 = vld [vmem:[#allocation13 + $0xb0] sm:$0xff]
        %v1123 = vld [vmem:[#allocation13 + $0xb8] sm:$0xff]
        %v1124 = vld [vmem:[#allocation13 + $0xc0] sm:$0xff]
        %v1125 = vld [vmem:[#allocation13 + $0xc8] sm:$0xff]
        %v1126 = vld [vmem:[#allocation13 + $0xd0] sm:$0xff]
        %v1127 = vld [vmem:[#allocation13 + $0xd8] sm:$0xff]
        %v1128 = vld [vmem:[#allocation13 + $0xe0] sm:$0xff]
        %v1129 = vld [vmem:[#allocation13 + $0xe8] sm:$0xff]
        %v1130 = vld [vmem:[#allocation13 + $0xf0] sm:$0xff]
        %v1131 = vld [vmem:[#allocation13 + $0xf8] sm:$0xff]
        %v1132 = vld [vmem:[#allocation14] sm:$0x3]
        %v1133 = vld [vmem:[#allocation16] sm:$0xff]
        %v1134 = vld [vmem:[#allocation16 + $0x8] sm:$0xff]
        %v1135 = vld [vmem:[#allocation16 + $0x10] sm:$0xff]
        %v1136 = vld [vmem:[#allocation16 + $0x18] sm:$0xff]
        %v1137 = vld [vmem:[#allocation16 + $0x20] sm:$0xff]
        %v1138 = vld [vmem:[#allocation16 + $0x28] sm:$0xff]
        %v1139 = vld [vmem:[#allocation16 + $0x30] sm:$0xff]
        %v1140 = vld [vmem:[#allocation16 + $0x38] sm:$0xff]
        %v1141 = vld [vmem:[#allocation16 + $0x40] sm:$0xff]
        %v1142 = vld [vmem:[#allocation16 + $0x48] sm:$0xff]
        %v1143 = vld [vmem:[#allocation16 + $0x50] sm:$0xff]
        %v1144 = vld [vmem:[#allocation16 + $0x58] sm:$0xff]
        %v1145 = vld [vmem:[#allocation16 + $0x60] sm:$0xff]
        %v1146 = vld [vmem:[#allocation16 + $0x68] sm:$0xff]
        %v1147 = vld [vmem:[#allocation16 + $0x70] sm:$0xff]
        %v1148 = vld [vmem:[#allocation16 + $0x78] sm:$0xff]
        %v1149 = vld [vmem:[#allocation16 + $0x80] sm:$0xff]
        %v1150 = vld [vmem:[#allocation16 + $0x88] sm:$0xff]
        %v1151 = vld [vmem:[#allocation16 + $0x90] sm:$0xff]
        %v1152 = vld [vmem:[#allocation16 + $0x98] sm:$0xff]
        %v1153 = vld [vmem:[#allocation16 + $0xa0] sm:$0xff]
        %v1154 = vld [vmem:[#allocation16 + $0xa8] sm:$0xff]
        %v1155 = vld [vmem:[#allocation16 + $0xb0] sm:$0xff]
        %v1156 = vld [vmem:[#allocation16 + $0xb8] sm:$0xff]
        %v1157 = vld [vmem:[#allocation16 + $0xc0] sm:$0xff]
        %v1158 = vld [vmem:[#allocation16 + $0xc8] sm:$0xff]
        %v1159 = vld [vmem:[#allocation16 + $0xd0] sm:$0xff]
        %v1160 = vld [vmem:[#allocation16 + $0xd8] sm:$0xff]
        %v1161 = vld [vmem:[#allocation16 + $0xe0] sm:$0xff]
        %v1162 = vld [vmem:[#allocation16 + $0xe8] sm:$0xff]
        %v1163 = vld [vmem:[#allocation16 + $0xf0] sm:$0xff]
        %v1164 = vld [vmem:[#allocation16 + $0xf8] sm:$0xff]
        %v1165 = vld [vmem:[#allocation16 + $0x100] sm:$0xff]
        %v1166 = vld [vmem:[#allocation16 + $0x108] sm:$0xff]
        %v1167 = vld [vmem:[#allocation16 + $0x110] sm:$0xff]
        %v1168 = vld [vmem:[#allocation16 + $0x118] sm:$0xff]
        %v1169 = vld [vmem:[#allocation16 + $0x120] sm:$0xff]
        %v1170 = vld [vmem:[#allocation16 + $0x128] sm:$0xff]
        %v1171 = vld [vmem:[#allocation16 + $0x130] sm:$0xff]
        %v1172 = vld [vmem:[#allocation16 + $0x138] sm:$0xff]
        %v1173 = vld [vmem:[#allocation16 + $0x140] sm:$0xff]
        %v1174 = vld [vmem:[#allocation16 + $0x148] sm:$0xff]
        %v1175 = vld [vmem:[#allocation16 + $0x150] sm:$0xff]
        %v1176 = vld [vmem:[#allocation16 + $0x158] sm:$0xff]
        %v1177 = vld [vmem:[#allocation16 + $0x160] sm:$0xff]
        %v1178 = vld [vmem:[#allocation16 + $0x168] sm:$0xff]
        %v1179 = vld [vmem:[#allocation16 + $0x170] sm:$0xff]
        %v1180 = vld [vmem:[#allocation16 + $0x178] sm:$0xff]
        %v1181 = vld [vmem:[#allocation16 + $0x180] sm:$0xff]
        %v1182 = vld [vmem:[#allocation16 + $0x188] sm:$0xff]
        %v1183 = vld [vmem:[#allocation16 + $0x190] sm:$0xff]
        %v1184 = vld [vmem:[#allocation16 + $0x198] sm:$0xff]
        %v1185 = vld [vmem:[#allocation16 + $0x1a0] sm:$0xff]
        %v1186 = vld [vmem:[#allocation16 + $0x1a8] sm:$0xff]
        %v1187 = vld [vmem:[#allocation16 + $0x1b0] sm:$0xff]
        %v1188 = vld [vmem:[#allocation16 + $0x1b8] sm:$0xff]
        %v1189 = vld [vmem:[#allocation16 + $0x1c0] sm:$0xff]
        %v1190 = vld [vmem:[#allocation16 + $0x1c8] sm:$0xff]
        %v1191 = vld [vmem:[#allocation16 + $0x1d0] sm:$0xff]
        %v1192 = vld [vmem:[#allocation16 + $0x1d8] sm:$0xff]
        %v1193 = vld [vmem:[#allocation16 + $0x1e0] sm:$0xff]
        %v1194 = vld [vmem:[#allocation16 + $0x1e8] sm:$0xff]
        %v1195 = vld [vmem:[#allocation16 + $0x1f0] sm:$0xff]
        %v1196 = vld [vmem:[#allocation16 + $0x1f8] sm:$0xff]
        %v1197 = vld [vmem:[#allocation17] sm:$0x3]
        %v1199 = vlaneseq
        %v1200 = vshrl.u32 %v1199, 7
        %v1201 = vsub.s32 0, %v1200
        %v1202 = vrot.slane %v1132, %v1201
        %v1203 = vlaneseq
        %v1204 = vshrl.u32 %v1203, 7
        %v1205 = vsub.s32 1, %v1204
        %v1206 = vrot.slane %v1132, %v1205
        %1209 = vmatprep.subr.mxu0 %v1101
        %1210 = vmatpush1.msra.mxu0 %v1100
        %1211 = vmatprep.subr.mxu0 %v1103
        %1212 = vmatpush1.msra.mxu0 %v1102
        %1213 = vmatprep.subr.mxu0 %v1105
        %1214 = vmatpush1.msra.mxu0 %v1104
        %1215 = vmatprep.subr.mxu0 %v1107
        %1216 = vmatpush1.msra.mxu0 %v1106
        %1217 = vmatprep.subr.mxu0 %v1109
        %1218 = vmatpush1.msra.mxu0 %v1108
        %1219 = vmatprep.subr.mxu0 %v1111
        %1220 = vmatpush1.msra.mxu0 %v1110
        %1221 = vmatprep.subr.mxu0 %v1113
        %1222 = vmatpush1.msra.mxu0 %v1112
        %1223 = vmatprep.subr.mxu0 %v1115
        %1224 = vmatpush1.msra.mxu0 %v1114
        %1225 = vmatprep.subr.mxu0 %v1117
        %1226 = vmatpush1.msra.mxu0 %v1116
        %1227 = vmatprep.subr.mxu0 %v1119
        %1228 = vmatpush1.msra.mxu0 %v1118
        %1229 = vmatprep.subr.mxu0 %v1121
        %1230 = vmatpush1.msra.mxu0 %v1120
        %1231 = vmatprep.subr.mxu0 %v1123
        %1232 = vmatpush1.msra.mxu0 %v1122
        %1233 = vmatprep.subr.mxu0 %v1125
        %1234 = vmatpush1.msra.mxu0 %v1124
        %1235 = vmatprep.subr.mxu0 %v1127
        %1236 = vmatpush1.msra.mxu0 %v1126
        %1237 = vmatprep.subr.mxu0 %v1129
        %1238 = vmatpush1.msra.mxu0 %v1128
        %1239 = vmatprep.subr.mxu0 %v1131
        %1240 = vmatpush1.msra.mxu0 %v1130
        %1241 = vmatprep.subr.mxu0 0.0
        %1242 = vmatpush1.msra.mxu0 0.0
        %1243 = vmatprep.subr.mxu0 0.0
        %1244 = vmatpush1.msra.mxu0 0.0
        %1245 = vmatprep.subr.mxu0 0.0
        %1246 = vmatpush1.msra.mxu0 0.0
        %1247 = vmatprep.subr.mxu0 0.0
        %1248 = vmatpush1.msra.mxu0 0.0
        %1249 = vmatprep.subr.mxu0 0.0
        %1250 = vmatpush1.msra.mxu0 0.0
        %1251 = vmatprep.subr.mxu0 0.0
        %1252 = vmatpush1.msra.mxu0 0.0
        %1253 = vmatprep.subr.mxu0 0.0
        %1254 = vmatpush1.msra.mxu0 0.0
        %1255 = vmatprep.subr.mxu0 0.0
        %1256 = vmatpush1.msra.mxu0 0.0
        %1257 = vmatprep.subr.mxu0 0.0
        %1258 = vmatpush1.msra.mxu0 0.0
        %1259 = vmatprep.subr.mxu0 0.0
        %1260 = vmatpush1.msra.mxu0 0.0
        %1261 = vmatprep.subr.mxu0 0.0
        %1262 = vmatpush1.msra.mxu0 0.0
        %1263 = vmatprep.subr.mxu0 0.0
        %1264 = vmatpush1.msra.mxu0 0.0
        %1265 = vmatprep.subr.mxu0 0.0
        %1266 = vmatpush1.msra.mxu0 0.0
        %1267 = vmatprep.subr.mxu0 0.0
        %1268 = vmatpush1.msra.mxu0 0.0
        %1269 = vmatprep.subr.mxu0 0.0
        %1270 = vmatpush1.msra.mxu0 0.0
        %1271 = vmatprep.subr.mxu0 0.0
        %1272 = vmatpush1.msra.mxu0 0.0
        %1273 = vmatprep.mubr.f32.mxu0 0.0
        %1274 = vmatmul.mubr.f32.gmra.mrb[0].mxu0 %v910
        %v1275 = vpop.f32.mrb[0].mxu0
        %v1276 = vadd.f32 %v1202, %v1275
        %v1277 = vpop.f32.mrb[0].mxu0
        %v1278 = vadd.f32 %v1206, %v1277
        %1279 = vmatprep.mubr.f32.mxu0 0.0
        %1280 = vmatmul.mubr.f32.gmra.mrb[0].mxu0 %v915
        %v1281 = vpop.f32.mrb[0].mxu0
        %v1282 = vadd.f32 %v1202, %v1281
        %v1283 = vpop.f32.mrb[0].mxu0
        %v1284 = vadd.f32 %v1206, %v1283
        %1285 = vmatprep.mubr.f32.mxu0 0.0
        %1286 = vmatmul.mubr.f32.gmra.mrb[0].mxu0 %v920
        %v1287 = vpop.f32.mrb[0].mxu0
        %v1288 = vadd.f32 %v1202, %v1287
        %v1289 = vpop.f32.mrb[0].mxu0
        %v1290 = vadd.f32 %v1206, %v1289
        %1291 = vmatprep.mubr.f32.mxu0 0.0
        %1292 = vmatmul.mubr.f32.gmra.mrb[0].mxu0 %v925
        %v1293 = vpop.f32.mrb[0].mxu0
        %v1294 = vadd.f32 %v1202, %v1293
        %v1295 = vpop.f32.mrb[0].mxu0
        %v1296 = vadd.f32 %v1206, %v1295
        %1297 = vmatprep.mubr.f32.mxu0 0.0
        %1298 = vmatmul.mubr.f32.gmra.mrb[0].mxu0 %v930
        %v1299 = vpop.f32.mrb[0].mxu0
        %v1300 = vadd.f32 %v1202, %v1299
        %v1301 = vpop.f32.mrb[0].mxu0
        %v1302 = vadd.f32 %v1206, %v1301
        %1303 = vmatprep.mubr.f32.mxu0 0.0
        %1304 = vmatmul.mubr.f32.gmra.mrb[0].mxu0 %v935
        %v1305 = vpop.f32.mrb[0].mxu0
        %v1306 = vadd.f32 %v1202, %v1305
        %v1307 = vpop.f32.mrb[0].mxu0
        %v1308 = vadd.f32 %v1206, %v1307
        %1309 = vmatprep.mubr.f32.mxu0 0.0
        %1310 = vmatmul.mubr.f32.gmra.mrb[0].mxu0 %v940
        %v1311 = vpop.f32.mrb[0].mxu0
        %v1312 = vadd.f32 %v1202, %v1311
        %v1313 = vpop.f32.mrb[0].mxu0
        %v1314 = vadd.f32 %v1206, %v1313
        %1315 = vmatprep.mubr.f32.mxu0 0.0
        %1316 = vmatmul.mubr.f32.gmra.mrb[0].mxu0 %v945
        %v1317 = vpop.f32.mrb[0].mxu0
        %v1318 = vadd.f32 %v1202, %v1317
        %v1319 = vpop.f32.mrb[0].mxu0
        %v1320 = vadd.f32 %v1206, %v1319
        %1321 = vmatprep.mubr.f32.mxu0 0.0
        %1322 = vmatmul.mubr.f32.gmra.mrb[0].mxu0 %v950
        %v1323 = vpop.f32.mrb[0].mxu0
        %v1324 = vadd.f32 %v1202, %v1323
        %v1325 = vpop.f32.mrb[0].mxu0
        %v1326 = vadd.f32 %v1206, %v1325
        %1327 = vmatprep.mubr.f32.mxu0 0.0
        %1328 = vmatmul.mubr.f32.gmra.mrb[0].mxu0 %v955
        %v1329 = vpop.f32.mrb[0].mxu0
        %v1330 = vadd.f32 %v1202, %v1329
        %v1331 = vpop.f32.mrb[0].mxu0
        %v1332 = vadd.f32 %v1206, %v1331
        %1333 = vmatprep.mubr.f32.mxu0 0.0
        %1334 = vmatmul.mubr.f32.gmra.mrb[0].mxu0 %v960
        %v1335 = vpop.f32.mrb[0].mxu0
        %v1336 = vadd.f32 %v1202, %v1335
        %v1337 = vpop.f32.mrb[0].mxu0
        %v1338 = vadd.f32 %v1206, %v1337
        %1339 = vmatprep.mubr.f32.mxu0 0.0
        %1340 = vmatmul.mubr.f32.gmra.mrb[0].mxu0 %v965
        %v1341 = vpop.f32.mrb[0].mxu0
        %v1342 = vadd.f32 %v1202, %v1341
        %v1343 = vpop.f32.mrb[0].mxu0
        %v1344 = vadd.f32 %v1206, %v1343
        %1345 = vmatprep.mubr.f32.mxu0 0.0
        %1346 = vmatmul.mubr.f32.gmra.mrb[0].mxu0 %v970
        %v1347 = vpop.f32.mrb[0].mxu0
        %v1348 = vadd.f32 %v1202, %v1347
        %v1349 = vpop.f32.mrb[0].mxu0
        %v1350 = vadd.f32 %v1206, %v1349
        %1351 = vmatprep.mubr.f32.mxu0 0.0
        %1352 = vmatmul.mubr.f32.gmra.mrb[0].mxu0 %v975
        %v1353 = vpop.f32.mrb[0].mxu0
        %v1354 = vadd.f32 %v1202, %v1353
        %v1355 = vpop.f32.mrb[0].mxu0
        %v1356 = vadd.f32 %v1206, %v1355
        %1357 = vmatprep.mubr.f32.mxu0 0.0
        %1358 = vmatmul.mubr.f32.gmra.mrb[0].mxu0 %v980
        %v1359 = vpop.f32.mrb[0].mxu0
        %v1360 = vadd.f32 %v1202, %v1359
        %v1361 = vpop.f32.mrb[0].mxu0
        %v1362 = vadd.f32 %v1206, %v1361
        %1363 = vmatprep.mubr.f32.mxu0 0.0
        %1364 = vmatmul.mubr.f32.gmra.mrb[0].mxu0 %v985
        %v1365 = vpop.f32.mrb[0].mxu0
        %v1366 = vadd.f32 %v1202, %v1365
        %v1367 = vpop.f32.mrb[0].mxu0
        %v1368 = vadd.f32 %v1206, %v1367
        %1369 = vmatprep.mubr.f32.mxu0 0.0
        %1370 = vmatmul.mubr.f32.gmra.mrb[0].mxu0 %v990
        %v1371 = vpop.f32.mrb[0].mxu0
        %v1372 = vadd.f32 %v1202, %v1371
        %v1373 = vpop.f32.mrb[0].mxu0
        %v1374 = vadd.f32 %v1206, %v1373
        %1375 = vmatprep.mubr.f32.mxu0 0.0
        %1376 = vmatmul.mubr.f32.gmra.mrb[0].mxu0 %v995
        %v1377 = vpop.f32.mrb[0].mxu0
        %v1378 = vadd.f32 %v1202, %v1377
        %v1379 = vpop.f32.mrb[0].mxu0
        %v1380 = vadd.f32 %v1206, %v1379
        %1381 = vmatprep.mubr.f32.mxu0 0.0
        %1382 = vmatmul.mubr.f32.gmra.mrb[0].mxu0 %v1000
        %v1383 = vpop.f32.mrb[0].mxu0
        %v1384 = vadd.f32 %v1202, %v1383
        %v1385 = vpop.f32.mrb[0].mxu0
        %v1386 = vadd.f32 %v1206, %v1385
        %1387 = vmatprep.mubr.f32.mxu0 0.0
        %1388 = vmatmul.mubr.f32.gmra.mrb[0].mxu0 %v1005
        %v1389 = vpop.f32.mrb[0].mxu0
        %v1390 = vadd.f32 %v1202, %v1389
        %v1391 = vpop.f32.mrb[0].mxu0
        %v1392 = vadd.f32 %v1206, %v1391
        %1393 = vmatprep.mubr.f32.mxu0 0.0
        %1394 = vmatmul.mubr.f32.gmra.mrb[0].mxu0 %v1010
        %v1395 = vpop.f32.mrb[0].mxu0
        %v1396 = vadd.f32 %v1202, %v1395
        %v1397 = vpop.f32.mrb[0].mxu0
        %v1398 = vadd.f32 %v1206, %v1397
        %1399 = vmatprep.mubr.f32.mxu0 0.0
        %1400 = vmatmul.mubr.f32.gmra.mrb[0].mxu0 %v1015
        %v1401 = vpop.f32.mrb[0].mxu0
        %v1402 = vadd.f32 %v1202, %v1401
        %v1403 = vpop.f32.mrb[0].mxu0
        %v1404 = vadd.f32 %v1206, %v1403
        %1405 = vmatprep.mubr.f32.mxu0 0.0
        %1406 = vmatmul.mubr.f32.gmra.mrb[0].mxu0 %v1020
        %v1407 = vpop.f32.mrb[0].mxu0
        %v1408 = vadd.f32 %v1202, %v1407
        %v1409 = vpop.f32.mrb[0].mxu0
        %v1410 = vadd.f32 %v1206, %v1409
        %1411 = vmatprep.mubr.f32.mxu0 0.0
        %1412 = vmatmul.mubr.f32.gmra.mrb[0].mxu0 %v1025
        %v1413 = vpop.f32.mrb[0].mxu0
        %v1414 = vadd.f32 %v1202, %v1413
        %v1415 = vpop.f32.mrb[0].mxu0
        %v1416 = vadd.f32 %v1206, %v1415
        %1417 = vmatprep.mubr.f32.mxu0 0.0
        %1418 = vmatmul.mubr.f32.gmra.mrb[0].mxu0 %v1030
        %v1419 = vpop.f32.mrb[0].mxu0
        %v1420 = vadd.f32 %v1202, %v1419
        %v1421 = vpop.f32.mrb[0].mxu0
        %v1422 = vadd.f32 %v1206, %v1421
        %1423 = vmatprep.mubr.f32.mxu0 0.0
        %1424 = vmatmul.mubr.f32.gmra.mrb[0].mxu0 %v1035
        %v1425 = vpop.f32.mrb[0].mxu0
        %v1426 = vadd.f32 %v1202, %v1425
        %v1427 = vpop.f32.mrb[0].mxu0
        %v1428 = vadd.f32 %v1206, %v1427
        %1429 = vmatprep.mubr.f32.mxu0 0.0
        %1430 = vmatmul.mubr.f32.gmra.mrb[0].mxu0 %v1040
        %v1431 = vpop.f32.mrb[0].mxu0
        %v1432 = vadd.f32 %v1202, %v1431
        %v1433 = vpop.f32.mrb[0].mxu0
        %v1434 = vadd.f32 %v1206, %v1433
        %1435 = vmatprep.mubr.f32.mxu0 0.0
        %1436 = vmatmul.mubr.f32.gmra.mrb[0].mxu0 %v1045
        %v1437 = vpop.f32.mrb[0].mxu0
        %v1438 = vadd.f32 %v1202, %v1437
        %v1439 = vpop.f32.mrb[0].mxu0
        %v1440 = vadd.f32 %v1206, %v1439
        %1441 = vmatprep.mubr.f32.mxu0 0.0
        %1442 = vmatmul.mubr.f32.gmra.mrb[0].mxu0 %v1050
        %v1443 = vpop.f32.mrb[0].mxu0
        %v1444 = vadd.f32 %v1202, %v1443
        %v1445 = vpop.f32.mrb[0].mxu0
        %v1446 = vadd.f32 %v1206, %v1445
        %1447 = vmatprep.mubr.f32.mxu0 0.0
        %1448 = vmatmul.mubr.f32.gmra.mrb[0].mxu0 %v1055
        %v1449 = vpop.f32.mrb[0].mxu0
        %v1450 = vadd.f32 %v1202, %v1449
        %v1451 = vpop.f32.mrb[0].mxu0
        %v1452 = vadd.f32 %v1206, %v1451
        %1453 = vmatprep.mubr.f32.mxu0 0.0
        %1454 = vmatmul.mubr.f32.gmra.mrb[0].mxu0 %v1060
        %v1455 = vpop.f32.mrb[0].mxu0
        %v1456 = vadd.f32 %v1202, %v1455
        %v1457 = vpop.f32.mrb[0].mxu0
        %v1458 = vadd.f32 %v1206, %v1457
        %1459 = vmatprep.mubr.f32.mxu0 0.0
        %1460 = vmatmul.mubr.f32.gmra.mrb[0].mxu0 %v1065
        %v1461 = vpop.f32.mrb[0].mxu0
        %v1462 = vadd.f32 %v1202, %v1461
        %v1463 = vpop.f32.mrb[0].mxu0
        %v1464 = vadd.f32 %v1206, %v1463
        %1465 = vdwg.mxu0
        %v1466 = vmul.f32 %v1276, 0.5
        %v1467 = vmul.f32 %v1278, 0.5
        %v1468 = vmul.f32 %v1282, 0.5
        %v1469 = vmul.f32 %v1284, 0.5
        %v1470 = vmul.f32 %v1288, 0.5
        %v1471 = vmul.f32 %v1290, 0.5
        %v1472 = vmul.f32 %v1294, 0.5
        %v1473 = vmul.f32 %v1296, 0.5
        %v1474 = vmul.f32 %v1300, 0.5
        %v1475 = vmul.f32 %v1302, 0.5
        %v1476 = vmul.f32 %v1306, 0.5
        %v1477 = vmul.f32 %v1308, 0.5
        %v1478 = vmul.f32 %v1312, 0.5
        %v1479 = vmul.f32 %v1314, 0.5
        %v1480 = vmul.f32 %v1318, 0.5
        %v1481 = vmul.f32 %v1320, 0.5
        %v1482 = vmul.f32 %v1324, 0.5
        %v1483 = vmul.f32 %v1326, 0.5
        %v1484 = vmul.f32 %v1330, 0.5
        %v1485 = vmul.f32 %v1332, 0.5
        %v1486 = vmul.f32 %v1336, 0.5
        %v1487 = vmul.f32 %v1338, 0.5
        %v1488 = vmul.f32 %v1342, 0.5
        %v1489 = vmul.f32 %v1344, 0.5
        %v1490 = vmul.f32 %v1348, 0.5
        %v1491 = vmul.f32 %v1350, 0.5
        %v1492 = vmul.f32 %v1354, 0.5
        %v1493 = vmul.f32 %v1356, 0.5
        %v1494 = vmul.f32 %v1360, 0.5
        %v1495 = vmul.f32 %v1362, 0.5
        %v1496 = vmul.f32 %v1366, 0.5
        %v1497 = vmul.f32 %v1368, 0.5
        %v1498 = vmul.f32 %v1372, 0.5
        %v1499 = vmul.f32 %v1374, 0.5
        %v1500 = vmul.f32 %v1378, 0.5
        %v1501 = vmul.f32 %v1380, 0.5
        %v1502 = vmul.f32 %v1384, 0.5
        %v1503 = vmul.f32 %v1386, 0.5
        %v1504 = vmul.f32 %v1390, 0.5
        %v1505 = vmul.f32 %v1392, 0.5
        %v1506 = vmul.f32 %v1396, 0.5
        %v1507 = vmul.f32 %v1398, 0.5
        %v1508 = vmul.f32 %v1402, 0.5
        %v1509 = vmul.f32 %v1404, 0.5
        %v1510 = vmul.f32 %v1408, 0.5
        %v1511 = vmul.f32 %v1410, 0.5
        %v1512 = vmul.f32 %v1414, 0.5
        %v1513 = vmul.f32 %v1416, 0.5
        %v1514 = vmul.f32 %v1420, 0.5
        %v1515 = vmul.f32 %v1422, 0.5
        %v1516 = vmul.f32 %v1426, 0.5
        %v1517 = vmul.f32 %v1428, 0.5
        %v1518 = vmul.f32 %v1432, 0.5
        %v1519 = vmul.f32 %v1434, 0.5
        %v1520 = vmul.f32 %v1438, 0.5
        %v1521 = vmul.f32 %v1440, 0.5
        %v1522 = vmul.f32 %v1444, 0.5
        %v1523 = vmul.f32 %v1446, 0.5
        %v1524 = vmul.f32 %v1450, 0.5
        %v1525 = vmul.f32 %v1452, 0.5
        %v1526 = vmul.f32 %v1456, 0.5
        %v1527 = vmul.f32 %v1458, 0.5
        %v1528 = vmul.f32 %v1462, 0.5
        %v1529 = vmul.f32 %v1464, 0.5
        %v1530 = vmul.f32 %v1276, 0.70710677
        %v1531 = vmul.f32 %v1278, 0.70710677
        %v1532 = vmul.f32 %v1282, 0.70710677
        %v1533 = vmul.f32 %v1284, 0.70710677
        %v1534 = vmul.f32 %v1288, 0.70710677
        %v1535 = vmul.f32 %v1290, 0.70710677
        %v1536 = vmul.f32 %v1294, 0.70710677
        %v1537 = vmul.f32 %v1296, 0.70710677
        %v1538 = vmul.f32 %v1300, 0.70710677
        %v1539 = vmul.f32 %v1302, 0.70710677
        %v1540 = vmul.f32 %v1306, 0.70710677
        %v1541 = vmul.f32 %v1308, 0.70710677
        %v1542 = vmul.f32 %v1312, 0.70710677
        %v1543 = vmul.f32 %v1314, 0.70710677
        %v1544 = vmul.f32 %v1318, 0.70710677
        %v1545 = vmul.f32 %v1320, 0.70710677
        %v1546 = vmul.f32 %v1324, 0.70710677
        %v1547 = vmul.f32 %v1326, 0.70710677
        %v1548 = vmul.f32 %v1330, 0.70710677
        %v1549 = vmul.f32 %v1332, 0.70710677
        %v1550 = vmul.f32 %v1336, 0.70710677
        %v1551 = vmul.f32 %v1338, 0.70710677
        %v1552 = vmul.f32 %v1342, 0.70710677
        %v1553 = vmul.f32 %v1344, 0.70710677
        %v1554 = vmul.f32 %v1348, 0.70710677
        %v1555 = vmul.f32 %v1350, 0.70710677
        %v1556 = vmul.f32 %v1354, 0.70710677
        %v1557 = vmul.f32 %v1356, 0.70710677
        %v1558 = vmul.f32 %v1360, 0.70710677
        %v1559 = vmul.f32 %v1362, 0.70710677
        %v1560 = vmul.f32 %v1366, 0.70710677
        %v1561 = vmul.f32 %v1368, 0.70710677
        %v1562 = vmul.f32 %v1372, 0.70710677
        %v1563 = vmul.f32 %v1374, 0.70710677
        %v1564 = vmul.f32 %v1378, 0.70710677
        %v1565 = vmul.f32 %v1380, 0.70710677
        %v1566 = vmul.f32 %v1384, 0.70710677
        %v1567 = vmul.f32 %v1386, 0.70710677
        %v1568 = vmul.f32 %v1390, 0.70710677
        %v1569 = vmul.f32 %v1392, 0.70710677
        %v1570 = vmul.f32 %v1396, 0.70710677
        %v1571 = vmul.f32 %v1398, 0.70710677
        %v1572 = vmul.f32 %v1402, 0.70710677
        %v1573 = vmul.f32 %v1404, 0.70710677
        %v1574 = vmul.f32 %v1408, 0.70710677
        %v1575 = vmul.f32 %v1410, 0.70710677
        %v1576 = vmul.f32 %v1414, 0.70710677
        %v1577 = vmul.f32 %v1416, 0.70710677
        %v1578 = vmul.f32 %v1420, 0.70710677
        %v1579 = vmul.f32 %v1422, 0.70710677
        %v1580 = vmul.f32 %v1426, 0.70710677
        %v1581 = vmul.f32 %v1428, 0.70710677
        %v1582 = vmul.f32 %v1432, 0.70710677
        %v1583 = vmul.f32 %v1434, 0.70710677
        %v1584 = vmul.f32 %v1438, 0.70710677
        %v1585 = vmul.f32 %v1440, 0.70710677
        %v1586 = vmul.f32 %v1444, 0.70710677
        %v1587 = vmul.f32 %v1446, 0.70710677
        %v1588 = vmul.f32 %v1450, 0.70710677
        %v1589 = vmul.f32 %v1452, 0.70710677
        %v1590 = vmul.f32 %v1456, 0.70710677
        %v1591 = vmul.f32 %v1458, 0.70710677
        %v1592 = vmul.f32 %v1462, 0.70710677
        %v1593 = vmul.f32 %v1464, 0.70710677
        %v1594 = verf.f32.pop %v1530
        %v1595 = verf.f32.pop %v1531
        %v1596 = verf.f32.pop %v1532
        %v1597 = verf.f32.pop %v1533
        %v1598 = verf.f32.pop %v1534
        %v1599 = verf.f32.pop %v1535
        %v1600 = verf.f32.pop %v1536
        %v1601 = verf.f32.pop %v1537
        %v1602 = verf.f32.pop %v1538
        %v1603 = verf.f32.pop %v1539
        %v1604 = verf.f32.pop %v1540
        %v1605 = verf.f32.pop %v1541
        %v1606 = verf.f32.pop %v1542
        %v1607 = verf.f32.pop %v1543
        %v1608 = verf.f32.pop %v1544
        %v1609 = verf.f32.pop %v1545
        %v1610 = verf.f32.pop %v1546
        %v1611 = verf.f32.pop %v1547
        %v1612 = verf.f32.pop %v1548
        %v1613 = verf.f32.pop %v1549
        %v1614 = verf.f32.pop %v1550
        %v1615 = verf.f32.pop %v1551
        %v1616 = verf.f32.pop %v1552
        %v1617 = verf.f32.pop %v1553
        %v1618 = verf.f32.pop %v1554
        %v1619 = verf.f32.pop %v1555
        %v1620 = verf.f32.pop %v1556
        %v1621 = verf.f32.pop %v1557
        %v1622 = verf.f32.pop %v1558
        %v1623 = verf.f32.pop %v1559
        %v1624 = verf.f32.pop %v1560
        %v1625 = verf.f32.pop %v1561
        %v1626 = verf.f32.pop %v1562
        %v1627 = verf.f32.pop %v1563
        %v1628 = verf.f32.pop %v1564
        %v1629 = verf.f32.pop %v1565
        %v1630 = verf.f32.pop %v1566
        %v1631 = verf.f32.pop %v1567
        %v1632 = verf.f32.pop %v1568
        %v1633 = verf.f32.pop %v1569
        %v1634 = verf.f32.pop %v1570
        %v1635 = verf.f32.pop %v1571
        %v1636 = verf.f32.pop %v1572
        %v1637 = verf.f32.pop %v1573
        %v1638 = verf.f32.pop %v1574
        %v1639 = verf.f32.pop %v1575
        %v1640 = verf.f32.pop %v1576
        %v1641 = verf.f32.pop %v1577
        %v1642 = verf.f32.pop %v1578
        %v1643 = verf.f32.pop %v1579
        %v1644 = verf.f32.pop %v1580
        %v1645 = verf.f32.pop %v1581
        %v1646 = verf.f32.pop %v1582
        %v1647 = verf.f32.pop %v1583
        %v1648 = verf.f32.pop %v1584
        %v1649 = verf.f32.pop %v1585
        %v1650 = verf.f32.pop %v1586
        %v1651 = verf.f32.pop %v1587
        %v1652 = verf.f32.pop %v1588
        %v1653 = verf.f32.pop %v1589
        %v1654 = verf.f32.pop %v1590
        %v1655 = verf.f32.pop %v1591
        %v1656 = verf.f32.pop %v1592
        %v1657 = verf.f32.pop %v1593
        %v1658 = vadd.f32 %v1594, 1.0
        %v1659 = vadd.f32 %v1595, 1.0
        %v1660 = vadd.f32 %v1596, 1.0
        %v1661 = vadd.f32 %v1597, 1.0
        %v1662 = vadd.f32 %v1598, 1.0
        %v1663 = vadd.f32 %v1599, 1.0
        %v1664 = vadd.f32 %v1600, 1.0
        %v1665 = vadd.f32 %v1601, 1.0
        %v1666 = vadd.f32 %v1602, 1.0
        %v1667 = vadd.f32 %v1603, 1.0
        %v1668 = vadd.f32 %v1604, 1.0
        %v1669 = vadd.f32 %v1605, 1.0
        %v1670 = vadd.f32 %v1606, 1.0
        %v1671 = vadd.f32 %v1607, 1.0
        %v1672 = vadd.f32 %v1608, 1.0
        %v1673 = vadd.f32 %v1609, 1.0
        %v1674 = vadd.f32 %v1610, 1.0
        %v1675 = vadd.f32 %v1611, 1.0
        %v1676 = vadd.f32 %v1612, 1.0
        %v1677 = vadd.f32 %v1613, 1.0
        %v1678 = vadd.f32 %v1614, 1.0
        %v1679 = vadd.f32 %v1615, 1.0
        %v1680 = vadd.f32 %v1616, 1.0
        %v1681 = vadd.f32 %v1617, 1.0
        %v1682 = vadd.f32 %v1618, 1.0
        %v1683 = vadd.f32 %v1619, 1.0
        %v1684 = vadd.f32 %v1620, 1.0
        %v1685 = vadd.f32 %v1621, 1.0
        %v1686 = vadd.f32 %v1622, 1.0
        %v1687 = vadd.f32 %v1623, 1.0
        %v1688 = vadd.f32 %v1624, 1.0
        %v1689 = vadd.f32 %v1625, 1.0
        %v1690 = vadd.f32 %v1626, 1.0
        %v1691 = vadd.f32 %v1627, 1.0
        %v1692 = vadd.f32 %v1628, 1.0
        %v1693 = vadd.f32 %v1629, 1.0
        %v1694 = vadd.f32 %v1630, 1.0
        %v1695 = vadd.f32 %v1631, 1.0
        %v1696 = vadd.f32 %v1632, 1.0
        %v1697 = vadd.f32 %v1633, 1.0
        %v1698 = vadd.f32 %v1634, 1.0
        %v1699 = vadd.f32 %v1635, 1.0
        %v1700 = vadd.f32 %v1636, 1.0
        %v1701 = vadd.f32 %v1637, 1.0
        %v1702 = vadd.f32 %v1638, 1.0
        %v1703 = vadd.f32 %v1639, 1.0
        %v1704 = vadd.f32 %v1640, 1.0
        %v1705 = vadd.f32 %v1641, 1.0
        %v1706 = vadd.f32 %v1642, 1.0
        %v1707 = vadd.f32 %v1643, 1.0
        %v1708 = vadd.f32 %v1644, 1.0
        %v1709 = vadd.f32 %v1645, 1.0
        %v1710 = vadd.f32 %v1646, 1.0
        %v1711 = vadd.f32 %v1647, 1.0
        %v1712 = vadd.f32 %v1648, 1.0
        %v1713 = vadd.f32 %v1649, 1.0
        %v1714 = vadd.f32 %v1650, 1.0
        %v1715 = vadd.f32 %v1651, 1.0
        %v1716 = vadd.f32 %v1652, 1.0
        %v1717 = vadd.f32 %v1653, 1.0
        %v1718 = vadd.f32 %v1654, 1.0
        %v1719 = vadd.f32 %v1655, 1.0
        %v1720 = vadd.f32 %v1656, 1.0
        %v1721 = vadd.f32 %v1657, 1.0
        %v1722 = vmul.f32 %v1466, %v1658
        %v1723 = vmul.f32 %v1467, %v1659
        %v1724 = vmul.f32 %v1468, %v1660
        %v1725 = vmul.f32 %v1469, %v1661
        %v1726 = vmul.f32 %v1470, %v1662
        %v1727 = vmul.f32 %v1471, %v1663
        %v1728 = vmul.f32 %v1472, %v1664
        %v1729 = vmul.f32 %v1473, %v1665
        %v1730 = vmul.f32 %v1474, %v1666
        %v1731 = vmul.f32 %v1475, %v1667
        %v1732 = vmul.f32 %v1476, %v1668
        %v1733 = vmul.f32 %v1477, %v1669
        %v1734 = vmul.f32 %v1478, %v1670
        %v1735 = vmul.f32 %v1479, %v1671
        %v1736 = vmul.f32 %v1480, %v1672
        %v1737 = vmul.f32 %v1481, %v1673
        %v1738 = vmul.f32 %v1482, %v1674
        %v1739 = vmul.f32 %v1483, %v1675
        %v1740 = vmul.f32 %v1484, %v1676
        %v1741 = vmul.f32 %v1485, %v1677
        %v1742 = vmul.f32 %v1486, %v1678
        %v1743 = vmul.f32 %v1487, %v1679
        %v1744 = vmul.f32 %v1488, %v1680
        %v1745 = vmul.f32 %v1489, %v1681
        %v1746 = vmul.f32 %v1490, %v1682
        %v1747 = vmul.f32 %v1491, %v1683
        %v1748 = vmul.f32 %v1492, %v1684
        %v1749 = vmul.f32 %v1493, %v1685
        %v1750 = vmul.f32 %v1494, %v1686
        %v1751 = vmul.f32 %v1495, %v1687
        %v1752 = vmul.f32 %v1496, %v1688
        %v1753 = vmul.f32 %v1497, %v1689
        %v1754 = vmul.f32 %v1498, %v1690
        %v1755 = vmul.f32 %v1499, %v1691
        %v1756 = vmul.f32 %v1500, %v1692
        %v1757 = vmul.f32 %v1501, %v1693
        %v1758 = vmul.f32 %v1502, %v1694
        %v1759 = vmul.f32 %v1503, %v1695
        %v1760 = vmul.f32 %v1504, %v1696
        %v1761 = vmul.f32 %v1505, %v1697
        %v1762 = vmul.f32 %v1506, %v1698
        %v1763 = vmul.f32 %v1507, %v1699
        %v1764 = vmul.f32 %v1508, %v1700
        %v1765 = vmul.f32 %v1509, %v1701
        %v1766 = vmul.f32 %v1510, %v1702
        %v1767 = vmul.f32 %v1511, %v1703
        %v1768 = vmul.f32 %v1512, %v1704
        %v1769 = vmul.f32 %v1513, %v1705
        %v1770 = vmul.f32 %v1514, %v1706
        %v1771 = vmul.f32 %v1515, %v1707
        %v1772 = vmul.f32 %v1516, %v1708
        %v1773 = vmul.f32 %v1517, %v1709
        %v1774 = vmul.f32 %v1518, %v1710
        %v1775 = vmul.f32 %v1519, %v1711
        %v1776 = vmul.f32 %v1520, %v1712
        %v1777 = vmul.f32 %v1521, %v1713
        %v1778 = vmul.f32 %v1522, %v1714
        %v1779 = vmul.f32 %v1523, %v1715
        %v1780 = vmul.f32 %v1524, %v1716
        %v1781 = vmul.f32 %v1525, %v1717
        %v1782 = vmul.f32 %v1526, %v1718
        %v1783 = vmul.f32 %v1527, %v1719
        %v1784 = vmul.f32 %v1528, %v1720
        %v1785 = vmul.f32 %v1529, %v1721
        %v1787 = vlaneseq
        %v1788 = vshrl.u32 %v1787, 7
        %v1789 = vsub.s32 0, %v1788
        %v1790 = vrot.slane %v1197, %v1789
        %v1791 = vlaneseq
        %v1792 = vshrl.u32 %v1791, 7
        %v1793 = vsub.s32 1, %v1792
        %v1794 = vrot.slane %v1197, %v1793
        %1797 = vmatprep.subr.mxu0 %v1134
        %1798 = vmatpush1.msra.mxu0 %v1133
        %1799 = vmatprep.subr.mxu0 %v1136
        %1800 = vmatpush1.msra.mxu0 %v1135
        %1801 = vmatprep.subr.mxu0 %v1138
        %1802 = vmatpush1.msra.mxu0 %v1137
        %1803 = vmatprep.subr.mxu0 %v1140
        %1804 = vmatpush1.msra.mxu0 %v1139
        %1805 = vmatprep.subr.mxu0 %v1142
        %1806 = vmatpush1.msra.mxu0 %v1141
        %1807 = vmatprep.subr.mxu0 %v1144
        %1808 = vmatpush1.msra.mxu0 %v1143
        %1809 = vmatprep.subr.mxu0 %v1146
        %1810 = vmatpush1.msra.mxu0 %v1145
        %1811 = vmatprep.subr.mxu0 %v1148
        %1812 = vmatpush1.msra.mxu0 %v1147
        %1813 = vmatprep.subr.mxu0 %v1150
        %1814 = vmatpush1.msra.mxu0 %v1149
        %1815 = vmatprep.subr.mxu0 %v1152
        %1816 = vmatpush1.msra.mxu0 %v1151
        %1817 = vmatprep.subr.mxu0 %v1154
        %1818 = vmatpush1.msra.mxu0 %v1153
        %1819 = vmatprep.subr.mxu0 %v1156
        %1820 = vmatpush1.msra.mxu0 %v1155
        %1821 = vmatprep.subr.mxu0 %v1158
        %1822 = vmatpush1.msra.mxu0 %v1157
        %1823 = vmatprep.subr.mxu0 %v1160
        %1824 = vmatpush1.msra.mxu0 %v1159
        %1825 = vmatprep.subr.mxu0 %v1162
        %1826 = vmatpush1.msra.mxu0 %v1161
        %1827 = vmatprep.subr.mxu0 %v1164
        %1828 = vmatpush1.msra.mxu0 %v1163
        %1829 = vmatprep.subr.mxu0 %v1166
        %1830 = vmatpush1.msra.mxu0 %v1165
        %1831 = vmatprep.subr.mxu0 %v1168
        %1832 = vmatpush1.msra.mxu0 %v1167
        %1833 = vmatprep.subr.mxu0 %v1170
        %1834 = vmatpush1.msra.mxu0 %v1169
        %1835 = vmatprep.subr.mxu0 %v1172
        %1836 = vmatpush1.msra.mxu0 %v1171
        %1837 = vmatprep.subr.mxu0 %v1174
        %1838 = vmatpush1.msra.mxu0 %v1173
        %1839 = vmatprep.subr.mxu0 %v1176
        %1840 = vmatpush1.msra.mxu0 %v1175
        %1841 = vmatprep.subr.mxu0 %v1178
        %1842 = vmatpush1.msra.mxu0 %v1177
        %1843 = vmatprep.subr.mxu0 %v1180
        %1844 = vmatpush1.msra.mxu0 %v1179
        %1845 = vmatprep.subr.mxu0 %v1182
        %1846 = vmatpush1.msra.mxu0 %v1181
        %1847 = vmatprep.subr.mxu0 %v1184
        %1848 = vmatpush1.msra.mxu0 %v1183
        %1849 = vmatprep.subr.mxu0 %v1186
        %1850 = vmatpush1.msra.mxu0 %v1185
        %1851 = vmatprep.subr.mxu0 %v1188
        %1852 = vmatpush1.msra.mxu0 %v1187
        %1853 = vmatprep.subr.mxu0 %v1190
        %1854 = vmatpush1.msra.mxu0 %v1189
        %1855 = vmatprep.subr.mxu0 %v1192
        %1856 = vmatpush1.msra.mxu0 %v1191
        %1857 = vmatprep.subr.mxu0 %v1194
        %1858 = vmatpush1.msra.mxu0 %v1193
        %1859 = vmatprep.subr.mxu0 %v1196
        %1860 = vmatpush1.msra.mxu0 %v1195
        %1861 = vmatprep.mubr.f32.mxu0 %v1723
        %1862 = vmatmul.mubr.f32.gmra.mrb[0].mxu0 %v1722
        %v1863 = vpop.f32.mrb[0].mxu0
        %v1864 = vadd.f32 %v1790, %v1863
        %v1865 = vpop.f32.mrb[0].mxu0
        %v1866 = vadd.f32 %v1794, %v1865
        %1867 = vmatprep.mubr.f32.mxu0 %v1725
        %1868 = vmatmul.mubr.f32.gmra.mrb[0].mxu0 %v1724
        %v1869 = vpop.f32.mrb[0].mxu0
        %v1870 = vadd.f32 %v1790, %v1869
        %v1871 = vpop.f32.mrb[0].mxu0
        %v1872 = vadd.f32 %v1794, %v1871
        %1873 = vmatprep.mubr.f32.mxu0 %v1727
        %1874 = vmatmul.mubr.f32.gmra.mrb[0].mxu0 %v1726
        %v1875 = vpop.f32.mrb[0].mxu0
        %v1876 = vadd.f32 %v1790, %v1875
        %v1877 = vpop.f32.mrb[0].mxu0
        %v1878 = vadd.f32 %v1794, %v1877
        %1879 = vmatprep.mubr.f32.mxu0 %v1729
        %1880 = vmatmul.mubr.f32.gmra.mrb[0].mxu0 %v1728
        %v1881 = vpop.f32.mrb[0].mxu0
        %v1882 = vadd.f32 %v1790, %v1881
        %v1883 = vpop.f32.mrb[0].mxu0
        %v1884 = vadd.f32 %v1794, %v1883
        %1885 = vmatprep.mubr.f32.mxu0 %v1731
        %1886 = vmatmul.mubr.f32.gmra.mrb[0].mxu0 %v1730
        %v1887 = vpop.f32.mrb[0].mxu0
        %v1888 = vadd.f32 %v1790, %v1887
        %v1889 = vpop.f32.mrb[0].mxu0
        %v1890 = vadd.f32 %v1794, %v1889
        %1891 = vmatprep.mubr.f32.mxu0 %v1733
        %1892 = vmatmul.mubr.f32.gmra.mrb[0].mxu0 %v1732
        %v1893 = vpop.f32.mrb[0].mxu0
        %v1894 = vadd.f32 %v1790, %v1893
        %v1895 = vpop.f32.mrb[0].mxu0
        %v1896 = vadd.f32 %v1794, %v1895
        %1897 = vmatprep.mubr.f32.mxu0 %v1735
        %1898 = vmatmul.mubr.f32.gmra.mrb[0].mxu0 %v1734
        %v1899 = vpop.f32.mrb[0].mxu0
        %v1900 = vadd.f32 %v1790, %v1899
        %v1901 = vpop.f32.mrb[0].mxu0
        %v1902 = vadd.f32 %v1794, %v1901
        %1903 = vmatprep.mubr.f32.mxu0 %v1737
        %1904 = vmatmul.mubr.f32.gmra.mrb[0].mxu0 %v1736
        %v1905 = vpop.f32.mrb[0].mxu0
        %v1906 = vadd.f32 %v1790, %v1905
        %v1907 = vpop.f32.mrb[0].mxu0
        %v1908 = vadd.f32 %v1794, %v1907
        %1909 = vmatprep.mubr.f32.mxu0 %v1739
        %1910 = vmatmul.mubr.f32.gmra.mrb[0].mxu0 %v1738
        %v1911 = vpop.f32.mrb[0].mxu0
        %v1912 = vadd.f32 %v1790, %v1911
        %v1913 = vpop.f32.mrb[0].mxu0
        %v1914 = vadd.f32 %v1794, %v1913
        %1915 = vmatprep.mubr.f32.mxu0 %v1741
        %1916 = vmatmul.mubr.f32.gmra.mrb[0].mxu0 %v1740
        %v1917 = vpop.f32.mrb[0].mxu0
        %v1918 = vadd.f32 %v1790, %v1917
        %v1919 = vpop.f32.mrb[0].mxu0
        %v1920 = vadd.f32 %v1794, %v1919
        %1921 = vmatprep.mubr.f32.mxu0 %v1743
        %1922 = vmatmul.mubr.f32.gmra.mrb[0].mxu0 %v1742
        %v1923 = vpop.f32.mrb[0].mxu0
        %v1924 = vadd.f32 %v1790, %v1923
        %v1925 = vpop.f32.mrb[0].mxu0
        %v1926 = vadd.f32 %v1794, %v1925
        %1927 = vmatprep.mubr.f32.mxu0 %v1745
        %1928 = vmatmul.mubr.f32.gmra.mrb[0].mxu0 %v1744
        %v1929 = vpop.f32.mrb[0].mxu0
        %v1930 = vadd.f32 %v1790, %v1929
        %v1931 = vpop.f32.mrb[0].mxu0
        %v1932 = vadd.f32 %v1794, %v1931
        %1933 = vmatprep.mubr.f32.mxu0 %v1747
        %1934 = vmatmul.mubr.f32.gmra.mrb[0].mxu0 %v1746
        %v1935 = vpop.f32.mrb[0].mxu0
        %v1936 = vadd.f32 %v1790, %v1935
        %v1937 = vpop.f32.mrb[0].mxu0
        %v1938 = vadd.f32 %v1794, %v1937
        %1939 = vmatprep.mubr.f32.mxu0 %v1749
        %1940 = vmatmul.mubr.f32.gmra.mrb[0].mxu0 %v1748
        %v1941 = vpop.f32.mrb[0].mxu0
        %v1942 = vadd.f32 %v1790, %v1941
        %v1943 = vpop.f32.mrb[0].mxu0
        %v1944 = vadd.f32 %v1794, %v1943
        %1945 = vmatprep.mubr.f32.mxu0 %v1751
        %1946 = vmatmul.mubr.f32.gmra.mrb[0].mxu0 %v1750
        %v1947 = vpop.f32.mrb[0].mxu0
        %v1948 = vadd.f32 %v1790, %v1947
        %v1949 = vpop.f32.mrb[0].mxu0
        %v1950 = vadd.f32 %v1794, %v1949
        %1951 = vmatprep.mubr.f32.mxu0 %v1753
        %1952 = vmatmul.mubr.f32.gmra.mrb[0].mxu0 %v1752
        %v1953 = vpop.f32.mrb[0].mxu0
        %v1954 = vadd.f32 %v1790, %v1953
        %v1955 = vpop.f32.mrb[0].mxu0
        %v1956 = vadd.f32 %v1794, %v1955
        %1957 = vmatprep.mubr.f32.mxu0 %v1755
        %1958 = vmatmul.mubr.f32.gmra.mrb[0].mxu0 %v1754
        %v1959 = vpop.f32.mrb[0].mxu0
        %v1960 = vadd.f32 %v1790, %v1959
        %v1961 = vpop.f32.mrb[0].mxu0
        %v1962 = vadd.f32 %v1794, %v1961
        %1963 = vmatprep.mubr.f32.mxu0 %v1757
        %1964 = vmatmul.mubr.f32.gmra.mrb[0].mxu0 %v1756
        %v1965 = vpop.f32.mrb[0].mxu0
        %v1966 = vadd.f32 %v1790, %v1965
        %v1967 = vpop.f32.mrb[0].mxu0
        %v1968 = vadd.f32 %v1794, %v1967
        %1969 = vmatprep.mubr.f32.mxu0 %v1759
        %1970 = vmatmul.mubr.f32.gmra.mrb[0].mxu0 %v1758
        %v1971 = vpop.f32.mrb[0].mxu0
        %v1972 = vadd.f32 %v1790, %v1971
        %v1973 = vpop.f32.mrb[0].mxu0
        %v1974 = vadd.f32 %v1794, %v1973
        %1975 = vmatprep.mubr.f32.mxu0 %v1761
        %1976 = vmatmul.mubr.f32.gmra.mrb[0].mxu0 %v1760
        %v1977 = vpop.f32.mrb[0].mxu0
        %v1978 = vadd.f32 %v1790, %v1977
        %v1979 = vpop.f32.mrb[0].mxu0
        %v1980 = vadd.f32 %v1794, %v1979
        %1981 = vmatprep.mubr.f32.mxu0 %v1763
        %1982 = vmatmul.mubr.f32.gmra.mrb[0].mxu0 %v1762
        %v1983 = vpop.f32.mrb[0].mxu0
        %v1984 = vadd.f32 %v1790, %v1983
        %v1985 = vpop.f32.mrb[0].mxu0
        %v1986 = vadd.f32 %v1794, %v1985
        %1987 = vmatprep.mubr.f32.mxu0 %v1765
        %1988 = vmatmul.mubr.f32.gmra.mrb[0].mxu0 %v1764
        %v1989 = vpop.f32.mrb[0].mxu0
        %v1990 = vadd.f32 %v1790, %v1989
        %v1991 = vpop.f32.mrb[0].mxu0
        %v1992 = vadd.f32 %v1794, %v1991
        %1993 = vmatprep.mubr.f32.mxu0 %v1767
        %1994 = vmatmul.mubr.f32.gmra.mrb[0].mxu0 %v1766
        %v1995 = vpop.f32.mrb[0].mxu0
        %v1996 = vadd.f32 %v1790, %v1995
        %v1997 = vpop.f32.mrb[0].mxu0
        %v1998 = vadd.f32 %v1794, %v1997
        %1999 = vmatprep.mubr.f32.mxu0 %v1769
        %2000 = vmatmul.mubr.f32.gmra.mrb[0].mxu0 %v1768
        %v2001 = vpop.f32.mrb[0].mxu0
        %v2002 = vadd.f32 %v1790, %v2001
        %v2003 = vpop.f32.mrb[0].mxu0
        %v2004 = vadd.f32 %v1794, %v2003
        %2005 = vmatprep.mubr.f32.mxu0 %v1771
        %2006 = vmatmul.mubr.f32.gmra.mrb[0].mxu0 %v1770
        %v2007 = vpop.f32.mrb[0].mxu0
        %v2008 = vadd.f32 %v1790, %v2007
        %v2009 = vpop.f32.mrb[0].mxu0
        %v2010 = vadd.f32 %v1794, %v2009
        %2011 = vmatprep.mubr.f32.mxu0 %v1773
        %2012 = vmatmul.mubr.f32.gmra.mrb[0].mxu0 %v1772
        %v2013 = vpop.f32.mrb[0].mxu0
        %v2014 = vadd.f32 %v1790, %v2013
        %v2015 = vpop.f32.mrb[0].mxu0
        %v2016 = vadd.f32 %v1794, %v2015
        %2017 = vmatprep.mubr.f32.mxu0 %v1775
        %2018 = vmatmul.mubr.f32.gmra.mrb[0].mxu0 %v1774
        %v2019 = vpop.f32.mrb[0].mxu0
        %v2020 = vadd.f32 %v1790, %v2019
        %v2021 = vpop.f32.mrb[0].mxu0
        %v2022 = vadd.f32 %v1794, %v2021
        %2023 = vmatprep.mubr.f32.mxu0 %v1777
        %2024 = vmatmul.mubr.f32.gmra.mrb[0].mxu0 %v1776
        %v2025 = vpop.f32.mrb[0].mxu0
        %v2026 = vadd.f32 %v1790, %v2025
        %v2027 = vpop.f32.mrb[0].mxu0
        %v2028 = vadd.f32 %v1794, %v2027
        %2029 = vmatprep.mubr.f32.mxu0 %v1779
        %2030 = vmatmul.mubr.f32.gmra.mrb[0].mxu0 %v1778
        %v2031 = vpop.f32.mrb[0].mxu0
        %v2032 = vadd.f32 %v1790, %v2031
        %v2033 = vpop.f32.mrb[0].mxu0
        %v2034 = vadd.f32 %v1794, %v2033
        %2035 = vmatprep.mubr.f32.mxu0 %v1781
        %2036 = vmatmul.mubr.f32.gmra.mrb[0].mxu0 %v1780
        %v2037 = vpop.f32.mrb[0].mxu0
        %v2038 = vadd.f32 %v1790, %v2037
        %v2039 = vpop.f32.mrb[0].mxu0
        %v2040 = vadd.f32 %v1794, %v2039
        %2041 = vmatprep.mubr.f32.mxu0 %v1783
        %2042 = vmatmul.mubr.f32.gmra.mrb[0].mxu0 %v1782
        %v2043 = vpop.f32.mrb[0].mxu0
        %v2044 = vadd.f32 %v1790, %v2043
        %v2045 = vpop.f32.mrb[0].mxu0
        %v2046 = vadd.f32 %v1794, %v2045
        %2047 = vmatprep.mubr.f32.mxu0 %v1785
        %2048 = vmatmul.mubr.f32.gmra.mrb[0].mxu0 %v1784
        %v2049 = vpop.f32.mrb[0].mxu0
        %v2050 = vadd.f32 %v1790, %v2049
        %v2051 = vpop.f32.mrb[0].mxu0
        %v2052 = vadd.f32 %v1794, %v2051
        %2053 = vdwg.mxu0
        %v2054 = vld [vmem:[%s667] sm:$0xff]
        %v2055 = vld [vmem:[%s667 + $0x8] sm:$0xff]
        %v2056 = vld [vmem:[%s667 + $0x10] sm:$0xff]
        %v2057 = vld [vmem:[%s667 + $0x18] sm:$0xff]
        %v2058 = vld [vmem:[%s667 + $0x20] sm:$0xff]
        %v2059 = vld [vmem:[%s667 + $0x28] sm:$0xff]
        %v2060 = vld [vmem:[%s667 + $0x30] sm:$0xff]
        %v2061 = vld [vmem:[%s667 + $0x38] sm:$0xff]
        %v2062 = vld [vmem:[%s667 + $0x40] sm:$0xff]
        %v2063 = vld [vmem:[%s667 + $0x48] sm:$0xff]
        %v2064 = vld [vmem:[%s667 + $0x50] sm:$0xff]
        %v2065 = vld [vmem:[%s667 + $0x58] sm:$0xff]
        %v2066 = vld [vmem:[%s667 + $0x60] sm:$0xff]
        %v2067 = vld [vmem:[%s667 + $0x68] sm:$0xff]
        %v2068 = vld [vmem:[%s667 + $0x70] sm:$0xff]
        %v2069 = vld [vmem:[%s667 + $0x78] sm:$0xff]
        %v2070 = vld [vmem:[%s667 + $0x80] sm:$0xff]
        %v2071 = vld [vmem:[%s667 + $0x88] sm:$0xff]
        %v2072 = vld [vmem:[%s667 + $0x90] sm:$0xff]
        %v2073 = vld [vmem:[%s667 + $0x98] sm:$0xff]
        %v2074 = vld [vmem:[%s667 + $0xa0] sm:$0xff]
        %v2075 = vld [vmem:[%s667 + $0xa8] sm:$0xff]
        %v2076 = vld [vmem:[%s667 + $0xb0] sm:$0xff]
        %v2077 = vld [vmem:[%s667 + $0xb8] sm:$0xff]
        %v2078 = vld [vmem:[%s667 + $0xc0] sm:$0xff]
        %v2079 = vld [vmem:[%s667 + $0xc8] sm:$0xff]
        %v2080 = vld [vmem:[%s667 + $0xd0] sm:$0xff]
        %v2081 = vld [vmem:[%s667 + $0xd8] sm:$0xff]
        %v2082 = vld [vmem:[%s667 + $0xe0] sm:$0xff]
        %v2083 = vld [vmem:[%s667 + $0xe8] sm:$0xff]
        %v2084 = vld [vmem:[%s667 + $0xf0] sm:$0xff]
        %v2085 = vld [vmem:[%s667 + $0xf8] sm:$0xff]
        %v2086 = vld [vmem:[%s667 + $0x100] sm:$0xff]
        %v2087 = vld [vmem:[%s667 + $0x108] sm:$0xff]
        %v2088 = vld [vmem:[%s667 + $0x110] sm:$0xff]
        %v2089 = vld [vmem:[%s667 + $0x118] sm:$0xff]
        %v2090 = vld [vmem:[%s667 + $0x120] sm:$0xff]
        %v2091 = vld [vmem:[%s667 + $0x128] sm:$0xff]
        %v2092 = vld [vmem:[%s667 + $0x130] sm:$0xff]
        %v2093 = vld [vmem:[%s667 + $0x138] sm:$0xff]
        %v2094 = vld [vmem:[%s667 + $0x140] sm:$0xff]
        %v2095 = vld [vmem:[%s667 + $0x148] sm:$0xff]
        %v2096 = vld [vmem:[%s667 + $0x150] sm:$0xff]
        %v2097 = vld [vmem:[%s667 + $0x158] sm:$0xff]
        %v2098 = vld [vmem:[%s667 + $0x160] sm:$0xff]
        %v2099 = vld [vmem:[%s667 + $0x168] sm:$0xff]
        %v2100 = vld [vmem:[%s667 + $0x170] sm:$0xff]
        %v2101 = vld [vmem:[%s667 + $0x178] sm:$0xff]
        %v2102 = vld [vmem:[%s667 + $0x180] sm:$0xff]
        %v2103 = vld [vmem:[%s667 + $0x188] sm:$0xff]
        %v2104 = vld [vmem:[%s667 + $0x190] sm:$0xff]
        %v2105 = vld [vmem:[%s667 + $0x198] sm:$0xff]
        %v2106 = vld [vmem:[%s667 + $0x1a0] sm:$0xff]
        %v2107 = vld [vmem:[%s667 + $0x1a8] sm:$0xff]
        %v2108 = vld [vmem:[%s667 + $0x1b0] sm:$0xff]
        %v2109 = vld [vmem:[%s667 + $0x1b8] sm:$0xff]
        %v2110 = vld [vmem:[%s667 + $0x1c0] sm:$0xff]
        %v2111 = vld [vmem:[%s667 + $0x1c8] sm:$0xff]
        %v2112 = vld [vmem:[%s667 + $0x1d0] sm:$0xff]
        %v2113 = vld [vmem:[%s667 + $0x1d8] sm:$0xff]
        %v2114 = vld [vmem:[%s667 + $0x1e0] sm:$0xff]
        %v2115 = vld [vmem:[%s667 + $0x1e8] sm:$0xff]
        %v2116 = vld [vmem:[%s667 + $0x1f0] sm:$0xff]
        %v2117 = vld [vmem:[%s667 + $0x1f8] sm:$0xff]
        %v2118 = vld [vmem:[#allocation10] sm:$0xff]
        %v2119 = vld [vmem:[#allocation10 + $0x8] sm:$0xff]
        %v2120 = vld [vmem:[#allocation10 + $0x10] sm:$0xff]
        %v2121 = vld [vmem:[#allocation10 + $0x18] sm:$0xff]
        %v2122 = vld [vmem:[#allocation10 + $0x20] sm:$0xff]
        %v2123 = vld [vmem:[#allocation10 + $0x28] sm:$0xff]
        %v2124 = vld [vmem:[#allocation10 + $0x30] sm:$0xff]
        %v2125 = vld [vmem:[#allocation10 + $0x38] sm:$0xff]
        %v2126 = vld [vmem:[#allocation10 + $0x40] sm:$0xff]
        %v2127 = vld [vmem:[#allocation10 + $0x48] sm:$0xff]
        %v2128 = vld [vmem:[#allocation10 + $0x50] sm:$0xff]
        %v2129 = vld [vmem:[#allocation10 + $0x58] sm:$0xff]
        %v2130 = vld [vmem:[#allocation10 + $0x60] sm:$0xff]
        %v2131 = vld [vmem:[#allocation10 + $0x68] sm:$0xff]
        %v2132 = vld [vmem:[#allocation10 + $0x70] sm:$0xff]
        %v2133 = vld [vmem:[#allocation10 + $0x78] sm:$0xff]
        %v2134 = vld [vmem:[#allocation10 + $0x80] sm:$0xff]
        %v2135 = vld [vmem:[#allocation10 + $0x88] sm:$0xff]
        %v2136 = vld [vmem:[#allocation10 + $0x90] sm:$0xff]
        %v2137 = vld [vmem:[#allocation10 + $0x98] sm:$0xff]
        %v2138 = vld [vmem:[#allocation10 + $0xa0] sm:$0xff]
        %v2139 = vld [vmem:[#allocation10 + $0xa8] sm:$0xff]
        %v2140 = vld [vmem:[#allocation10 + $0xb0] sm:$0xff]
        %v2141 = vld [vmem:[#allocation10 + $0xb8] sm:$0xff]
        %v2142 = vld [vmem:[#allocation10 + $0xc0] sm:$0xff]
        %v2143 = vld [vmem:[#allocation10 + $0xc8] sm:$0xff]
        %v2144 = vld [vmem:[#allocation10 + $0xd0] sm:$0xff]
        %v2145 = vld [vmem:[#allocation10 + $0xd8] sm:$0xff]
        %v2146 = vld [vmem:[#allocation10 + $0xe0] sm:$0xff]
        %v2147 = vld [vmem:[#allocation10 + $0xe8] sm:$0xff]
        %v2148 = vld [vmem:[#allocation10 + $0xf0] sm:$0xff]
        %v2149 = vld [vmem:[#allocation10 + $0xf8] sm:$0xff]
        %v2150 = vld [vmem:[#allocation10 + $0x100] sm:$0xff]
        %v2151 = vld [vmem:[#allocation10 + $0x108] sm:$0xff]
        %v2152 = vld [vmem:[#allocation10 + $0x110] sm:$0xff]
        %v2153 = vld [vmem:[#allocation10 + $0x118] sm:$0xff]
        %v2154 = vld [vmem:[#allocation10 + $0x120] sm:$0xff]
        %v2155 = vld [vmem:[#allocation10 + $0x128] sm:$0xff]
        %v2156 = vld [vmem:[#allocation10 + $0x130] sm:$0xff]
        %v2157 = vld [vmem:[#allocation10 + $0x138] sm:$0xff]
        %v2158 = vld [vmem:[#allocation10 + $0x140] sm:$0xff]
        %v2159 = vld [vmem:[#allocation10 + $0x148] sm:$0xff]
        %v2160 = vld [vmem:[#allocation10 + $0x150] sm:$0xff]
        %v2161 = vld [vmem:[#allocation10 + $0x158] sm:$0xff]
        %v2162 = vld [vmem:[#allocation10 + $0x160] sm:$0xff]
        %v2163 = vld [vmem:[#allocation10 + $0x168] sm:$0xff]
        %v2164 = vld [vmem:[#allocation10 + $0x170] sm:$0xff]
        %v2165 = vld [vmem:[#allocation10 + $0x178] sm:$0xff]
        %v2166 = vld [vmem:[#allocation10 + $0x180] sm:$0xff]
        %v2167 = vld [vmem:[#allocation10 + $0x188] sm:$0xff]
        %v2168 = vld [vmem:[#allocation10 + $0x190] sm:$0xff]
        %v2169 = vld [vmem:[#allocation10 + $0x198] sm:$0xff]
        %v2170 = vld [vmem:[#allocation10 + $0x1a0] sm:$0xff]
        %v2171 = vld [vmem:[#allocation10 + $0x1a8] sm:$0xff]
        %v2172 = vld [vmem:[#allocation10 + $0x1b0] sm:$0xff]
        %v2173 = vld [vmem:[#allocation10 + $0x1b8] sm:$0xff]
        %v2174 = vld [vmem:[#allocation10 + $0x1c0] sm:$0xff]
        %v2175 = vld [vmem:[#allocation10 + $0x1c8] sm:$0xff]
        %v2176 = vld [vmem:[#allocation10 + $0x1d0] sm:$0xff]
        %v2177 = vld [vmem:[#allocation10 + $0x1d8] sm:$0xff]
        %v2178 = vld [vmem:[#allocation10 + $0x1e0] sm:$0xff]
        %v2179 = vld [vmem:[#allocation10 + $0x1e8] sm:$0xff]
        %v2180 = vld [vmem:[#allocation10 + $0x1f0] sm:$0xff]
        %v2181 = vld [vmem:[#allocation10 + $0x1f8] sm:$0xff]
        %2182 = vmatprep.subr.mxu0 %v2119
        %2183 = vmatpush1.msra.mxu0 %v2118
        %2184 = vmatprep.subr.mxu0 %v2121
        %2185 = vmatpush1.msra.mxu0 %v2120
        %2186 = vmatprep.subr.mxu0 %v2123
        %2187 = vmatpush1.msra.mxu0 %v2122
        %2188 = vmatprep.subr.mxu0 %v2125
        %2189 = vmatpush1.msra.mxu0 %v2124
        %2190 = vmatprep.subr.mxu0 %v2127
        %2191 = vmatpush1.msra.mxu0 %v2126
        %2192 = vmatprep.subr.mxu0 %v2129
        %2193 = vmatpush1.msra.mxu0 %v2128
        %2194 = vmatprep.subr.mxu0 %v2131
        %2195 = vmatpush1.msra.mxu0 %v2130
        %2196 = vmatprep.subr.mxu0 %v2133
        %2197 = vmatpush1.msra.mxu0 %v2132
        %2198 = vmatprep.subr.mxu0 %v2135
        %2199 = vmatpush1.msra.mxu0 %v2134
        %2200 = vmatprep.subr.mxu0 %v2137
        %2201 = vmatpush1.msra.mxu0 %v2136
        %2202 = vmatprep.subr.mxu0 %v2139
        %2203 = vmatpush1.msra.mxu0 %v2138
        %2204 = vmatprep.subr.mxu0 %v2141
        %2205 = vmatpush1.msra.mxu0 %v2140
        %2206 = vmatprep.subr.mxu0 %v2143
        %2207 = vmatpush1.msra.mxu0 %v2142
        %2208 = vmatprep.subr.mxu0 %v2145
        %2209 = vmatpush1.msra.mxu0 %v2144
        %2210 = vmatprep.subr.mxu0 %v2147
        %2211 = vmatpush1.msra.mxu0 %v2146
        %2212 = vmatprep.subr.mxu0 %v2149
        %2213 = vmatpush1.msra.mxu0 %v2148
        %2214 = vmatprep.subr.mxu0 %v2151
        %2215 = vmatpush1.msra.mxu0 %v2150
        %2216 = vmatprep.subr.mxu0 %v2153
        %2217 = vmatpush1.msra.mxu0 %v2152
        %2218 = vmatprep.subr.mxu0 %v2155
        %2219 = vmatpush1.msra.mxu0 %v2154
        %2220 = vmatprep.subr.mxu0 %v2157
        %2221 = vmatpush1.msra.mxu0 %v2156
        %2222 = vmatprep.subr.mxu0 %v2159
        %2223 = vmatpush1.msra.mxu0 %v2158
        %2224 = vmatprep.subr.mxu0 %v2161
        %2225 = vmatpush1.msra.mxu0 %v2160
        %2226 = vmatprep.subr.mxu0 %v2163
        %2227 = vmatpush1.msra.mxu0 %v2162
        %2228 = vmatprep.subr.mxu0 %v2165
        %2229 = vmatpush1.msra.mxu0 %v2164
        %2230 = vmatprep.subr.mxu0 %v2167
        %2231 = vmatpush1.msra.mxu0 %v2166
        %2232 = vmatprep.subr.mxu0 %v2169
        %2233 = vmatpush1.msra.mxu0 %v2168
        %2234 = vmatprep.subr.mxu0 %v2171
        %2235 = vmatpush1.msra.mxu0 %v2170
        %2236 = vmatprep.subr.mxu0 %v2173
        %2237 = vmatpush1.msra.mxu0 %v2172
        %2238 = vmatprep.subr.mxu0 %v2175
        %2239 = vmatpush1.msra.mxu0 %v2174
        %2240 = vmatprep.subr.mxu0 %v2177
        %2241 = vmatpush1.msra.mxu0 %v2176
        %2242 = vmatprep.subr.mxu0 %v2179
        %2243 = vmatpush1.msra.mxu0 %v2178
        %2244 = vmatprep.subr.mxu0 %v2181
        %2245 = vmatpush1.msra.mxu0 %v2180
        %2246 = vmatprep.mubr.f32.mxu0 %v2055
        %2247 = vmatmul.mubr.f32.gmra.mrb[0].mxu0 %v2054
        %v2248 = vpop.f32.mrb[0].mxu0
        %v2249 = vadd.f32 %v1864, %v2248
        %v2250 = vpop.f32.mrb[0].mxu0
        %v2251 = vadd.f32 %v1866, %v2250
        %2252 = vmatprep.mubr.f32.mxu0 %v2057
        %2253 = vmatmul.mubr.f32.gmra.mrb[0].mxu0 %v2056
        %v2254 = vpop.f32.mrb[0].mxu0
        %v2255 = vadd.f32 %v1870, %v2254
        %v2256 = vpop.f32.mrb[0].mxu0
        %v2257 = vadd.f32 %v1872, %v2256
        %2258 = vmatprep.mubr.f32.mxu0 %v2059
        %2259 = vmatmul.mubr.f32.gmra.mrb[0].mxu0 %v2058
        %v2260 = vpop.f32.mrb[0].mxu0
        %v2261 = vadd.f32 %v1876, %v2260
        %v2262 = vpop.f32.mrb[0].mxu0
        %v2263 = vadd.f32 %v1878, %v2262
        %2264 = vmatprep.mubr.f32.mxu0 %v2061
        %2265 = vmatmul.mubr.f32.gmra.mrb[0].mxu0 %v2060
        %v2266 = vpop.f32.mrb[0].mxu0
        %v2267 = vadd.f32 %v1882, %v2266
        %v2268 = vpop.f32.mrb[0].mxu0
        %v2269 = vadd.f32 %v1884, %v2268
        %2270 = vmatprep.mubr.f32.mxu0 %v2063
        %2271 = vmatmul.mubr.f32.gmra.mrb[0].mxu0 %v2062
        %v2272 = vpop.f32.mrb[0].mxu0
        %v2273 = vadd.f32 %v1888, %v2272
        %v2274 = vpop.f32.mrb[0].mxu0
        %v2275 = vadd.f32 %v1890, %v2274
        %2276 = vmatprep.mubr.f32.mxu0 %v2065
        %2277 = vmatmul.mubr.f32.gmra.mrb[0].mxu0 %v2064
        %v2278 = vpop.f32.mrb[0].mxu0
        %v2279 = vadd.f32 %v1894, %v2278
        %v2280 = vpop.f32.mrb[0].mxu0
        %v2281 = vadd.f32 %v1896, %v2280
        %2282 = vmatprep.mubr.f32.mxu0 %v2067
        %2283 = vmatmul.mubr.f32.gmra.mrb[0].mxu0 %v2066
        %v2284 = vpop.f32.mrb[0].mxu0
        %v2285 = vadd.f32 %v1900, %v2284
        %v2286 = vpop.f32.mrb[0].mxu0
        %v2287 = vadd.f32 %v1902, %v2286
        %2288 = vmatprep.mubr.f32.mxu0 %v2069
        %2289 = vmatmul.mubr.f32.gmra.mrb[0].mxu0 %v2068
        %v2290 = vpop.f32.mrb[0].mxu0
        %v2291 = vadd.f32 %v1906, %v2290
        %v2292 = vpop.f32.mrb[0].mxu0
        %v2293 = vadd.f32 %v1908, %v2292
        %2294 = vmatprep.mubr.f32.mxu0 %v2071
        %2295 = vmatmul.mubr.f32.gmra.mrb[0].mxu0 %v2070
        %v2296 = vpop.f32.mrb[0].mxu0
        %v2297 = vadd.f32 %v1912, %v2296
        %v2298 = vpop.f32.mrb[0].mxu0
        %v2299 = vadd.f32 %v1914, %v2298
        %2300 = vmatprep.mubr.f32.mxu0 %v2073
        %2301 = vmatmul.mubr.f32.gmra.mrb[0].mxu0 %v2072
        %v2302 = vpop.f32.mrb[0].mxu0
        %v2303 = vadd.f32 %v1918, %v2302
        %v2304 = vpop.f32.mrb[0].mxu0
        %v2305 = vadd.f32 %v1920, %v2304
        %2306 = vmatprep.mubr.f32.mxu0 %v2075
        %2307 = vmatmul.mubr.f32.gmra.mrb[0].mxu0 %v2074
        %v2308 = vpop.f32.mrb[0].mxu0
        %v2309 = vadd.f32 %v1924, %v2308
        %v2310 = vpop.f32.mrb[0].mxu0
        %v2311 = vadd.f32 %v1926, %v2310
        %2312 = vmatprep.mubr.f32.mxu0 %v2077
        %2313 = vmatmul.mubr.f32.gmra.mrb[0].mxu0 %v2076
        %v2314 = vpop.f32.mrb[0].mxu0
        %v2315 = vadd.f32 %v1930, %v2314
        %v2316 = vpop.f32.mrb[0].mxu0
        %v2317 = vadd.f32 %v1932, %v2316
        %2318 = vmatprep.mubr.f32.mxu0 %v2079
        %2319 = vmatmul.mubr.f32.gmra.mrb[0].mxu0 %v2078
        %v2320 = vpop.f32.mrb[0].mxu0
        %v2321 = vadd.f32 %v1936, %v2320
        %v2322 = vpop.f32.mrb[0].mxu0
        %v2323 = vadd.f32 %v1938, %v2322
        %2324 = vmatprep.mubr.f32.mxu0 %v2081
        %2325 = vmatmul.mubr.f32.gmra.mrb[0].mxu0 %v2080
        %v2326 = vpop.f32.mrb[0].mxu0
        %v2327 = vadd.f32 %v1942, %v2326
        %v2328 = vpop.f32.mrb[0].mxu0
        %v2329 = vadd.f32 %v1944, %v2328
        %2330 = vmatprep.mubr.f32.mxu0 %v2083
        %2331 = vmatmul.mubr.f32.gmra.mrb[0].mxu0 %v2082
        %v2332 = vpop.f32.mrb[0].mxu0
        %v2333 = vadd.f32 %v1948, %v2332
        %v2334 = vpop.f32.mrb[0].mxu0
        %v2335 = vadd.f32 %v1950, %v2334
        %2336 = vmatprep.mubr.f32.mxu0 %v2085
        %2337 = vmatmul.mubr.f32.gmra.mrb[0].mxu0 %v2084
        %v2338 = vpop.f32.mrb[0].mxu0
        %v2339 = vadd.f32 %v1954, %v2338
        %v2340 = vpop.f32.mrb[0].mxu0
        %v2341 = vadd.f32 %v1956, %v2340
        %2342 = vmatprep.mubr.f32.mxu0 %v2087
        %2343 = vmatmul.mubr.f32.gmra.mrb[0].mxu0 %v2086
        %v2344 = vpop.f32.mrb[0].mxu0
        %v2345 = vadd.f32 %v1960, %v2344
        %v2346 = vpop.f32.mrb[0].mxu0
        %v2347 = vadd.f32 %v1962, %v2346
        %2348 = vmatprep.mubr.f32.mxu0 %v2089
        %2349 = vmatmul.mubr.f32.gmra.mrb[0].mxu0 %v2088
        %v2350 = vpop.f32.mrb[0].mxu0
        %v2351 = vadd.f32 %v1966, %v2350
        %v2352 = vpop.f32.mrb[0].mxu0
        %v2353 = vadd.f32 %v1968, %v2352
        %2354 = vmatprep.mubr.f32.mxu0 %v2091
        %2355 = vmatmul.mubr.f32.gmra.mrb[0].mxu0 %v2090
        %v2356 = vpop.f32.mrb[0].mxu0
        %v2357 = vadd.f32 %v1972, %v2356
        %v2358 = vpop.f32.mrb[0].mxu0
        %v2359 = vadd.f32 %v1974, %v2358
        %2360 = vmatprep.mubr.f32.mxu0 %v2093
        %2361 = vmatmul.mubr.f32.gmra.mrb[0].mxu0 %v2092
        %v2362 = vpop.f32.mrb[0].mxu0
        %v2363 = vadd.f32 %v1978, %v2362
        %v2364 = vpop.f32.mrb[0].mxu0
        %v2365 = vadd.f32 %v1980, %v2364
        %2366 = vmatprep.mubr.f32.mxu0 %v2095
        %2367 = vmatmul.mubr.f32.gmra.mrb[0].mxu0 %v2094
        %v2368 = vpop.f32.mrb[0].mxu0
        %v2369 = vadd.f32 %v1984, %v2368
        %v2370 = vpop.f32.mrb[0].mxu0
        %v2371 = vadd.f32 %v1986, %v2370
        %2372 = vmatprep.mubr.f32.mxu0 %v2097
        %2373 = vmatmul.mubr.f32.gmra.mrb[0].mxu0 %v2096
        %v2374 = vpop.f32.mrb[0].mxu0
        %v2375 = vadd.f32 %v1990, %v2374
        %v2376 = vpop.f32.mrb[0].mxu0
        %v2377 = vadd.f32 %v1992, %v2376
        %2378 = vmatprep.mubr.f32.mxu0 %v2099
        %2379 = vmatmul.mubr.f32.gmra.mrb[0].mxu0 %v2098
        %v2380 = vpop.f32.mrb[0].mxu0
        %v2381 = vadd.f32 %v1996, %v2380
        %v2382 = vpop.f32.mrb[0].mxu0
        %v2383 = vadd.f32 %v1998, %v2382
        %2384 = vmatprep.mubr.f32.mxu0 %v2101
        %2385 = vmatmul.mubr.f32.gmra.mrb[0].mxu0 %v2100
        %v2386 = vpop.f32.mrb[0].mxu0
        %v2387 = vadd.f32 %v2002, %v2386
        %v2388 = vpop.f32.mrb[0].mxu0
        %v2389 = vadd.f32 %v2004, %v2388
        %2390 = vmatprep.mubr.f32.mxu0 %v2103
        %2391 = vmatmul.mubr.f32.gmra.mrb[0].mxu0 %v2102
        %v2392 = vpop.f32.mrb[0].mxu0
        %v2393 = vadd.f32 %v2008, %v2392
        %v2394 = vpop.f32.mrb[0].mxu0
        %v2395 = vadd.f32 %v2010, %v2394
        %2396 = vmatprep.mubr.f32.mxu0 %v2105
        %2397 = vmatmul.mubr.f32.gmra.mrb[0].mxu0 %v2104
        %v2398 = vpop.f32.mrb[0].mxu0
        %v2399 = vadd.f32 %v2014, %v2398
        %v2400 = vpop.f32.mrb[0].mxu0
        %v2401 = vadd.f32 %v2016, %v2400
        %2402 = vmatprep.mubr.f32.mxu0 %v2107
        %2403 = vmatmul.mubr.f32.gmra.mrb[0].mxu0 %v2106
        %v2404 = vpop.f32.mrb[0].mxu0
        %v2405 = vadd.f32 %v2020, %v2404
        %v2406 = vpop.f32.mrb[0].mxu0
        %v2407 = vadd.f32 %v2022, %v2406
        %2408 = vmatprep.mubr.f32.mxu0 %v2109
        %2409 = vmatmul.mubr.f32.gmra.mrb[0].mxu0 %v2108
        %v2410 = vpop.f32.mrb[0].mxu0
        %v2411 = vadd.f32 %v2026, %v2410
        %v2412 = vpop.f32.mrb[0].mxu0
        %v2413 = vadd.f32 %v2028, %v2412
        %2414 = vmatprep.mubr.f32.mxu0 %v2111
        %2415 = vmatmul.mubr.f32.gmra.mrb[0].mxu0 %v2110
        %v2416 = vpop.f32.mrb[0].mxu0
        %v2417 = vadd.f32 %v2032, %v2416
        %v2418 = vpop.f32.mrb[0].mxu0
        %v2419 = vadd.f32 %v2034, %v2418
        %2420 = vmatprep.mubr.f32.mxu0 %v2113
        %2421 = vmatmul.mubr.f32.gmra.mrb[0].mxu0 %v2112
        %v2422 = vpop.f32.mrb[0].mxu0
        %v2423 = vadd.f32 %v2038, %v2422
        %v2424 = vpop.f32.mrb[0].mxu0
        %v2425 = vadd.f32 %v2040, %v2424
        %2426 = vmatprep.mubr.f32.mxu0 %v2115
        %2427 = vmatmul.mubr.f32.gmra.mrb[0].mxu0 %v2114
        %v2428 = vpop.f32.mrb[0].mxu0
        %v2429 = vadd.f32 %v2044, %v2428
        %v2430 = vpop.f32.mrb[0].mxu0
        %v2431 = vadd.f32 %v2046, %v2430
        %2432 = vmatprep.mubr.f32.mxu0 %v2117
        %2433 = vmatmul.mubr.f32.gmra.mrb[0].mxu0 %v2116
        %v2434 = vpop.f32.mrb[0].mxu0
        %v2435 = vadd.f32 %v2050, %v2434
        %v2436 = vpop.f32.mrb[0].mxu0
        %v2437 = vadd.f32 %v2052, %v2436
        %2438 = vdwg.mxu0
        %2439 = vst [vmem:[%s781] sm:$0xff] %v2249
        %2440 = vst [vmem:[%s781 + $0x8] sm:$0xff] %v2251
        %2441 = vst [vmem:[%s781 + $0x10] sm:$0xff] %v2255
        %2442 = vst [vmem:[%s781 + $0x18] sm:$0xff] %v2257
        %2443 = vst [vmem:[%s781 + $0x20] sm:$0xff] %v2261
        %2444 = vst [vmem:[%s781 + $0x28] sm:$0xff] %v2263
        %2445 = vst [vmem:[%s781 + $0x30] sm:$0xff] %v2267
        %2446 = vst [vmem:[%s781 + $0x38] sm:$0xff] %v2269
        %2447 = vst [vmem:[%s781 + $0x40] sm:$0xff] %v2273
        %2448 = vst [vmem:[%s781 + $0x48] sm:$0xff] %v2275
        %2449 = vst [vmem:[%s781 + $0x50] sm:$0xff] %v2279
        %2450 = vst [vmem:[%s781 + $0x58] sm:$0xff] %v2281
        %2451 = vst [vmem:[%s781 + $0x60] sm:$0xff] %v2285
        %2452 = vst [vmem:[%s781 + $0x68] sm:$0xff] %v2287
        %2453 = vst [vmem:[%s781 + $0x70] sm:$0xff] %v2291
        %2454 = vst [vmem:[%s781 + $0x78] sm:$0xff] %v2293
        %2455 = vst [vmem:[%s781 + $0x80] sm:$0xff] %v2297
        %2456 = vst [vmem:[%s781 + $0x88] sm:$0xff] %v2299
        %2457 = vst [vmem:[%s781 + $0x90] sm:$0xff] %v2303
        %2458 = vst [vmem:[%s781 + $0x98] sm:$0xff] %v2305
        %2459 = vst [vmem:[%s781 + $0xa0] sm:$0xff] %v2309
        %2460 = vst [vmem:[%s781 + $0xa8] sm:$0xff] %v2311
        %2461 = vst [vmem:[%s781 + $0xb0] sm:$0xff] %v2315
        %2462 = vst [vmem:[%s781 + $0xb8] sm:$0xff] %v2317
        %2463 = vst [vmem:[%s781 + $0xc0] sm:$0xff] %v2321
        %2464 = vst [vmem:[%s781 + $0xc8] sm:$0xff] %v2323
        %2465 = vst [vmem:[%s781 + $0xd0] sm:$0xff] %v2327
        %2466 = vst [vmem:[%s781 + $0xd8] sm:$0xff] %v2329
        %2467 = vst [vmem:[%s781 + $0xe0] sm:$0xff] %v2333
        %2468 = vst [vmem:[%s781 + $0xe8] sm:$0xff] %v2335
        %2469 = vst [vmem:[%s781 + $0xf0] sm:$0xff] %v2339
        %2470 = vst [vmem:[%s781 + $0xf8] sm:$0xff] %v2341
        %2471 = vst [vmem:[%s781 + $0x100] sm:$0xff] %v2345
        %2472 = vst [vmem:[%s781 + $0x108] sm:$0xff] %v2347
        %2473 = vst [vmem:[%s781 + $0x110] sm:$0xff] %v2351
        %2474 = vst [vmem:[%s781 + $0x118] sm:$0xff] %v2353
        %2475 = vst [vmem:[%s781 + $0x120] sm:$0xff] %v2357
        %2476 = vst [vmem:[%s781 + $0x128] sm:$0xff] %v2359
        %2477 = vst [vmem:[%s781 + $0x130] sm:$0xff] %v2363
        %2478 = vst [vmem:[%s781 + $0x138] sm:$0xff] %v2365
        %2479 = vst [vmem:[%s781 + $0x140] sm:$0xff] %v2369
        %2480 = vst [vmem:[%s781 + $0x148] sm:$0xff] %v2371
        %2481 = vst [vmem:[%s781 + $0x150] sm:$0xff] %v2375
        %2482 = vst [vmem:[%s781 + $0x158] sm:$0xff] %v2377
        %2483 = vst [vmem:[%s781 + $0x160] sm:$0xff] %v2381
        %2484 = vst [vmem:[%s781 + $0x168] sm:$0xff] %v2383
        %2485 = vst [vmem:[%s781 + $0x170] sm:$0xff] %v2387
        %2486 = vst [vmem:[%s781 + $0x178] sm:$0xff] %v2389
        %2487 = vst [vmem:[%s781 + $0x180] sm:$0xff] %v2393
        %2488 = vst [vmem:[%s781 + $0x188] sm:$0xff] %v2395
        %2489 = vst [vmem:[%s781 + $0x190] sm:$0xff] %v2399
        %2490 = vst [vmem:[%s781 + $0x198] sm:$0xff] %v2401
        %2491 = vst [vmem:[%s781 + $0x1a0] sm:$0xff] %v2405
        %2492 = vst [vmem:[%s781 + $0x1a8] sm:$0xff] %v2407
        %2493 = vst [vmem:[%s781 + $0x1b0] sm:$0xff] %v2411
        %2494 = vst [vmem:[%s781 + $0x1b8] sm:$0xff] %v2413
        %2495 = vst [vmem:[%s781 + $0x1c0] sm:$0xff] %v2417
        %2496 = vst [vmem:[%s781 + $0x1c8] sm:$0xff] %v2419
        %2497 = vst [vmem:[%s781 + $0x1d0] sm:$0xff] %v2423
        %2498 = vst [vmem:[%s781 + $0x1d8] sm:$0xff] %v2425
        %2499 = vst [vmem:[%s781 + $0x1e0] sm:$0xff] %v2429
        %2500 = vst [vmem:[%s781 + $0x1e8] sm:$0xff] %v2431
        %2501 = vst [vmem:[%s781 + $0x1f0] sm:$0xff] %v2435
        %2502 = vst [vmem:[%s781 + $0x1f8] sm:$0xff] %v2437
        %v2503 = vld [vmem:[#allocation19] sm:$0xff]
        %v2504 = vld [vmem:[#allocation19 + $0x8] sm:$0xff]
        %v2505 = vld [vmem:[#allocation19 + $0x10] sm:$0xff]
        %v2506 = vld [vmem:[#allocation19 + $0x18] sm:$0xff]
        %v2507 = vld [vmem:[#allocation19 + $0x20] sm:$0xff]
        %v2508 = vld [vmem:[#allocation19 + $0x28] sm:$0xff]
        %v2509 = vld [vmem:[#allocation19 + $0x30] sm:$0xff]
        %v2510 = vld [vmem:[#allocation19 + $0x38] sm:$0xff]
        %v2511 = vld [vmem:[#allocation19 + $0x40] sm:$0xff]
        %v2512 = vld [vmem:[#allocation19 + $0x48] sm:$0xff]
        %v2513 = vld [vmem:[#allocation19 + $0x50] sm:$0xff]
        %v2514 = vld [vmem:[#allocation19 + $0x58] sm:$0xff]
        %v2515 = vld [vmem:[#allocation19 + $0x60] sm:$0xff]
        %v2516 = vld [vmem:[#allocation19 + $0x68] sm:$0xff]
        %v2517 = vld [vmem:[#allocation19 + $0x70] sm:$0xff]
        %v2518 = vld [vmem:[#allocation19 + $0x78] sm:$0xff]
        %v2519 = vld [vmem:[#allocation19 + $0x80] sm:$0xff]
        %v2520 = vld [vmem:[#allocation19 + $0x88] sm:$0xff]
        %v2521 = vld [vmem:[#allocation19 + $0x90] sm:$0xff]
        %v2522 = vld [vmem:[#allocation19 + $0x98] sm:$0xff]
        %v2523 = vld [vmem:[#allocation19 + $0xa0] sm:$0xff]
        %v2524 = vld [vmem:[#allocation19 + $0xa8] sm:$0xff]
        %v2525 = vld [vmem:[#allocation19 + $0xb0] sm:$0xff]
        %v2526 = vld [vmem:[#allocation19 + $0xb8] sm:$0xff]
        %v2527 = vld [vmem:[#allocation19 + $0xc0] sm:$0xff]
        %v2528 = vld [vmem:[#allocation19 + $0xc8] sm:$0xff]
        %v2529 = vld [vmem:[#allocation19 + $0xd0] sm:$0xff]
        %v2530 = vld [vmem:[#allocation19 + $0xd8] sm:$0xff]
        %v2531 = vld [vmem:[#allocation19 + $0xe0] sm:$0xff]
        %v2532 = vld [vmem:[#allocation19 + $0xe8] sm:$0xff]
        %v2533 = vld [vmem:[#allocation19 + $0xf0] sm:$0xff]
        %v2534 = vld [vmem:[#allocation19 + $0xf8] sm:$0xff]
        %v2535 = vld [vmem:[#allocation19 + $0x100] sm:$0xff]
        %v2536 = vld [vmem:[#allocation19 + $0x108] sm:$0xff]
        %v2537 = vld [vmem:[#allocation19 + $0x110] sm:$0xff]
        %v2538 = vld [vmem:[#allocation19 + $0x118] sm:$0xff]
        %v2539 = vld [vmem:[#allocation19 + $0x120] sm:$0xff]
        %v2540 = vld [vmem:[#allocation19 + $0x128] sm:$0xff]
        %v2541 = vld [vmem:[#allocation19 + $0x130] sm:$0xff]
        %v2542 = vld [vmem:[#allocation19 + $0x138] sm:$0xff]
        %v2543 = vld [vmem:[#allocation19 + $0x140] sm:$0xff]
        %v2544 = vld [vmem:[#allocation19 + $0x148] sm:$0xff]
        %v2545 = vld [vmem:[#allocation19 + $0x150] sm:$0xff]
        %v2546 = vld [vmem:[#allocation19 + $0x158] sm:$0xff]
        %v2547 = vld [vmem:[#allocation19 + $0x160] sm:$0xff]
        %v2548 = vld [vmem:[#allocation19 + $0x168] sm:$0xff]
        %v2549 = vld [vmem:[#allocation19 + $0x170] sm:$0xff]
        %v2550 = vld [vmem:[#allocation19 + $0x178] sm:$0xff]
        %v2551 = vld [vmem:[#allocation19 + $0x180] sm:$0xff]
        %v2552 = vld [vmem:[#allocation19 + $0x188] sm:$0xff]
        %v2553 = vld [vmem:[#allocation19 + $0x190] sm:$0xff]
        %v2554 = vld [vmem:[#allocation19 + $0x198] sm:$0xff]
        %v2555 = vld [vmem:[#allocation19 + $0x1a0] sm:$0xff]
        %v2556 = vld [vmem:[#allocation19 + $0x1a8] sm:$0xff]
        %v2557 = vld [vmem:[#allocation19 + $0x1b0] sm:$0xff]
        %v2558 = vld [vmem:[#allocation19 + $0x1b8] sm:$0xff]
        %v2559 = vld [vmem:[#allocation19 + $0x1c0] sm:$0xff]
        %v2560 = vld [vmem:[#allocation19 + $0x1c8] sm:$0xff]
        %v2561 = vld [vmem:[#allocation19 + $0x1d0] sm:$0xff]
        %v2562 = vld [vmem:[#allocation19 + $0x1d8] sm:$0xff]
        %v2563 = vld [vmem:[#allocation19 + $0x1e0] sm:$0xff]
        %v2564 = vld [vmem:[#allocation19 + $0x1e8] sm:$0xff]
        %v2565 = vld [vmem:[#allocation19 + $0x1f0] sm:$0xff]
        %v2566 = vld [vmem:[#allocation19 + $0x1f8] sm:$0xff]
        %v2567 = vld [vmem:[#allocation19 + $0x200] sm:$0xff]
        %v2568 = vld [vmem:[#allocation19 + $0x208] sm:$0xff]
        %v2569 = vld [vmem:[#allocation19 + $0x210] sm:$0xff]
        %v2570 = vld [vmem:[#allocation19 + $0x218] sm:$0xff]
        %v2571 = vld [vmem:[#allocation19 + $0x220] sm:$0xff]
        %v2572 = vld [vmem:[#allocation19 + $0x228] sm:$0xff]
        %v2573 = vld [vmem:[#allocation19 + $0x230] sm:$0xff]
        %v2574 = vld [vmem:[#allocation19 + $0x238] sm:$0xff]
        %v2575 = vld [vmem:[#allocation19 + $0x240] sm:$0xff]
        %v2576 = vld [vmem:[#allocation19 + $0x248] sm:$0xff]
        %v2577 = vld [vmem:[#allocation19 + $0x250] sm:$0xff]
        %v2578 = vld [vmem:[#allocation19 + $0x258] sm:$0xff]
        %v2579 = vld [vmem:[#allocation19 + $0x260] sm:$0xff]
        %v2580 = vld [vmem:[#allocation19 + $0x268] sm:$0xff]
        %v2581 = vld [vmem:[#allocation19 + $0x270] sm:$0xff]
        %v2582 = vld [vmem:[#allocation19 + $0x278] sm:$0xff]
        %v2583 = vld [vmem:[#allocation19 + $0x280] sm:$0xff]
        %v2584 = vld [vmem:[#allocation19 + $0x288] sm:$0xff]
        %v2585 = vld [vmem:[#allocation19 + $0x290] sm:$0xff]
        %v2586 = vld [vmem:[#allocation19 + $0x298] sm:$0xff]
        %v2587 = vld [vmem:[#allocation19 + $0x2a0] sm:$0xff]
        %v2588 = vld [vmem:[#allocation19 + $0x2a8] sm:$0xff]
        %v2589 = vld [vmem:[#allocation19 + $0x2b0] sm:$0xff]
        %v2590 = vld [vmem:[#allocation19 + $0x2b8] sm:$0xff]
        %v2591 = vld [vmem:[#allocation19 + $0x2c0] sm:$0xff]
        %v2592 = vld [vmem:[#allocation19 + $0x2c8] sm:$0xff]
        %v2593 = vld [vmem:[#allocation19 + $0x2d0] sm:$0xff]
        %v2594 = vld [vmem:[#allocation19 + $0x2d8] sm:$0xff]
        %v2595 = vld [vmem:[#allocation19 + $0x2e0] sm:$0xff]
        %v2596 = vld [vmem:[#allocation19 + $0x2e8] sm:$0xff]
        %v2597 = vld [vmem:[#allocation19 + $0x2f0] sm:$0xff]
        %v2598 = vld [vmem:[#allocation19 + $0x2f8] sm:$0xff]
        %v2599 = vld [vmem:[#allocation19 + $0x300] sm:$0xff]
        %v2600 = vld [vmem:[#allocation19 + $0x308] sm:$0xff]
        %v2601 = vld [vmem:[#allocation19 + $0x310] sm:$0xff]
        %v2602 = vld [vmem:[#allocation19 + $0x318] sm:$0xff]
        %v2603 = vld [vmem:[#allocation19 + $0x320] sm:$0xff]
        %v2604 = vld [vmem:[#allocation19 + $0x328] sm:$0xff]
        %v2605 = vld [vmem:[#allocation19 + $0x330] sm:$0xff]
        %v2606 = vld [vmem:[#allocation19 + $0x338] sm:$0xff]
        %v2607 = vld [vmem:[#allocation19 + $0x340] sm:$0xff]
        %v2608 = vld [vmem:[#allocation19 + $0x348] sm:$0xff]
        %v2609 = vld [vmem:[#allocation19 + $0x350] sm:$0xff]
        %v2610 = vld [vmem:[#allocation19 + $0x358] sm:$0xff]
        %v2611 = vld [vmem:[#allocation19 + $0x360] sm:$0xff]
        %v2612 = vld [vmem:[#allocation19 + $0x368] sm:$0xff]
        %v2613 = vld [vmem:[#allocation19 + $0x370] sm:$0xff]
        %v2614 = vld [vmem:[#allocation19 + $0x378] sm:$0xff]
        %v2615 = vld [vmem:[#allocation19 + $0x380] sm:$0xff]
        %v2616 = vld [vmem:[#allocation19 + $0x388] sm:$0xff]
        %v2617 = vld [vmem:[#allocation19 + $0x390] sm:$0xff]
        %v2618 = vld [vmem:[#allocation19 + $0x398] sm:$0xff]
        %v2619 = vld [vmem:[#allocation19 + $0x3a0] sm:$0xff]
        %v2620 = vld [vmem:[#allocation19 + $0x3a8] sm:$0xff]
        %v2621 = vld [vmem:[#allocation19 + $0x3b0] sm:$0xff]
        %v2622 = vld [vmem:[#allocation19 + $0x3b8] sm:$0xff]
        %v2623 = vld [vmem:[#allocation19 + $0x3c0] sm:$0xff]
        %v2624 = vld [vmem:[#allocation19 + $0x3c8] sm:$0xff]
        %v2625 = vld [vmem:[#allocation19 + $0x3d0] sm:$0xff]
        %v2626 = vld [vmem:[#allocation19 + $0x3d8] sm:$0xff]
        %v2627 = vld [vmem:[#allocation19 + $0x3e0] sm:$0xff]
        %v2628 = vld [vmem:[#allocation19 + $0x3e8] sm:$0xff]
        %v2629 = vld [vmem:[#allocation19 + $0x3f0] sm:$0xff]
        %v2630 = vld [vmem:[#allocation19 + $0x3f8] sm:$0xff]
        %v2631 = vld [vmem:[#allocation20] sm:$0xf]
        %v2632 = vld [vmem:[#allocation22] sm:$0xff]
        %v2633 = vld [vmem:[#allocation22 + $0x8] sm:$0xff]
        %v2634 = vld [vmem:[#allocation22 + $0x10] sm:$0xff]
        %v2635 = vld [vmem:[#allocation22 + $0x18] sm:$0xff]
        %v2636 = vld [vmem:[#allocation22 + $0x20] sm:$0xff]
        %v2637 = vld [vmem:[#allocation22 + $0x28] sm:$0xff]
        %v2638 = vld [vmem:[#allocation22 + $0x30] sm:$0xff]
        %v2639 = vld [vmem:[#allocation22 + $0x38] sm:$0xff]
        %v2640 = vld [vmem:[#allocation22 + $0x40] sm:$0xff]
        %v2641 = vld [vmem:[#allocation22 + $0x48] sm:$0xff]
        %v2642 = vld [vmem:[#allocation22 + $0x50] sm:$0xff]
        %v2643 = vld [vmem:[#allocation22 + $0x58] sm:$0xff]
        %v2644 = vld [vmem:[#allocation22 + $0x60] sm:$0xff]
        %v2645 = vld [vmem:[#allocation22 + $0x68] sm:$0xff]
        %v2646 = vld [vmem:[#allocation22 + $0x70] sm:$0xff]
        %v2647 = vld [vmem:[#allocation22 + $0x78] sm:$0xff]
        %v2648 = vld [vmem:[#allocation22 + $0x80] sm:$0xff]
        %v2649 = vld [vmem:[#allocation22 + $0x88] sm:$0xff]
        %v2650 = vld [vmem:[#allocation22 + $0x90] sm:$0xff]
        %v2651 = vld [vmem:[#allocation22 + $0x98] sm:$0xff]
        %v2652 = vld [vmem:[#allocation22 + $0xa0] sm:$0xff]
        %v2653 = vld [vmem:[#allocation22 + $0xa8] sm:$0xff]
        %v2654 = vld [vmem:[#allocation22 + $0xb0] sm:$0xff]
        %v2655 = vld [vmem:[#allocation22 + $0xb8] sm:$0xff]
        %v2656 = vld [vmem:[#allocation22 + $0xc0] sm:$0xff]
        %v2657 = vld [vmem:[#allocation22 + $0xc8] sm:$0xff]
        %v2658 = vld [vmem:[#allocation22 + $0xd0] sm:$0xff]
        %v2659 = vld [vmem:[#allocation22 + $0xd8] sm:$0xff]
        %v2660 = vld [vmem:[#allocation22 + $0xe0] sm:$0xff]
        %v2661 = vld [vmem:[#allocation22 + $0xe8] sm:$0xff]
        %v2662 = vld [vmem:[#allocation22 + $0xf0] sm:$0xff]
        %v2663 = vld [vmem:[#allocation22 + $0xf8] sm:$0xff]
        %v2664 = vld [vmem:[#allocation22 + $0x100] sm:$0xff]
        %v2665 = vld [vmem:[#allocation22 + $0x108] sm:$0xff]
        %v2666 = vld [vmem:[#allocation22 + $0x110] sm:$0xff]
        %v2667 = vld [vmem:[#allocation22 + $0x118] sm:$0xff]
        %v2668 = vld [vmem:[#allocation22 + $0x120] sm:$0xff]
        %v2669 = vld [vmem:[#allocation22 + $0x128] sm:$0xff]
        %v2670 = vld [vmem:[#allocation22 + $0x130] sm:$0xff]
        %v2671 = vld [vmem:[#allocation22 + $0x138] sm:$0xff]
        %v2672 = vld [vmem:[#allocation22 + $0x140] sm:$0xff]
        %v2673 = vld [vmem:[#allocation22 + $0x148] sm:$0xff]
        %v2674 = vld [vmem:[#allocation22 + $0x150] sm:$0xff]
        %v2675 = vld [vmem:[#allocation22 + $0x158] sm:$0xff]
        %v2676 = vld [vmem:[#allocation22 + $0x160] sm:$0xff]
        %v2677 = vld [vmem:[#allocation22 + $0x168] sm:$0xff]
        %v2678 = vld [vmem:[#allocation22 + $0x170] sm:$0xff]
        %v2679 = vld [vmem:[#allocation22 + $0x178] sm:$0xff]
        %v2680 = vld [vmem:[#allocation22 + $0x180] sm:$0xff]
        %v2681 = vld [vmem:[#allocation22 + $0x188] sm:$0xff]
        %v2682 = vld [vmem:[#allocation22 + $0x190] sm:$0xff]
        %v2683 = vld [vmem:[#allocation22 + $0x198] sm:$0xff]
        %v2684 = vld [vmem:[#allocation22 + $0x1a0] sm:$0xff]
        %v2685 = vld [vmem:[#allocation22 + $0x1a8] sm:$0xff]
        %v2686 = vld [vmem:[#allocation22 + $0x1b0] sm:$0xff]
        %v2687 = vld [vmem:[#allocation22 + $0x1b8] sm:$0xff]
        %v2688 = vld [vmem:[#allocation22 + $0x1c0] sm:$0xff]
        %v2689 = vld [vmem:[#allocation22 + $0x1c8] sm:$0xff]
        %v2690 = vld [vmem:[#allocation22 + $0x1d0] sm:$0xff]
        %v2691 = vld [vmem:[#allocation22 + $0x1d8] sm:$0xff]
        %v2692 = vld [vmem:[#allocation22 + $0x1e0] sm:$0xff]
        %v2693 = vld [vmem:[#allocation22 + $0x1e8] sm:$0xff]
        %v2694 = vld [vmem:[#allocation22 + $0x1f0] sm:$0xff]
        %v2695 = vld [vmem:[#allocation22 + $0x1f8] sm:$0xff]
        %v2696 = vld [vmem:[#allocation22 + $0x200] sm:$0xff]
        %v2697 = vld [vmem:[#allocation22 + $0x208] sm:$0xff]
        %v2698 = vld [vmem:[#allocation22 + $0x210] sm:$0xff]
        %v2699 = vld [vmem:[#allocation22 + $0x218] sm:$0xff]
        %v2700 = vld [vmem:[#allocation22 + $0x220] sm:$0xff]
        %v2701 = vld [vmem:[#allocation22 + $0x228] sm:$0xff]
        %v2702 = vld [vmem:[#allocation22 + $0x230] sm:$0xff]
        %v2703 = vld [vmem:[#allocation22 + $0x238] sm:$0xff]
        %v2704 = vld [vmem:[#allocation22 + $0x240] sm:$0xff]
        %v2705 = vld [vmem:[#allocation22 + $0x248] sm:$0xff]
        %v2706 = vld [vmem:[#allocation22 + $0x250] sm:$0xff]
        %v2707 = vld [vmem:[#allocation22 + $0x258] sm:$0xff]
        %v2708 = vld [vmem:[#allocation22 + $0x260] sm:$0xff]
        %v2709 = vld [vmem:[#allocation22 + $0x268] sm:$0xff]
        %v2710 = vld [vmem:[#allocation22 + $0x270] sm:$0xff]
        %v2711 = vld [vmem:[#allocation22 + $0x278] sm:$0xff]
        %v2712 = vld [vmem:[#allocation22 + $0x280] sm:$0xff]
        %v2713 = vld [vmem:[#allocation22 + $0x288] sm:$0xff]
        %v2714 = vld [vmem:[#allocation22 + $0x290] sm:$0xff]
        %v2715 = vld [vmem:[#allocation22 + $0x298] sm:$0xff]
        %v2716 = vld [vmem:[#allocation22 + $0x2a0] sm:$0xff]
        %v2717 = vld [vmem:[#allocation22 + $0x2a8] sm:$0xff]
        %v2718 = vld [vmem:[#allocation22 + $0x2b0] sm:$0xff]
        %v2719 = vld [vmem:[#allocation22 + $0x2b8] sm:$0xff]
        %v2720 = vld [vmem:[#allocation22 + $0x2c0] sm:$0xff]
        %v2721 = vld [vmem:[#allocation22 + $0x2c8] sm:$0xff]
        %v2722 = vld [vmem:[#allocation22 + $0x2d0] sm:$0xff]
        %v2723 = vld [vmem:[#allocation22 + $0x2d8] sm:$0xff]
        %v2724 = vld [vmem:[#allocation22 + $0x2e0] sm:$0xff]
        %v2725 = vld [vmem:[#allocation22 + $0x2e8] sm:$0xff]
        %v2726 = vld [vmem:[#allocation22 + $0x2f0] sm:$0xff]
        %v2727 = vld [vmem:[#allocation22 + $0x2f8] sm:$0xff]
        %v2728 = vld [vmem:[#allocation22 + $0x300] sm:$0xff]
        %v2729 = vld [vmem:[#allocation22 + $0x308] sm:$0xff]
        %v2730 = vld [vmem:[#allocation22 + $0x310] sm:$0xff]
        %v2731 = vld [vmem:[#allocation22 + $0x318] sm:$0xff]
        %v2732 = vld [vmem:[#allocation22 + $0x320] sm:$0xff]
        %v2733 = vld [vmem:[#allocation22 + $0x328] sm:$0xff]
        %v2734 = vld [vmem:[#allocation22 + $0x330] sm:$0xff]
        %v2735 = vld [vmem:[#allocation22 + $0x338] sm:$0xff]
        %v2736 = vld [vmem:[#allocation22 + $0x340] sm:$0xff]
        %v2737 = vld [vmem:[#allocation22 + $0x348] sm:$0xff]
        %v2738 = vld [vmem:[#allocation22 + $0x350] sm:$0xff]
        %v2739 = vld [vmem:[#allocation22 + $0x358] sm:$0xff]
        %v2740 = vld [vmem:[#allocation22 + $0x360] sm:$0xff]
        %v2741 = vld [vmem:[#allocation22 + $0x368] sm:$0xff]
        %v2742 = vld [vmem:[#allocation22 + $0x370] sm:$0xff]
        %v2743 = vld [vmem:[#allocation22 + $0x378] sm:$0xff]
        %v2744 = vld [vmem:[#allocation22 + $0x380] sm:$0xff]
        %v2745 = vld [vmem:[#allocation22 + $0x388] sm:$0xff]
        %v2746 = vld [vmem:[#allocation22 + $0x390] sm:$0xff]
        %v2747 = vld [vmem:[#allocation22 + $0x398] sm:$0xff]
        %v2748 = vld [vmem:[#allocation22 + $0x3a0] sm:$0xff]
        %v2749 = vld [vmem:[#allocation22 + $0x3a8] sm:$0xff]
        %v2750 = vld [vmem:[#allocation22 + $0x3b0] sm:$0xff]
        %v2751 = vld [vmem:[#allocation22 + $0x3b8] sm:$0xff]
        %v2752 = vld [vmem:[#allocation22 + $0x3c0] sm:$0xff]
        %v2753 = vld [vmem:[#allocation22 + $0x3c8] sm:$0xff]
        %v2754 = vld [vmem:[#allocation22 + $0x3d0] sm:$0xff]
        %v2755 = vld [vmem:[#allocation22 + $0x3d8] sm:$0xff]
        %v2756 = vld [vmem:[#allocation22 + $0x3e0] sm:$0xff]
        %v2757 = vld [vmem:[#allocation22 + $0x3e8] sm:$0xff]
        %v2758 = vld [vmem:[#allocation22 + $0x3f0] sm:$0xff]
        %v2759 = vld [vmem:[#allocation22 + $0x3f8] sm:$0xff]
        %v2760 = vld [vmem:[#allocation22 + $0x400] sm:$0xff]
        %v2761 = vld [vmem:[#allocation22 + $0x408] sm:$0xff]
        %v2762 = vld [vmem:[#allocation22 + $0x410] sm:$0xff]
        %v2763 = vld [vmem:[#allocation22 + $0x418] sm:$0xff]
        %v2764 = vld [vmem:[#allocation22 + $0x420] sm:$0xff]
        %v2765 = vld [vmem:[#allocation22 + $0x428] sm:$0xff]
        %v2766 = vld [vmem:[#allocation22 + $0x430] sm:$0xff]
        %v2767 = vld [vmem:[#allocation22 + $0x438] sm:$0xff]
        %v2768 = vld [vmem:[#allocation22 + $0x440] sm:$0xff]
        %v2769 = vld [vmem:[#allocation22 + $0x448] sm:$0xff]
        %v2770 = vld [vmem:[#allocation22 + $0x450] sm:$0xff]
        %v2771 = vld [vmem:[#allocation22 + $0x458] sm:$0xff]
        %v2772 = vld [vmem:[#allocation22 + $0x460] sm:$0xff]
        %v2773 = vld [vmem:[#allocation22 + $0x468] sm:$0xff]
        %v2774 = vld [vmem:[#allocation22 + $0x470] sm:$0xff]
        %v2775 = vld [vmem:[#allocation22 + $0x478] sm:$0xff]
        %v2776 = vld [vmem:[#allocation22 + $0x480] sm:$0xff]
        %v2777 = vld [vmem:[#allocation22 + $0x488] sm:$0xff]
        %v2778 = vld [vmem:[#allocation22 + $0x490] sm:$0xff]
        %v2779 = vld [vmem:[#allocation22 + $0x498] sm:$0xff]
        %v2780 = vld [vmem:[#allocation22 + $0x4a0] sm:$0xff]
        %v2781 = vld [vmem:[#allocation22 + $0x4a8] sm:$0xff]
        %v2782 = vld [vmem:[#allocation22 + $0x4b0] sm:$0xff]
        %v2783 = vld [vmem:[#allocation22 + $0x4b8] sm:$0xff]
        %v2784 = vld [vmem:[#allocation22 + $0x4c0] sm:$0xff]
        %v2785 = vld [vmem:[#allocation22 + $0x4c8] sm:$0xff]
        %v2786 = vld [vmem:[#allocation22 + $0x4d0] sm:$0xff]
        %v2787 = vld [vmem:[#allocation22 + $0x4d8] sm:$0xff]
        %v2788 = vld [vmem:[#allocation22 + $0x4e0] sm:$0xff]
        %v2789 = vld [vmem:[#allocation22 + $0x4e8] sm:$0xff]
        %v2790 = vld [vmem:[#allocation22 + $0x4f0] sm:$0xff]
        %v2791 = vld [vmem:[#allocation22 + $0x4f8] sm:$0xff]
        %v2792 = vld [vmem:[#allocation22 + $0x500] sm:$0xff]
        %v2793 = vld [vmem:[#allocation22 + $0x508] sm:$0xff]
        %v2794 = vld [vmem:[#allocation22 + $0x510] sm:$0xff]
        %v2795 = vld [vmem:[#allocation22 + $0x518] sm:$0xff]
        %v2796 = vld [vmem:[#allocation22 + $0x520] sm:$0xff]
        %v2797 = vld [vmem:[#allocation22 + $0x528] sm:$0xff]
        %v2798 = vld [vmem:[#allocation22 + $0x530] sm:$0xff]
        %v2799 = vld [vmem:[#allocation22 + $0x538] sm:$0xff]
        %v2800 = vld [vmem:[#allocation22 + $0x540] sm:$0xff]
        %v2801 = vld [vmem:[#allocation22 + $0x548] sm:$0xff]
        %v2802 = vld [vmem:[#allocation22 + $0x550] sm:$0xff]
        %v2803 = vld [vmem:[#allocation22 + $0x558] sm:$0xff]
        %v2804 = vld [vmem:[#allocation22 + $0x560] sm:$0xff]
        %v2805 = vld [vmem:[#allocation22 + $0x568] sm:$0xff]
        %v2806 = vld [vmem:[#allocation22 + $0x570] sm:$0xff]
        %v2807 = vld [vmem:[#allocation22 + $0x578] sm:$0xff]
        %v2808 = vld [vmem:[#allocation22 + $0x580] sm:$0xff]
        %v2809 = vld [vmem:[#allocation22 + $0x588] sm:$0xff]
        %v2810 = vld [vmem:[#allocation22 + $0x590] sm:$0xff]
        %v2811 = vld [vmem:[#allocation22 + $0x598] sm:$0xff]
        %v2812 = vld [vmem:[#allocation22 + $0x5a0] sm:$0xff]
        %v2813 = vld [vmem:[#allocation22 + $0x5a8] sm:$0xff]
        %v2814 = vld [vmem:[#allocation22 + $0x5b0] sm:$0xff]
        %v2815 = vld [vmem:[#allocation22 + $0x5b8] sm:$0xff]
        %v2816 = vld [vmem:[#allocation22 + $0x5c0] sm:$0xff]
        %v2817 = vld [vmem:[#allocation22 + $0x5c8] sm:$0xff]
        %v2818 = vld [vmem:[#allocation22 + $0x5d0] sm:$0xff]
        %v2819 = vld [vmem:[#allocation22 + $0x5d8] sm:$0xff]
        %v2820 = vld [vmem:[#allocation22 + $0x5e0] sm:$0xff]
        %v2821 = vld [vmem:[#allocation22 + $0x5e8] sm:$0xff]
        %v2822 = vld [vmem:[#allocation22 + $0x5f0] sm:$0xff]
        %v2823 = vld [vmem:[#allocation22 + $0x5f8] sm:$0xff]
        %v2824 = vld [vmem:[#allocation22 + $0x600] sm:$0xff]
        %v2825 = vld [vmem:[#allocation22 + $0x608] sm:$0xff]
        %v2826 = vld [vmem:[#allocation22 + $0x610] sm:$0xff]
        %v2827 = vld [vmem:[#allocation22 + $0x618] sm:$0xff]
        %v2828 = vld [vmem:[#allocation22 + $0x620] sm:$0xff]
        %v2829 = vld [vmem:[#allocation22 + $0x628] sm:$0xff]
        %v2830 = vld [vmem:[#allocation22 + $0x630] sm:$0xff]
        %v2831 = vld [vmem:[#allocation22 + $0x638] sm:$0xff]
        %v2832 = vld [vmem:[#allocation22 + $0x640] sm:$0xff]
        %v2833 = vld [vmem:[#allocation22 + $0x648] sm:$0xff]
        %v2834 = vld [vmem:[#allocation22 + $0x650] sm:$0xff]
        %v2835 = vld [vmem:[#allocation22 + $0x658] sm:$0xff]
        %v2836 = vld [vmem:[#allocation22 + $0x660] sm:$0xff]
        %v2837 = vld [vmem:[#allocation22 + $0x668] sm:$0xff]
        %v2838 = vld [vmem:[#allocation22 + $0x670] sm:$0xff]
        %v2839 = vld [vmem:[#allocation22 + $0x678] sm:$0xff]
        %v2840 = vld [vmem:[#allocation22 + $0x680] sm:$0xff]
        %v2841 = vld [vmem:[#allocation22 + $0x688] sm:$0xff]
        %v2842 = vld [vmem:[#allocation22 + $0x690] sm:$0xff]
        %v2843 = vld [vmem:[#allocation22 + $0x698] sm:$0xff]
        %v2844 = vld [vmem:[#allocation22 + $0x6a0] sm:$0xff]
        %v2845 = vld [vmem:[#allocation22 + $0x6a8] sm:$0xff]
        %v2846 = vld [vmem:[#allocation22 + $0x6b0] sm:$0xff]
        %v2847 = vld [vmem:[#allocation22 + $0x6b8] sm:$0xff]
        %v2848 = vld [vmem:[#allocation22 + $0x6c0] sm:$0xff]
        %v2849 = vld [vmem:[#allocation22 + $0x6c8] sm:$0xff]
        %v2850 = vld [vmem:[#allocation22 + $0x6d0] sm:$0xff]
        %v2851 = vld [vmem:[#allocation22 + $0x6d8] sm:$0xff]
        %v2852 = vld [vmem:[#allocation22 + $0x6e0] sm:$0xff]
        %v2853 = vld [vmem:[#allocation22 + $0x6e8] sm:$0xff]
        %v2854 = vld [vmem:[#allocation22 + $0x6f0] sm:$0xff]
        %v2855 = vld [vmem:[#allocation22 + $0x6f8] sm:$0xff]
        %v2856 = vld [vmem:[#allocation22 + $0x700] sm:$0xff]
        %v2857 = vld [vmem:[#allocation22 + $0x708] sm:$0xff]
        %v2858 = vld [vmem:[#allocation22 + $0x710] sm:$0xff]
        %v2859 = vld [vmem:[#allocation22 + $0x718] sm:$0xff]
        %v2860 = vld [vmem:[#allocation22 + $0x720] sm:$0xff]
        %v2861 = vld [vmem:[#allocation22 + $0x728] sm:$0xff]
        %v2862 = vld [vmem:[#allocation22 + $0x730] sm:$0xff]
        %v2863 = vld [vmem:[#allocation22 + $0x738] sm:$0xff]
        %v2864 = vld [vmem:[#allocation22 + $0x740] sm:$0xff]
        %v2865 = vld [vmem:[#allocation22 + $0x748] sm:$0xff]
        %v2866 = vld [vmem:[#allocation22 + $0x750] sm:$0xff]
        %v2867 = vld [vmem:[#allocation22 + $0x758] sm:$0xff]
        %v2868 = vld [vmem:[#allocation22 + $0x760] sm:$0xff]
        %v2869 = vld [vmem:[#allocation22 + $0x768] sm:$0xff]
        %v2870 = vld [vmem:[#allocation22 + $0x770] sm:$0xff]
        %v2871 = vld [vmem:[#allocation22 + $0x778] sm:$0xff]
        %v2872 = vld [vmem:[#allocation22 + $0x780] sm:$0xff]
        %v2873 = vld [vmem:[#allocation22 + $0x788] sm:$0xff]
        %v2874 = vld [vmem:[#allocation22 + $0x790] sm:$0xff]
        %v2875 = vld [vmem:[#allocation22 + $0x798] sm:$0xff]
        %v2876 = vld [vmem:[#allocation22 + $0x7a0] sm:$0xff]
        %v2877 = vld [vmem:[#allocation22 + $0x7a8] sm:$0xff]
        %v2878 = vld [vmem:[#allocation22 + $0x7b0] sm:$0xff]
        %v2879 = vld [vmem:[#allocation22 + $0x7b8] sm:$0xff]
        %v2880 = vld [vmem:[#allocation22 + $0x7c0] sm:$0xff]
        %v2881 = vld [vmem:[#allocation22 + $0x7c8] sm:$0xff]
        %v2882 = vld [vmem:[#allocation22 + $0x7d0] sm:$0xff]
        %v2883 = vld [vmem:[#allocation22 + $0x7d8] sm:$0xff]
        %v2884 = vld [vmem:[#allocation22 + $0x7e0] sm:$0xff]
        %v2885 = vld [vmem:[#allocation22 + $0x7e8] sm:$0xff]
        %v2886 = vld [vmem:[#allocation22 + $0x7f0] sm:$0xff]
        %v2887 = vld [vmem:[#allocation22 + $0x7f8] sm:$0xff]
        %v2888 = vld [vmem:[#allocation23] sm:$0xf]
        %v2890 = vlaneseq
        %v2891 = vshrl.u32 %v2890, 7
        %v2892 = vsub.s32 0, %v2891
        %v2893 = vrot.slane %v2631, %v2892
        %v2894 = vlaneseq
        %v2895 = vshrl.u32 %v2894, 7
        %v2896 = vsub.s32 1, %v2895
        %v2897 = vrot.slane %v2631, %v2896
        %v2898 = vlaneseq
        %v2899 = vshrl.u32 %v2898, 7
        %v2900 = vsub.s32 2, %v2899
        %v2901 = vrot.slane %v2631, %v2900
        %v2902 = vlaneseq
        %v2903 = vshrl.u32 %v2902, 7
        %v2904 = vsub.s32 3, %v2903
        %v2905 = vrot.slane %v2631, %v2904
        %2910 = vmatprep.subr.mxu0 %v2504
        %2911 = vmatpush1.msra.mxu0 %v2503
        %2912 = vmatprep.subr.mxu0 %v2508
        %2913 = vmatpush1.msra.mxu0 %v2507
        %2914 = vmatprep.subr.mxu0 %v2512
        %2915 = vmatpush1.msra.mxu0 %v2511
        %2916 = vmatprep.subr.mxu0 %v2516
        %2917 = vmatpush1.msra.mxu0 %v2515
        %2918 = vmatprep.subr.mxu0 %v2520
        %2919 = vmatpush1.msra.mxu0 %v2519
        %2920 = vmatprep.subr.mxu0 %v2524
        %2921 = vmatpush1.msra.mxu0 %v2523
        %2922 = vmatprep.subr.mxu0 %v2528
        %2923 = vmatpush1.msra.mxu0 %v2527
        %2924 = vmatprep.subr.mxu0 %v2532
        %2925 = vmatpush1.msra.mxu0 %v2531
        %2926 = vmatprep.subr.mxu0 %v2536
        %2927 = vmatpush1.msra.mxu0 %v2535
        %2928 = vmatprep.subr.mxu0 %v2540
        %2929 = vmatpush1.msra.mxu0 %v2539
        %2930 = vmatprep.subr.mxu0 %v2544
        %2931 = vmatpush1.msra.mxu0 %v2543
        %2932 = vmatprep.subr.mxu0 %v2548
        %2933 = vmatpush1.msra.mxu0 %v2547
        %2934 = vmatprep.subr.mxu0 %v2552
        %2935 = vmatpush1.msra.mxu0 %v2551
        %2936 = vmatprep.subr.mxu0 %v2556
        %2937 = vmatpush1.msra.mxu0 %v2555
        %2938 = vmatprep.subr.mxu0 %v2560
        %2939 = vmatpush1.msra.mxu0 %v2559
        %2940 = vmatprep.subr.mxu0 %v2564
        %2941 = vmatpush1.msra.mxu0 %v2563
        %2942 = vmatprep.subr.mxu0 %v2568
        %2943 = vmatpush1.msra.mxu0 %v2567
        %2944 = vmatprep.subr.mxu0 %v2572
        %2945 = vmatpush1.msra.mxu0 %v2571
        %2946 = vmatprep.subr.mxu0 %v2576
        %2947 = vmatpush1.msra.mxu0 %v2575
        %2948 = vmatprep.subr.mxu0 %v2580
        %2949 = vmatpush1.msra.mxu0 %v2579
        %2950 = vmatprep.subr.mxu0 %v2584
        %2951 = vmatpush1.msra.mxu0 %v2583
        %2952 = vmatprep.subr.mxu0 %v2588
        %2953 = vmatpush1.msra.mxu0 %v2587
        %2954 = vmatprep.subr.mxu0 %v2592
        %2955 = vmatpush1.msra.mxu0 %v2591
        %2956 = vmatprep.subr.mxu0 %v2596
        %2957 = vmatpush1.msra.mxu0 %v2595
        %2958 = vmatprep.subr.mxu0 %v2600
        %2959 = vmatpush1.msra.mxu0 %v2599
        %2960 = vmatprep.subr.mxu0 %v2604
        %2961 = vmatpush1.msra.mxu0 %v2603
        %2962 = vmatprep.subr.mxu0 %v2608
        %2963 = vmatpush1.msra.mxu0 %v2607
        %2964 = vmatprep.subr.mxu0 %v2612
        %2965 = vmatpush1.msra.mxu0 %v2611
        %2966 = vmatprep.subr.mxu0 %v2616
        %2967 = vmatpush1.msra.mxu0 %v2615
        %2968 = vmatprep.subr.mxu0 %v2620
        %2969 = vmatpush1.msra.mxu0 %v2619
        %2970 = vmatprep.subr.mxu0 %v2624
        %2971 = vmatpush1.msra.mxu0 %v2623
        %2972 = vmatprep.subr.mxu0 %v2628
        %2973 = vmatpush1.msra.mxu0 %v2627
        %2974 = vmatprep.mubr.f32.mxu0 %v2251
        %2975 = vmatmul.mubr.f32.gmra.mrb[0].mxu0 %v2249
        %v2976 = vpop.f32.mrb[0].mxu0
        %v2977 = vadd.f32 %v2893, %v2976
        %v2978 = vpop.f32.mrb[0].mxu0
        %v2979 = vadd.f32 %v2897, %v2978
        %2980 = vmatprep.mubr.f32.mxu0 %v2257
        %2981 = vmatmul.mubr.f32.gmra.mrb[0].mxu0 %v2255
        %v2982 = vpop.f32.mrb[0].mxu0
        %v2983 = vadd.f32 %v2893, %v2982
        %v2984 = vpop.f32.mrb[0].mxu0
        %v2985 = vadd.f32 %v2897, %v2984
        %2986 = vmatprep.mubr.f32.mxu0 %v2263
        %2987 = vmatmul.mubr.f32.gmra.mrb[0].mxu0 %v2261
        %v2988 = vpop.f32.mrb[0].mxu0
        %v2989 = vadd.f32 %v2893, %v2988
        %v2990 = vpop.f32.mrb[0].mxu0
        %v2991 = vadd.f32 %v2897, %v2990
        %2992 = vmatprep.mubr.f32.mxu0 %v2269
        %2993 = vmatmul.mubr.f32.gmra.mrb[0].mxu0 %v2267
        %v2994 = vpop.f32.mrb[0].mxu0
        %v2995 = vadd.f32 %v2893, %v2994
        %v2996 = vpop.f32.mrb[0].mxu0
        %v2997 = vadd.f32 %v2897, %v2996
        %2998 = vmatprep.mubr.f32.mxu0 %v2275
        %2999 = vmatmul.mubr.f32.gmra.mrb[0].mxu0 %v2273
        %v3000 = vpop.f32.mrb[0].mxu0
        %v3001 = vadd.f32 %v2893, %v3000
        %v3002 = vpop.f32.mrb[0].mxu0
        %v3003 = vadd.f32 %v2897, %v3002
        %3004 = vmatprep.mubr.f32.mxu0 %v2281
        %3005 = vmatmul.mubr.f32.gmra.mrb[0].mxu0 %v2279
        %v3006 = vpop.f32.mrb[0].mxu0
        %v3007 = vadd.f32 %v2893, %v3006
        %v3008 = vpop.f32.mrb[0].mxu0
        %v3009 = vadd.f32 %v2897, %v3008
        %3010 = vmatprep.mubr.f32.mxu0 %v2287
        %3011 = vmatmul.mubr.f32.gmra.mrb[0].mxu0 %v2285
        %v3012 = vpop.f32.mrb[0].mxu0
        %v3013 = vadd.f32 %v2893, %v3012
        %v3014 = vpop.f32.mrb[0].mxu0
        %v3015 = vadd.f32 %v2897, %v3014
        %3016 = vmatprep.mubr.f32.mxu0 %v2293
        %3017 = vmatmul.mubr.f32.gmra.mrb[0].mxu0 %v2291
        %v3018 = vpop.f32.mrb[0].mxu0
        %v3019 = vadd.f32 %v2893, %v3018
        %v3020 = vpop.f32.mrb[0].mxu0
        %v3021 = vadd.f32 %v2897, %v3020
        %3022 = vmatprep.mubr.f32.mxu0 %v2299
        %3023 = vmatmul.mubr.f32.gmra.mrb[0].mxu0 %v2297
        %v3024 = vpop.f32.mrb[0].mxu0
        %v3025 = vadd.f32 %v2893, %v3024
        %v3026 = vpop.f32.mrb[0].mxu0
        %v3027 = vadd.f32 %v2897, %v3026
        %3028 = vmatprep.mubr.f32.mxu0 %v2305
        %3029 = vmatmul.mubr.f32.gmra.mrb[0].mxu0 %v2303
        %v3030 = vpop.f32.mrb[0].mxu0
        %v3031 = vadd.f32 %v2893, %v3030
        %v3032 = vpop.f32.mrb[0].mxu0
        %v3033 = vadd.f32 %v2897, %v3032
        %3034 = vmatprep.mubr.f32.mxu0 %v2311
        %3035 = vmatmul.mubr.f32.gmra.mrb[0].mxu0 %v2309
        %v3036 = vpop.f32.mrb[0].mxu0
        %v3037 = vadd.f32 %v2893, %v3036
        %v3038 = vpop.f32.mrb[0].mxu0
        %v3039 = vadd.f32 %v2897, %v3038
        %3040 = vmatprep.mubr.f32.mxu0 %v2317
        %3041 = vmatmul.mubr.f32.gmra.mrb[0].mxu0 %v2315
        %v3042 = vpop.f32.mrb[0].mxu0
        %v3043 = vadd.f32 %v2893, %v3042
        %v3044 = vpop.f32.mrb[0].mxu0
        %v3045 = vadd.f32 %v2897, %v3044
        %3046 = vmatprep.mubr.f32.mxu0 %v2323
        %3047 = vmatmul.mubr.f32.gmra.mrb[0].mxu0 %v2321
        %v3048 = vpop.f32.mrb[0].mxu0
        %v3049 = vadd.f32 %v2893, %v3048
        %v3050 = vpop.f32.mrb[0].mxu0
        %v3051 = vadd.f32 %v2897, %v3050
        %3052 = vmatprep.mubr.f32.mxu0 %v2329
        %3053 = vmatmul.mubr.f32.gmra.mrb[0].mxu0 %v2327
        %v3054 = vpop.f32.mrb[0].mxu0
        %v3055 = vadd.f32 %v2893, %v3054
        %v3056 = vpop.f32.mrb[0].mxu0
        %v3057 = vadd.f32 %v2897, %v3056
        %3058 = vmatprep.mubr.f32.mxu0 %v2335
        %3059 = vmatmul.mubr.f32.gmra.mrb[0].mxu0 %v2333
        %v3060 = vpop.f32.mrb[0].mxu0
        %v3061 = vadd.f32 %v2893, %v3060
        %v3062 = vpop.f32.mrb[0].mxu0
        %v3063 = vadd.f32 %v2897, %v3062
        %3064 = vmatprep.mubr.f32.mxu0 %v2341
        %3065 = vmatmul.mubr.f32.gmra.mrb[0].mxu0 %v2339
        %v3066 = vpop.f32.mrb[0].mxu0
        %v3067 = vadd.f32 %v2893, %v3066
        %v3068 = vpop.f32.mrb[0].mxu0
        %v3069 = vadd.f32 %v2897, %v3068
        %3070 = vmatprep.mubr.f32.mxu0 %v2347
        %3071 = vmatmul.mubr.f32.gmra.mrb[0].mxu0 %v2345
        %v3072 = vpop.f32.mrb[0].mxu0
        %v3073 = vadd.f32 %v2893, %v3072
        %v3074 = vpop.f32.mrb[0].mxu0
        %v3075 = vadd.f32 %v2897, %v3074
        %3076 = vmatprep.mubr.f32.mxu0 %v2353
        %3077 = vmatmul.mubr.f32.gmra.mrb[0].mxu0 %v2351
        %v3078 = vpop.f32.mrb[0].mxu0
        %v3079 = vadd.f32 %v2893, %v3078
        %v3080 = vpop.f32.mrb[0].mxu0
        %v3081 = vadd.f32 %v2897, %v3080
        %3082 = vmatprep.mubr.f32.mxu0 %v2359
        %3083 = vmatmul.mubr.f32.gmra.mrb[0].mxu0 %v2357
        %v3084 = vpop.f32.mrb[0].mxu0
        %v3085 = vadd.f32 %v2893, %v3084
        %v3086 = vpop.f32.mrb[0].mxu0
        %v3087 = vadd.f32 %v2897, %v3086
        %3088 = vmatprep.mubr.f32.mxu0 %v2365
        %3089 = vmatmul.mubr.f32.gmra.mrb[0].mxu0 %v2363
        %v3090 = vpop.f32.mrb[0].mxu0
        %v3091 = vadd.f32 %v2893, %v3090
        %v3092 = vpop.f32.mrb[0].mxu0
        %v3093 = vadd.f32 %v2897, %v3092
        %3094 = vmatprep.mubr.f32.mxu0 %v2371
        %3095 = vmatmul.mubr.f32.gmra.mrb[0].mxu0 %v2369
        %v3096 = vpop.f32.mrb[0].mxu0
        %v3097 = vadd.f32 %v2893, %v3096
        %v3098 = vpop.f32.mrb[0].mxu0
        %v3099 = vadd.f32 %v2897, %v3098
        %3100 = vmatprep.mubr.f32.mxu0 %v2377
        %3101 = vmatmul.mubr.f32.gmra.mrb[0].mxu0 %v2375
        %v3102 = vpop.f32.mrb[0].mxu0
        %v3103 = vadd.f32 %v2893, %v3102
        %v3104 = vpop.f32.mrb[0].mxu0
        %v3105 = vadd.f32 %v2897, %v3104
        %3106 = vmatprep.mubr.f32.mxu0 %v2383
        %3107 = vmatmul.mubr.f32.gmra.mrb[0].mxu0 %v2381
        %v3108 = vpop.f32.mrb[0].mxu0
        %v3109 = vadd.f32 %v2893, %v3108
        %v3110 = vpop.f32.mrb[0].mxu0
        %v3111 = vadd.f32 %v2897, %v3110
        %3112 = vmatprep.mubr.f32.mxu0 %v2389
        %3113 = vmatmul.mubr.f32.gmra.mrb[0].mxu0 %v2387
        %v3114 = vpop.f32.mrb[0].mxu0
        %v3115 = vadd.f32 %v2893, %v3114
        %v3116 = vpop.f32.mrb[0].mxu0
        %v3117 = vadd.f32 %v2897, %v3116
        %3118 = vmatprep.mubr.f32.mxu0 %v2395
        %3119 = vmatmul.mubr.f32.gmra.mrb[0].mxu0 %v2393
        %v3120 = vpop.f32.mrb[0].mxu0
        %v3121 = vadd.f32 %v2893, %v3120
        %v3122 = vpop.f32.mrb[0].mxu0
        %v3123 = vadd.f32 %v2897, %v3122
        %3124 = vmatprep.mubr.f32.mxu0 %v2401
        %3125 = vmatmul.mubr.f32.gmra.mrb[0].mxu0 %v2399
        %v3126 = vpop.f32.mrb[0].mxu0
        %v3127 = vadd.f32 %v2893, %v3126
        %v3128 = vpop.f32.mrb[0].mxu0
        %v3129 = vadd.f32 %v2897, %v3128
        %3130 = vmatprep.mubr.f32.mxu0 %v2407
        %3131 = vmatmul.mubr.f32.gmra.mrb[0].mxu0 %v2405
        %v3132 = vpop.f32.mrb[0].mxu0
        %v3133 = vadd.f32 %v2893, %v3132
        %v3134 = vpop.f32.mrb[0].mxu0
        %v3135 = vadd.f32 %v2897, %v3134
        %3136 = vmatprep.mubr.f32.mxu0 %v2413
        %3137 = vmatmul.mubr.f32.gmra.mrb[0].mxu0 %v2411
        %v3138 = vpop.f32.mrb[0].mxu0
        %v3139 = vadd.f32 %v2893, %v3138
        %v3140 = vpop.f32.mrb[0].mxu0
        %v3141 = vadd.f32 %v2897, %v3140
        %3142 = vmatprep.mubr.f32.mxu0 %v2419
        %3143 = vmatmul.mubr.f32.gmra.mrb[0].mxu0 %v2417
        %v3144 = vpop.f32.mrb[0].mxu0
        %v3145 = vadd.f32 %v2893, %v3144
        %v3146 = vpop.f32.mrb[0].mxu0
        %v3147 = vadd.f32 %v2897, %v3146
        %3148 = vmatprep.mubr.f32.mxu0 %v2425
        %3149 = vmatmul.mubr.f32.gmra.mrb[0].mxu0 %v2423
        %v3150 = vpop.f32.mrb[0].mxu0
        %v3151 = vadd.f32 %v2893, %v3150
        %v3152 = vpop.f32.mrb[0].mxu0
        %v3153 = vadd.f32 %v2897, %v3152
        %3154 = vmatprep.mubr.f32.mxu0 %v2431
        %3155 = vmatmul.mubr.f32.gmra.mrb[0].mxu0 %v2429
        %v3156 = vpop.f32.mrb[0].mxu0
        %v3157 = vadd.f32 %v2893, %v3156
        %v3158 = vpop.f32.mrb[0].mxu0
        %v3159 = vadd.f32 %v2897, %v3158
        %3160 = vmatprep.mubr.f32.mxu0 %v2437
        %3161 = vmatmul.mubr.f32.gmra.mrb[0].mxu0 %v2435
        %v3162 = vpop.f32.mrb[0].mxu0
        %v3163 = vadd.f32 %v2893, %v3162
        %v3164 = vpop.f32.mrb[0].mxu0
        %v3165 = vadd.f32 %v2897, %v3164
        %3166 = vdwg.mxu0
        %3167 = vmatprep.subr.mxu0 %v2506
        %3168 = vmatpush1.msra.mxu0 %v2505
        %3169 = vmatprep.subr.mxu0 %v2510
        %3170 = vmatpush1.msra.mxu0 %v2509
        %3171 = vmatprep.subr.mxu0 %v2514
        %3172 = vmatpush1.msra.mxu0 %v2513
        %3173 = vmatprep.subr.mxu0 %v2518
        %3174 = vmatpush1.msra.mxu0 %v2517
        %3175 = vmatprep.subr.mxu0 %v2522
        %3176 = vmatpush1.msra.mxu0 %v2521
        %3177 = vmatprep.subr.mxu0 %v2526
        %3178 = vmatpush1.msra.mxu0 %v2525
        %3179 = vmatprep.subr.mxu0 %v2530
        %3180 = vmatpush1.msra.mxu0 %v2529
        %3181 = vmatprep.subr.mxu0 %v2534
        %3182 = vmatpush1.msra.mxu0 %v2533
        %3183 = vmatprep.subr.mxu0 %v2538
        %3184 = vmatpush1.msra.mxu0 %v2537
        %3185 = vmatprep.subr.mxu0 %v2542
        %3186 = vmatpush1.msra.mxu0 %v2541
        %3187 = vmatprep.subr.mxu0 %v2546
        %3188 = vmatpush1.msra.mxu0 %v2545
        %3189 = vmatprep.subr.mxu0 %v2550
        %3190 = vmatpush1.msra.mxu0 %v2549
        %3191 = vmatprep.subr.mxu0 %v2554
        %3192 = vmatpush1.msra.mxu0 %v2553
        %3193 = vmatprep.subr.mxu0 %v2558
        %3194 = vmatpush1.msra.mxu0 %v2557
        %3195 = vmatprep.subr.mxu0 %v2562
        %3196 = vmatpush1.msra.mxu0 %v2561
        %3197 = vmatprep.subr.mxu0 %v2566
        %3198 = vmatpush1.msra.mxu0 %v2565
        %3199 = vmatprep.subr.mxu0 %v2570
        %3200 = vmatpush1.msra.mxu0 %v2569
        %3201 = vmatprep.subr.mxu0 %v2574
        %3202 = vmatpush1.msra.mxu0 %v2573
        %3203 = vmatprep.subr.mxu0 %v2578
        %3204 = vmatpush1.msra.mxu0 %v2577
        %3205 = vmatprep.subr.mxu0 %v2582
        %3206 = vmatpush1.msra.mxu0 %v2581
        %3207 = vmatprep.subr.mxu0 %v2586
        %3208 = vmatpush1.msra.mxu0 %v2585
        %3209 = vmatprep.subr.mxu0 %v2590
        %3210 = vmatpush1.msra.mxu0 %v2589
        %3211 = vmatprep.subr.mxu0 %v2594
        %3212 = vmatpush1.msra.mxu0 %v2593
        %3213 = vmatprep.subr.mxu0 %v2598
        %3214 = vmatpush1.msra.mxu0 %v2597
        %3215 = vmatprep.subr.mxu0 %v2602
        %3216 = vmatpush1.msra.mxu0 %v2601
        %3217 = vmatprep.subr.mxu0 %v2606
        %3218 = vmatpush1.msra.mxu0 %v2605
        %3219 = vmatprep.subr.mxu0 %v2610
        %3220 = vmatpush1.msra.mxu0 %v2609
        %3221 = vmatprep.subr.mxu0 %v2614
        %3222 = vmatpush1.msra.mxu0 %v2613
        %3223 = vmatprep.subr.mxu0 %v2618
        %3224 = vmatpush1.msra.mxu0 %v2617
        %3225 = vmatprep.subr.mxu0 %v2622
        %3226 = vmatpush1.msra.mxu0 %v2621
        %3227 = vmatprep.subr.mxu0 %v2626
        %3228 = vmatpush1.msra.mxu0 %v2625
        %3229 = vmatprep.subr.mxu0 %v2630
        %3230 = vmatpush1.msra.mxu0 %v2629
        %3231 = vmatprep.mubr.f32.mxu0 %v2251
        %3232 = vmatmul.mubr.f32.gmra.mrb[0].mxu0 %v2249
        %v3233 = vpop.f32.mrb[0].mxu0
        %v3234 = vadd.f32 %v2901, %v3233
        %v3235 = vpop.f32.mrb[0].mxu0
        %v3236 = vadd.f32 %v2905, %v3235
        %3237 = vmatprep.mubr.f32.mxu0 %v2257
        %3238 = vmatmul.mubr.f32.gmra.mrb[0].mxu0 %v2255
        %v3239 = vpop.f32.mrb[0].mxu0
        %v3240 = vadd.f32 %v2901, %v3239
        %v3241 = vpop.f32.mrb[0].mxu0
        %v3242 = vadd.f32 %v2905, %v3241
        %3243 = vmatprep.mubr.f32.mxu0 %v2263
        %3244 = vmatmul.mubr.f32.gmra.mrb[0].mxu0 %v2261
        %v3245 = vpop.f32.mrb[0].mxu0
        %v3246 = vadd.f32 %v2901, %v3245
        %v3247 = vpop.f32.mrb[0].mxu0
        %v3248 = vadd.f32 %v2905, %v3247
        %3249 = vmatprep.mubr.f32.mxu0 %v2269
        %3250 = vmatmul.mubr.f32.gmra.mrb[0].mxu0 %v2267
        %v3251 = vpop.f32.mrb[0].mxu0
        %v3252 = vadd.f32 %v2901, %v3251
        %v3253 = vpop.f32.mrb[0].mxu0
        %v3254 = vadd.f32 %v2905, %v3253
        %3255 = vmatprep.mubr.f32.mxu0 %v2275
        %3256 = vmatmul.mubr.f32.gmra.mrb[0].mxu0 %v2273
        %v3257 = vpop.f32.mrb[0].mxu0
        %v3258 = vadd.f32 %v2901, %v3257
        %v3259 = vpop.f32.mrb[0].mxu0
        %v3260 = vadd.f32 %v2905, %v3259
        %3261 = vmatprep.mubr.f32.mxu0 %v2281
        %3262 = vmatmul.mubr.f32.gmra.mrb[0].mxu0 %v2279
        %v3263 = vpop.f32.mrb[0].mxu0
        %v3264 = vadd.f32 %v2901, %v3263
        %v3265 = vpop.f32.mrb[0].mxu0
        %v3266 = vadd.f32 %v2905, %v3265
        %3267 = vmatprep.mubr.f32.mxu0 %v2287
        %3268 = vmatmul.mubr.f32.gmra.mrb[0].mxu0 %v2285
        %v3269 = vpop.f32.mrb[0].mxu0
        %v3270 = vadd.f32 %v2901, %v3269
        %v3271 = vpop.f32.mrb[0].mxu0
        %v3272 = vadd.f32 %v2905, %v3271
        %3273 = vmatprep.mubr.f32.mxu0 %v2293
        %3274 = vmatmul.mubr.f32.gmra.mrb[0].mxu0 %v2291
        %v3275 = vpop.f32.mrb[0].mxu0
        %v3276 = vadd.f32 %v2901, %v3275
        %v3277 = vpop.f32.mrb[0].mxu0
        %v3278 = vadd.f32 %v2905, %v3277
        %3279 = vmatprep.mubr.f32.mxu0 %v2299
        %3280 = vmatmul.mubr.f32.gmra.mrb[0].mxu0 %v2297
        %v3281 = vpop.f32.mrb[0].mxu0
        %v3282 = vadd.f32 %v2901, %v3281
        %v3283 = vpop.f32.mrb[0].mxu0
        %v3284 = vadd.f32 %v2905, %v3283
        %3285 = vmatprep.mubr.f32.mxu0 %v2305
        %3286 = vmatmul.mubr.f32.gmra.mrb[0].mxu0 %v2303
        %v3287 = vpop.f32.mrb[0].mxu0
        %v3288 = vadd.f32 %v2901, %v3287
        %v3289 = vpop.f32.mrb[0].mxu0
        %v3290 = vadd.f32 %v2905, %v3289
        %3291 = vmatprep.mubr.f32.mxu0 %v2311
        %3292 = vmatmul.mubr.f32.gmra.mrb[0].mxu0 %v2309
        %v3293 = vpop.f32.mrb[0].mxu0
        %v3294 = vadd.f32 %v2901, %v3293
        %v3295 = vpop.f32.mrb[0].mxu0
        %v3296 = vadd.f32 %v2905, %v3295
        %3297 = vmatprep.mubr.f32.mxu0 %v2317
        %3298 = vmatmul.mubr.f32.gmra.mrb[0].mxu0 %v2315
        %v3299 = vpop.f32.mrb[0].mxu0
        %v3300 = vadd.f32 %v2901, %v3299
        %v3301 = vpop.f32.mrb[0].mxu0
        %v3302 = vadd.f32 %v2905, %v3301
        %3303 = vmatprep.mubr.f32.mxu0 %v2323
        %3304 = vmatmul.mubr.f32.gmra.mrb[0].mxu0 %v2321
        %v3305 = vpop.f32.mrb[0].mxu0
        %v3306 = vadd.f32 %v2901, %v3305
        %v3307 = vpop.f32.mrb[0].mxu0
        %v3308 = vadd.f32 %v2905, %v3307
        %3309 = vmatprep.mubr.f32.mxu0 %v2329
        %3310 = vmatmul.mubr.f32.gmra.mrb[0].mxu0 %v2327
        %v3311 = vpop.f32.mrb[0].mxu0
        %v3312 = vadd.f32 %v2901, %v3311
        %v3313 = vpop.f32.mrb[0].mxu0
        %v3314 = vadd.f32 %v2905, %v3313
        %3315 = vmatprep.mubr.f32.mxu0 %v2335
        %3316 = vmatmul.mubr.f32.gmra.mrb[0].mxu0 %v2333
        %v3317 = vpop.f32.mrb[0].mxu0
        %v3318 = vadd.f32 %v2901, %v3317
        %v3319 = vpop.f32.mrb[0].mxu0
        %v3320 = vadd.f32 %v2905, %v3319
        %3321 = vmatprep.mubr.f32.mxu0 %v2341
        %3322 = vmatmul.mubr.f32.gmra.mrb[0].mxu0 %v2339
        %v3323 = vpop.f32.mrb[0].mxu0
        %v3324 = vadd.f32 %v2901, %v3323
        %v3325 = vpop.f32.mrb[0].mxu0
        %v3326 = vadd.f32 %v2905, %v3325
        %3327 = vmatprep.mubr.f32.mxu0 %v2347
        %3328 = vmatmul.mubr.f32.gmra.mrb[0].mxu0 %v2345
        %v3329 = vpop.f32.mrb[0].mxu0
        %v3330 = vadd.f32 %v2901, %v3329
        %v3331 = vpop.f32.mrb[0].mxu0
        %v3332 = vadd.f32 %v2905, %v3331
        %3333 = vmatprep.mubr.f32.mxu0 %v2353
        %3334 = vmatmul.mubr.f32.gmra.mrb[0].mxu0 %v2351
        %v3335 = vpop.f32.mrb[0].mxu0
        %v3336 = vadd.f32 %v2901, %v3335
        %v3337 = vpop.f32.mrb[0].mxu0
        %v3338 = vadd.f32 %v2905, %v3337
        %3339 = vmatprep.mubr.f32.mxu0 %v2359
        %3340 = vmatmul.mubr.f32.gmra.mrb[0].mxu0 %v2357
        %v3341 = vpop.f32.mrb[0].mxu0
        %v3342 = vadd.f32 %v2901, %v3341
        %v3343 = vpop.f32.mrb[0].mxu0
        %v3344 = vadd.f32 %v2905, %v3343
        %3345 = vmatprep.mubr.f32.mxu0 %v2365
        %3346 = vmatmul.mubr.f32.gmra.mrb[0].mxu0 %v2363
        %v3347 = vpop.f32.mrb[0].mxu0
        %v3348 = vadd.f32 %v2901, %v3347
        %v3349 = vpop.f32.mrb[0].mxu0
        %v3350 = vadd.f32 %v2905, %v3349
        %3351 = vmatprep.mubr.f32.mxu0 %v2371
        %3352 = vmatmul.mubr.f32.gmra.mrb[0].mxu0 %v2369
        %v3353 = vpop.f32.mrb[0].mxu0
        %v3354 = vadd.f32 %v2901, %v3353
        %v3355 = vpop.f32.mrb[0].mxu0
        %v3356 = vadd.f32 %v2905, %v3355
        %3357 = vmatprep.mubr.f32.mxu0 %v2377
        %3358 = vmatmul.mubr.f32.gmra.mrb[0].mxu0 %v2375
        %v3359 = vpop.f32.mrb[0].mxu0
        %v3360 = vadd.f32 %v2901, %v3359
        %v3361 = vpop.f32.mrb[0].mxu0
        %v3362 = vadd.f32 %v2905, %v3361
        %3363 = vmatprep.mubr.f32.mxu0 %v2383
        %3364 = vmatmul.mubr.f32.gmra.mrb[0].mxu0 %v2381
        %v3365 = vpop.f32.mrb[0].mxu0
        %v3366 = vadd.f32 %v2901, %v3365
        %v3367 = vpop.f32.mrb[0].mxu0
        %v3368 = vadd.f32 %v2905, %v3367
        %3369 = vmatprep.mubr.f32.mxu0 %v2389
        %3370 = vmatmul.mubr.f32.gmra.mrb[0].mxu0 %v2387
        %v3371 = vpop.f32.mrb[0].mxu0
        %v3372 = vadd.f32 %v2901, %v3371
        %v3373 = vpop.f32.mrb[0].mxu0
        %v3374 = vadd.f32 %v2905, %v3373
        %3375 = vmatprep.mubr.f32.mxu0 %v2395
        %3376 = vmatmul.mubr.f32.gmra.mrb[0].mxu0 %v2393
        %v3377 = vpop.f32.mrb[0].mxu0
        %v3378 = vadd.f32 %v2901, %v3377
        %v3379 = vpop.f32.mrb[0].mxu0
        %v3380 = vadd.f32 %v2905, %v3379
        %3381 = vmatprep.mubr.f32.mxu0 %v2401
        %3382 = vmatmul.mubr.f32.gmra.mrb[0].mxu0 %v2399
        %v3383 = vpop.f32.mrb[0].mxu0
        %v3384 = vadd.f32 %v2901, %v3383
        %v3385 = vpop.f32.mrb[0].mxu0
        %v3386 = vadd.f32 %v2905, %v3385
        %3387 = vmatprep.mubr.f32.mxu0 %v2407
        %3388 = vmatmul.mubr.f32.gmra.mrb[0].mxu0 %v2405
        %v3389 = vpop.f32.mrb[0].mxu0
        %v3390 = vadd.f32 %v2901, %v3389
        %v3391 = vpop.f32.mrb[0].mxu0
        %v3392 = vadd.f32 %v2905, %v3391
        %3393 = vmatprep.mubr.f32.mxu0 %v2413
        %3394 = vmatmul.mubr.f32.gmra.mrb[0].mxu0 %v2411
        %v3395 = vpop.f32.mrb[0].mxu0
        %v3396 = vadd.f32 %v2901, %v3395
        %v3397 = vpop.f32.mrb[0].mxu0
        %v3398 = vadd.f32 %v2905, %v3397
        %3399 = vmatprep.mubr.f32.mxu0 %v2419
        %3400 = vmatmul.mubr.f32.gmra.mrb[0].mxu0 %v2417
        %v3401 = vpop.f32.mrb[0].mxu0
        %v3402 = vadd.f32 %v2901, %v3401
        %v3403 = vpop.f32.mrb[0].mxu0
        %v3404 = vadd.f32 %v2905, %v3403
        %3405 = vmatprep.mubr.f32.mxu0 %v2425
        %3406 = vmatmul.mubr.f32.gmra.mrb[0].mxu0 %v2423
        %v3407 = vpop.f32.mrb[0].mxu0
        %v3408 = vadd.f32 %v2901, %v3407
        %v3409 = vpop.f32.mrb[0].mxu0
        %v3410 = vadd.f32 %v2905, %v3409
        %3411 = vmatprep.mubr.f32.mxu0 %v2431
        %3412 = vmatmul.mubr.f32.gmra.mrb[0].mxu0 %v2429
        %v3413 = vpop.f32.mrb[0].mxu0
        %v3414 = vadd.f32 %v2901, %v3413
        %v3415 = vpop.f32.mrb[0].mxu0
        %v3416 = vadd.f32 %v2905, %v3415
        %3417 = vmatprep.mubr.f32.mxu0 %v2437
        %3418 = vmatmul.mubr.f32.gmra.mrb[0].mxu0 %v2435
        %v3419 = vpop.f32.mrb[0].mxu0
        %v3420 = vadd.f32 %v2901, %v3419
        %v3421 = vpop.f32.mrb[0].mxu0
        %v3422 = vadd.f32 %v2905, %v3421
        %3423 = vdwg.mxu0
        %v3424 = vmul.f32 %v2977, 0.5
        %v3425 = vmul.f32 %v2979, 0.5
        %v3426 = vmul.f32 %v3234, 0.5
        %v3427 = vmul.f32 %v3236, 0.5
        %v3428 = vmul.f32 %v2983, 0.5
        %v3429 = vmul.f32 %v2985, 0.5
        %v3430 = vmul.f32 %v3240, 0.5
        %v3431 = vmul.f32 %v3242, 0.5
        %v3432 = vmul.f32 %v2989, 0.5
        %v3433 = vmul.f32 %v2991, 0.5
        %v3434 = vmul.f32 %v3246, 0.5
        %v3435 = vmul.f32 %v3248, 0.5
        %v3436 = vmul.f32 %v2995, 0.5
        %v3437 = vmul.f32 %v2997, 0.5
        %v3438 = vmul.f32 %v3252, 0.5
        %v3439 = vmul.f32 %v3254, 0.5
        %v3440 = vmul.f32 %v3001, 0.5
        %v3441 = vmul.f32 %v3003, 0.5
        %v3442 = vmul.f32 %v3258, 0.5
        %v3443 = vmul.f32 %v3260, 0.5
        %v3444 = vmul.f32 %v3007, 0.5
        %v3445 = vmul.f32 %v3009, 0.5
        %v3446 = vmul.f32 %v3264, 0.5
        %v3447 = vmul.f32 %v3266, 0.5
        %v3448 = vmul.f32 %v3013, 0.5
        %v3449 = vmul.f32 %v3015, 0.5
        %v3450 = vmul.f32 %v3270, 0.5
        %v3451 = vmul.f32 %v3272, 0.5
        %v3452 = vmul.f32 %v3019, 0.5
        %v3453 = vmul.f32 %v3021, 0.5
        %v3454 = vmul.f32 %v3276, 0.5
        %v3455 = vmul.f32 %v3278, 0.5
        %v3456 = vmul.f32 %v3025, 0.5
        %v3457 = vmul.f32 %v3027, 0.5
        %v3458 = vmul.f32 %v3282, 0.5
        %v3459 = vmul.f32 %v3284, 0.5
        %v3460 = vmul.f32 %v3031, 0.5
        %v3461 = vmul.f32 %v3033, 0.5
        %v3462 = vmul.f32 %v3288, 0.5
        %v3463 = vmul.f32 %v3290, 0.5
        %v3464 = vmul.f32 %v3037, 0.5
        %v3465 = vmul.f32 %v3039, 0.5
        %v3466 = vmul.f32 %v3294, 0.5
        %v3467 = vmul.f32 %v3296, 0.5
        %v3468 = vmul.f32 %v3043, 0.5
        %v3469 = vmul.f32 %v3045, 0.5
        %v3470 = vmul.f32 %v3300, 0.5
        %v3471 = vmul.f32 %v3302, 0.5
        %v3472 = vmul.f32 %v3049, 0.5
        %v3473 = vmul.f32 %v3051, 0.5
        %v3474 = vmul.f32 %v3306, 0.5
        %v3475 = vmul.f32 %v3308, 0.5
        %v3476 = vmul.f32 %v3055, 0.5
        %v3477 = vmul.f32 %v3057, 0.5
        %v3478 = vmul.f32 %v3312, 0.5
        %v3479 = vmul.f32 %v3314, 0.5
        %v3480 = vmul.f32 %v3061, 0.5
        %v3481 = vmul.f32 %v3063, 0.5
        %v3482 = vmul.f32 %v3318, 0.5
        %v3483 = vmul.f32 %v3320, 0.5
        %v3484 = vmul.f32 %v3067, 0.5
        %v3485 = vmul.f32 %v3069, 0.5
        %v3486 = vmul.f32 %v3324, 0.5
        %v3487 = vmul.f32 %v3326, 0.5
        %v3488 = vmul.f32 %v3073, 0.5
        %v3489 = vmul.f32 %v3075, 0.5
        %v3490 = vmul.f32 %v3330, 0.5
        %v3491 = vmul.f32 %v3332, 0.5
        %v3492 = vmul.f32 %v3079, 0.5
        %v3493 = vmul.f32 %v3081, 0.5
        %v3494 = vmul.f32 %v3336, 0.5
        %v3495 = vmul.f32 %v3338, 0.5
        %v3496 = vmul.f32 %v3085, 0.5
        %v3497 = vmul.f32 %v3087, 0.5
        %v3498 = vmul.f32 %v3342, 0.5
        %v3499 = vmul.f32 %v3344, 0.5
        %v3500 = vmul.f32 %v3091, 0.5
        %v3501 = vmul.f32 %v3093, 0.5
        %v3502 = vmul.f32 %v3348, 0.5
        %v3503 = vmul.f32 %v3350, 0.5
        %v3504 = vmul.f32 %v3097, 0.5
        %v3505 = vmul.f32 %v3099, 0.5
        %v3506 = vmul.f32 %v3354, 0.5
        %v3507 = vmul.f32 %v3356, 0.5
        %v3508 = vmul.f32 %v3103, 0.5
        %v3509 = vmul.f32 %v3105, 0.5
        %v3510 = vmul.f32 %v3360, 0.5
        %v3511 = vmul.f32 %v3362, 0.5
        %v3512 = vmul.f32 %v3109, 0.5
        %v3513 = vmul.f32 %v3111, 0.5
        %v3514 = vmul.f32 %v3366, 0.5
        %v3515 = vmul.f32 %v3368, 0.5
        %v3516 = vmul.f32 %v3115, 0.5
        %v3517 = vmul.f32 %v3117, 0.5
        %v3518 = vmul.f32 %v3372, 0.5
        %v3519 = vmul.f32 %v3374, 0.5
        %v3520 = vmul.f32 %v3121, 0.5
        %v3521 = vmul.f32 %v3123, 0.5
        %v3522 = vmul.f32 %v3378, 0.5
        %v3523 = vmul.f32 %v3380, 0.5
        %v3524 = vmul.f32 %v3127, 0.5
        %v3525 = vmul.f32 %v3129, 0.5
        %v3526 = vmul.f32 %v3384, 0.5
        %v3527 = vmul.f32 %v3386, 0.5
        %v3528 = vmul.f32 %v3133, 0.5
        %v3529 = vmul.f32 %v3135, 0.5
        %v3530 = vmul.f32 %v3390, 0.5
        %v3531 = vmul.f32 %v3392, 0.5
        %v3532 = vmul.f32 %v3139, 0.5
        %v3533 = vmul.f32 %v3141, 0.5
        %v3534 = vmul.f32 %v3396, 0.5
        %v3535 = vmul.f32 %v3398, 0.5
        %v3536 = vmul.f32 %v3145, 0.5
        %v3537 = vmul.f32 %v3147, 0.5
        %v3538 = vmul.f32 %v3402, 0.5
        %v3539 = vmul.f32 %v3404, 0.5
        %v3540 = vmul.f32 %v3151, 0.5
        %v3541 = vmul.f32 %v3153, 0.5
        %v3542 = vmul.f32 %v3408, 0.5
        %v3543 = vmul.f32 %v3410, 0.5
        %v3544 = vmul.f32 %v3157, 0.5
        %v3545 = vmul.f32 %v3159, 0.5
        %v3546 = vmul.f32 %v3414, 0.5
        %v3547 = vmul.f32 %v3416, 0.5
        %v3548 = vmul.f32 %v3163, 0.5
        %v3549 = vmul.f32 %v3165, 0.5
        %v3550 = vmul.f32 %v3420, 0.5
        %v3551 = vmul.f32 %v3422, 0.5
        %v3552 = vmul.f32 %v2977, 0.70710677
        %v3553 = vmul.f32 %v2979, 0.70710677
        %v3554 = vmul.f32 %v3234, 0.70710677
        %v3555 = vmul.f32 %v3236, 0.70710677
        %v3556 = vmul.f32 %v2983, 0.70710677
        %v3557 = vmul.f32 %v2985, 0.70710677
        %v3558 = vmul.f32 %v3240, 0.70710677
        %v3559 = vmul.f32 %v3242, 0.70710677
        %v3560 = vmul.f32 %v2989, 0.70710677
        %v3561 = vmul.f32 %v2991, 0.70710677
        %v3562 = vmul.f32 %v3246, 0.70710677
        %v3563 = vmul.f32 %v3248, 0.70710677
        %v3564 = vmul.f32 %v2995, 0.70710677
        %v3565 = vmul.f32 %v2997, 0.70710677
        %v3566 = vmul.f32 %v3252, 0.70710677
        %v3567 = vmul.f32 %v3254, 0.70710677
        %v3568 = vmul.f32 %v3001, 0.70710677
        %v3569 = vmul.f32 %v3003, 0.70710677
        %v3570 = vmul.f32 %v3258, 0.70710677
        %v3571 = vmul.f32 %v3260, 0.70710677
        %v3572 = vmul.f32 %v3007, 0.70710677
        %v3573 = vmul.f32 %v3009, 0.70710677
        %v3574 = vmul.f32 %v3264, 0.70710677
        %v3575 = vmul.f32 %v3266, 0.70710677
        %v3576 = vmul.f32 %v3013, 0.70710677
        %v3577 = vmul.f32 %v3015, 0.70710677
        %v3578 = vmul.f32 %v3270, 0.70710677
        %v3579 = vmul.f32 %v3272, 0.70710677
        %v3580 = vmul.f32 %v3019, 0.70710677
        %v3581 = vmul.f32 %v3021, 0.70710677
        %v3582 = vmul.f32 %v3276, 0.70710677
        %v3583 = vmul.f32 %v3278, 0.70710677
        %v3584 = vmul.f32 %v3025, 0.70710677
        %v3585 = vmul.f32 %v3027, 0.70710677
        %v3586 = vmul.f32 %v3282, 0.70710677
        %v3587 = vmul.f32 %v3284, 0.70710677
        %v3588 = vmul.f32 %v3031, 0.70710677
        %v3589 = vmul.f32 %v3033, 0.70710677
        %v3590 = vmul.f32 %v3288, 0.70710677
        %v3591 = vmul.f32 %v3290, 0.70710677
        %v3592 = vmul.f32 %v3037, 0.70710677
        %v3593 = vmul.f32 %v3039, 0.70710677
        %v3594 = vmul.f32 %v3294, 0.70710677
        %v3595 = vmul.f32 %v3296, 0.70710677
        %v3596 = vmul.f32 %v3043, 0.70710677
        %v3597 = vmul.f32 %v3045, 0.70710677
        %v3598 = vmul.f32 %v3300, 0.70710677
        %v3599 = vmul.f32 %v3302, 0.70710677
        %v3600 = vmul.f32 %v3049, 0.70710677
        %v3601 = vmul.f32 %v3051, 0.70710677
        %v3602 = vmul.f32 %v3306, 0.70710677
        %v3603 = vmul.f32 %v3308, 0.70710677
        %v3604 = vmul.f32 %v3055, 0.70710677
        %v3605 = vmul.f32 %v3057, 0.70710677
        %v3606 = vmul.f32 %v3312, 0.70710677
        %v3607 = vmul.f32 %v3314, 0.70710677
        %v3608 = vmul.f32 %v3061, 0.70710677
        %v3609 = vmul.f32 %v3063, 0.70710677
        %v3610 = vmul.f32 %v3318, 0.70710677
        %v3611 = vmul.f32 %v3320, 0.70710677
        %v3612 = vmul.f32 %v3067, 0.70710677
        %v3613 = vmul.f32 %v3069, 0.70710677
        %v3614 = vmul.f32 %v3324, 0.70710677
        %v3615 = vmul.f32 %v3326, 0.70710677
        %v3616 = vmul.f32 %v3073, 0.70710677
        %v3617 = vmul.f32 %v3075, 0.70710677
        %v3618 = vmul.f32 %v3330, 0.70710677
        %v3619 = vmul.f32 %v3332, 0.70710677
        %v3620 = vmul.f32 %v3079, 0.70710677
        %v3621 = vmul.f32 %v3081, 0.70710677
        %v3622 = vmul.f32 %v3336, 0.70710677
        %v3623 = vmul.f32 %v3338, 0.70710677
        %v3624 = vmul.f32 %v3085, 0.70710677
        %v3625 = vmul.f32 %v3087, 0.70710677
        %v3626 = vmul.f32 %v3342, 0.70710677
        %v3627 = vmul.f32 %v3344, 0.70710677
        %v3628 = vmul.f32 %v3091, 0.70710677
        %v3629 = vmul.f32 %v3093, 0.70710677
        %v3630 = vmul.f32 %v3348, 0.70710677
        %v3631 = vmul.f32 %v3350, 0.70710677
        %v3632 = vmul.f32 %v3097, 0.70710677
        %v3633 = vmul.f32 %v3099, 0.70710677
        %v3634 = vmul.f32 %v3354, 0.70710677
        %v3635 = vmul.f32 %v3356, 0.70710677
        %v3636 = vmul.f32 %v3103, 0.70710677
        %v3637 = vmul.f32 %v3105, 0.70710677
        %v3638 = vmul.f32 %v3360, 0.70710677
        %v3639 = vmul.f32 %v3362, 0.70710677
        %v3640 = vmul.f32 %v3109, 0.70710677
        %v3641 = vmul.f32 %v3111, 0.70710677
        %v3642 = vmul.f32 %v3366, 0.70710677
        %v3643 = vmul.f32 %v3368, 0.70710677
        %v3644 = vmul.f32 %v3115, 0.70710677
        %v3645 = vmul.f32 %v3117, 0.70710677
        %v3646 = vmul.f32 %v3372, 0.70710677
        %v3647 = vmul.f32 %v3374, 0.70710677
        %v3648 = vmul.f32 %v3121, 0.70710677
        %v3649 = vmul.f32 %v3123, 0.70710677
        %v3650 = vmul.f32 %v3378, 0.70710677
        %v3651 = vmul.f32 %v3380, 0.70710677
        %v3652 = vmul.f32 %v3127, 0.70710677
        %v3653 = vmul.f32 %v3129, 0.70710677
        %v3654 = vmul.f32 %v3384, 0.70710677
        %v3655 = vmul.f32 %v3386, 0.70710677
        %v3656 = vmul.f32 %v3133, 0.70710677
        %v3657 = vmul.f32 %v3135, 0.70710677
        %v3658 = vmul.f32 %v3390, 0.70710677
        %v3659 = vmul.f32 %v3392, 0.70710677
        %v3660 = vmul.f32 %v3139, 0.70710677
        %v3661 = vmul.f32 %v3141, 0.70710677
        %v3662 = vmul.f32 %v3396, 0.70710677
        %v3663 = vmul.f32 %v3398, 0.70710677
        %v3664 = vmul.f32 %v3145, 0.70710677
        %v3665 = vmul.f32 %v3147, 0.70710677
        %v3666 = vmul.f32 %v3402, 0.70710677
        %v3667 = vmul.f32 %v3404, 0.70710677
        %v3668 = vmul.f32 %v3151, 0.70710677
        %v3669 = vmul.f32 %v3153, 0.70710677
        %v3670 = vmul.f32 %v3408, 0.70710677
        %v3671 = vmul.f32 %v3410, 0.70710677
        %v3672 = vmul.f32 %v3157, 0.70710677
        %v3673 = vmul.f32 %v3159, 0.70710677
        %v3674 = vmul.f32 %v3414, 0.70710677
        %v3675 = vmul.f32 %v3416, 0.70710677
        %v3676 = vmul.f32 %v3163, 0.70710677
        %v3677 = vmul.f32 %v3165, 0.70710677
        %v3678 = vmul.f32 %v3420, 0.70710677
        %v3679 = vmul.f32 %v3422, 0.70710677
        %v3680 = verf.f32.pop %v3552
        %v3681 = verf.f32.pop %v3553
        %v3682 = verf.f32.pop %v3554
        %v3683 = verf.f32.pop %v3555
        %v3684 = verf.f32.pop %v3556
        %v3685 = verf.f32.pop %v3557
        %v3686 = verf.f32.pop %v3558
        %v3687 = verf.f32.pop %v3559
        %v3688 = verf.f32.pop %v3560
        %v3689 = verf.f32.pop %v3561
        %v3690 = verf.f32.pop %v3562
        %v3691 = verf.f32.pop %v3563
        %v3692 = verf.f32.pop %v3564
        %v3693 = verf.f32.pop %v3565
        %v3694 = verf.f32.pop %v3566
        %v3695 = verf.f32.pop %v3567
        %v3696 = verf.f32.pop %v3568
        %v3697 = verf.f32.pop %v3569
        %v3698 = verf.f32.pop %v3570
        %v3699 = verf.f32.pop %v3571
        %v3700 = verf.f32.pop %v3572
        %v3701 = verf.f32.pop %v3573
        %v3702 = verf.f32.pop %v3574
        %v3703 = verf.f32.pop %v3575
        %v3704 = verf.f32.pop %v3576
        %v3705 = verf.f32.pop %v3577
        %v3706 = verf.f32.pop %v3578
        %v3707 = verf.f32.pop %v3579
        %v3708 = verf.f32.pop %v3580
        %v3709 = verf.f32.pop %v3581
        %v3710 = verf.f32.pop %v3582
        %v3711 = verf.f32.pop %v3583
        %v3712 = verf.f32.pop %v3584
        %v3713 = verf.f32.pop %v3585
        %v3714 = verf.f32.pop %v3586
        %v3715 = verf.f32.pop %v3587
        %v3716 = verf.f32.pop %v3588
        %v3717 = verf.f32.pop %v3589
        %v3718 = verf.f32.pop %v3590
        %v3719 = verf.f32.pop %v3591
        %v3720 = verf.f32.pop %v3592
        %v3721 = verf.f32.pop %v3593
        %v3722 = verf.f32.pop %v3594
        %v3723 = verf.f32.pop %v3595
        %v3724 = verf.f32.pop %v3596
        %v3725 = verf.f32.pop %v3597
        %v3726 = verf.f32.pop %v3598
        %v3727 = verf.f32.pop %v3599
        %v3728 = verf.f32.pop %v3600
        %v3729 = verf.f32.pop %v3601
        %v3730 = verf.f32.pop %v3602
        %v3731 = verf.f32.pop %v3603
        %v3732 = verf.f32.pop %v3604
        %v3733 = verf.f32.pop %v3605
        %v3734 = verf.f32.pop %v3606
        %v3735 = verf.f32.pop %v3607
        %v3736 = verf.f32.pop %v3608
        %v3737 = verf.f32.pop %v3609
        %v3738 = verf.f32.pop %v3610
        %v3739 = verf.f32.pop %v3611
        %v3740 = verf.f32.pop %v3612
        %v3741 = verf.f32.pop %v3613
        %v3742 = verf.f32.pop %v3614
        %v3743 = verf.f32.pop %v3615
        %v3744 = verf.f32.pop %v3616
        %v3745 = verf.f32.pop %v3617
        %v3746 = verf.f32.pop %v3618
        %v3747 = verf.f32.pop %v3619
        %v3748 = verf.f32.pop %v3620
        %v3749 = verf.f32.pop %v3621
        %v3750 = verf.f32.pop %v3622
        %v3751 = verf.f32.pop %v3623
        %v3752 = verf.f32.pop %v3624
        %v3753 = verf.f32.pop %v3625
        %v3754 = verf.f32.pop %v3626
        %v3755 = verf.f32.pop %v3627
        %v3756 = verf.f32.pop %v3628
        %v3757 = verf.f32.pop %v3629
        %v3758 = verf.f32.pop %v3630
        %v3759 = verf.f32.pop %v3631
        %v3760 = verf.f32.pop %v3632
        %v3761 = verf.f32.pop %v3633
        %v3762 = verf.f32.pop %v3634
        %v3763 = verf.f32.pop %v3635
        %v3764 = verf.f32.pop %v3636
        %v3765 = verf.f32.pop %v3637
        %v3766 = verf.f32.pop %v3638
        %v3767 = verf.f32.pop %v3639
        %v3768 = verf.f32.pop %v3640
        %v3769 = verf.f32.pop %v3641
        %v3770 = verf.f32.pop %v3642
        %v3771 = verf.f32.pop %v3643
        %v3772 = verf.f32.pop %v3644
        %v3773 = verf.f32.pop %v3645
        %v3774 = verf.f32.pop %v3646
        %v3775 = verf.f32.pop %v3647
        %v3776 = verf.f32.pop %v3648
        %v3777 = verf.f32.pop %v3649
        %v3778 = verf.f32.pop %v3650
        %v3779 = verf.f32.pop %v3651
        %v3780 = verf.f32.pop %v3652
        %v3781 = verf.f32.pop %v3653
        %v3782 = verf.f32.pop %v3654
        %v3783 = verf.f32.pop %v3655
        %v3784 = verf.f32.pop %v3656
        %v3785 = verf.f32.pop %v3657
        %v3786 = verf.f32.pop %v3658
        %v3787 = verf.f32.pop %v3659
        %v3788 = verf.f32.pop %v3660
        %v3789 = verf.f32.pop %v3661
        %v3790 = verf.f32.pop %v3662
        %v3791 = verf.f32.pop %v3663
        %v3792 = verf.f32.pop %v3664
        %v3793 = verf.f32.pop %v3665
        %v3794 = verf.f32.pop %v3666
        %v3795 = verf.f32.pop %v3667
        %v3796 = verf.f32.pop %v3668
        %v3797 = verf.f32.pop %v3669
        %v3798 = verf.f32.pop %v3670
        %v3799 = verf.f32.pop %v3671
        %v3800 = verf.f32.pop %v3672
        %v3801 = verf.f32.pop %v3673
        %v3802 = verf.f32.pop %v3674
        %v3803 = verf.f32.pop %v3675
        %v3804 = verf.f32.pop %v3676
        %v3805 = verf.f32.pop %v3677
        %v3806 = verf.f32.pop %v3678
        %v3807 = verf.f32.pop %v3679
        %v3808 = vadd.f32 %v3680, 1.0
        %v3809 = vadd.f32 %v3681, 1.0
        %v3810 = vadd.f32 %v3682, 1.0
        %v3811 = vadd.f32 %v3683, 1.0
        %v3812 = vadd.f32 %v3684, 1.0
        %v3813 = vadd.f32 %v3685, 1.0
        %v3814 = vadd.f32 %v3686, 1.0
        %v3815 = vadd.f32 %v3687, 1.0
        %v3816 = vadd.f32 %v3688, 1.0
        %v3817 = vadd.f32 %v3689, 1.0
        %v3818 = vadd.f32 %v3690, 1.0
        %v3819 = vadd.f32 %v3691, 1.0
        %v3820 = vadd.f32 %v3692, 1.0
        %v3821 = vadd.f32 %v3693, 1.0
        %v3822 = vadd.f32 %v3694, 1.0
        %v3823 = vadd.f32 %v3695, 1.0
        %v3824 = vadd.f32 %v3696, 1.0
        %v3825 = vadd.f32 %v3697, 1.0
        %v3826 = vadd.f32 %v3698, 1.0
        %v3827 = vadd.f32 %v3699, 1.0
        %v3828 = vadd.f32 %v3700, 1.0
        %v3829 = vadd.f32 %v3701, 1.0
        %v3830 = vadd.f32 %v3702, 1.0
        %v3831 = vadd.f32 %v3703, 1.0
        %v3832 = vadd.f32 %v3704, 1.0
        %v3833 = vadd.f32 %v3705, 1.0
        %v3834 = vadd.f32 %v3706, 1.0
        %v3835 = vadd.f32 %v3707, 1.0
        %v3836 = vadd.f32 %v3708, 1.0
        %v3837 = vadd.f32 %v3709, 1.0
        %v3838 = vadd.f32 %v3710, 1.0
        %v3839 = vadd.f32 %v3711, 1.0
        %v3840 = vadd.f32 %v3712, 1.0
        %v3841 = vadd.f32 %v3713, 1.0
        %v3842 = vadd.f32 %v3714, 1.0
        %v3843 = vadd.f32 %v3715, 1.0
        %v3844 = vadd.f32 %v3716, 1.0
        %v3845 = vadd.f32 %v3717, 1.0
        %v3846 = vadd.f32 %v3718, 1.0
        %v3847 = vadd.f32 %v3719, 1.0
        %v3848 = vadd.f32 %v3720, 1.0
        %v3849 = vadd.f32 %v3721, 1.0
        %v3850 = vadd.f32 %v3722, 1.0
        %v3851 = vadd.f32 %v3723, 1.0
        %v3852 = vadd.f32 %v3724, 1.0
        %v3853 = vadd.f32 %v3725, 1.0
        %v3854 = vadd.f32 %v3726, 1.0
        %v3855 = vadd.f32 %v3727, 1.0
        %v3856 = vadd.f32 %v3728, 1.0
        %v3857 = vadd.f32 %v3729, 1.0
        %v3858 = vadd.f32 %v3730, 1.0
        %v3859 = vadd.f32 %v3731, 1.0
        %v3860 = vadd.f32 %v3732, 1.0
        %v3861 = vadd.f32 %v3733, 1.0
        %v3862 = vadd.f32 %v3734, 1.0
        %v3863 = vadd.f32 %v3735, 1.0
        %v3864 = vadd.f32 %v3736, 1.0
        %v3865 = vadd.f32 %v3737, 1.0
        %v3866 = vadd.f32 %v3738, 1.0
        %v3867 = vadd.f32 %v3739, 1.0
        %v3868 = vadd.f32 %v3740, 1.0
        %v3869 = vadd.f32 %v3741, 1.0
        %v3870 = vadd.f32 %v3742, 1.0
        %v3871 = vadd.f32 %v3743, 1.0
        %v3872 = vadd.f32 %v3744, 1.0
        %v3873 = vadd.f32 %v3745, 1.0
        %v3874 = vadd.f32 %v3746, 1.0
        %v3875 = vadd.f32 %v3747, 1.0
        %v3876 = vadd.f32 %v3748, 1.0
        %v3877 = vadd.f32 %v3749, 1.0
        %v3878 = vadd.f32 %v3750, 1.0
        %v3879 = vadd.f32 %v3751, 1.0
        %v3880 = vadd.f32 %v3752, 1.0
        %v3881 = vadd.f32 %v3753, 1.0
        %v3882 = vadd.f32 %v3754, 1.0
        %v3883 = vadd.f32 %v3755, 1.0
        %v3884 = vadd.f32 %v3756, 1.0
        %v3885 = vadd.f32 %v3757, 1.0
        %v3886 = vadd.f32 %v3758, 1.0
        %v3887 = vadd.f32 %v3759, 1.0
        %v3888 = vadd.f32 %v3760, 1.0
        %v3889 = vadd.f32 %v3761, 1.0
        %v3890 = vadd.f32 %v3762, 1.0
        %v3891 = vadd.f32 %v3763, 1.0
        %v3892 = vadd.f32 %v3764, 1.0
        %v3893 = vadd.f32 %v3765, 1.0
        %v3894 = vadd.f32 %v3766, 1.0
        %v3895 = vadd.f32 %v3767, 1.0
        %v3896 = vadd.f32 %v3768, 1.0
        %v3897 = vadd.f32 %v3769, 1.0
        %v3898 = vadd.f32 %v3770, 1.0
        %v3899 = vadd.f32 %v3771, 1.0
        %v3900 = vadd.f32 %v3772, 1.0
        %v3901 = vadd.f32 %v3773, 1.0
        %v3902 = vadd.f32 %v3774, 1.0
        %v3903 = vadd.f32 %v3775, 1.0
        %v3904 = vadd.f32 %v3776, 1.0
        %v3905 = vadd.f32 %v3777, 1.0
        %v3906 = vadd.f32 %v3778, 1.0
        %v3907 = vadd.f32 %v3779, 1.0
        %v3908 = vadd.f32 %v3780, 1.0
        %v3909 = vadd.f32 %v3781, 1.0
        %v3910 = vadd.f32 %v3782, 1.0
        %v3911 = vadd.f32 %v3783, 1.0
        %v3912 = vadd.f32 %v3784, 1.0
        %v3913 = vadd.f32 %v3785, 1.0
        %v3914 = vadd.f32 %v3786, 1.0
        %v3915 = vadd.f32 %v3787, 1.0
        %v3916 = vadd.f32 %v3788, 1.0
        %v3917 = vadd.f32 %v3789, 1.0
        %v3918 = vadd.f32 %v3790, 1.0
        %v3919 = vadd.f32 %v3791, 1.0
        %v3920 = vadd.f32 %v3792, 1.0
        %v3921 = vadd.f32 %v3793, 1.0
        %v3922 = vadd.f32 %v3794, 1.0
        %v3923 = vadd.f32 %v3795, 1.0
        %v3924 = vadd.f32 %v3796, 1.0
        %v3925 = vadd.f32 %v3797, 1.0
        %v3926 = vadd.f32 %v3798, 1.0
        %v3927 = vadd.f32 %v3799, 1.0
        %v3928 = vadd.f32 %v3800, 1.0
        %v3929 = vadd.f32 %v3801, 1.0
        %v3930 = vadd.f32 %v3802, 1.0
        %v3931 = vadd.f32 %v3803, 1.0
        %v3932 = vadd.f32 %v3804, 1.0
        %v3933 = vadd.f32 %v3805, 1.0
        %v3934 = vadd.f32 %v3806, 1.0
        %v3935 = vadd.f32 %v3807, 1.0
        %v3936 = vmul.f32 %v3424, %v3808
        %v3937 = vmul.f32 %v3425, %v3809
        %v3938 = vmul.f32 %v3426, %v3810
        %v3939 = vmul.f32 %v3427, %v3811
        %v3940 = vmul.f32 %v3428, %v3812
        %v3941 = vmul.f32 %v3429, %v3813
        %v3942 = vmul.f32 %v3430, %v3814
        %v3943 = vmul.f32 %v3431, %v3815
        %v3944 = vmul.f32 %v3432, %v3816
        %v3945 = vmul.f32 %v3433, %v3817
        %v3946 = vmul.f32 %v3434, %v3818
        %v3947 = vmul.f32 %v3435, %v3819
        %v3948 = vmul.f32 %v3436, %v3820
        %v3949 = vmul.f32 %v3437, %v3821
        %v3950 = vmul.f32 %v3438, %v3822
        %v3951 = vmul.f32 %v3439, %v3823
        %v3952 = vmul.f32 %v3440, %v3824
        %v3953 = vmul.f32 %v3441, %v3825
        %v3954 = vmul.f32 %v3442, %v3826
        %v3955 = vmul.f32 %v3443, %v3827
        %v3956 = vmul.f32 %v3444, %v3828
        %v3957 = vmul.f32 %v3445, %v3829
        %v3958 = vmul.f32 %v3446, %v3830
        %v3959 = vmul.f32 %v3447, %v3831
        %v3960 = vmul.f32 %v3448, %v3832
        %v3961 = vmul.f32 %v3449, %v3833
        %v3962 = vmul.f32 %v3450, %v3834
        %v3963 = vmul.f32 %v3451, %v3835
        %v3964 = vmul.f32 %v3452, %v3836
        %v3965 = vmul.f32 %v3453, %v3837
        %v3966 = vmul.f32 %v3454, %v3838
        %v3967 = vmul.f32 %v3455, %v3839
        %v3968 = vmul.f32 %v3456, %v3840
        %v3969 = vmul.f32 %v3457, %v3841
        %v3970 = vmul.f32 %v3458, %v3842
        %v3971 = vmul.f32 %v3459, %v3843
        %v3972 = vmul.f32 %v3460, %v3844
        %v3973 = vmul.f32 %v3461, %v3845
        %v3974 = vmul.f32 %v3462, %v3846
        %v3975 = vmul.f32 %v3463, %v3847
        %v3976 = vmul.f32 %v3464, %v3848
        %v3977 = vmul.f32 %v3465, %v3849
        %v3978 = vmul.f32 %v3466, %v3850
        %v3979 = vmul.f32 %v3467, %v3851
        %v3980 = vmul.f32 %v3468, %v3852
        %v3981 = vmul.f32 %v3469, %v3853
        %v3982 = vmul.f32 %v3470, %v3854
        %v3983 = vmul.f32 %v3471, %v3855
        %v3984 = vmul.f32 %v3472, %v3856
        %v3985 = vmul.f32 %v3473, %v3857
        %v3986 = vmul.f32 %v3474, %v3858
        %v3987 = vmul.f32 %v3475, %v3859
        %v3988 = vmul.f32 %v3476, %v3860
        %v3989 = vmul.f32 %v3477, %v3861
        %v3990 = vmul.f32 %v3478, %v3862
        %v3991 = vmul.f32 %v3479, %v3863
        %v3992 = vmul.f32 %v3480, %v3864
        %v3993 = vmul.f32 %v3481, %v3865
        %v3994 = vmul.f32 %v3482, %v3866
        %v3995 = vmul.f32 %v3483, %v3867
        %v3996 = vmul.f32 %v3484, %v3868
        %v3997 = vmul.f32 %v3485, %v3869
        %v3998 = vmul.f32 %v3486, %v3870
        %v3999 = vmul.f32 %v3487, %v3871
        %v4000 = vmul.f32 %v3488, %v3872
        %v4001 = vmul.f32 %v3489, %v3873
        %v4002 = vmul.f32 %v3490, %v3874
        %v4003 = vmul.f32 %v3491, %v3875
        %v4004 = vmul.f32 %v3492, %v3876
        %v4005 = vmul.f32 %v3493, %v3877
        %v4006 = vmul.f32 %v3494, %v3878
        %v4007 = vmul.f32 %v3495, %v3879
        %v4008 = vmul.f32 %v3496, %v3880
        %v4009 = vmul.f32 %v3497, %v3881
        %v4010 = vmul.f32 %v3498, %v3882
        %v4011 = vmul.f32 %v3499, %v3883
        %v4012 = vmul.f32 %v3500, %v3884
        %v4013 = vmul.f32 %v3501, %v3885
        %v4014 = vmul.f32 %v3502, %v3886
        %v4015 = vmul.f32 %v3503, %v3887
        %v4016 = vmul.f32 %v3504, %v3888
        %v4017 = vmul.f32 %v3505, %v3889
        %v4018 = vmul.f32 %v3506, %v3890
        %v4019 = vmul.f32 %v3507, %v3891
        %v4020 = vmul.f32 %v3508, %v3892
        %v4021 = vmul.f32 %v3509, %v3893
        %v4022 = vmul.f32 %v3510, %v3894
        %v4023 = vmul.f32 %v3511, %v3895
        %v4024 = vmul.f32 %v3512, %v3896
        %v4025 = vmul.f32 %v3513, %v3897
        %v4026 = vmul.f32 %v3514, %v3898
        %v4027 = vmul.f32 %v3515, %v3899
        %v4028 = vmul.f32 %v3516, %v3900
        %v4029 = vmul.f32 %v3517, %v3901
        %v4030 = vmul.f32 %v3518, %v3902
        %v4031 = vmul.f32 %v3519, %v3903
        %v4032 = vmul.f32 %v3520, %v3904
        %v4033 = vmul.f32 %v3521, %v3905
        %v4034 = vmul.f32 %v3522, %v3906
        %v4035 = vmul.f32 %v3523, %v3907
        %v4036 = vmul.f32 %v3524, %v3908
        %v4037 = vmul.f32 %v3525, %v3909
        %v4038 = vmul.f32 %v3526, %v3910
        %v4039 = vmul.f32 %v3527, %v3911
        %v4040 = vmul.f32 %v3528, %v3912
        %v4041 = vmul.f32 %v3529, %v3913
        %v4042 = vmul.f32 %v3530, %v3914
        %v4043 = vmul.f32 %v3531, %v3915
        %v4044 = vmul.f32 %v3532, %v3916
        %v4045 = vmul.f32 %v3533, %v3917
        %v4046 = vmul.f32 %v3534, %v3918
        %v4047 = vmul.f32 %v3535, %v3919
        %v4048 = vmul.f32 %v3536, %v3920
        %v4049 = vmul.f32 %v3537, %v3921
        %v4050 = vmul.f32 %v3538, %v3922
        %v4051 = vmul.f32 %v3539, %v3923
        %v4052 = vmul.f32 %v3540, %v3924
        %v4053 = vmul.f32 %v3541, %v3925
        %v4054 = vmul.f32 %v3542, %v3926
        %v4055 = vmul.f32 %v3543, %v3927
        %v4056 = vmul.f32 %v3544, %v3928
        %v4057 = vmul.f32 %v3545, %v3929
        %v4058 = vmul.f32 %v3546, %v3930
        %v4059 = vmul.f32 %v3547, %v3931
        %v4060 = vmul.f32 %v3548, %v3932
        %v4061 = vmul.f32 %v3549, %v3933
        %v4062 = vmul.f32 %v3550, %v3934
        %v4063 = vmul.f32 %v3551, %v3935
        %v4065 = vlaneseq
        %v4066 = vshrl.u32 %v4065, 7
        %v4067 = vsub.s32 0, %v4066
        %v4068 = vrot.slane %v2888, %v4067
        %v4069 = vlaneseq
        %v4070 = vshrl.u32 %v4069, 7
        %v4071 = vsub.s32 1, %v4070
        %v4072 = vrot.slane %v2888, %v4071
        %v4073 = vlaneseq
        %v4074 = vshrl.u32 %v4073, 7
        %v4075 = vsub.s32 2, %v4074
        %v4076 = vrot.slane %v2888, %v4075
        %v4077 = vlaneseq
        %v4078 = vshrl.u32 %v4077, 7
        %v4079 = vsub.s32 3, %v4078
        %v4080 = vrot.slane %v2888, %v4079
        %4085 = vmatprep.subr.mxu0 %v2633
        %4086 = vmatpush1.msra.mxu0 %v2632
        %4087 = vmatprep.subr.mxu0 %v2637
        %4088 = vmatpush1.msra.mxu0 %v2636
        %4089 = vmatprep.subr.mxu0 %v2641
        %4090 = vmatpush1.msra.mxu0 %v2640
        %4091 = vmatprep.subr.mxu0 %v2645
        %4092 = vmatpush1.msra.mxu0 %v2644
        %4093 = vmatprep.subr.mxu0 %v2649
        %4094 = vmatpush1.msra.mxu0 %v2648
        %4095 = vmatprep.subr.mxu0 %v2653
        %4096 = vmatpush1.msra.mxu0 %v2652
        %4097 = vmatprep.subr.mxu0 %v2657
        %4098 = vmatpush1.msra.mxu0 %v2656
        %4099 = vmatprep.subr.mxu0 %v2661
        %4100 = vmatpush1.msra.mxu0 %v2660
        %4101 = vmatprep.subr.mxu0 %v2665
        %4102 = vmatpush1.msra.mxu0 %v2664
        %4103 = vmatprep.subr.mxu0 %v2669
        %4104 = vmatpush1.msra.mxu0 %v2668
        %4105 = vmatprep.subr.mxu0 %v2673
        %4106 = vmatpush1.msra.mxu0 %v2672
        %4107 = vmatprep.subr.mxu0 %v2677
        %4108 = vmatpush1.msra.mxu0 %v2676
        %4109 = vmatprep.subr.mxu0 %v2681
        %4110 = vmatpush1.msra.mxu0 %v2680
        %4111 = vmatprep.subr.mxu0 %v2685
        %4112 = vmatpush1.msra.mxu0 %v2684
        %4113 = vmatprep.subr.mxu0 %v2689
        %4114 = vmatpush1.msra.mxu0 %v2688
        %4115 = vmatprep.subr.mxu0 %v2693
        %4116 = vmatpush1.msra.mxu0 %v2692
        %4117 = vmatprep.subr.mxu0 %v2697
        %4118 = vmatpush1.msra.mxu0 %v2696
        %4119 = vmatprep.subr.mxu0 %v2701
        %4120 = vmatpush1.msra.mxu0 %v2700
        %4121 = vmatprep.subr.mxu0 %v2705
        %4122 = vmatpush1.msra.mxu0 %v2704
        %4123 = vmatprep.subr.mxu0 %v2709
        %4124 = vmatpush1.msra.mxu0 %v2708
        %4125 = vmatprep.subr.mxu0 %v2713
        %4126 = vmatpush1.msra.mxu0 %v2712
        %4127 = vmatprep.subr.mxu0 %v2717
        %4128 = vmatpush1.msra.mxu0 %v2716
        %4129 = vmatprep.subr.mxu0 %v2721
        %4130 = vmatpush1.msra.mxu0 %v2720
        %4131 = vmatprep.subr.mxu0 %v2725
        %4132 = vmatpush1.msra.mxu0 %v2724
        %4133 = vmatprep.subr.mxu0 %v2729
        %4134 = vmatpush1.msra.mxu0 %v2728
        %4135 = vmatprep.subr.mxu0 %v2733
        %4136 = vmatpush1.msra.mxu0 %v2732
        %4137 = vmatprep.subr.mxu0 %v2737
        %4138 = vmatpush1.msra.mxu0 %v2736
        %4139 = vmatprep.subr.mxu0 %v2741
        %4140 = vmatpush1.msra.mxu0 %v2740
        %4141 = vmatprep.subr.mxu0 %v2745
        %4142 = vmatpush1.msra.mxu0 %v2744
        %4143 = vmatprep.subr.mxu0 %v2749
        %4144 = vmatpush1.msra.mxu0 %v2748
        %4145 = vmatprep.subr.mxu0 %v2753
        %4146 = vmatpush1.msra.mxu0 %v2752
        %4147 = vmatprep.subr.mxu0 %v2757
        %4148 = vmatpush1.msra.mxu0 %v2756
        %4149 = vmatprep.mubr.f32.mxu0 %v3937
        %4150 = vmatmul.mubr.f32.gmra.mrb[0].mxu0 %v3936
        %v4151 = vpop.f32.mrb[0].mxu0
        %v4152 = vadd.f32 %v4068, %v4151
        %v4153 = vpop.f32.mrb[0].mxu0
        %v4154 = vadd.f32 %v4072, %v4153
        %4155 = vmatprep.mubr.f32.mxu0 %v3941
        %4156 = vmatmul.mubr.f32.gmra.mrb[0].mxu0 %v3940
        %v4157 = vpop.f32.mrb[0].mxu0
        %v4158 = vadd.f32 %v4068, %v4157
        %v4159 = vpop.f32.mrb[0].mxu0
        %v4160 = vadd.f32 %v4072, %v4159
        %4161 = vmatprep.mubr.f32.mxu0 %v3945
        %4162 = vmatmul.mubr.f32.gmra.mrb[0].mxu0 %v3944
        %v4163 = vpop.f32.mrb[0].mxu0
        %v4164 = vadd.f32 %v4068, %v4163
        %v4165 = vpop.f32.mrb[0].mxu0
        %v4166 = vadd.f32 %v4072, %v4165
        %4167 = vmatprep.mubr.f32.mxu0 %v3949
        %4168 = vmatmul.mubr.f32.gmra.mrb[0].mxu0 %v3948
        %v4169 = vpop.f32.mrb[0].mxu0
        %v4170 = vadd.f32 %v4068, %v4169
        %v4171 = vpop.f32.mrb[0].mxu0
        %v4172 = vadd.f32 %v4072, %v4171
        %4173 = vmatprep.mubr.f32.mxu0 %v3953
        %4174 = vmatmul.mubr.f32.gmra.mrb[0].mxu0 %v3952
        %v4175 = vpop.f32.mrb[0].mxu0
        %v4176 = vadd.f32 %v4068, %v4175
        %v4177 = vpop.f32.mrb[0].mxu0
        %v4178 = vadd.f32 %v4072, %v4177
        %4179 = vmatprep.mubr.f32.mxu0 %v3957
        %4180 = vmatmul.mubr.f32.gmra.mrb[0].mxu0 %v3956
        %v4181 = vpop.f32.mrb[0].mxu0
        %v4182 = vadd.f32 %v4068, %v4181
        %v4183 = vpop.f32.mrb[0].mxu0
        %v4184 = vadd.f32 %v4072, %v4183
        %4185 = vmatprep.mubr.f32.mxu0 %v3961
        %4186 = vmatmul.mubr.f32.gmra.mrb[0].mxu0 %v3960
        %v4187 = vpop.f32.mrb[0].mxu0
        %v4188 = vadd.f32 %v4068, %v4187
        %v4189 = vpop.f32.mrb[0].mxu0
        %v4190 = vadd.f32 %v4072, %v4189
        %4191 = vmatprep.mubr.f32.mxu0 %v3965
        %4192 = vmatmul.mubr.f32.gmra.mrb[0].mxu0 %v3964
        %v4193 = vpop.f32.mrb[0].mxu0
        %v4194 = vadd.f32 %v4068, %v4193
        %v4195 = vpop.f32.mrb[0].mxu0
        %v4196 = vadd.f32 %v4072, %v4195
        %4197 = vmatprep.mubr.f32.mxu0 %v3969
        %4198 = vmatmul.mubr.f32.gmra.mrb[0].mxu0 %v3968
        %v4199 = vpop.f32.mrb[0].mxu0
        %v4200 = vadd.f32 %v4068, %v4199
        %v4201 = vpop.f32.mrb[0].mxu0
        %v4202 = vadd.f32 %v4072, %v4201
        %4203 = vmatprep.mubr.f32.mxu0 %v3973
        %4204 = vmatmul.mubr.f32.gmra.mrb[0].mxu0 %v3972
        %v4205 = vpop.f32.mrb[0].mxu0
        %v4206 = vadd.f32 %v4068, %v4205
        %v4207 = vpop.f32.mrb[0].mxu0
        %v4208 = vadd.f32 %v4072, %v4207
        %4209 = vmatprep.mubr.f32.mxu0 %v3977
        %4210 = vmatmul.mubr.f32.gmra.mrb[0].mxu0 %v3976
        %v4211 = vpop.f32.mrb[0].mxu0
        %v4212 = vadd.f32 %v4068, %v4211
        %v4213 = vpop.f32.mrb[0].mxu0
        %v4214 = vadd.f32 %v4072, %v4213
        %4215 = vmatprep.mubr.f32.mxu0 %v3981
        %4216 = vmatmul.mubr.f32.gmra.mrb[0].mxu0 %v3980
        %v4217 = vpop.f32.mrb[0].mxu0
        %v4218 = vadd.f32 %v4068, %v4217
        %v4219 = vpop.f32.mrb[0].mxu0
        %v4220 = vadd.f32 %v4072, %v4219
        %4221 = vmatprep.mubr.f32.mxu0 %v3985
        %4222 = vmatmul.mubr.f32.gmra.mrb[0].mxu0 %v3984
        %v4223 = vpop.f32.mrb[0].mxu0
        %v4224 = vadd.f32 %v4068, %v4223
        %v4225 = vpop.f32.mrb[0].mxu0
        %v4226 = vadd.f32 %v4072, %v4225
        %4227 = vmatprep.mubr.f32.mxu0 %v3989
        %4228 = vmatmul.mubr.f32.gmra.mrb[0].mxu0 %v3988
        %v4229 = vpop.f32.mrb[0].mxu0
        %v4230 = vadd.f32 %v4068, %v4229
        %v4231 = vpop.f32.mrb[0].mxu0
        %v4232 = vadd.f32 %v4072, %v4231
        %4233 = vmatprep.mubr.f32.mxu0 %v3993
        %4234 = vmatmul.mubr.f32.gmra.mrb[0].mxu0 %v3992
        %v4235 = vpop.f32.mrb[0].mxu0
        %v4236 = vadd.f32 %v4068, %v4235
        %v4237 = vpop.f32.mrb[0].mxu0
        %v4238 = vadd.f32 %v4072, %v4237
        %4239 = vmatprep.mubr.f32.mxu0 %v3997
        %4240 = vmatmul.mubr.f32.gmra.mrb[0].mxu0 %v3996
        %v4241 = vpop.f32.mrb[0].mxu0
        %v4242 = vadd.f32 %v4068, %v4241
        %v4243 = vpop.f32.mrb[0].mxu0
        %v4244 = vadd.f32 %v4072, %v4243
        %4245 = vmatprep.mubr.f32.mxu0 %v4001
        %4246 = vmatmul.mubr.f32.gmra.mrb[0].mxu0 %v4000
        %v4247 = vpop.f32.mrb[0].mxu0
        %v4248 = vadd.f32 %v4068, %v4247
        %v4249 = vpop.f32.mrb[0].mxu0
        %v4250 = vadd.f32 %v4072, %v4249
        %4251 = vmatprep.mubr.f32.mxu0 %v4005
        %4252 = vmatmul.mubr.f32.gmra.mrb[0].mxu0 %v4004
        %v4253 = vpop.f32.mrb[0].mxu0
        %v4254 = vadd.f32 %v4068, %v4253
        %v4255 = vpop.f32.mrb[0].mxu0
        %v4256 = vadd.f32 %v4072, %v4255
        %4257 = vmatprep.mubr.f32.mxu0 %v4009
        %4258 = vmatmul.mubr.f32.gmra.mrb[0].mxu0 %v4008
        %v4259 = vpop.f32.mrb[0].mxu0
        %v4260 = vadd.f32 %v4068, %v4259
        %v4261 = vpop.f32.mrb[0].mxu0
        %v4262 = vadd.f32 %v4072, %v4261
        %4263 = vmatprep.mubr.f32.mxu0 %v4013
        %4264 = vmatmul.mubr.f32.gmra.mrb[0].mxu0 %v4012
        %v4265 = vpop.f32.mrb[0].mxu0
        %v4266 = vadd.f32 %v4068, %v4265
        %v4267 = vpop.f32.mrb[0].mxu0
        %v4268 = vadd.f32 %v4072, %v4267
        %4269 = vmatprep.mubr.f32.mxu0 %v4017
        %4270 = vmatmul.mubr.f32.gmra.mrb[0].mxu0 %v4016
        %v4271 = vpop.f32.mrb[0].mxu0
        %v4272 = vadd.f32 %v4068, %v4271
        %v4273 = vpop.f32.mrb[0].mxu0
        %v4274 = vadd.f32 %v4072, %v4273
        %4275 = vmatprep.mubr.f32.mxu0 %v4021
        %4276 = vmatmul.mubr.f32.gmra.mrb[0].mxu0 %v4020
        %v4277 = vpop.f32.mrb[0].mxu0
        %v4278 = vadd.f32 %v4068, %v4277
        %v4279 = vpop.f32.mrb[0].mxu0
        %v4280 = vadd.f32 %v4072, %v4279
        %4281 = vmatprep.mubr.f32.mxu0 %v4025
        %4282 = vmatmul.mubr.f32.gmra.mrb[0].mxu0 %v4024
        %v4283 = vpop.f32.mrb[0].mxu0
        %v4284 = vadd.f32 %v4068, %v4283
        %v4285 = vpop.f32.mrb[0].mxu0
        %v4286 = vadd.f32 %v4072, %v4285
        %4287 = vmatprep.mubr.f32.mxu0 %v4029
        %4288 = vmatmul.mubr.f32.gmra.mrb[0].mxu0 %v4028
        %v4289 = vpop.f32.mrb[0].mxu0
        %v4290 = vadd.f32 %v4068, %v4289
        %v4291 = vpop.f32.mrb[0].mxu0
        %v4292 = vadd.f32 %v4072, %v4291
        %4293 = vmatprep.mubr.f32.mxu0 %v4033
        %4294 = vmatmul.mubr.f32.gmra.mrb[0].mxu0 %v4032
        %v4295 = vpop.f32.mrb[0].mxu0
        %v4296 = vadd.f32 %v4068, %v4295
        %v4297 = vpop.f32.mrb[0].mxu0
        %v4298 = vadd.f32 %v4072, %v4297
        %4299 = vmatprep.mubr.f32.mxu0 %v4037
        %4300 = vmatmul.mubr.f32.gmra.mrb[0].mxu0 %v4036
        %v4301 = vpop.f32.mrb[0].mxu0
        %v4302 = vadd.f32 %v4068, %v4301
        %v4303 = vpop.f32.mrb[0].mxu0
        %v4304 = vadd.f32 %v4072, %v4303
        %4305 = vmatprep.mubr.f32.mxu0 %v4041
        %4306 = vmatmul.mubr.f32.gmra.mrb[0].mxu0 %v4040
        %v4307 = vpop.f32.mrb[0].mxu0
        %v4308 = vadd.f32 %v4068, %v4307
        %v4309 = vpop.f32.mrb[0].mxu0
        %v4310 = vadd.f32 %v4072, %v4309
        %4311 = vmatprep.mubr.f32.mxu0 %v4045
        %4312 = vmatmul.mubr.f32.gmra.mrb[0].mxu0 %v4044
        %v4313 = vpop.f32.mrb[0].mxu0
        %v4314 = vadd.f32 %v4068, %v4313
        %v4315 = vpop.f32.mrb[0].mxu0
        %v4316 = vadd.f32 %v4072, %v4315
        %4317 = vmatprep.mubr.f32.mxu0 %v4049
        %4318 = vmatmul.mubr.f32.gmra.mrb[0].mxu0 %v4048
        %v4319 = vpop.f32.mrb[0].mxu0
        %v4320 = vadd.f32 %v4068, %v4319
        %v4321 = vpop.f32.mrb[0].mxu0
        %v4322 = vadd.f32 %v4072, %v4321
        %4323 = vmatprep.mubr.f32.mxu0 %v4053
        %4324 = vmatmul.mubr.f32.gmra.mrb[0].mxu0 %v4052
        %v4325 = vpop.f32.mrb[0].mxu0
        %v4326 = vadd.f32 %v4068, %v4325
        %v4327 = vpop.f32.mrb[0].mxu0
        %v4328 = vadd.f32 %v4072, %v4327
        %4329 = vmatprep.mubr.f32.mxu0 %v4057
        %4330 = vmatmul.mubr.f32.gmra.mrb[0].mxu0 %v4056
        %v4331 = vpop.f32.mrb[0].mxu0
        %v4332 = vadd.f32 %v4068, %v4331
        %v4333 = vpop.f32.mrb[0].mxu0
        %v4334 = vadd.f32 %v4072, %v4333
        %4335 = vmatprep.mubr.f32.mxu0 %v4061
        %4336 = vmatmul.mubr.f32.gmra.mrb[0].mxu0 %v4060
        %v4337 = vpop.f32.mrb[0].mxu0
        %v4338 = vadd.f32 %v4068, %v4337
        %v4339 = vpop.f32.mrb[0].mxu0
        %v4340 = vadd.f32 %v4072, %v4339
        %4341 = vdwg.mxu0
        %4342 = vmatprep.subr.mxu0 %v2761
        %4343 = vmatpush1.msra.mxu0 %v2760
        %4344 = vmatprep.subr.mxu0 %v2765
        %4345 = vmatpush1.msra.mxu0 %v2764
        %4346 = vmatprep.subr.mxu0 %v2769
        %4347 = vmatpush1.msra.mxu0 %v2768
        %4348 = vmatprep.subr.mxu0 %v2773
        %4349 = vmatpush1.msra.mxu0 %v2772
        %4350 = vmatprep.subr.mxu0 %v2777
        %4351 = vmatpush1.msra.mxu0 %v2776
        %4352 = vmatprep.subr.mxu0 %v2781
        %4353 = vmatpush1.msra.mxu0 %v2780
        %4354 = vmatprep.subr.mxu0 %v2785
        %4355 = vmatpush1.msra.mxu0 %v2784
        %4356 = vmatprep.subr.mxu0 %v2789
        %4357 = vmatpush1.msra.mxu0 %v2788
        %4358 = vmatprep.subr.mxu0 %v2793
        %4359 = vmatpush1.msra.mxu0 %v2792
        %4360 = vmatprep.subr.mxu0 %v2797
        %4361 = vmatpush1.msra.mxu0 %v2796
        %4362 = vmatprep.subr.mxu0 %v2801
        %4363 = vmatpush1.msra.mxu0 %v2800
        %4364 = vmatprep.subr.mxu0 %v2805
        %4365 = vmatpush1.msra.mxu0 %v2804
        %4366 = vmatprep.subr.mxu0 %v2809
        %4367 = vmatpush1.msra.mxu0 %v2808
        %4368 = vmatprep.subr.mxu0 %v2813
        %4369 = vmatpush1.msra.mxu0 %v2812
        %4370 = vmatprep.subr.mxu0 %v2817
        %4371 = vmatpush1.msra.mxu0 %v2816
        %4372 = vmatprep.subr.mxu0 %v2821
        %4373 = vmatpush1.msra.mxu0 %v2820
        %4374 = vmatprep.subr.mxu0 %v2825
        %4375 = vmatpush1.msra.mxu0 %v2824
        %4376 = vmatprep.subr.mxu0 %v2829
        %4377 = vmatpush1.msra.mxu0 %v2828
        %4378 = vmatprep.subr.mxu0 %v2833
        %4379 = vmatpush1.msra.mxu0 %v2832
        %4380 = vmatprep.subr.mxu0 %v2837
        %4381 = vmatpush1.msra.mxu0 %v2836
        %4382 = vmatprep.subr.mxu0 %v2841
        %4383 = vmatpush1.msra.mxu0 %v2840
        %4384 = vmatprep.subr.mxu0 %v2845
        %4385 = vmatpush1.msra.mxu0 %v2844
        %4386 = vmatprep.subr.mxu0 %v2849
        %4387 = vmatpush1.msra.mxu0 %v2848
        %4388 = vmatprep.subr.mxu0 %v2853
        %4389 = vmatpush1.msra.mxu0 %v2852
        %4390 = vmatprep.subr.mxu0 %v2857
        %4391 = vmatpush1.msra.mxu0 %v2856
        %4392 = vmatprep.subr.mxu0 %v2861
        %4393 = vmatpush1.msra.mxu0 %v2860
        %4394 = vmatprep.subr.mxu0 %v2865
        %4395 = vmatpush1.msra.mxu0 %v2864
        %4396 = vmatprep.subr.mxu0 %v2869
        %4397 = vmatpush1.msra.mxu0 %v2868
        %4398 = vmatprep.subr.mxu0 %v2873
        %4399 = vmatpush1.msra.mxu0 %v2872
        %4400 = vmatprep.subr.mxu0 %v2877
        %4401 = vmatpush1.msra.mxu0 %v2876
        %4402 = vmatprep.subr.mxu0 %v2881
        %4403 = vmatpush1.msra.mxu0 %v2880
        %4404 = vmatprep.subr.mxu0 %v2885
        %4405 = vmatpush1.msra.mxu0 %v2884
        %4406 = vmatprep.mubr.f32.mxu0 %v3939
        %4407 = vmatmul.mubr.f32.gmra.mrb[0].mxu0 %v3938
        %v4408 = vpop.f32.mrb[0].mxu0
        %v4409 = vadd.f32 %v4152, %v4408
        %v4410 = vpop.f32.mrb[0].mxu0
        %v4411 = vadd.f32 %v4154, %v4410
        %4412 = vmatprep.mubr.f32.mxu0 %v3943
        %4413 = vmatmul.mubr.f32.gmra.mrb[0].mxu0 %v3942
        %v4414 = vpop.f32.mrb[0].mxu0
        %v4415 = vadd.f32 %v4158, %v4414
        %v4416 = vpop.f32.mrb[0].mxu0
        %v4417 = vadd.f32 %v4160, %v4416
        %4418 = vmatprep.mubr.f32.mxu0 %v3947
        %4419 = vmatmul.mubr.f32.gmra.mrb[0].mxu0 %v3946
        %v4420 = vpop.f32.mrb[0].mxu0
        %v4421 = vadd.f32 %v4164, %v4420
        %v4422 = vpop.f32.mrb[0].mxu0
        %v4423 = vadd.f32 %v4166, %v4422
        %4424 = vmatprep.mubr.f32.mxu0 %v3951
        %4425 = vmatmul.mubr.f32.gmra.mrb[0].mxu0 %v3950
        %v4426 = vpop.f32.mrb[0].mxu0
        %v4427 = vadd.f32 %v4170, %v4426
        %v4428 = vpop.f32.mrb[0].mxu0
        %v4429 = vadd.f32 %v4172, %v4428
        %4430 = vmatprep.mubr.f32.mxu0 %v3955
        %4431 = vmatmul.mubr.f32.gmra.mrb[0].mxu0 %v3954
        %v4432 = vpop.f32.mrb[0].mxu0
        %v4433 = vadd.f32 %v4176, %v4432
        %v4434 = vpop.f32.mrb[0].mxu0
        %v4435 = vadd.f32 %v4178, %v4434
        %4436 = vmatprep.mubr.f32.mxu0 %v3959
        %4437 = vmatmul.mubr.f32.gmra.mrb[0].mxu0 %v3958
        %v4438 = vpop.f32.mrb[0].mxu0
        %v4439 = vadd.f32 %v4182, %v4438
        %v4440 = vpop.f32.mrb[0].mxu0
        %v4441 = vadd.f32 %v4184, %v4440
        %4442 = vmatprep.mubr.f32.mxu0 %v3963
        %4443 = vmatmul.mubr.f32.gmra.mrb[0].mxu0 %v3962
        %v4444 = vpop.f32.mrb[0].mxu0
        %v4445 = vadd.f32 %v4188, %v4444
        %v4446 = vpop.f32.mrb[0].mxu0
        %v4447 = vadd.f32 %v4190, %v4446
        %4448 = vmatprep.mubr.f32.mxu0 %v3967
        %4449 = vmatmul.mubr.f32.gmra.mrb[0].mxu0 %v3966
        %v4450 = vpop.f32.mrb[0].mxu0
        %v4451 = vadd.f32 %v4194, %v4450
        %v4452 = vpop.f32.mrb[0].mxu0
        %v4453 = vadd.f32 %v4196, %v4452
        %4454 = vmatprep.mubr.f32.mxu0 %v3971
        %4455 = vmatmul.mubr.f32.gmra.mrb[0].mxu0 %v3970
        %v4456 = vpop.f32.mrb[0].mxu0
        %v4457 = vadd.f32 %v4200, %v4456
        %v4458 = vpop.f32.mrb[0].mxu0
        %v4459 = vadd.f32 %v4202, %v4458
        %4460 = vmatprep.mubr.f32.mxu0 %v3975
        %4461 = vmatmul.mubr.f32.gmra.mrb[0].mxu0 %v3974
        %v4462 = vpop.f32.mrb[0].mxu0
        %v4463 = vadd.f32 %v4206, %v4462
        %v4464 = vpop.f32.mrb[0].mxu0
        %v4465 = vadd.f32 %v4208, %v4464
        %4466 = vmatprep.mubr.f32.mxu0 %v3979
        %4467 = vmatmul.mubr.f32.gmra.mrb[0].mxu0 %v3978
        %v4468 = vpop.f32.mrb[0].mxu0
        %v4469 = vadd.f32 %v4212, %v4468
        %v4470 = vpop.f32.mrb[0].mxu0
        %v4471 = vadd.f32 %v4214, %v4470
        %4472 = vmatprep.mubr.f32.mxu0 %v3983
        %4473 = vmatmul.mubr.f32.gmra.mrb[0].mxu0 %v3982
        %v4474 = vpop.f32.mrb[0].mxu0
        %v4475 = vadd.f32 %v4218, %v4474
        %v4476 = vpop.f32.mrb[0].mxu0
        %v4477 = vadd.f32 %v4220, %v4476
        %4478 = vmatprep.mubr.f32.mxu0 %v3987
        %4479 = vmatmul.mubr.f32.gmra.mrb[0].mxu0 %v3986
        %v4480 = vpop.f32.mrb[0].mxu0
        %v4481 = vadd.f32 %v4224, %v4480
        %v4482 = vpop.f32.mrb[0].mxu0
        %v4483 = vadd.f32 %v4226, %v4482
        %4484 = vmatprep.mubr.f32.mxu0 %v3991
        %4485 = vmatmul.mubr.f32.gmra.mrb[0].mxu0 %v3990
        %v4486 = vpop.f32.mrb[0].mxu0
        %v4487 = vadd.f32 %v4230, %v4486
        %v4488 = vpop.f32.mrb[0].mxu0
        %v4489 = vadd.f32 %v4232, %v4488
        %4490 = vmatprep.mubr.f32.mxu0 %v3995
        %4491 = vmatmul.mubr.f32.gmra.mrb[0].mxu0 %v3994
        %v4492 = vpop.f32.mrb[0].mxu0
        %v4493 = vadd.f32 %v4236, %v4492
        %v4494 = vpop.f32.mrb[0].mxu0
        %v4495 = vadd.f32 %v4238, %v4494
        %4496 = vmatprep.mubr.f32.mxu0 %v3999
        %4497 = vmatmul.mubr.f32.gmra.mrb[0].mxu0 %v3998
        %v4498 = vpop.f32.mrb[0].mxu0
        %v4499 = vadd.f32 %v4242, %v4498
        %v4500 = vpop.f32.mrb[0].mxu0
        %v4501 = vadd.f32 %v4244, %v4500
        %4502 = vmatprep.mubr.f32.mxu0 %v4003
        %4503 = vmatmul.mubr.f32.gmra.mrb[0].mxu0 %v4002
        %v4504 = vpop.f32.mrb[0].mxu0
        %v4505 = vadd.f32 %v4248, %v4504
        %v4506 = vpop.f32.mrb[0].mxu0
        %v4507 = vadd.f32 %v4250, %v4506
        %4508 = vmatprep.mubr.f32.mxu0 %v4007
        %4509 = vmatmul.mubr.f32.gmra.mrb[0].mxu0 %v4006
        %v4510 = vpop.f32.mrb[0].mxu0
        %v4511 = vadd.f32 %v4254, %v4510
        %v4512 = vpop.f32.mrb[0].mxu0
        %v4513 = vadd.f32 %v4256, %v4512
        %4514 = vmatprep.mubr.f32.mxu0 %v4011
        %4515 = vmatmul.mubr.f32.gmra.mrb[0].mxu0 %v4010
        %v4516 = vpop.f32.mrb[0].mxu0
        %v4517 = vadd.f32 %v4260, %v4516
        %v4518 = vpop.f32.mrb[0].mxu0
        %v4519 = vadd.f32 %v4262, %v4518
        %4520 = vmatprep.mubr.f32.mxu0 %v4015
        %4521 = vmatmul.mubr.f32.gmra.mrb[0].mxu0 %v4014
        %v4522 = vpop.f32.mrb[0].mxu0
        %v4523 = vadd.f32 %v4266, %v4522
        %v4524 = vpop.f32.mrb[0].mxu0
        %v4525 = vadd.f32 %v4268, %v4524
        %4526 = vmatprep.mubr.f32.mxu0 %v4019
        %4527 = vmatmul.mubr.f32.gmra.mrb[0].mxu0 %v4018
        %v4528 = vpop.f32.mrb[0].mxu0
        %v4529 = vadd.f32 %v4272, %v4528
        %v4530 = vpop.f32.mrb[0].mxu0
        %v4531 = vadd.f32 %v4274, %v4530
        %4532 = vmatprep.mubr.f32.mxu0 %v4023
        %4533 = vmatmul.mubr.f32.gmra.mrb[0].mxu0 %v4022
        %v4534 = vpop.f32.mrb[0].mxu0
        %v4535 = vadd.f32 %v4278, %v4534
        %v4536 = vpop.f32.mrb[0].mxu0
        %v4537 = vadd.f32 %v4280, %v4536
        %4538 = vmatprep.mubr.f32.mxu0 %v4027
        %4539 = vmatmul.mubr.f32.gmra.mrb[0].mxu0 %v4026
        %v4540 = vpop.f32.mrb[0].mxu0
        %v4541 = vadd.f32 %v4284, %v4540
        %v4542 = vpop.f32.mrb[0].mxu0
        %v4543 = vadd.f32 %v4286, %v4542
        %4544 = vmatprep.mubr.f32.mxu0 %v4031
        %4545 = vmatmul.mubr.f32.gmra.mrb[0].mxu0 %v4030
        %v4546 = vpop.f32.mrb[0].mxu0
        %v4547 = vadd.f32 %v4290, %v4546
        %v4548 = vpop.f32.mrb[0].mxu0
        %v4549 = vadd.f32 %v4292, %v4548
        %4550 = vmatprep.mubr.f32.mxu0 %v4035
        %4551 = vmatmul.mubr.f32.gmra.mrb[0].mxu0 %v4034
        %v4552 = vpop.f32.mrb[0].mxu0
        %v4553 = vadd.f32 %v4296, %v4552
        %v4554 = vpop.f32.mrb[0].mxu0
        %v4555 = vadd.f32 %v4298, %v4554
        %4556 = vmatprep.mubr.f32.mxu0 %v4039
        %4557 = vmatmul.mubr.f32.gmra.mrb[0].mxu0 %v4038
        %v4558 = vpop.f32.mrb[0].mxu0
        %v4559 = vadd.f32 %v4302, %v4558
        %v4560 = vpop.f32.mrb[0].mxu0
        %v4561 = vadd.f32 %v4304, %v4560
        %4562 = vmatprep.mubr.f32.mxu0 %v4043
        %4563 = vmatmul.mubr.f32.gmra.mrb[0].mxu0 %v4042
        %v4564 = vpop.f32.mrb[0].mxu0
        %v4565 = vadd.f32 %v4308, %v4564
        %v4566 = vpop.f32.mrb[0].mxu0
        %v4567 = vadd.f32 %v4310, %v4566
        %4568 = vmatprep.mubr.f32.mxu0 %v4047
        %4569 = vmatmul.mubr.f32.gmra.mrb[0].mxu0 %v4046
        %v4570 = vpop.f32.mrb[0].mxu0
        %v4571 = vadd.f32 %v4314, %v4570
        %v4572 = vpop.f32.mrb[0].mxu0
        %v4573 = vadd.f32 %v4316, %v4572
        %4574 = vmatprep.mubr.f32.mxu0 %v4051
        %4575 = vmatmul.mubr.f32.gmra.mrb[0].mxu0 %v4050
        %v4576 = vpop.f32.mrb[0].mxu0
        %v4577 = vadd.f32 %v4320, %v4576
        %v4578 = vpop.f32.mrb[0].mxu0
        %v4579 = vadd.f32 %v4322, %v4578
        %4580 = vmatprep.mubr.f32.mxu0 %v4055
        %4581 = vmatmul.mubr.f32.gmra.mrb[0].mxu0 %v4054
        %v4582 = vpop.f32.mrb[0].mxu0
        %v4583 = vadd.f32 %v4326, %v4582
        %v4584 = vpop.f32.mrb[0].mxu0
        %v4585 = vadd.f32 %v4328, %v4584
        %4586 = vmatprep.mubr.f32.mxu0 %v4059
        %4587 = vmatmul.mubr.f32.gmra.mrb[0].mxu0 %v4058
        %v4588 = vpop.f32.mrb[0].mxu0
        %v4589 = vadd.f32 %v4332, %v4588
        %v4590 = vpop.f32.mrb[0].mxu0
        %v4591 = vadd.f32 %v4334, %v4590
        %4592 = vmatprep.mubr.f32.mxu0 %v4063
        %4593 = vmatmul.mubr.f32.gmra.mrb[0].mxu0 %v4062
        %v4594 = vpop.f32.mrb[0].mxu0
        %v4595 = vadd.f32 %v4338, %v4594
        %v4596 = vpop.f32.mrb[0].mxu0
        %v4597 = vadd.f32 %v4340, %v4596
        %4598 = vdwg.mxu0
        %4599 = vmatprep.subr.mxu0 %v2635
        %4600 = vmatpush1.msra.mxu0 %v2634
        %4601 = vmatprep.subr.mxu0 %v2639
        %4602 = vmatpush1.msra.mxu0 %v2638
        %4603 = vmatprep.subr.mxu0 %v2643
        %4604 = vmatpush1.msra.mxu0 %v2642
        %4605 = vmatprep.subr.mxu0 %v2647
        %4606 = vmatpush1.msra.mxu0 %v2646
        %4607 = vmatprep.subr.mxu0 %v2651
        %4608 = vmatpush1.msra.mxu0 %v2650
        %4609 = vmatprep.subr.mxu0 %v2655
        %4610 = vmatpush1.msra.mxu0 %v2654
        %4611 = vmatprep.subr.mxu0 %v2659
        %4612 = vmatpush1.msra.mxu0 %v2658
        %4613 = vmatprep.subr.mxu0 %v2663
        %4614 = vmatpush1.msra.mxu0 %v2662
        %4615 = vmatprep.subr.mxu0 %v2667
        %4616 = vmatpush1.msra.mxu0 %v2666
        %4617 = vmatprep.subr.mxu0 %v2671
        %4618 = vmatpush1.msra.mxu0 %v2670
        %4619 = vmatprep.subr.mxu0 %v2675
        %4620 = vmatpush1.msra.mxu0 %v2674
        %4621 = vmatprep.subr.mxu0 %v2679
        %4622 = vmatpush1.msra.mxu0 %v2678
        %4623 = vmatprep.subr.mxu0 %v2683
        %4624 = vmatpush1.msra.mxu0 %v2682
        %4625 = vmatprep.subr.mxu0 %v2687
        %4626 = vmatpush1.msra.mxu0 %v2686
        %4627 = vmatprep.subr.mxu0 %v2691
        %4628 = vmatpush1.msra.mxu0 %v2690
        %4629 = vmatprep.subr.mxu0 %v2695
        %4630 = vmatpush1.msra.mxu0 %v2694
        %4631 = vmatprep.subr.mxu0 %v2699
        %4632 = vmatpush1.msra.mxu0 %v2698
        %4633 = vmatprep.subr.mxu0 %v2703
        %4634 = vmatpush1.msra.mxu0 %v2702
        %4635 = vmatprep.subr.mxu0 %v2707
        %4636 = vmatpush1.msra.mxu0 %v2706
        %4637 = vmatprep.subr.mxu0 %v2711
        %4638 = vmatpush1.msra.mxu0 %v2710
        %4639 = vmatprep.subr.mxu0 %v2715
        %4640 = vmatpush1.msra.mxu0 %v2714
        %4641 = vmatprep.subr.mxu0 %v2719
        %4642 = vmatpush1.msra.mxu0 %v2718
        %4643 = vmatprep.subr.mxu0 %v2723
        %4644 = vmatpush1.msra.mxu0 %v2722
        %4645 = vmatprep.subr.mxu0 %v2727
        %4646 = vmatpush1.msra.mxu0 %v2726
        %4647 = vmatprep.subr.mxu0 %v2731
        %4648 = vmatpush1.msra.mxu0 %v2730
        %4649 = vmatprep.subr.mxu0 %v2735
        %4650 = vmatpush1.msra.mxu0 %v2734
        %4651 = vmatprep.subr.mxu0 %v2739
        %4652 = vmatpush1.msra.mxu0 %v2738
        %4653 = vmatprep.subr.mxu0 %v2743
        %4654 = vmatpush1.msra.mxu0 %v2742
        %4655 = vmatprep.subr.mxu0 %v2747
        %4656 = vmatpush1.msra.mxu0 %v2746
        %4657 = vmatprep.subr.mxu0 %v2751
        %4658 = vmatpush1.msra.mxu0 %v2750
        %4659 = vmatprep.subr.mxu0 %v2755
        %4660 = vmatpush1.msra.mxu0 %v2754
        %4661 = vmatprep.subr.mxu0 %v2759
        %4662 = vmatpush1.msra.mxu0 %v2758
        %4663 = vmatprep.mubr.f32.mxu0 %v3937
        %4664 = vmatmul.mubr.f32.gmra.mrb[0].mxu0 %v3936
        %v4665 = vpop.f32.mrb[0].mxu0
        %v4666 = vadd.f32 %v4076, %v4665
        %v4667 = vpop.f32.mrb[0].mxu0
        %v4668 = vadd.f32 %v4080, %v4667
        %4669 = vmatprep.mubr.f32.mxu0 %v3941
        %4670 = vmatmul.mubr.f32.gmra.mrb[0].mxu0 %v3940
        %v4671 = vpop.f32.mrb[0].mxu0
        %v4672 = vadd.f32 %v4076, %v4671
        %v4673 = vpop.f32.mrb[0].mxu0
        %v4674 = vadd.f32 %v4080, %v4673
        %4675 = vmatprep.mubr.f32.mxu0 %v3945
        %4676 = vmatmul.mubr.f32.gmra.mrb[0].mxu0 %v3944
        %v4677 = vpop.f32.mrb[0].mxu0
        %v4678 = vadd.f32 %v4076, %v4677
        %v4679 = vpop.f32.mrb[0].mxu0
        %v4680 = vadd.f32 %v4080, %v4679
        %4681 = vmatprep.mubr.f32.mxu0 %v3949
        %4682 = vmatmul.mubr.f32.gmra.mrb[0].mxu0 %v3948
        %v4683 = vpop.f32.mrb[0].mxu0
        %v4684 = vadd.f32 %v4076, %v4683
        %v4685 = vpop.f32.mrb[0].mxu0
        %v4686 = vadd.f32 %v4080, %v4685
        %4687 = vmatprep.mubr.f32.mxu0 %v3953
        %4688 = vmatmul.mubr.f32.gmra.mrb[0].mxu0 %v3952
        %v4689 = vpop.f32.mrb[0].mxu0
        %v4690 = vadd.f32 %v4076, %v4689
        %v4691 = vpop.f32.mrb[0].mxu0
        %v4692 = vadd.f32 %v4080, %v4691
        %4693 = vmatprep.mubr.f32.mxu0 %v3957
        %4694 = vmatmul.mubr.f32.gmra.mrb[0].mxu0 %v3956
        %v4695 = vpop.f32.mrb[0].mxu0
        %v4696 = vadd.f32 %v4076, %v4695
        %v4697 = vpop.f32.mrb[0].mxu0
        %v4698 = vadd.f32 %v4080, %v4697
        %4699 = vmatprep.mubr.f32.mxu0 %v3961
        %4700 = vmatmul.mubr.f32.gmra.mrb[0].mxu0 %v3960
        %v4701 = vpop.f32.mrb[0].mxu0
        %v4702 = vadd.f32 %v4076, %v4701
        %v4703 = vpop.f32.mrb[0].mxu0
        %v4704 = vadd.f32 %v4080, %v4703
        %4705 = vmatprep.mubr.f32.mxu0 %v3965
        %4706 = vmatmul.mubr.f32.gmra.mrb[0].mxu0 %v3964
        %v4707 = vpop.f32.mrb[0].mxu0
        %v4708 = vadd.f32 %v4076, %v4707
        %v4709 = vpop.f32.mrb[0].mxu0
        %v4710 = vadd.f32 %v4080, %v4709
        %4711 = vmatprep.mubr.f32.mxu0 %v3969
        %4712 = vmatmul.mubr.f32.gmra.mrb[0].mxu0 %v3968
        %v4713 = vpop.f32.mrb[0].mxu0
        %v4714 = vadd.f32 %v4076, %v4713
        %v4715 = vpop.f32.mrb[0].mxu0
        %v4716 = vadd.f32 %v4080, %v4715
        %4717 = vmatprep.mubr.f32.mxu0 %v3973
        %4718 = vmatmul.mubr.f32.gmra.mrb[0].mxu0 %v3972
        %v4719 = vpop.f32.mrb[0].mxu0
        %v4720 = vadd.f32 %v4076, %v4719
        %v4721 = vpop.f32.mrb[0].mxu0
        %v4722 = vadd.f32 %v4080, %v4721
        %4723 = vmatprep.mubr.f32.mxu0 %v3977
        %4724 = vmatmul.mubr.f32.gmra.mrb[0].mxu0 %v3976
        %v4725 = vpop.f32.mrb[0].mxu0
        %v4726 = vadd.f32 %v4076, %v4725
        %v4727 = vpop.f32.mrb[0].mxu0
        %v4728 = vadd.f32 %v4080, %v4727
        %4729 = vmatprep.mubr.f32.mxu0 %v3981
        %4730 = vmatmul.mubr.f32.gmra.mrb[0].mxu0 %v3980
        %v4731 = vpop.f32.mrb[0].mxu0
        %v4732 = vadd.f32 %v4076, %v4731
        %v4733 = vpop.f32.mrb[0].mxu0
        %v4734 = vadd.f32 %v4080, %v4733
        %4735 = vmatprep.mubr.f32.mxu0 %v3985
        %4736 = vmatmul.mubr.f32.gmra.mrb[0].mxu0 %v3984
        %v4737 = vpop.f32.mrb[0].mxu0
        %v4738 = vadd.f32 %v4076, %v4737
        %v4739 = vpop.f32.mrb[0].mxu0
        %v4740 = vadd.f32 %v4080, %v4739
        %4741 = vmatprep.mubr.f32.mxu0 %v3989
        %4742 = vmatmul.mubr.f32.gmra.mrb[0].mxu0 %v3988
        %v4743 = vpop.f32.mrb[0].mxu0
        %v4744 = vadd.f32 %v4076, %v4743
        %v4745 = vpop.f32.mrb[0].mxu0
        %v4746 = vadd.f32 %v4080, %v4745
        %4747 = vmatprep.mubr.f32.mxu0 %v3993
        %4748 = vmatmul.mubr.f32.gmra.mrb[0].mxu0 %v3992
        %v4749 = vpop.f32.mrb[0].mxu0
        %v4750 = vadd.f32 %v4076, %v4749
        %v4751 = vpop.f32.mrb[0].mxu0
        %v4752 = vadd.f32 %v4080, %v4751
        %4753 = vmatprep.mubr.f32.mxu0 %v3997
        %4754 = vmatmul.mubr.f32.gmra.mrb[0].mxu0 %v3996
        %v4755 = vpop.f32.mrb[0].mxu0
        %v4756 = vadd.f32 %v4076, %v4755
        %v4757 = vpop.f32.mrb[0].mxu0
        %v4758 = vadd.f32 %v4080, %v4757
        %4759 = vmatprep.mubr.f32.mxu0 %v4001
        %4760 = vmatmul.mubr.f32.gmra.mrb[0].mxu0 %v4000
        %v4761 = vpop.f32.mrb[0].mxu0
        %v4762 = vadd.f32 %v4076, %v4761
        %v4763 = vpop.f32.mrb[0].mxu0
        %v4764 = vadd.f32 %v4080, %v4763
        %4765 = vmatprep.mubr.f32.mxu0 %v4005
        %4766 = vmatmul.mubr.f32.gmra.mrb[0].mxu0 %v4004
        %v4767 = vpop.f32.mrb[0].mxu0
        %v4768 = vadd.f32 %v4076, %v4767
        %v4769 = vpop.f32.mrb[0].mxu0
        %v4770 = vadd.f32 %v4080, %v4769
        %4771 = vmatprep.mubr.f32.mxu0 %v4009
        %4772 = vmatmul.mubr.f32.gmra.mrb[0].mxu0 %v4008
        %v4773 = vpop.f32.mrb[0].mxu0
        %v4774 = vadd.f32 %v4076, %v4773
        %v4775 = vpop.f32.mrb[0].mxu0
        %v4776 = vadd.f32 %v4080, %v4775
        %4777 = vmatprep.mubr.f32.mxu0 %v4013
        %4778 = vmatmul.mubr.f32.gmra.mrb[0].mxu0 %v4012
        %v4779 = vpop.f32.mrb[0].mxu0
        %v4780 = vadd.f32 %v4076, %v4779
        %v4781 = vpop.f32.mrb[0].mxu0
        %v4782 = vadd.f32 %v4080, %v4781
        %4783 = vmatprep.mubr.f32.mxu0 %v4017
        %4784 = vmatmul.mubr.f32.gmra.mrb[0].mxu0 %v4016
        %v4785 = vpop.f32.mrb[0].mxu0
        %v4786 = vadd.f32 %v4076, %v4785
        %v4787 = vpop.f32.mrb[0].mxu0
        %v4788 = vadd.f32 %v4080, %v4787
        %4789 = vmatprep.mubr.f32.mxu0 %v4021
        %4790 = vmatmul.mubr.f32.gmra.mrb[0].mxu0 %v4020
        %v4791 = vpop.f32.mrb[0].mxu0
        %v4792 = vadd.f32 %v4076, %v4791
        %v4793 = vpop.f32.mrb[0].mxu0
        %v4794 = vadd.f32 %v4080, %v4793
        %4795 = vmatprep.mubr.f32.mxu0 %v4025
        %4796 = vmatmul.mubr.f32.gmra.mrb[0].mxu0 %v4024
        %v4797 = vpop.f32.mrb[0].mxu0
        %v4798 = vadd.f32 %v4076, %v4797
        %v4799 = vpop.f32.mrb[0].mxu0
        %v4800 = vadd.f32 %v4080, %v4799
        %4801 = vmatprep.mubr.f32.mxu0 %v4029
        %4802 = vmatmul.mubr.f32.gmra.mrb[0].mxu0 %v4028
        %v4803 = vpop.f32.mrb[0].mxu0
        %v4804 = vadd.f32 %v4076, %v4803
        %v4805 = vpop.f32.mrb[0].mxu0
        %v4806 = vadd.f32 %v4080, %v4805
        %4807 = vmatprep.mubr.f32.mxu0 %v4033
        %4808 = vmatmul.mubr.f32.gmra.mrb[0].mxu0 %v4032
        %v4809 = vpop.f32.mrb[0].mxu0
        %v4810 = vadd.f32 %v4076, %v4809
        %v4811 = vpop.f32.mrb[0].mxu0
        %v4812 = vadd.f32 %v4080, %v4811
        %4813 = vmatprep.mubr.f32.mxu0 %v4037
        %4814 = vmatmul.mubr.f32.gmra.mrb[0].mxu0 %v4036
        %v4815 = vpop.f32.mrb[0].mxu0
        %v4816 = vadd.f32 %v4076, %v4815
        %v4817 = vpop.f32.mrb[0].mxu0
        %v4818 = vadd.f32 %v4080, %v4817
        %4819 = vmatprep.mubr.f32.mxu0 %v4041
        %4820 = vmatmul.mubr.f32.gmra.mrb[0].mxu0 %v4040
        %v4821 = vpop.f32.mrb[0].mxu0
        %v4822 = vadd.f32 %v4076, %v4821
        %v4823 = vpop.f32.mrb[0].mxu0
        %v4824 = vadd.f32 %v4080, %v4823
        %4825 = vmatprep.mubr.f32.mxu0 %v4045
        %4826 = vmatmul.mubr.f32.gmra.mrb[0].mxu0 %v4044
        %v4827 = vpop.f32.mrb[0].mxu0
        %v4828 = vadd.f32 %v4076, %v4827
        %v4829 = vpop.f32.mrb[0].mxu0
        %v4830 = vadd.f32 %v4080, %v4829
        %4831 = vmatprep.mubr.f32.mxu0 %v4049
        %4832 = vmatmul.mubr.f32.gmra.mrb[0].mxu0 %v4048
        %v4833 = vpop.f32.mrb[0].mxu0
        %v4834 = vadd.f32 %v4076, %v4833
        %v4835 = vpop.f32.mrb[0].mxu0
        %v4836 = vadd.f32 %v4080, %v4835
        %4837 = vmatprep.mubr.f32.mxu0 %v4053
        %4838 = vmatmul.mubr.f32.gmra.mrb[0].mxu0 %v4052
        %v4839 = vpop.f32.mrb[0].mxu0
        %v4840 = vadd.f32 %v4076, %v4839
        %v4841 = vpop.f32.mrb[0].mxu0
        %v4842 = vadd.f32 %v4080, %v4841
        %4843 = vmatprep.mubr.f32.mxu0 %v4057
        %4844 = vmatmul.mubr.f32.gmra.mrb[0].mxu0 %v4056
        %v4845 = vpop.f32.mrb[0].mxu0
        %v4846 = vadd.f32 %v4076, %v4845
        %v4847 = vpop.f32.mrb[0].mxu0
        %v4848 = vadd.f32 %v4080, %v4847
        %4849 = vmatprep.mubr.f32.mxu0 %v4061
        %4850 = vmatmul.mubr.f32.gmra.mrb[0].mxu0 %v4060
        %v4851 = vpop.f32.mrb[0].mxu0
        %v4852 = vadd.f32 %v4076, %v4851
        %v4853 = vpop.f32.mrb[0].mxu0
        %v4854 = vadd.f32 %v4080, %v4853
        %4855 = vdwg.mxu0
        %4856 = vmatprep.subr.mxu0 %v2763
        %4857 = vmatpush1.msra.mxu0 %v2762
        %4858 = vmatprep.subr.mxu0 %v2767
        %4859 = vmatpush1.msra.mxu0 %v2766
        %4860 = vmatprep.subr.mxu0 %v2771
        %4861 = vmatpush1.msra.mxu0 %v2770
        %4862 = vmatprep.subr.mxu0 %v2775
        %4863 = vmatpush1.msra.mxu0 %v2774
        %4864 = vmatprep.subr.mxu0 %v2779
        %4865 = vmatpush1.msra.mxu0 %v2778
        %4866 = vmatprep.subr.mxu0 %v2783
        %4867 = vmatpush1.msra.mxu0 %v2782
        %4868 = vmatprep.subr.mxu0 %v2787
        %4869 = vmatpush1.msra.mxu0 %v2786
        %4870 = vmatprep.subr.mxu0 %v2791
        %4871 = vmatpush1.msra.mxu0 %v2790
        %4872 = vmatprep.subr.mxu0 %v2795
        %4873 = vmatpush1.msra.mxu0 %v2794
        %4874 = vmatprep.subr.mxu0 %v2799
        %4875 = vmatpush1.msra.mxu0 %v2798
        %4876 = vmatprep.subr.mxu0 %v2803
        %4877 = vmatpush1.msra.mxu0 %v2802
        %4878 = vmatprep.subr.mxu0 %v2807
        %4879 = vmatpush1.msra.mxu0 %v2806
        %4880 = vmatprep.subr.mxu0 %v2811
        %4881 = vmatpush1.msra.mxu0 %v2810
        %4882 = vmatprep.subr.mxu0 %v2815
        %4883 = vmatpush1.msra.mxu0 %v2814
        %4884 = vmatprep.subr.mxu0 %v2819
        %4885 = vmatpush1.msra.mxu0 %v2818
        %4886 = vmatprep.subr.mxu0 %v2823
        %4887 = vmatpush1.msra.mxu0 %v2822
        %4888 = vmatprep.subr.mxu0 %v2827
        %4889 = vmatpush1.msra.mxu0 %v2826
        %4890 = vmatprep.subr.mxu0 %v2831
        %4891 = vmatpush1.msra.mxu0 %v2830
        %4892 = vmatprep.subr.mxu0 %v2835
        %4893 = vmatpush1.msra.mxu0 %v2834
        %4894 = vmatprep.subr.mxu0 %v2839
        %4895 = vmatpush1.msra.mxu0 %v2838
        %4896 = vmatprep.subr.mxu0 %v2843
        %4897 = vmatpush1.msra.mxu0 %v2842
        %4898 = vmatprep.subr.mxu0 %v2847
        %4899 = vmatpush1.msra.mxu0 %v2846
        %4900 = vmatprep.subr.mxu0 %v2851
        %4901 = vmatpush1.msra.mxu0 %v2850
        %4902 = vmatprep.subr.mxu0 %v2855
        %4903 = vmatpush1.msra.mxu0 %v2854
        %4904 = vmatprep.subr.mxu0 %v2859
        %4905 = vmatpush1.msra.mxu0 %v2858
        %4906 = vmatprep.subr.mxu0 %v2863
        %4907 = vmatpush1.msra.mxu0 %v2862
        %4908 = vmatprep.subr.mxu0 %v2867
        %4909 = vmatpush1.msra.mxu0 %v2866
        %4910 = vmatprep.subr.mxu0 %v2871
        %4911 = vmatpush1.msra.mxu0 %v2870
        %4912 = vmatprep.subr.mxu0 %v2875
        %4913 = vmatpush1.msra.mxu0 %v2874
        %4914 = vmatprep.subr.mxu0 %v2879
        %4915 = vmatpush1.msra.mxu0 %v2878
        %4916 = vmatprep.subr.mxu0 %v2883
        %4917 = vmatpush1.msra.mxu0 %v2882
        %4918 = vmatprep.subr.mxu0 %v2887
        %4919 = vmatpush1.msra.mxu0 %v2886
        %4920 = vmatprep.mubr.f32.mxu0 %v3939
        %4921 = vmatmul.mubr.f32.gmra.mrb[0].mxu0 %v3938
        %v4922 = vpop.f32.mrb[0].mxu0
        %v4923 = vadd.f32 %v4666, %v4922
        %v4924 = vpop.f32.mrb[0].mxu0
        %v4925 = vadd.f32 %v4668, %v4924
        %4926 = vmatprep.mubr.f32.mxu0 %v3943
        %4927 = vmatmul.mubr.f32.gmra.mrb[0].mxu0 %v3942
        %v4928 = vpop.f32.mrb[0].mxu0
        %v4929 = vadd.f32 %v4672, %v4928
        %v4930 = vpop.f32.mrb[0].mxu0
        %v4931 = vadd.f32 %v4674, %v4930
        %4932 = vmatprep.mubr.f32.mxu0 %v3947
        %4933 = vmatmul.mubr.f32.gmra.mrb[0].mxu0 %v3946
        %v4934 = vpop.f32.mrb[0].mxu0
        %v4935 = vadd.f32 %v4678, %v4934
        %v4936 = vpop.f32.mrb[0].mxu0
        %v4937 = vadd.f32 %v4680, %v4936
        %4938 = vmatprep.mubr.f32.mxu0 %v3951
        %4939 = vmatmul.mubr.f32.gmra.mrb[0].mxu0 %v3950
        %v4940 = vpop.f32.mrb[0].mxu0
        %v4941 = vadd.f32 %v4684, %v4940
        %v4942 = vpop.f32.mrb[0].mxu0
        %v4943 = vadd.f32 %v4686, %v4942
        %4944 = vmatprep.mubr.f32.mxu0 %v3955
        %4945 = vmatmul.mubr.f32.gmra.mrb[0].mxu0 %v3954
        %v4946 = vpop.f32.mrb[0].mxu0
        %v4947 = vadd.f32 %v4690, %v4946
        %v4948 = vpop.f32.mrb[0].mxu0
        %v4949 = vadd.f32 %v4692, %v4948
        %4950 = vmatprep.mubr.f32.mxu0 %v3959
        %4951 = vmatmul.mubr.f32.gmra.mrb[0].mxu0 %v3958
        %v4952 = vpop.f32.mrb[0].mxu0
        %v4953 = vadd.f32 %v4696, %v4952
        %v4954 = vpop.f32.mrb[0].mxu0
        %v4955 = vadd.f32 %v4698, %v4954
        %4956 = vmatprep.mubr.f32.mxu0 %v3963
        %4957 = vmatmul.mubr.f32.gmra.mrb[0].mxu0 %v3962
        %v4958 = vpop.f32.mrb[0].mxu0
        %v4959 = vadd.f32 %v4702, %v4958
        %v4960 = vpop.f32.mrb[0].mxu0
        %v4961 = vadd.f32 %v4704, %v4960
        %4962 = vmatprep.mubr.f32.mxu0 %v3967
        %4963 = vmatmul.mubr.f32.gmra.mrb[0].mxu0 %v3966
        %v4964 = vpop.f32.mrb[0].mxu0
        %v4965 = vadd.f32 %v4708, %v4964
        %v4966 = vpop.f32.mrb[0].mxu0
        %v4967 = vadd.f32 %v4710, %v4966
        %4968 = vmatprep.mubr.f32.mxu0 %v3971
        %4969 = vmatmul.mubr.f32.gmra.mrb[0].mxu0 %v3970
        %v4970 = vpop.f32.mrb[0].mxu0
        %v4971 = vadd.f32 %v4714, %v4970
        %v4972 = vpop.f32.mrb[0].mxu0
        %v4973 = vadd.f32 %v4716, %v4972
        %4974 = vmatprep.mubr.f32.mxu0 %v3975
        %4975 = vmatmul.mubr.f32.gmra.mrb[0].mxu0 %v3974
        %v4976 = vpop.f32.mrb[0].mxu0
        %v4977 = vadd.f32 %v4720, %v4976
        %v4978 = vpop.f32.mrb[0].mxu0
        %v4979 = vadd.f32 %v4722, %v4978
        %4980 = vmatprep.mubr.f32.mxu0 %v3979
        %4981 = vmatmul.mubr.f32.gmra.mrb[0].mxu0 %v3978
        %v4982 = vpop.f32.mrb[0].mxu0
        %v4983 = vadd.f32 %v4726, %v4982
        %v4984 = vpop.f32.mrb[0].mxu0
        %v4985 = vadd.f32 %v4728, %v4984
        %4986 = vmatprep.mubr.f32.mxu0 %v3983
        %4987 = vmatmul.mubr.f32.gmra.mrb[0].mxu0 %v3982
        %v4988 = vpop.f32.mrb[0].mxu0
        %v4989 = vadd.f32 %v4732, %v4988
        %v4990 = vpop.f32.mrb[0].mxu0
        %v4991 = vadd.f32 %v4734, %v4990
        %4992 = vmatprep.mubr.f32.mxu0 %v3987
        %4993 = vmatmul.mubr.f32.gmra.mrb[0].mxu0 %v3986
        %v4994 = vpop.f32.mrb[0].mxu0
        %v4995 = vadd.f32 %v4738, %v4994
        %v4996 = vpop.f32.mrb[0].mxu0
        %v4997 = vadd.f32 %v4740, %v4996
        %4998 = vmatprep.mubr.f32.mxu0 %v3991
        %4999 = vmatmul.mubr.f32.gmra.mrb[0].mxu0 %v3990
        %v5000 = vpop.f32.mrb[0].mxu0
        %v5001 = vadd.f32 %v4744, %v5000
        %v5002 = vpop.f32.mrb[0].mxu0
        %v5003 = vadd.f32 %v4746, %v5002
        %5004 = vmatprep.mubr.f32.mxu0 %v3995
        %5005 = vmatmul.mubr.f32.gmra.mrb[0].mxu0 %v3994
        %v5006 = vpop.f32.mrb[0].mxu0
        %v5007 = vadd.f32 %v4750, %v5006
        %v5008 = vpop.f32.mrb[0].mxu0
        %v5009 = vadd.f32 %v4752, %v5008
        %5010 = vmatprep.mubr.f32.mxu0 %v3999
        %5011 = vmatmul.mubr.f32.gmra.mrb[0].mxu0 %v3998
        %v5012 = vpop.f32.mrb[0].mxu0
        %v5013 = vadd.f32 %v4756, %v5012
        %v5014 = vpop.f32.mrb[0].mxu0
        %v5015 = vadd.f32 %v4758, %v5014
        %5016 = vmatprep.mubr.f32.mxu0 %v4003
        %5017 = vmatmul.mubr.f32.gmra.mrb[0].mxu0 %v4002
        %v5018 = vpop.f32.mrb[0].mxu0
        %v5019 = vadd.f32 %v4762, %v5018
        %v5020 = vpop.f32.mrb[0].mxu0
        %v5021 = vadd.f32 %v4764, %v5020
        %5022 = vmatprep.mubr.f32.mxu0 %v4007
        %5023 = vmatmul.mubr.f32.gmra.mrb[0].mxu0 %v4006
        %v5024 = vpop.f32.mrb[0].mxu0
        %v5025 = vadd.f32 %v4768, %v5024
        %v5026 = vpop.f32.mrb[0].mxu0
        %v5027 = vadd.f32 %v4770, %v5026
        %5028 = vmatprep.mubr.f32.mxu0 %v4011
        %5029 = vmatmul.mubr.f32.gmra.mrb[0].mxu0 %v4010
        %v5030 = vpop.f32.mrb[0].mxu0
        %v5031 = vadd.f32 %v4774, %v5030
        %v5032 = vpop.f32.mrb[0].mxu0
        %v5033 = vadd.f32 %v4776, %v5032
        %5034 = vmatprep.mubr.f32.mxu0 %v4015
        %5035 = vmatmul.mubr.f32.gmra.mrb[0].mxu0 %v4014
        %v5036 = vpop.f32.mrb[0].mxu0
        %v5037 = vadd.f32 %v4780, %v5036
        %v5038 = vpop.f32.mrb[0].mxu0
        %v5039 = vadd.f32 %v4782, %v5038
        %5040 = vmatprep.mubr.f32.mxu0 %v4019
        %5041 = vmatmul.mubr.f32.gmra.mrb[0].mxu0 %v4018
        %v5042 = vpop.f32.mrb[0].mxu0
        %v5043 = vadd.f32 %v4786, %v5042
        %v5044 = vpop.f32.mrb[0].mxu0
        %v5045 = vadd.f32 %v4788, %v5044
        %5046 = vmatprep.mubr.f32.mxu0 %v4023
        %5047 = vmatmul.mubr.f32.gmra.mrb[0].mxu0 %v4022
        %v5048 = vpop.f32.mrb[0].mxu0
        %v5049 = vadd.f32 %v4792, %v5048
        %v5050 = vpop.f32.mrb[0].mxu0
        %v5051 = vadd.f32 %v4794, %v5050
        %5052 = vmatprep.mubr.f32.mxu0 %v4027
        %5053 = vmatmul.mubr.f32.gmra.mrb[0].mxu0 %v4026
        %v5054 = vpop.f32.mrb[0].mxu0
        %v5055 = vadd.f32 %v4798, %v5054
        %v5056 = vpop.f32.mrb[0].mxu0
        %v5057 = vadd.f32 %v4800, %v5056
        %5058 = vmatprep.mubr.f32.mxu0 %v4031
        %5059 = vmatmul.mubr.f32.gmra.mrb[0].mxu0 %v4030
        %v5060 = vpop.f32.mrb[0].mxu0
        %v5061 = vadd.f32 %v4804, %v5060
        %v5062 = vpop.f32.mrb[0].mxu0
        %v5063 = vadd.f32 %v4806, %v5062
        %5064 = vmatprep.mubr.f32.mxu0 %v4035
        %5065 = vmatmul.mubr.f32.gmra.mrb[0].mxu0 %v4034
        %v5066 = vpop.f32.mrb[0].mxu0
        %v5067 = vadd.f32 %v4810, %v5066
        %v5068 = vpop.f32.mrb[0].mxu0
        %v5069 = vadd.f32 %v4812, %v5068
        %5070 = vmatprep.mubr.f32.mxu0 %v4039
        %5071 = vmatmul.mubr.f32.gmra.mrb[0].mxu0 %v4038
        %v5072 = vpop.f32.mrb[0].mxu0
        %v5073 = vadd.f32 %v4816, %v5072
        %v5074 = vpop.f32.mrb[0].mxu0
        %v5075 = vadd.f32 %v4818, %v5074
        %5076 = vmatprep.mubr.f32.mxu0 %v4043
        %5077 = vmatmul.mubr.f32.gmra.mrb[0].mxu0 %v4042
        %v5078 = vpop.f32.mrb[0].mxu0
        %v5079 = vadd.f32 %v4822, %v5078
        %v5080 = vpop.f32.mrb[0].mxu0
        %v5081 = vadd.f32 %v4824, %v5080
        %5082 = vmatprep.mubr.f32.mxu0 %v4047
        %5083 = vmatmul.mubr.f32.gmra.mrb[0].mxu0 %v4046
        %v5084 = vpop.f32.mrb[0].mxu0
        %v5085 = vadd.f32 %v4828, %v5084
        %v5086 = vpop.f32.mrb[0].mxu0
        %v5087 = vadd.f32 %v4830, %v5086
        %5088 = vmatprep.mubr.f32.mxu0 %v4051
        %5089 = vmatmul.mubr.f32.gmra.mrb[0].mxu0 %v4050
        %v5090 = vpop.f32.mrb[0].mxu0
        %v5091 = vadd.f32 %v4834, %v5090
        %v5092 = vpop.f32.mrb[0].mxu0
        %v5093 = vadd.f32 %v4836, %v5092
        %5094 = vmatprep.mubr.f32.mxu0 %v4055
        %5095 = vmatmul.mubr.f32.gmra.mrb[0].mxu0 %v4054
        %v5096 = vpop.f32.mrb[0].mxu0
        %v5097 = vadd.f32 %v4840, %v5096
        %v5098 = vpop.f32.mrb[0].mxu0
        %v5099 = vadd.f32 %v4842, %v5098
        %5100 = vmatprep.mubr.f32.mxu0 %v4059
        %5101 = vmatmul.mubr.f32.gmra.mrb[0].mxu0 %v4058
        %v5102 = vpop.f32.mrb[0].mxu0
        %v5103 = vadd.f32 %v4846, %v5102
        %v5104 = vpop.f32.mrb[0].mxu0
        %v5105 = vadd.f32 %v4848, %v5104
        %5106 = vmatprep.mubr.f32.mxu0 %v4063
        %5107 = vmatmul.mubr.f32.gmra.mrb[0].mxu0 %v4062
        %v5108 = vpop.f32.mrb[0].mxu0
        %v5109 = vadd.f32 %v4852, %v5108
        %v5110 = vpop.f32.mrb[0].mxu0
        %v5111 = vadd.f32 %v4854, %v5110
        %5112 = vdwg.mxu0
        %v5113 = vld [vmem:[%s658] sm:$0xff]
        %v5114 = vld [vmem:[%s658 + $0x8] sm:$0xff]
        %v5115 = vld [vmem:[%s658 + $0x10] sm:$0xff]
        %v5116 = vld [vmem:[%s658 + $0x18] sm:$0xff]
        %v5117 = vld [vmem:[%s658 + $0x20] sm:$0xff]
        %v5118 = vld [vmem:[%s658 + $0x28] sm:$0xff]
        %v5119 = vld [vmem:[%s658 + $0x30] sm:$0xff]
        %v5120 = vld [vmem:[%s658 + $0x38] sm:$0xff]
        %v5121 = vld [vmem:[%s658 + $0x40] sm:$0xff]
        %v5122 = vld [vmem:[%s658 + $0x48] sm:$0xff]
        %v5123 = vld [vmem:[%s658 + $0x50] sm:$0xff]
        %v5124 = vld [vmem:[%s658 + $0x58] sm:$0xff]
        %v5125 = vld [vmem:[%s658 + $0x60] sm:$0xff]
        %v5126 = vld [vmem:[%s658 + $0x68] sm:$0xff]
        %v5127 = vld [vmem:[%s658 + $0x70] sm:$0xff]
        %v5128 = vld [vmem:[%s658 + $0x78] sm:$0xff]
        %v5129 = vld [vmem:[%s658 + $0x80] sm:$0xff]
        %v5130 = vld [vmem:[%s658 + $0x88] sm:$0xff]
        %v5131 = vld [vmem:[%s658 + $0x90] sm:$0xff]
        %v5132 = vld [vmem:[%s658 + $0x98] sm:$0xff]
        %v5133 = vld [vmem:[%s658 + $0xa0] sm:$0xff]
        %v5134 = vld [vmem:[%s658 + $0xa8] sm:$0xff]
        %v5135 = vld [vmem:[%s658 + $0xb0] sm:$0xff]
        %v5136 = vld [vmem:[%s658 + $0xb8] sm:$0xff]
        %v5137 = vld [vmem:[%s658 + $0xc0] sm:$0xff]
        %v5138 = vld [vmem:[%s658 + $0xc8] sm:$0xff]
        %v5139 = vld [vmem:[%s658 + $0xd0] sm:$0xff]
        %v5140 = vld [vmem:[%s658 + $0xd8] sm:$0xff]
        %v5141 = vld [vmem:[%s658 + $0xe0] sm:$0xff]
        %v5142 = vld [vmem:[%s658 + $0xe8] sm:$0xff]
        %v5143 = vld [vmem:[%s658 + $0xf0] sm:$0xff]
        %v5144 = vld [vmem:[%s658 + $0xf8] sm:$0xff]
        %v5145 = vld [vmem:[%s658 + $0x100] sm:$0xff]
        %v5146 = vld [vmem:[%s658 + $0x108] sm:$0xff]
        %v5147 = vld [vmem:[%s658 + $0x110] sm:$0xff]
        %v5148 = vld [vmem:[%s658 + $0x118] sm:$0xff]
        %v5149 = vld [vmem:[%s658 + $0x120] sm:$0xff]
        %v5150 = vld [vmem:[%s658 + $0x128] sm:$0xff]
        %v5151 = vld [vmem:[%s658 + $0x130] sm:$0xff]
        %v5152 = vld [vmem:[%s658 + $0x138] sm:$0xff]
        %v5153 = vld [vmem:[%s658 + $0x140] sm:$0xff]
        %v5154 = vld [vmem:[%s658 + $0x148] sm:$0xff]
        %v5155 = vld [vmem:[%s658 + $0x150] sm:$0xff]
        %v5156 = vld [vmem:[%s658 + $0x158] sm:$0xff]
        %v5157 = vld [vmem:[%s658 + $0x160] sm:$0xff]
        %v5158 = vld [vmem:[%s658 + $0x168] sm:$0xff]
        %v5159 = vld [vmem:[%s658 + $0x170] sm:$0xff]
        %v5160 = vld [vmem:[%s658 + $0x178] sm:$0xff]
        %v5161 = vld [vmem:[%s658 + $0x180] sm:$0xff]
        %v5162 = vld [vmem:[%s658 + $0x188] sm:$0xff]
        %v5163 = vld [vmem:[%s658 + $0x190] sm:$0xff]
        %v5164 = vld [vmem:[%s658 + $0x198] sm:$0xff]
        %v5165 = vld [vmem:[%s658 + $0x1a0] sm:$0xff]
        %v5166 = vld [vmem:[%s658 + $0x1a8] sm:$0xff]
        %v5167 = vld [vmem:[%s658 + $0x1b0] sm:$0xff]
        %v5168 = vld [vmem:[%s658 + $0x1b8] sm:$0xff]
        %v5169 = vld [vmem:[%s658 + $0x1c0] sm:$0xff]
        %v5170 = vld [vmem:[%s658 + $0x1c8] sm:$0xff]
        %v5171 = vld [vmem:[%s658 + $0x1d0] sm:$0xff]
        %v5172 = vld [vmem:[%s658 + $0x1d8] sm:$0xff]
        %v5173 = vld [vmem:[%s658 + $0x1e0] sm:$0xff]
        %v5174 = vld [vmem:[%s658 + $0x1e8] sm:$0xff]
        %v5175 = vld [vmem:[%s658 + $0x1f0] sm:$0xff]
        %v5176 = vld [vmem:[%s658 + $0x1f8] sm:$0xff]
        %v5177 = vld [vmem:[%s658 + $0x200] sm:$0xff]
        %v5178 = vld [vmem:[%s658 + $0x208] sm:$0xff]
        %v5179 = vld [vmem:[%s658 + $0x210] sm:$0xff]
        %v5180 = vld [vmem:[%s658 + $0x218] sm:$0xff]
        %v5181 = vld [vmem:[%s658 + $0x220] sm:$0xff]
        %v5182 = vld [vmem:[%s658 + $0x228] sm:$0xff]
        %v5183 = vld [vmem:[%s658 + $0x230] sm:$0xff]
        %v5184 = vld [vmem:[%s658 + $0x238] sm:$0xff]
        %v5185 = vld [vmem:[%s658 + $0x240] sm:$0xff]
        %v5186 = vld [vmem:[%s658 + $0x248] sm:$0xff]
        %v5187 = vld [vmem:[%s658 + $0x250] sm:$0xff]
        %v5188 = vld [vmem:[%s658 + $0x258] sm:$0xff]
        %v5189 = vld [vmem:[%s658 + $0x260] sm:$0xff]
        %v5190 = vld [vmem:[%s658 + $0x268] sm:$0xff]
        %v5191 = vld [vmem:[%s658 + $0x270] sm:$0xff]
        %v5192 = vld [vmem:[%s658 + $0x278] sm:$0xff]
        %v5193 = vld [vmem:[%s658 + $0x280] sm:$0xff]
        %v5194 = vld [vmem:[%s658 + $0x288] sm:$0xff]
        %v5195 = vld [vmem:[%s658 + $0x290] sm:$0xff]
        %v5196 = vld [vmem:[%s658 + $0x298] sm:$0xff]
        %v5197 = vld [vmem:[%s658 + $0x2a0] sm:$0xff]
        %v5198 = vld [vmem:[%s658 + $0x2a8] sm:$0xff]
        %v5199 = vld [vmem:[%s658 + $0x2b0] sm:$0xff]
        %v5200 = vld [vmem:[%s658 + $0x2b8] sm:$0xff]
        %v5201 = vld [vmem:[%s658 + $0x2c0] sm:$0xff]
        %v5202 = vld [vmem:[%s658 + $0x2c8] sm:$0xff]
        %v5203 = vld [vmem:[%s658 + $0x2d0] sm:$0xff]
        %v5204 = vld [vmem:[%s658 + $0x2d8] sm:$0xff]
        %v5205 = vld [vmem:[%s658 + $0x2e0] sm:$0xff]
        %v5206 = vld [vmem:[%s658 + $0x2e8] sm:$0xff]
        %v5207 = vld [vmem:[%s658 + $0x2f0] sm:$0xff]
        %v5208 = vld [vmem:[%s658 + $0x2f8] sm:$0xff]
        %v5209 = vld [vmem:[%s658 + $0x300] sm:$0xff]
        %v5210 = vld [vmem:[%s658 + $0x308] sm:$0xff]
        %v5211 = vld [vmem:[%s658 + $0x310] sm:$0xff]
        %v5212 = vld [vmem:[%s658 + $0x318] sm:$0xff]
        %v5213 = vld [vmem:[%s658 + $0x320] sm:$0xff]
        %v5214 = vld [vmem:[%s658 + $0x328] sm:$0xff]
        %v5215 = vld [vmem:[%s658 + $0x330] sm:$0xff]
        %v5216 = vld [vmem:[%s658 + $0x338] sm:$0xff]
        %v5217 = vld [vmem:[%s658 + $0x340] sm:$0xff]
        %v5218 = vld [vmem:[%s658 + $0x348] sm:$0xff]
        %v5219 = vld [vmem:[%s658 + $0x350] sm:$0xff]
        %v5220 = vld [vmem:[%s658 + $0x358] sm:$0xff]
        %v5221 = vld [vmem:[%s658 + $0x360] sm:$0xff]
        %v5222 = vld [vmem:[%s658 + $0x368] sm:$0xff]
        %v5223 = vld [vmem:[%s658 + $0x370] sm:$0xff]
        %v5224 = vld [vmem:[%s658 + $0x378] sm:$0xff]
        %v5225 = vld [vmem:[%s658 + $0x380] sm:$0xff]
        %v5226 = vld [vmem:[%s658 + $0x388] sm:$0xff]
        %v5227 = vld [vmem:[%s658 + $0x390] sm:$0xff]
        %v5228 = vld [vmem:[%s658 + $0x398] sm:$0xff]
        %v5229 = vld [vmem:[%s658 + $0x3a0] sm:$0xff]
        %v5230 = vld [vmem:[%s658 + $0x3a8] sm:$0xff]
        %v5231 = vld [vmem:[%s658 + $0x3b0] sm:$0xff]
        %v5232 = vld [vmem:[%s658 + $0x3b8] sm:$0xff]
        %v5233 = vld [vmem:[%s658 + $0x3c0] sm:$0xff]
        %v5234 = vld [vmem:[%s658 + $0x3c8] sm:$0xff]
        %v5235 = vld [vmem:[%s658 + $0x3d0] sm:$0xff]
        %v5236 = vld [vmem:[%s658 + $0x3d8] sm:$0xff]
        %v5237 = vld [vmem:[%s658 + $0x3e0] sm:$0xff]
        %v5238 = vld [vmem:[%s658 + $0x3e8] sm:$0xff]
        %v5239 = vld [vmem:[%s658 + $0x3f0] sm:$0xff]
        %v5240 = vld [vmem:[%s658 + $0x3f8] sm:$0xff]
        %v5241 = vld [vmem:[#allocation8] sm:$0xff]
        %v5242 = vld [vmem:[#allocation8 + $0x8] sm:$0xff]
        %v5243 = vld [vmem:[#allocation8 + $0x10] sm:$0xff]
        %v5244 = vld [vmem:[#allocation8 + $0x18] sm:$0xff]
        %v5245 = vld [vmem:[#allocation8 + $0x20] sm:$0xff]
        %v5246 = vld [vmem:[#allocation8 + $0x28] sm:$0xff]
        %v5247 = vld [vmem:[#allocation8 + $0x30] sm:$0xff]
        %v5248 = vld [vmem:[#allocation8 + $0x38] sm:$0xff]
        %v5249 = vld [vmem:[#allocation8 + $0x40] sm:$0xff]
        %v5250 = vld [vmem:[#allocation8 + $0x48] sm:$0xff]
        %v5251 = vld [vmem:[#allocation8 + $0x50] sm:$0xff]
        %v5252 = vld [vmem:[#allocation8 + $0x58] sm:$0xff]
        %v5253 = vld [vmem:[#allocation8 + $0x60] sm:$0xff]
        %v5254 = vld [vmem:[#allocation8 + $0x68] sm:$0xff]
        %v5255 = vld [vmem:[#allocation8 + $0x70] sm:$0xff]
        %v5256 = vld [vmem:[#allocation8 + $0x78] sm:$0xff]
        %v5257 = vld [vmem:[#allocation8 + $0x80] sm:$0xff]
        %v5258 = vld [vmem:[#allocation8 + $0x88] sm:$0xff]
        %v5259 = vld [vmem:[#allocation8 + $0x90] sm:$0xff]
        %v5260 = vld [vmem:[#allocation8 + $0x98] sm:$0xff]
        %v5261 = vld [vmem:[#allocation8 + $0xa0] sm:$0xff]
        %v5262 = vld [vmem:[#allocation8 + $0xa8] sm:$0xff]
        %v5263 = vld [vmem:[#allocation8 + $0xb0] sm:$0xff]
        %v5264 = vld [vmem:[#allocation8 + $0xb8] sm:$0xff]
        %v5265 = vld [vmem:[#allocation8 + $0xc0] sm:$0xff]
        %v5266 = vld [vmem:[#allocation8 + $0xc8] sm:$0xff]
        %v5267 = vld [vmem:[#allocation8 + $0xd0] sm:$0xff]
        %v5268 = vld [vmem:[#allocation8 + $0xd8] sm:$0xff]
        %v5269 = vld [vmem:[#allocation8 + $0xe0] sm:$0xff]
        %v5270 = vld [vmem:[#allocation8 + $0xe8] sm:$0xff]
        %v5271 = vld [vmem:[#allocation8 + $0xf0] sm:$0xff]
        %v5272 = vld [vmem:[#allocation8 + $0xf8] sm:$0xff]
        %v5273 = vld [vmem:[#allocation8 + $0x100] sm:$0xff]
        %v5274 = vld [vmem:[#allocation8 + $0x108] sm:$0xff]
        %v5275 = vld [vmem:[#allocation8 + $0x110] sm:$0xff]
        %v5276 = vld [vmem:[#allocation8 + $0x118] sm:$0xff]
        %v5277 = vld [vmem:[#allocation8 + $0x120] sm:$0xff]
        %v5278 = vld [vmem:[#allocation8 + $0x128] sm:$0xff]
        %v5279 = vld [vmem:[#allocation8 + $0x130] sm:$0xff]
        %v5280 = vld [vmem:[#allocation8 + $0x138] sm:$0xff]
        %v5281 = vld [vmem:[#allocation8 + $0x140] sm:$0xff]
        %v5282 = vld [vmem:[#allocation8 + $0x148] sm:$0xff]
        %v5283 = vld [vmem:[#allocation8 + $0x150] sm:$0xff]
        %v5284 = vld [vmem:[#allocation8 + $0x158] sm:$0xff]
        %v5285 = vld [vmem:[#allocation8 + $0x160] sm:$0xff]
        %v5286 = vld [vmem:[#allocation8 + $0x168] sm:$0xff]
        %v5287 = vld [vmem:[#allocation8 + $0x170] sm:$0xff]
        %v5288 = vld [vmem:[#allocation8 + $0x178] sm:$0xff]
        %v5289 = vld [vmem:[#allocation8 + $0x180] sm:$0xff]
        %v5290 = vld [vmem:[#allocation8 + $0x188] sm:$0xff]
        %v5291 = vld [vmem:[#allocation8 + $0x190] sm:$0xff]
        %v5292 = vld [vmem:[#allocation8 + $0x198] sm:$0xff]
        %v5293 = vld [vmem:[#allocation8 + $0x1a0] sm:$0xff]
        %v5294 = vld [vmem:[#allocation8 + $0x1a8] sm:$0xff]
        %v5295 = vld [vmem:[#allocation8 + $0x1b0] sm:$0xff]
        %v5296 = vld [vmem:[#allocation8 + $0x1b8] sm:$0xff]
        %v5297 = vld [vmem:[#allocation8 + $0x1c0] sm:$0xff]
        %v5298 = vld [vmem:[#allocation8 + $0x1c8] sm:$0xff]
        %v5299 = vld [vmem:[#allocation8 + $0x1d0] sm:$0xff]
        %v5300 = vld [vmem:[#allocation8 + $0x1d8] sm:$0xff]
        %v5301 = vld [vmem:[#allocation8 + $0x1e0] sm:$0xff]
        %v5302 = vld [vmem:[#allocation8 + $0x1e8] sm:$0xff]
        %v5303 = vld [vmem:[#allocation8 + $0x1f0] sm:$0xff]
        %v5304 = vld [vmem:[#allocation8 + $0x1f8] sm:$0xff]
        %v5305 = vld [vmem:[#allocation8 + $0x200] sm:$0xff]
        %v5306 = vld [vmem:[#allocation8 + $0x208] sm:$0xff]
        %v5307 = vld [vmem:[#allocation8 + $0x210] sm:$0xff]
        %v5308 = vld [vmem:[#allocation8 + $0x218] sm:$0xff]
        %v5309 = vld [vmem:[#allocation8 + $0x220] sm:$0xff]
        %v5310 = vld [vmem:[#allocation8 + $0x228] sm:$0xff]
        %v5311 = vld [vmem:[#allocation8 + $0x230] sm:$0xff]
        %v5312 = vld [vmem:[#allocation8 + $0x238] sm:$0xff]
        %v5313 = vld [vmem:[#allocation8 + $0x240] sm:$0xff]
        %v5314 = vld [vmem:[#allocation8 + $0x248] sm:$0xff]
        %v5315 = vld [vmem:[#allocation8 + $0x250] sm:$0xff]
        %v5316 = vld [vmem:[#allocation8 + $0x258] sm:$0xff]
        %v5317 = vld [vmem:[#allocation8 + $0x260] sm:$0xff]
        %v5318 = vld [vmem:[#allocation8 + $0x268] sm:$0xff]
        %v5319 = vld [vmem:[#allocation8 + $0x270] sm:$0xff]
        %v5320 = vld [vmem:[#allocation8 + $0x278] sm:$0xff]
        %v5321 = vld [vmem:[#allocation8 + $0x280] sm:$0xff]
        %v5322 = vld [vmem:[#allocation8 + $0x288] sm:$0xff]
        %v5323 = vld [vmem:[#allocation8 + $0x290] sm:$0xff]
        %v5324 = vld [vmem:[#allocation8 + $0x298] sm:$0xff]
        %v5325 = vld [vmem:[#allocation8 + $0x2a0] sm:$0xff]
        %v5326 = vld [vmem:[#allocation8 + $0x2a8] sm:$0xff]
        %v5327 = vld [vmem:[#allocation8 + $0x2b0] sm:$0xff]
        %v5328 = vld [vmem:[#allocation8 + $0x2b8] sm:$0xff]
        %v5329 = vld [vmem:[#allocation8 + $0x2c0] sm:$0xff]
        %v5330 = vld [vmem:[#allocation8 + $0x2c8] sm:$0xff]
        %v5331 = vld [vmem:[#allocation8 + $0x2d0] sm:$0xff]
        %v5332 = vld [vmem:[#allocation8 + $0x2d8] sm:$0xff]
        %v5333 = vld [vmem:[#allocation8 + $0x2e0] sm:$0xff]
        %v5334 = vld [vmem:[#allocation8 + $0x2e8] sm:$0xff]
        %v5335 = vld [vmem:[#allocation8 + $0x2f0] sm:$0xff]
        %v5336 = vld [vmem:[#allocation8 + $0x2f8] sm:$0xff]
        %v5337 = vld [vmem:[#allocation8 + $0x300] sm:$0xff]
        %v5338 = vld [vmem:[#allocation8 + $0x308] sm:$0xff]
        %v5339 = vld [vmem:[#allocation8 + $0x310] sm:$0xff]
        %v5340 = vld [vmem:[#allocation8 + $0x318] sm:$0xff]
        %v5341 = vld [vmem:[#allocation8 + $0x320] sm:$0xff]
        %v5342 = vld [vmem:[#allocation8 + $0x328] sm:$0xff]
        %v5343 = vld [vmem:[#allocation8 + $0x330] sm:$0xff]
        %v5344 = vld [vmem:[#allocation8 + $0x338] sm:$0xff]
        %v5345 = vld [vmem:[#allocation8 + $0x340] sm:$0xff]
        %v5346 = vld [vmem:[#allocation8 + $0x348] sm:$0xff]
        %v5347 = vld [vmem:[#allocation8 + $0x350] sm:$0xff]
        %v5348 = vld [vmem:[#allocation8 + $0x358] sm:$0xff]
        %v5349 = vld [vmem:[#allocation8 + $0x360] sm:$0xff]
        %v5350 = vld [vmem:[#allocation8 + $0x368] sm:$0xff]
        %v5351 = vld [vmem:[#allocation8 + $0x370] sm:$0xff]
        %v5352 = vld [vmem:[#allocation8 + $0x378] sm:$0xff]
        %v5353 = vld [vmem:[#allocation8 + $0x380] sm:$0xff]
        %v5354 = vld [vmem:[#allocation8 + $0x388] sm:$0xff]
        %v5355 = vld [vmem:[#allocation8 + $0x390] sm:$0xff]
        %v5356 = vld [vmem:[#allocation8 + $0x398] sm:$0xff]
        %v5357 = vld [vmem:[#allocation8 + $0x3a0] sm:$0xff]
        %v5358 = vld [vmem:[#allocation8 + $0x3a8] sm:$0xff]
        %v5359 = vld [vmem:[#allocation8 + $0x3b0] sm:$0xff]
        %v5360 = vld [vmem:[#allocation8 + $0x3b8] sm:$0xff]
        %v5361 = vld [vmem:[#allocation8 + $0x3c0] sm:$0xff]
        %v5362 = vld [vmem:[#allocation8 + $0x3c8] sm:$0xff]
        %v5363 = vld [vmem:[#allocation8 + $0x3d0] sm:$0xff]
        %v5364 = vld [vmem:[#allocation8 + $0x3d8] sm:$0xff]
        %v5365 = vld [vmem:[#allocation8 + $0x3e0] sm:$0xff]
        %v5366 = vld [vmem:[#allocation8 + $0x3e8] sm:$0xff]
        %v5367 = vld [vmem:[#allocation8 + $0x3f0] sm:$0xff]
        %v5368 = vld [vmem:[#allocation8 + $0x3f8] sm:$0xff]
        %v5369 = vld [vmem:[#allocation8 + $0x400] sm:$0xff]
        %v5370 = vld [vmem:[#allocation8 + $0x408] sm:$0xff]
        %v5371 = vld [vmem:[#allocation8 + $0x410] sm:$0xff]
        %v5372 = vld [vmem:[#allocation8 + $0x418] sm:$0xff]
        %v5373 = vld [vmem:[#allocation8 + $0x420] sm:$0xff]
        %v5374 = vld [vmem:[#allocation8 + $0x428] sm:$0xff]
        %v5375 = vld [vmem:[#allocation8 + $0x430] sm:$0xff]
        %v5376 = vld [vmem:[#allocation8 + $0x438] sm:$0xff]
        %v5377 = vld [vmem:[#allocation8 + $0x440] sm:$0xff]
        %v5378 = vld [vmem:[#allocation8 + $0x448] sm:$0xff]
        %v5379 = vld [vmem:[#allocation8 + $0x450] sm:$0xff]
        %v5380 = vld [vmem:[#allocation8 + $0x458] sm:$0xff]
        %v5381 = vld [vmem:[#allocation8 + $0x460] sm:$0xff]
        %v5382 = vld [vmem:[#allocation8 + $0x468] sm:$0xff]
        %v5383 = vld [vmem:[#allocation8 + $0x470] sm:$0xff]
        %v5384 = vld [vmem:[#allocation8 + $0x478] sm:$0xff]
        %v5385 = vld [vmem:[#allocation8 + $0x480] sm:$0xff]
        %v5386 = vld [vmem:[#allocation8 + $0x488] sm:$0xff]
        %v5387 = vld [vmem:[#allocation8 + $0x490] sm:$0xff]
        %v5388 = vld [vmem:[#allocation8 + $0x498] sm:$0xff]
        %v5389 = vld [vmem:[#allocation8 + $0x4a0] sm:$0xff]
        %v5390 = vld [vmem:[#allocation8 + $0x4a8] sm:$0xff]
        %v5391 = vld [vmem:[#allocation8 + $0x4b0] sm:$0xff]
        %v5392 = vld [vmem:[#allocation8 + $0x4b8] sm:$0xff]
        %v5393 = vld [vmem:[#allocation8 + $0x4c0] sm:$0xff]
        %v5394 = vld [vmem:[#allocation8 + $0x4c8] sm:$0xff]
        %v5395 = vld [vmem:[#allocation8 + $0x4d0] sm:$0xff]
        %v5396 = vld [vmem:[#allocation8 + $0x4d8] sm:$0xff]
        %v5397 = vld [vmem:[#allocation8 + $0x4e0] sm:$0xff]
        %v5398 = vld [vmem:[#allocation8 + $0x4e8] sm:$0xff]
        %v5399 = vld [vmem:[#allocation8 + $0x4f0] sm:$0xff]
        %v5400 = vld [vmem:[#allocation8 + $0x4f8] sm:$0xff]
        %v5401 = vld [vmem:[#allocation8 + $0x500] sm:$0xff]
        %v5402 = vld [vmem:[#allocation8 + $0x508] sm:$0xff]
        %v5403 = vld [vmem:[#allocation8 + $0x510] sm:$0xff]
        %v5404 = vld [vmem:[#allocation8 + $0x518] sm:$0xff]
        %v5405 = vld [vmem:[#allocation8 + $0x520] sm:$0xff]
        %v5406 = vld [vmem:[#allocation8 + $0x528] sm:$0xff]
        %v5407 = vld [vmem:[#allocation8 + $0x530] sm:$0xff]
        %v5408 = vld [vmem:[#allocation8 + $0x538] sm:$0xff]
        %v5409 = vld [vmem:[#allocation8 + $0x540] sm:$0xff]
        %v5410 = vld [vmem:[#allocation8 + $0x548] sm:$0xff]
        %v5411 = vld [vmem:[#allocation8 + $0x550] sm:$0xff]
        %v5412 = vld [vmem:[#allocation8 + $0x558] sm:$0xff]
        %v5413 = vld [vmem:[#allocation8 + $0x560] sm:$0xff]
        %v5414 = vld [vmem:[#allocation8 + $0x568] sm:$0xff]
        %v5415 = vld [vmem:[#allocation8 + $0x570] sm:$0xff]
        %v5416 = vld [vmem:[#allocation8 + $0x578] sm:$0xff]
        %v5417 = vld [vmem:[#allocation8 + $0x580] sm:$0xff]
        %v5418 = vld [vmem:[#allocation8 + $0x588] sm:$0xff]
        %v5419 = vld [vmem:[#allocation8 + $0x590] sm:$0xff]
        %v5420 = vld [vmem:[#allocation8 + $0x598] sm:$0xff]
        %v5421 = vld [vmem:[#allocation8 + $0x5a0] sm:$0xff]
        %v5422 = vld [vmem:[#allocation8 + $0x5a8] sm:$0xff]
        %v5423 = vld [vmem:[#allocation8 + $0x5b0] sm:$0xff]
        %v5424 = vld [vmem:[#allocation8 + $0x5b8] sm:$0xff]
        %v5425 = vld [vmem:[#allocation8 + $0x5c0] sm:$0xff]
        %v5426 = vld [vmem:[#allocation8 + $0x5c8] sm:$0xff]
        %v5427 = vld [vmem:[#allocation8 + $0x5d0] sm:$0xff]
        %v5428 = vld [vmem:[#allocation8 + $0x5d8] sm:$0xff]
        %v5429 = vld [vmem:[#allocation8 + $0x5e0] sm:$0xff]
        %v5430 = vld [vmem:[#allocation8 + $0x5e8] sm:$0xff]
        %v5431 = vld [vmem:[#allocation8 + $0x5f0] sm:$0xff]
        %v5432 = vld [vmem:[#allocation8 + $0x5f8] sm:$0xff]
        %v5433 = vld [vmem:[#allocation8 + $0x600] sm:$0xff]
        %v5434 = vld [vmem:[#allocation8 + $0x608] sm:$0xff]
        %v5435 = vld [vmem:[#allocation8 + $0x610] sm:$0xff]
        %v5436 = vld [vmem:[#allocation8 + $0x618] sm:$0xff]
        %v5437 = vld [vmem:[#allocation8 + $0x620] sm:$0xff]
        %v5438 = vld [vmem:[#allocation8 + $0x628] sm:$0xff]
        %v5439 = vld [vmem:[#allocation8 + $0x630] sm:$0xff]
        %v5440 = vld [vmem:[#allocation8 + $0x638] sm:$0xff]
        %v5441 = vld [vmem:[#allocation8 + $0x640] sm:$0xff]
        %v5442 = vld [vmem:[#allocation8 + $0x648] sm:$0xff]
        %v5443 = vld [vmem:[#allocation8 + $0x650] sm:$0xff]
        %v5444 = vld [vmem:[#allocation8 + $0x658] sm:$0xff]
        %v5445 = vld [vmem:[#allocation8 + $0x660] sm:$0xff]
        %v5446 = vld [vmem:[#allocation8 + $0x668] sm:$0xff]
        %v5447 = vld [vmem:[#allocation8 + $0x670] sm:$0xff]
        %v5448 = vld [vmem:[#allocation8 + $0x678] sm:$0xff]
        %v5449 = vld [vmem:[#allocation8 + $0x680] sm:$0xff]
        %v5450 = vld [vmem:[#allocation8 + $0x688] sm:$0xff]
        %v5451 = vld [vmem:[#allocation8 + $0x690] sm:$0xff]
        %v5452 = vld [vmem:[#allocation8 + $0x698] sm:$0xff]
        %v5453 = vld [vmem:[#allocation8 + $0x6a0] sm:$0xff]
        %v5454 = vld [vmem:[#allocation8 + $0x6a8] sm:$0xff]
        %v5455 = vld [vmem:[#allocation8 + $0x6b0] sm:$0xff]
        %v5456 = vld [vmem:[#allocation8 + $0x6b8] sm:$0xff]
        %v5457 = vld [vmem:[#allocation8 + $0x6c0] sm:$0xff]
        %v5458 = vld [vmem:[#allocation8 + $0x6c8] sm:$0xff]
        %v5459 = vld [vmem:[#allocation8 + $0x6d0] sm:$0xff]
        %v5460 = vld [vmem:[#allocation8 + $0x6d8] sm:$0xff]
        %v5461 = vld [vmem:[#allocation8 + $0x6e0] sm:$0xff]
        %v5462 = vld [vmem:[#allocation8 + $0x6e8] sm:$0xff]
        %v5463 = vld [vmem:[#allocation8 + $0x6f0] sm:$0xff]
        %v5464 = vld [vmem:[#allocation8 + $0x6f8] sm:$0xff]
        %v5465 = vld [vmem:[#allocation8 + $0x700] sm:$0xff]
        %v5466 = vld [vmem:[#allocation8 + $0x708] sm:$0xff]
        %v5467 = vld [vmem:[#allocation8 + $0x710] sm:$0xff]
        %v5468 = vld [vmem:[#allocation8 + $0x718] sm:$0xff]
        %v5469 = vld [vmem:[#allocation8 + $0x720] sm:$0xff]
        %v5470 = vld [vmem:[#allocation8 + $0x728] sm:$0xff]
        %v5471 = vld [vmem:[#allocation8 + $0x730] sm:$0xff]
        %v5472 = vld [vmem:[#allocation8 + $0x738] sm:$0xff]
        %v5473 = vld [vmem:[#allocation8 + $0x740] sm:$0xff]
        %v5474 = vld [vmem:[#allocation8 + $0x748] sm:$0xff]
        %v5475 = vld [vmem:[#allocation8 + $0x750] sm:$0xff]
        %v5476 = vld [vmem:[#allocation8 + $0x758] sm:$0xff]
        %v5477 = vld [vmem:[#allocation8 + $0x760] sm:$0xff]
        %v5478 = vld [vmem:[#allocation8 + $0x768] sm:$0xff]
        %v5479 = vld [vmem:[#allocation8 + $0x770] sm:$0xff]
        %v5480 = vld [vmem:[#allocation8 + $0x778] sm:$0xff]
        %v5481 = vld [vmem:[#allocation8 + $0x780] sm:$0xff]
        %v5482 = vld [vmem:[#allocation8 + $0x788] sm:$0xff]
        %v5483 = vld [vmem:[#allocation8 + $0x790] sm:$0xff]
        %v5484 = vld [vmem:[#allocation8 + $0x798] sm:$0xff]
        %v5485 = vld [vmem:[#allocation8 + $0x7a0] sm:$0xff]
        %v5486 = vld [vmem:[#allocation8 + $0x7a8] sm:$0xff]
        %v5487 = vld [vmem:[#allocation8 + $0x7b0] sm:$0xff]
        %v5488 = vld [vmem:[#allocation8 + $0x7b8] sm:$0xff]
        %v5489 = vld [vmem:[#allocation8 + $0x7c0] sm:$0xff]
        %v5490 = vld [vmem:[#allocation8 + $0x7c8] sm:$0xff]
        %v5491 = vld [vmem:[#allocation8 + $0x7d0] sm:$0xff]
        %v5492 = vld [vmem:[#allocation8 + $0x7d8] sm:$0xff]
        %v5493 = vld [vmem:[#allocation8 + $0x7e0] sm:$0xff]
        %v5494 = vld [vmem:[#allocation8 + $0x7e8] sm:$0xff]
        %v5495 = vld [vmem:[#allocation8 + $0x7f0] sm:$0xff]
        %v5496 = vld [vmem:[#allocation8 + $0x7f8] sm:$0xff]
        %5497 = vmatprep.subr.mxu0 %v5242
        %5498 = vmatpush1.msra.mxu0 %v5241
        %5499 = vmatprep.subr.mxu0 %v5246
        %5500 = vmatpush1.msra.mxu0 %v5245
        %5501 = vmatprep.subr.mxu0 %v5250
        %5502 = vmatpush1.msra.mxu0 %v5249
        %5503 = vmatprep.subr.mxu0 %v5254
        %5504 = vmatpush1.msra.mxu0 %v5253
        %5505 = vmatprep.subr.mxu0 %v5258
        %5506 = vmatpush1.msra.mxu0 %v5257
        %5507 = vmatprep.subr.mxu0 %v5262
        %5508 = vmatpush1.msra.mxu0 %v5261
        %5509 = vmatprep.subr.mxu0 %v5266
        %5510 = vmatpush1.msra.mxu0 %v5265
        %5511 = vmatprep.subr.mxu0 %v5270
        %5512 = vmatpush1.msra.mxu0 %v5269
        %5513 = vmatprep.subr.mxu0 %v5274
        %5514 = vmatpush1.msra.mxu0 %v5273
        %5515 = vmatprep.subr.mxu0 %v5278
        %5516 = vmatpush1.msra.mxu0 %v5277
        %5517 = vmatprep.subr.mxu0 %v5282
        %5518 = vmatpush1.msra.mxu0 %v5281
        %5519 = vmatprep.subr.mxu0 %v5286
        %5520 = vmatpush1.msra.mxu0 %v5285
        %5521 = vmatprep.subr.mxu0 %v5290
        %5522 = vmatpush1.msra.mxu0 %v5289
        %5523 = vmatprep.subr.mxu0 %v5294
        %5524 = vmatpush1.msra.mxu0 %v5293
        %5525 = vmatprep.subr.mxu0 %v5298
        %5526 = vmatpush1.msra.mxu0 %v5297
        %5527 = vmatprep.subr.mxu0 %v5302
        %5528 = vmatpush1.msra.mxu0 %v5301
        %5529 = vmatprep.subr.mxu0 %v5306
        %5530 = vmatpush1.msra.mxu0 %v5305
        %5531 = vmatprep.subr.mxu0 %v5310
        %5532 = vmatpush1.msra.mxu0 %v5309
        %5533 = vmatprep.subr.mxu0 %v5314
        %5534 = vmatpush1.msra.mxu0 %v5313
        %5535 = vmatprep.subr.mxu0 %v5318
        %5536 = vmatpush1.msra.mxu0 %v5317
        %5537 = vmatprep.subr.mxu0 %v5322
        %5538 = vmatpush1.msra.mxu0 %v5321
        %5539 = vmatprep.subr.mxu0 %v5326
        %5540 = vmatpush1.msra.mxu0 %v5325
        %5541 = vmatprep.subr.mxu0 %v5330
        %5542 = vmatpush1.msra.mxu0 %v5329
        %5543 = vmatprep.subr.mxu0 %v5334
        %5544 = vmatpush1.msra.mxu0 %v5333
        %5545 = vmatprep.subr.mxu0 %v5338
        %5546 = vmatpush1.msra.mxu0 %v5337
        %5547 = vmatprep.subr.mxu0 %v5342
        %5548 = vmatpush1.msra.mxu0 %v5341
        %5549 = vmatprep.subr.mxu0 %v5346
        %5550 = vmatpush1.msra.mxu0 %v5345
        %5551 = vmatprep.subr.mxu0 %v5350
        %5552 = vmatpush1.msra.mxu0 %v5349
        %5553 = vmatprep.subr.mxu0 %v5354
        %5554 = vmatpush1.msra.mxu0 %v5353
        %5555 = vmatprep.subr.mxu0 %v5358
        %5556 = vmatpush1.msra.mxu0 %v5357
        %5557 = vmatprep.subr.mxu0 %v5362
        %5558 = vmatpush1.msra.mxu0 %v5361
        %5559 = vmatprep.subr.mxu0 %v5366
        %5560 = vmatpush1.msra.mxu0 %v5365
        %5561 = vmatprep.mubr.f32.mxu0 %v5114
        %5562 = vmatmul.mubr.f32.gmra.mrb[0].mxu0 %v5113
        %v5563 = vpop.f32.mrb[0].mxu0
        %v5564 = vadd.f32 %v4409, %v5563
        %v5565 = vpop.f32.mrb[0].mxu0
        %v5566 = vadd.f32 %v4411, %v5565
        %5567 = vmatprep.mubr.f32.mxu0 %v5118
        %5568 = vmatmul.mubr.f32.gmra.mrb[0].mxu0 %v5117
        %v5569 = vpop.f32.mrb[0].mxu0
        %v5570 = vadd.f32 %v4415, %v5569
        %v5571 = vpop.f32.mrb[0].mxu0
        %v5572 = vadd.f32 %v4417, %v5571
        %5573 = vmatprep.mubr.f32.mxu0 %v5122
        %5574 = vmatmul.mubr.f32.gmra.mrb[0].mxu0 %v5121
        %v5575 = vpop.f32.mrb[0].mxu0
        %v5576 = vadd.f32 %v4421, %v5575
        %v5577 = vpop.f32.mrb[0].mxu0
        %v5578 = vadd.f32 %v4423, %v5577
        %5579 = vmatprep.mubr.f32.mxu0 %v5126
        %5580 = vmatmul.mubr.f32.gmra.mrb[0].mxu0 %v5125
        %v5581 = vpop.f32.mrb[0].mxu0
        %v5582 = vadd.f32 %v4427, %v5581
        %v5583 = vpop.f32.mrb[0].mxu0
        %v5584 = vadd.f32 %v4429, %v5583
        %5585 = vmatprep.mubr.f32.mxu0 %v5130
        %5586 = vmatmul.mubr.f32.gmra.mrb[0].mxu0 %v5129
        %v5587 = vpop.f32.mrb[0].mxu0
        %v5588 = vadd.f32 %v4433, %v5587
        %v5589 = vpop.f32.mrb[0].mxu0
        %v5590 = vadd.f32 %v4435, %v5589
        %5591 = vmatprep.mubr.f32.mxu0 %v5134
        %5592 = vmatmul.mubr.f32.gmra.mrb[0].mxu0 %v5133
        %v5593 = vpop.f32.mrb[0].mxu0
        %v5594 = vadd.f32 %v4439, %v5593
        %v5595 = vpop.f32.mrb[0].mxu0
        %v5596 = vadd.f32 %v4441, %v5595
        %5597 = vmatprep.mubr.f32.mxu0 %v5138
        %5598 = vmatmul.mubr.f32.gmra.mrb[0].mxu0 %v5137
        %v5599 = vpop.f32.mrb[0].mxu0
        %v5600 = vadd.f32 %v4445, %v5599
        %v5601 = vpop.f32.mrb[0].mxu0
        %v5602 = vadd.f32 %v4447, %v5601
        %5603 = vmatprep.mubr.f32.mxu0 %v5142
        %5604 = vmatmul.mubr.f32.gmra.mrb[0].mxu0 %v5141
        %v5605 = vpop.f32.mrb[0].mxu0
        %v5606 = vadd.f32 %v4451, %v5605
        %v5607 = vpop.f32.mrb[0].mxu0
        %v5608 = vadd.f32 %v4453, %v5607
        %5609 = vmatprep.mubr.f32.mxu0 %v5146
        %5610 = vmatmul.mubr.f32.gmra.mrb[0].mxu0 %v5145
        %v5611 = vpop.f32.mrb[0].mxu0
        %v5612 = vadd.f32 %v4457, %v5611
        %v5613 = vpop.f32.mrb[0].mxu0
        %v5614 = vadd.f32 %v4459, %v5613
        %5615 = vmatprep.mubr.f32.mxu0 %v5150
        %5616 = vmatmul.mubr.f32.gmra.mrb[0].mxu0 %v5149
        %v5617 = vpop.f32.mrb[0].mxu0
        %v5618 = vadd.f32 %v4463, %v5617
        %v5619 = vpop.f32.mrb[0].mxu0
        %v5620 = vadd.f32 %v4465, %v5619
        %5621 = vmatprep.mubr.f32.mxu0 %v5154
        %5622 = vmatmul.mubr.f32.gmra.mrb[0].mxu0 %v5153
        %v5623 = vpop.f32.mrb[0].mxu0
        %v5624 = vadd.f32 %v4469, %v5623
        %v5625 = vpop.f32.mrb[0].mxu0
        %v5626 = vadd.f32 %v4471, %v5625
        %5627 = vmatprep.mubr.f32.mxu0 %v5158
        %5628 = vmatmul.mubr.f32.gmra.mrb[0].mxu0 %v5157
        %v5629 = vpop.f32.mrb[0].mxu0
        %v5630 = vadd.f32 %v4475, %v5629
        %v5631 = vpop.f32.mrb[0].mxu0
        %v5632 = vadd.f32 %v4477, %v5631
        %5633 = vmatprep.mubr.f32.mxu0 %v5162
        %5634 = vmatmul.mubr.f32.gmra.mrb[0].mxu0 %v5161
        %v5635 = vpop.f32.mrb[0].mxu0
        %v5636 = vadd.f32 %v4481, %v5635
        %v5637 = vpop.f32.mrb[0].mxu0
        %v5638 = vadd.f32 %v4483, %v5637
        %5639 = vmatprep.mubr.f32.mxu0 %v5166
        %5640 = vmatmul.mubr.f32.gmra.mrb[0].mxu0 %v5165
        %v5641 = vpop.f32.mrb[0].mxu0
        %v5642 = vadd.f32 %v4487, %v5641
        %v5643 = vpop.f32.mrb[0].mxu0
        %v5644 = vadd.f32 %v4489, %v5643
        %5645 = vmatprep.mubr.f32.mxu0 %v5170
        %5646 = vmatmul.mubr.f32.gmra.mrb[0].mxu0 %v5169
        %v5647 = vpop.f32.mrb[0].mxu0
        %v5648 = vadd.f32 %v4493, %v5647
        %v5649 = vpop.f32.mrb[0].mxu0
        %v5650 = vadd.f32 %v4495, %v5649
        %5651 = vmatprep.mubr.f32.mxu0 %v5174
        %5652 = vmatmul.mubr.f32.gmra.mrb[0].mxu0 %v5173
        %v5653 = vpop.f32.mrb[0].mxu0
        %v5654 = vadd.f32 %v4499, %v5653
        %v5655 = vpop.f32.mrb[0].mxu0
        %v5656 = vadd.f32 %v4501, %v5655
        %5657 = vmatprep.mubr.f32.mxu0 %v5178
        %5658 = vmatmul.mubr.f32.gmra.mrb[0].mxu0 %v5177
        %v5659 = vpop.f32.mrb[0].mxu0
        %v5660 = vadd.f32 %v4505, %v5659
        %v5661 = vpop.f32.mrb[0].mxu0
        %v5662 = vadd.f32 %v4507, %v5661
        %5663 = vmatprep.mubr.f32.mxu0 %v5182
        %5664 = vmatmul.mubr.f32.gmra.mrb[0].mxu0 %v5181
        %v5665 = vpop.f32.mrb[0].mxu0
        %v5666 = vadd.f32 %v4511, %v5665
        %v5667 = vpop.f32.mrb[0].mxu0
        %v5668 = vadd.f32 %v4513, %v5667
        %5669 = vmatprep.mubr.f32.mxu0 %v5186
        %5670 = vmatmul.mubr.f32.gmra.mrb[0].mxu0 %v5185
        %v5671 = vpop.f32.mrb[0].mxu0
        %v5672 = vadd.f32 %v4517, %v5671
        %v5673 = vpop.f32.mrb[0].mxu0
        %v5674 = vadd.f32 %v4519, %v5673
        %5675 = vmatprep.mubr.f32.mxu0 %v5190
        %5676 = vmatmul.mubr.f32.gmra.mrb[0].mxu0 %v5189
        %v5677 = vpop.f32.mrb[0].mxu0
        %v5678 = vadd.f32 %v4523, %v5677
        %v5679 = vpop.f32.mrb[0].mxu0
        %v5680 = vadd.f32 %v4525, %v5679
        %5681 = vmatprep.mubr.f32.mxu0 %v5194
        %5682 = vmatmul.mubr.f32.gmra.mrb[0].mxu0 %v5193
        %v5683 = vpop.f32.mrb[0].mxu0
        %v5684 = vadd.f32 %v4529, %v5683
        %v5685 = vpop.f32.mrb[0].mxu0
        %v5686 = vadd.f32 %v4531, %v5685
        %5687 = vmatprep.mubr.f32.mxu0 %v5198
        %5688 = vmatmul.mubr.f32.gmra.mrb[0].mxu0 %v5197
        %v5689 = vpop.f32.mrb[0].mxu0
        %v5690 = vadd.f32 %v4535, %v5689
        %v5691 = vpop.f32.mrb[0].mxu0
        %v5692 = vadd.f32 %v4537, %v5691
        %5693 = vmatprep.mubr.f32.mxu0 %v5202
        %5694 = vmatmul.mubr.f32.gmra.mrb[0].mxu0 %v5201
        %v5695 = vpop.f32.mrb[0].mxu0
        %v5696 = vadd.f32 %v4541, %v5695
        %v5697 = vpop.f32.mrb[0].mxu0
        %v5698 = vadd.f32 %v4543, %v5697
        %5699 = vmatprep.mubr.f32.mxu0 %v5206
        %5700 = vmatmul.mubr.f32.gmra.mrb[0].mxu0 %v5205
        %v5701 = vpop.f32.mrb[0].mxu0
        %v5702 = vadd.f32 %v4547, %v5701
        %v5703 = vpop.f32.mrb[0].mxu0
        %v5704 = vadd.f32 %v4549, %v5703
        %5705 = vmatprep.mubr.f32.mxu0 %v5210
        %5706 = vmatmul.mubr.f32.gmra.mrb[0].mxu0 %v5209
        %v5707 = vpop.f32.mrb[0].mxu0
        %v5708 = vadd.f32 %v4553, %v5707
        %v5709 = vpop.f32.mrb[0].mxu0
        %v5710 = vadd.f32 %v4555, %v5709
        %5711 = vmatprep.mubr.f32.mxu0 %v5214
        %5712 = vmatmul.mubr.f32.gmra.mrb[0].mxu0 %v5213
        %v5713 = vpop.f32.mrb[0].mxu0
        %v5714 = vadd.f32 %v4559, %v5713
        %v5715 = vpop.f32.mrb[0].mxu0
        %v5716 = vadd.f32 %v4561, %v5715
        %5717 = vmatprep.mubr.f32.mxu0 %v5218
        %5718 = vmatmul.mubr.f32.gmra.mrb[0].mxu0 %v5217
        %v5719 = vpop.f32.mrb[0].mxu0
        %v5720 = vadd.f32 %v4565, %v5719
        %v5721 = vpop.f32.mrb[0].mxu0
        %v5722 = vadd.f32 %v4567, %v5721
        %5723 = vmatprep.mubr.f32.mxu0 %v5222
        %5724 = vmatmul.mubr.f32.gmra.mrb[0].mxu0 %v5221
        %v5725 = vpop.f32.mrb[0].mxu0
        %v5726 = vadd.f32 %v4571, %v5725
        %v5727 = vpop.f32.mrb[0].mxu0
        %v5728 = vadd.f32 %v4573, %v5727
        %5729 = vmatprep.mubr.f32.mxu0 %v5226
        %5730 = vmatmul.mubr.f32.gmra.mrb[0].mxu0 %v5225
        %v5731 = vpop.f32.mrb[0].mxu0
        %v5732 = vadd.f32 %v4577, %v5731
        %v5733 = vpop.f32.mrb[0].mxu0
        %v5734 = vadd.f32 %v4579, %v5733
        %5735 = vmatprep.mubr.f32.mxu0 %v5230
        %5736 = vmatmul.mubr.f32.gmra.mrb[0].mxu0 %v5229
        %v5737 = vpop.f32.mrb[0].mxu0
        %v5738 = vadd.f32 %v4583, %v5737
        %v5739 = vpop.f32.mrb[0].mxu0
        %v5740 = vadd.f32 %v4585, %v5739
        %5741 = vmatprep.mubr.f32.mxu0 %v5234
        %5742 = vmatmul.mubr.f32.gmra.mrb[0].mxu0 %v5233
        %v5743 = vpop.f32.mrb[0].mxu0
        %v5744 = vadd.f32 %v4589, %v5743
        %v5745 = vpop.f32.mrb[0].mxu0
        %v5746 = vadd.f32 %v4591, %v5745
        %5747 = vmatprep.mubr.f32.mxu0 %v5238
        %5748 = vmatmul.mubr.f32.gmra.mrb[0].mxu0 %v5237
        %v5749 = vpop.f32.mrb[0].mxu0
        %v5750 = vadd.f32 %v4595, %v5749
        %v5751 = vpop.f32.mrb[0].mxu0
        %v5752 = vadd.f32 %v4597, %v5751
        %5753 = vdwg.mxu0
        %5754 = vmatprep.subr.mxu0 %v5370
        %5755 = vmatpush1.msra.mxu0 %v5369
        %5756 = vmatprep.subr.mxu0 %v5374
        %5757 = vmatpush1.msra.mxu0 %v5373
        %5758 = vmatprep.subr.mxu0 %v5378
        %5759 = vmatpush1.msra.mxu0 %v5377
        %5760 = vmatprep.subr.mxu0 %v5382
        %5761 = vmatpush1.msra.mxu0 %v5381
        %5762 = vmatprep.subr.mxu0 %v5386
        %5763 = vmatpush1.msra.mxu0 %v5385
        %5764 = vmatprep.subr.mxu0 %v5390
        %5765 = vmatpush1.msra.mxu0 %v5389
        %5766 = vmatprep.subr.mxu0 %v5394
        %5767 = vmatpush1.msra.mxu0 %v5393
        %5768 = vmatprep.subr.mxu0 %v5398
        %5769 = vmatpush1.msra.mxu0 %v5397
        %5770 = vmatprep.subr.mxu0 %v5402
        %5771 = vmatpush1.msra.mxu0 %v5401
        %5772 = vmatprep.subr.mxu0 %v5406
        %5773 = vmatpush1.msra.mxu0 %v5405
        %5774 = vmatprep.subr.mxu0 %v5410
        %5775 = vmatpush1.msra.mxu0 %v5409
        %5776 = vmatprep.subr.mxu0 %v5414
        %5777 = vmatpush1.msra.mxu0 %v5413
        %5778 = vmatprep.subr.mxu0 %v5418
        %5779 = vmatpush1.msra.mxu0 %v5417
        %5780 = vmatprep.subr.mxu0 %v5422
        %5781 = vmatpush1.msra.mxu0 %v5421
        %5782 = vmatprep.subr.mxu0 %v5426
        %5783 = vmatpush1.msra.mxu0 %v5425
        %5784 = vmatprep.subr.mxu0 %v5430
        %5785 = vmatpush1.msra.mxu0 %v5429
        %5786 = vmatprep.subr.mxu0 %v5434
        %5787 = vmatpush1.msra.mxu0 %v5433
        %5788 = vmatprep.subr.mxu0 %v5438
        %5789 = vmatpush1.msra.mxu0 %v5437
        %5790 = vmatprep.subr.mxu0 %v5442
        %5791 = vmatpush1.msra.mxu0 %v5441
        %5792 = vmatprep.subr.mxu0 %v5446
        %5793 = vmatpush1.msra.mxu0 %v5445
        %5794 = vmatprep.subr.mxu0 %v5450
        %5795 = vmatpush1.msra.mxu0 %v5449
        %5796 = vmatprep.subr.mxu0 %v5454
        %5797 = vmatpush1.msra.mxu0 %v5453
        %5798 = vmatprep.subr.mxu0 %v5458
        %5799 = vmatpush1.msra.mxu0 %v5457
        %5800 = vmatprep.subr.mxu0 %v5462
        %5801 = vmatpush1.msra.mxu0 %v5461
        %5802 = vmatprep.subr.mxu0 %v5466
        %5803 = vmatpush1.msra.mxu0 %v5465
        %5804 = vmatprep.subr.mxu0 %v5470
        %5805 = vmatpush1.msra.mxu0 %v5469
        %5806 = vmatprep.subr.mxu0 %v5474
        %5807 = vmatpush1.msra.mxu0 %v5473
        %5808 = vmatprep.subr.mxu0 %v5478
        %5809 = vmatpush1.msra.mxu0 %v5477
        %5810 = vmatprep.subr.mxu0 %v5482
        %5811 = vmatpush1.msra.mxu0 %v5481
        %5812 = vmatprep.subr.mxu0 %v5486
        %5813 = vmatpush1.msra.mxu0 %v5485
        %5814 = vmatprep.subr.mxu0 %v5490
        %5815 = vmatpush1.msra.mxu0 %v5489
        %5816 = vmatprep.subr.mxu0 %v5494
        %5817 = vmatpush1.msra.mxu0 %v5493
        %5818 = vmatprep.mubr.f32.mxu0 %v5116
        %5819 = vmatmul.mubr.f32.gmra.mrb[0].mxu0 %v5115
        %v5820 = vpop.f32.mrb[0].mxu0
        %v5821 = vadd.f32 %v5564, %v5820
        %v5822 = vpop.f32.mrb[0].mxu0
        %v5823 = vadd.f32 %v5566, %v5822
        %5824 = vmatprep.mubr.f32.mxu0 %v5120
        %5825 = vmatmul.mubr.f32.gmra.mrb[0].mxu0 %v5119
        %v5826 = vpop.f32.mrb[0].mxu0
        %v5827 = vadd.f32 %v5570, %v5826
        %v5828 = vpop.f32.mrb[0].mxu0
        %v5829 = vadd.f32 %v5572, %v5828
        %5830 = vmatprep.mubr.f32.mxu0 %v5124
        %5831 = vmatmul.mubr.f32.gmra.mrb[0].mxu0 %v5123
        %v5832 = vpop.f32.mrb[0].mxu0
        %v5833 = vadd.f32 %v5576, %v5832
        %v5834 = vpop.f32.mrb[0].mxu0
        %v5835 = vadd.f32 %v5578, %v5834
        %5836 = vmatprep.mubr.f32.mxu0 %v5128
        %5837 = vmatmul.mubr.f32.gmra.mrb[0].mxu0 %v5127
        %v5838 = vpop.f32.mrb[0].mxu0
        %v5839 = vadd.f32 %v5582, %v5838
        %v5840 = vpop.f32.mrb[0].mxu0
        %v5841 = vadd.f32 %v5584, %v5840
        %5842 = vmatprep.mubr.f32.mxu0 %v5132
        %5843 = vmatmul.mubr.f32.gmra.mrb[0].mxu0 %v5131
        %v5844 = vpop.f32.mrb[0].mxu0
        %v5845 = vadd.f32 %v5588, %v5844
        %v5846 = vpop.f32.mrb[0].mxu0
        %v5847 = vadd.f32 %v5590, %v5846
        %5848 = vmatprep.mubr.f32.mxu0 %v5136
        %5849 = vmatmul.mubr.f32.gmra.mrb[0].mxu0 %v5135
        %v5850 = vpop.f32.mrb[0].mxu0
        %v5851 = vadd.f32 %v5594, %v5850
        %v5852 = vpop.f32.mrb[0].mxu0
        %v5853 = vadd.f32 %v5596, %v5852
        %5854 = vmatprep.mubr.f32.mxu0 %v5140
        %5855 = vmatmul.mubr.f32.gmra.mrb[0].mxu0 %v5139
        %v5856 = vpop.f32.mrb[0].mxu0
        %v5857 = vadd.f32 %v5600, %v5856
        %v5858 = vpop.f32.mrb[0].mxu0
        %v5859 = vadd.f32 %v5602, %v5858
        %5860 = vmatprep.mubr.f32.mxu0 %v5144
        %5861 = vmatmul.mubr.f32.gmra.mrb[0].mxu0 %v5143
        %v5862 = vpop.f32.mrb[0].mxu0
        %v5863 = vadd.f32 %v5606, %v5862
        %v5864 = vpop.f32.mrb[0].mxu0
        %v5865 = vadd.f32 %v5608, %v5864
        %5866 = vmatprep.mubr.f32.mxu0 %v5148
        %5867 = vmatmul.mubr.f32.gmra.mrb[0].mxu0 %v5147
        %v5868 = vpop.f32.mrb[0].mxu0
        %v5869 = vadd.f32 %v5612, %v5868
        %v5870 = vpop.f32.mrb[0].mxu0
        %v5871 = vadd.f32 %v5614, %v5870
        %5872 = vmatprep.mubr.f32.mxu0 %v5152
        %5873 = vmatmul.mubr.f32.gmra.mrb[0].mxu0 %v5151
        %v5874 = vpop.f32.mrb[0].mxu0
        %v5875 = vadd.f32 %v5618, %v5874
        %v5876 = vpop.f32.mrb[0].mxu0
        %v5877 = vadd.f32 %v5620, %v5876
        %5878 = vmatprep.mubr.f32.mxu0 %v5156
        %5879 = vmatmul.mubr.f32.gmra.mrb[0].mxu0 %v5155
        %v5880 = vpop.f32.mrb[0].mxu0
        %v5881 = vadd.f32 %v5624, %v5880
        %v5882 = vpop.f32.mrb[0].mxu0
        %v5883 = vadd.f32 %v5626, %v5882
        %5884 = vmatprep.mubr.f32.mxu0 %v5160
        %5885 = vmatmul.mubr.f32.gmra.mrb[0].mxu0 %v5159
        %v5886 = vpop.f32.mrb[0].mxu0
        %v5887 = vadd.f32 %v5630, %v5886
        %v5888 = vpop.f32.mrb[0].mxu0
        %v5889 = vadd.f32 %v5632, %v5888
        %5890 = vmatprep.mubr.f32.mxu0 %v5164
        %5891 = vmatmul.mubr.f32.gmra.mrb[0].mxu0 %v5163
        %v5892 = vpop.f32.mrb[0].mxu0
        %v5893 = vadd.f32 %v5636, %v5892
        %v5894 = vpop.f32.mrb[0].mxu0
        %v5895 = vadd.f32 %v5638, %v5894
        %5896 = vmatprep.mubr.f32.mxu0 %v5168
        %5897 = vmatmul.mubr.f32.gmra.mrb[0].mxu0 %v5167
        %v5898 = vpop.f32.mrb[0].mxu0
        %v5899 = vadd.f32 %v5642, %v5898
        %v5900 = vpop.f32.mrb[0].mxu0
        %v5901 = vadd.f32 %v5644, %v5900
        %5902 = vmatprep.mubr.f32.mxu0 %v5172
        %5903 = vmatmul.mubr.f32.gmra.mrb[0].mxu0 %v5171
        %v5904 = vpop.f32.mrb[0].mxu0
        %v5905 = vadd.f32 %v5648, %v5904
        %v5906 = vpop.f32.mrb[0].mxu0
        %v5907 = vadd.f32 %v5650, %v5906
        %5908 = vmatprep.mubr.f32.mxu0 %v5176
        %5909 = vmatmul.mubr.f32.gmra.mrb[0].mxu0 %v5175
        %v5910 = vpop.f32.mrb[0].mxu0
        %v5911 = vadd.f32 %v5654, %v5910
        %v5912 = vpop.f32.mrb[0].mxu0
        %v5913 = vadd.f32 %v5656, %v5912
        %5914 = vmatprep.mubr.f32.mxu0 %v5180
        %5915 = vmatmul.mubr.f32.gmra.mrb[0].mxu0 %v5179
        %v5916 = vpop.f32.mrb[0].mxu0
        %v5917 = vadd.f32 %v5660, %v5916
        %v5918 = vpop.f32.mrb[0].mxu0
        %v5919 = vadd.f32 %v5662, %v5918
        %5920 = vmatprep.mubr.f32.mxu0 %v5184
        %5921 = vmatmul.mubr.f32.gmra.mrb[0].mxu0 %v5183
        %v5922 = vpop.f32.mrb[0].mxu0
        %v5923 = vadd.f32 %v5666, %v5922
        %v5924 = vpop.f32.mrb[0].mxu0
        %v5925 = vadd.f32 %v5668, %v5924
        %5926 = vmatprep.mubr.f32.mxu0 %v5188
        %5927 = vmatmul.mubr.f32.gmra.mrb[0].mxu0 %v5187
        %v5928 = vpop.f32.mrb[0].mxu0
        %v5929 = vadd.f32 %v5672, %v5928
        %v5930 = vpop.f32.mrb[0].mxu0
        %v5931 = vadd.f32 %v5674, %v5930
        %5932 = vmatprep.mubr.f32.mxu0 %v5192
        %5933 = vmatmul.mubr.f32.gmra.mrb[0].mxu0 %v5191
        %v5934 = vpop.f32.mrb[0].mxu0
        %v5935 = vadd.f32 %v5678, %v5934
        %v5936 = vpop.f32.mrb[0].mxu0
        %v5937 = vadd.f32 %v5680, %v5936
        %5938 = vmatprep.mubr.f32.mxu0 %v5196
        %5939 = vmatmul.mubr.f32.gmra.mrb[0].mxu0 %v5195
        %v5940 = vpop.f32.mrb[0].mxu0
        %v5941 = vadd.f32 %v5684, %v5940
        %v5942 = vpop.f32.mrb[0].mxu0
        %v5943 = vadd.f32 %v5686, %v5942
        %5944 = vmatprep.mubr.f32.mxu0 %v5200
        %5945 = vmatmul.mubr.f32.gmra.mrb[0].mxu0 %v5199
        %v5946 = vpop.f32.mrb[0].mxu0
        %v5947 = vadd.f32 %v5690, %v5946
        %v5948 = vpop.f32.mrb[0].mxu0
        %v5949 = vadd.f32 %v5692, %v5948
        %5950 = vmatprep.mubr.f32.mxu0 %v5204
        %5951 = vmatmul.mubr.f32.gmra.mrb[0].mxu0 %v5203
        %v5952 = vpop.f32.mrb[0].mxu0
        %v5953 = vadd.f32 %v5696, %v5952
        %v5954 = vpop.f32.mrb[0].mxu0
        %v5955 = vadd.f32 %v5698, %v5954
        %5956 = vmatprep.mubr.f32.mxu0 %v5208
        %5957 = vmatmul.mubr.f32.gmra.mrb[0].mxu0 %v5207
        %v5958 = vpop.f32.mrb[0].mxu0
        %v5959 = vadd.f32 %v5702, %v5958
        %v5960 = vpop.f32.mrb[0].mxu0
        %v5961 = vadd.f32 %v5704, %v5960
        %5962 = vmatprep.mubr.f32.mxu0 %v5212
        %5963 = vmatmul.mubr.f32.gmra.mrb[0].mxu0 %v5211
        %v5964 = vpop.f32.mrb[0].mxu0
        %v5965 = vadd.f32 %v5708, %v5964
        %v5966 = vpop.f32.mrb[0].mxu0
        %v5967 = vadd.f32 %v5710, %v5966
        %5968 = vmatprep.mubr.f32.mxu0 %v5216
        %5969 = vmatmul.mubr.f32.gmra.mrb[0].mxu0 %v5215
        %v5970 = vpop.f32.mrb[0].mxu0
        %v5971 = vadd.f32 %v5714, %v5970
        %v5972 = vpop.f32.mrb[0].mxu0
        %v5973 = vadd.f32 %v5716, %v5972
        %5974 = vmatprep.mubr.f32.mxu0 %v5220
        %5975 = vmatmul.mubr.f32.gmra.mrb[0].mxu0 %v5219
        %v5976 = vpop.f32.mrb[0].mxu0
        %v5977 = vadd.f32 %v5720, %v5976
        %v5978 = vpop.f32.mrb[0].mxu0
        %v5979 = vadd.f32 %v5722, %v5978
        %5980 = vmatprep.mubr.f32.mxu0 %v5224
        %5981 = vmatmul.mubr.f32.gmra.mrb[0].mxu0 %v5223
        %v5982 = vpop.f32.mrb[0].mxu0
        %v5983 = vadd.f32 %v5726, %v5982
        %v5984 = vpop.f32.mrb[0].mxu0
        %v5985 = vadd.f32 %v5728, %v5984
        %5986 = vmatprep.mubr.f32.mxu0 %v5228
        %5987 = vmatmul.mubr.f32.gmra.mrb[0].mxu0 %v5227
        %v5988 = vpop.f32.mrb[0].mxu0
        %v5989 = vadd.f32 %v5732, %v5988
        %v5990 = vpop.f32.mrb[0].mxu0
        %v5991 = vadd.f32 %v5734, %v5990
        %5992 = vmatprep.mubr.f32.mxu0 %v5232
        %5993 = vmatmul.mubr.f32.gmra.mrb[0].mxu0 %v5231
        %v5994 = vpop.f32.mrb[0].mxu0
        %v5995 = vadd.f32 %v5738, %v5994
        %v5996 = vpop.f32.mrb[0].mxu0
        %v5997 = vadd.f32 %v5740, %v5996
        %5998 = vmatprep.mubr.f32.mxu0 %v5236
        %5999 = vmatmul.mubr.f32.gmra.mrb[0].mxu0 %v5235
        %v6000 = vpop.f32.mrb[0].mxu0
        %v6001 = vadd.f32 %v5744, %v6000
        %v6002 = vpop.f32.mrb[0].mxu0
        %v6003 = vadd.f32 %v5746, %v6002
        %6004 = vmatprep.mubr.f32.mxu0 %v5240
        %6005 = vmatmul.mubr.f32.gmra.mrb[0].mxu0 %v5239
        %v6006 = vpop.f32.mrb[0].mxu0
        %v6007 = vadd.f32 %v5750, %v6006
        %v6008 = vpop.f32.mrb[0].mxu0
        %v6009 = vadd.f32 %v5752, %v6008
        %6010 = vdwg.mxu0
        %6011 = vmatprep.subr.mxu0 %v5244
        %6012 = vmatpush1.msra.mxu0 %v5243
        %6013 = vmatprep.subr.mxu0 %v5248
        %6014 = vmatpush1.msra.mxu0 %v5247
        %6015 = vmatprep.subr.mxu0 %v5252
        %6016 = vmatpush1.msra.mxu0 %v5251
        %6017 = vmatprep.subr.mxu0 %v5256
        %6018 = vmatpush1.msra.mxu0 %v5255
        %6019 = vmatprep.subr.mxu0 %v5260
        %6020 = vmatpush1.msra.mxu0 %v5259
        %6021 = vmatprep.subr.mxu0 %v5264
        %6022 = vmatpush1.msra.mxu0 %v5263
        %6023 = vmatprep.subr.mxu0 %v5268
        %6024 = vmatpush1.msra.mxu0 %v5267
        %6025 = vmatprep.subr.mxu0 %v5272
        %6026 = vmatpush1.msra.mxu0 %v5271
        %6027 = vmatprep.subr.mxu0 %v5276
        %6028 = vmatpush1.msra.mxu0 %v5275
        %6029 = vmatprep.subr.mxu0 %v5280
        %6030 = vmatpush1.msra.mxu0 %v5279
        %6031 = vmatprep.subr.mxu0 %v5284
        %6032 = vmatpush1.msra.mxu0 %v5283
        %6033 = vmatprep.subr.mxu0 %v5288
        %6034 = vmatpush1.msra.mxu0 %v5287
        %6035 = vmatprep.subr.mxu0 %v5292
        %6036 = vmatpush1.msra.mxu0 %v5291
        %6037 = vmatprep.subr.mxu0 %v5296
        %6038 = vmatpush1.msra.mxu0 %v5295
        %6039 = vmatprep.subr.mxu0 %v5300
        %6040 = vmatpush1.msra.mxu0 %v5299
        %6041 = vmatprep.subr.mxu0 %v5304
        %6042 = vmatpush1.msra.mxu0 %v5303
        %6043 = vmatprep.subr.mxu0 %v5308
        %6044 = vmatpush1.msra.mxu0 %v5307
        %6045 = vmatprep.subr.mxu0 %v5312
        %6046 = vmatpush1.msra.mxu0 %v5311
        %6047 = vmatprep.subr.mxu0 %v5316
        %6048 = vmatpush1.msra.mxu0 %v5315
        %6049 = vmatprep.subr.mxu0 %v5320
        %6050 = vmatpush1.msra.mxu0 %v5319
        %6051 = vmatprep.subr.mxu0 %v5324
        %6052 = vmatpush1.msra.mxu0 %v5323
        %6053 = vmatprep.subr.mxu0 %v5328
        %6054 = vmatpush1.msra.mxu0 %v5327
        %6055 = vmatprep.subr.mxu0 %v5332
        %6056 = vmatpush1.msra.mxu0 %v5331
        %6057 = vmatprep.subr.mxu0 %v5336
        %6058 = vmatpush1.msra.mxu0 %v5335
        %6059 = vmatprep.subr.mxu0 %v5340
        %6060 = vmatpush1.msra.mxu0 %v5339
        %6061 = vmatprep.subr.mxu0 %v5344
        %6062 = vmatpush1.msra.mxu0 %v5343
        %6063 = vmatprep.subr.mxu0 %v5348
        %6064 = vmatpush1.msra.mxu0 %v5347
        %6065 = vmatprep.subr.mxu0 %v5352
        %6066 = vmatpush1.msra.mxu0 %v5351
        %6067 = vmatprep.subr.mxu0 %v5356
        %6068 = vmatpush1.msra.mxu0 %v5355
        %6069 = vmatprep.subr.mxu0 %v5360
        %6070 = vmatpush1.msra.mxu0 %v5359
        %6071 = vmatprep.subr.mxu0 %v5364
        %6072 = vmatpush1.msra.mxu0 %v5363
        %6073 = vmatprep.subr.mxu0 %v5368
        %6074 = vmatpush1.msra.mxu0 %v5367
        %6075 = vmatprep.mubr.f32.mxu0 %v5114
        %6076 = vmatmul.mubr.f32.gmra.mrb[0].mxu0 %v5113
        %v6077 = vpop.f32.mrb[0].mxu0
        %v6078 = vadd.f32 %v4923, %v6077
        %v6079 = vpop.f32.mrb[0].mxu0
        %v6080 = vadd.f32 %v4925, %v6079
        %6081 = vmatprep.mubr.f32.mxu0 %v5118
        %6082 = vmatmul.mubr.f32.gmra.mrb[0].mxu0 %v5117
        %v6083 = vpop.f32.mrb[0].mxu0
        %v6084 = vadd.f32 %v4929, %v6083
        %v6085 = vpop.f32.mrb[0].mxu0
        %v6086 = vadd.f32 %v4931, %v6085
        %6087 = vmatprep.mubr.f32.mxu0 %v5122
        %6088 = vmatmul.mubr.f32.gmra.mrb[0].mxu0 %v5121
        %v6089 = vpop.f32.mrb[0].mxu0
        %v6090 = vadd.f32 %v4935, %v6089
        %v6091 = vpop.f32.mrb[0].mxu0
        %v6092 = vadd.f32 %v4937, %v6091
        %6093 = vmatprep.mubr.f32.mxu0 %v5126
        %6094 = vmatmul.mubr.f32.gmra.mrb[0].mxu0 %v5125
        %v6095 = vpop.f32.mrb[0].mxu0
        %v6096 = vadd.f32 %v4941, %v6095
        %v6097 = vpop.f32.mrb[0].mxu0
        %v6098 = vadd.f32 %v4943, %v6097
        %6099 = vmatprep.mubr.f32.mxu0 %v5130
        %6100 = vmatmul.mubr.f32.gmra.mrb[0].mxu0 %v5129
        %v6101 = vpop.f32.mrb[0].mxu0
        %v6102 = vadd.f32 %v4947, %v6101
        %v6103 = vpop.f32.mrb[0].mxu0
        %v6104 = vadd.f32 %v4949, %v6103
        %6105 = vmatprep.mubr.f32.mxu0 %v5134
        %6106 = vmatmul.mubr.f32.gmra.mrb[0].mxu0 %v5133
        %v6107 = vpop.f32.mrb[0].mxu0
        %v6108 = vadd.f32 %v4953, %v6107
        %v6109 = vpop.f32.mrb[0].mxu0
        %v6110 = vadd.f32 %v4955, %v6109
        %6111 = vmatprep.mubr.f32.mxu0 %v5138
        %6112 = vmatmul.mubr.f32.gmra.mrb[0].mxu0 %v5137
        %v6113 = vpop.f32.mrb[0].mxu0
        %v6114 = vadd.f32 %v4959, %v6113
        %v6115 = vpop.f32.mrb[0].mxu0
        %v6116 = vadd.f32 %v4961, %v6115
        %6117 = vmatprep.mubr.f32.mxu0 %v5142
        %6118 = vmatmul.mubr.f32.gmra.mrb[0].mxu0 %v5141
        %v6119 = vpop.f32.mrb[0].mxu0
        %v6120 = vadd.f32 %v4965, %v6119
        %v6121 = vpop.f32.mrb[0].mxu0
        %v6122 = vadd.f32 %v4967, %v6121
        %6123 = vmatprep.mubr.f32.mxu0 %v5146
        %6124 = vmatmul.mubr.f32.gmra.mrb[0].mxu0 %v5145
        %v6125 = vpop.f32.mrb[0].mxu0
        %v6126 = vadd.f32 %v4971, %v6125
        %v6127 = vpop.f32.mrb[0].mxu0
        %v6128 = vadd.f32 %v4973, %v6127
        %6129 = vmatprep.mubr.f32.mxu0 %v5150
        %6130 = vmatmul.mubr.f32.gmra.mrb[0].mxu0 %v5149
        %v6131 = vpop.f32.mrb[0].mxu0
        %v6132 = vadd.f32 %v4977, %v6131
        %v6133 = vpop.f32.mrb[0].mxu0
        %v6134 = vadd.f32 %v4979, %v6133
        %6135 = vmatprep.mubr.f32.mxu0 %v5154
        %6136 = vmatmul.mubr.f32.gmra.mrb[0].mxu0 %v5153
        %v6137 = vpop.f32.mrb[0].mxu0
        %v6138 = vadd.f32 %v4983, %v6137
        %v6139 = vpop.f32.mrb[0].mxu0
        %v6140 = vadd.f32 %v4985, %v6139
        %6141 = vmatprep.mubr.f32.mxu0 %v5158
        %6142 = vmatmul.mubr.f32.gmra.mrb[0].mxu0 %v5157
        %v6143 = vpop.f32.mrb[0].mxu0
        %v6144 = vadd.f32 %v4989, %v6143
        %v6145 = vpop.f32.mrb[0].mxu0
        %v6146 = vadd.f32 %v4991, %v6145
        %6147 = vmatprep.mubr.f32.mxu0 %v5162
        %6148 = vmatmul.mubr.f32.gmra.mrb[0].mxu0 %v5161
        %v6149 = vpop.f32.mrb[0].mxu0
        %v6150 = vadd.f32 %v4995, %v6149
        %v6151 = vpop.f32.mrb[0].mxu0
        %v6152 = vadd.f32 %v4997, %v6151
        %6153 = vmatprep.mubr.f32.mxu0 %v5166
        %6154 = vmatmul.mubr.f32.gmra.mrb[0].mxu0 %v5165
        %v6155 = vpop.f32.mrb[0].mxu0
        %v6156 = vadd.f32 %v5001, %v6155
        %v6157 = vpop.f32.mrb[0].mxu0
        %v6158 = vadd.f32 %v5003, %v6157
        %6159 = vmatprep.mubr.f32.mxu0 %v5170
        %6160 = vmatmul.mubr.f32.gmra.mrb[0].mxu0 %v5169
        %v6161 = vpop.f32.mrb[0].mxu0
        %v6162 = vadd.f32 %v5007, %v6161
        %v6163 = vpop.f32.mrb[0].mxu0
        %v6164 = vadd.f32 %v5009, %v6163
        %6165 = vmatprep.mubr.f32.mxu0 %v5174
        %6166 = vmatmul.mubr.f32.gmra.mrb[0].mxu0 %v5173
        %v6167 = vpop.f32.mrb[0].mxu0
        %v6168 = vadd.f32 %v5013, %v6167
        %v6169 = vpop.f32.mrb[0].mxu0
        %v6170 = vadd.f32 %v5015, %v6169
        %6171 = vmatprep.mubr.f32.mxu0 %v5178
        %6172 = vmatmul.mubr.f32.gmra.mrb[0].mxu0 %v5177
        %v6173 = vpop.f32.mrb[0].mxu0
        %v6174 = vadd.f32 %v5019, %v6173
        %v6175 = vpop.f32.mrb[0].mxu0
        %v6176 = vadd.f32 %v5021, %v6175
        %6177 = vmatprep.mubr.f32.mxu0 %v5182
        %6178 = vmatmul.mubr.f32.gmra.mrb[0].mxu0 %v5181
        %v6179 = vpop.f32.mrb[0].mxu0
        %v6180 = vadd.f32 %v5025, %v6179
        %v6181 = vpop.f32.mrb[0].mxu0
        %v6182 = vadd.f32 %v5027, %v6181
        %6183 = vmatprep.mubr.f32.mxu0 %v5186
        %6184 = vmatmul.mubr.f32.gmra.mrb[0].mxu0 %v5185
        %v6185 = vpop.f32.mrb[0].mxu0
        %v6186 = vadd.f32 %v5031, %v6185
        %v6187 = vpop.f32.mrb[0].mxu0
        %v6188 = vadd.f32 %v5033, %v6187
        %6189 = vmatprep.mubr.f32.mxu0 %v5190
        %6190 = vmatmul.mubr.f32.gmra.mrb[0].mxu0 %v5189
        %v6191 = vpop.f32.mrb[0].mxu0
        %v6192 = vadd.f32 %v5037, %v6191
        %v6193 = vpop.f32.mrb[0].mxu0
        %v6194 = vadd.f32 %v5039, %v6193
        %6195 = vmatprep.mubr.f32.mxu0 %v5194
        %6196 = vmatmul.mubr.f32.gmra.mrb[0].mxu0 %v5193
        %v6197 = vpop.f32.mrb[0].mxu0
        %v6198 = vadd.f32 %v5043, %v6197
        %v6199 = vpop.f32.mrb[0].mxu0
        %v6200 = vadd.f32 %v5045, %v6199
        %6201 = vmatprep.mubr.f32.mxu0 %v5198
        %6202 = vmatmul.mubr.f32.gmra.mrb[0].mxu0 %v5197
        %v6203 = vpop.f32.mrb[0].mxu0
        %v6204 = vadd.f32 %v5049, %v6203
        %v6205 = vpop.f32.mrb[0].mxu0
        %v6206 = vadd.f32 %v5051, %v6205
        %6207 = vmatprep.mubr.f32.mxu0 %v5202
        %6208 = vmatmul.mubr.f32.gmra.mrb[0].mxu0 %v5201
        %v6209 = vpop.f32.mrb[0].mxu0
        %v6210 = vadd.f32 %v5055, %v6209
        %v6211 = vpop.f32.mrb[0].mxu0
        %v6212 = vadd.f32 %v5057, %v6211
        %6213 = vmatprep.mubr.f32.mxu0 %v5206
        %6214 = vmatmul.mubr.f32.gmra.mrb[0].mxu0 %v5205
        %v6215 = vpop.f32.mrb[0].mxu0
        %v6216 = vadd.f32 %v5061, %v6215
        %v6217 = vpop.f32.mrb[0].mxu0
        %v6218 = vadd.f32 %v5063, %v6217
        %6219 = vmatprep.mubr.f32.mxu0 %v5210
        %6220 = vmatmul.mubr.f32.gmra.mrb[0].mxu0 %v5209
        %v6221 = vpop.f32.mrb[0].mxu0
        %v6222 = vadd.f32 %v5067, %v6221
        %v6223 = vpop.f32.mrb[0].mxu0
        %v6224 = vadd.f32 %v5069, %v6223
        %6225 = vmatprep.mubr.f32.mxu0 %v5214
        %6226 = vmatmul.mubr.f32.gmra.mrb[0].mxu0 %v5213
        %v6227 = vpop.f32.mrb[0].mxu0
        %v6228 = vadd.f32 %v5073, %v6227
        %v6229 = vpop.f32.mrb[0].mxu0
        %v6230 = vadd.f32 %v5075, %v6229
        %6231 = vmatprep.mubr.f32.mxu0 %v5218
        %6232 = vmatmul.mubr.f32.gmra.mrb[0].mxu0 %v5217
        %v6233 = vpop.f32.mrb[0].mxu0
        %v6234 = vadd.f32 %v5079, %v6233
        %v6235 = vpop.f32.mrb[0].mxu0
        %v6236 = vadd.f32 %v5081, %v6235
        %6237 = vmatprep.mubr.f32.mxu0 %v5222
        %6238 = vmatmul.mubr.f32.gmra.mrb[0].mxu0 %v5221
        %v6239 = vpop.f32.mrb[0].mxu0
        %v6240 = vadd.f32 %v5085, %v6239
        %v6241 = vpop.f32.mrb[0].mxu0
        %v6242 = vadd.f32 %v5087, %v6241
        %6243 = vmatprep.mubr.f32.mxu0 %v5226
        %6244 = vmatmul.mubr.f32.gmra.mrb[0].mxu0 %v5225
        %v6245 = vpop.f32.mrb[0].mxu0
        %v6246 = vadd.f32 %v5091, %v6245
        %v6247 = vpop.f32.mrb[0].mxu0
        %v6248 = vadd.f32 %v5093, %v6247
        %6249 = vmatprep.mubr.f32.mxu0 %v5230
        %6250 = vmatmul.mubr.f32.gmra.mrb[0].mxu0 %v5229
        %v6251 = vpop.f32.mrb[0].mxu0
        %v6252 = vadd.f32 %v5097, %v6251
        %v6253 = vpop.f32.mrb[0].mxu0
        %v6254 = vadd.f32 %v5099, %v6253
        %6255 = vmatprep.mubr.f32.mxu0 %v5234
        %6256 = vmatmul.mubr.f32.gmra.mrb[0].mxu0 %v5233
        %v6257 = vpop.f32.mrb[0].mxu0
        %v6258 = vadd.f32 %v5103, %v6257
        %v6259 = vpop.f32.mrb[0].mxu0
        %v6260 = vadd.f32 %v5105, %v6259
        %6261 = vmatprep.mubr.f32.mxu0 %v5238
        %6262 = vmatmul.mubr.f32.gmra.mrb[0].mxu0 %v5237
        %v6263 = vpop.f32.mrb[0].mxu0
        %v6264 = vadd.f32 %v5109, %v6263
        %v6265 = vpop.f32.mrb[0].mxu0
        %v6266 = vadd.f32 %v5111, %v6265
        %6267 = vdwg.mxu0
        %6268 = vmatprep.subr.mxu0 %v5372
        %6269 = vmatpush1.msra.mxu0 %v5371
        %6270 = vmatprep.subr.mxu0 %v5376
        %6271 = vmatpush1.msra.mxu0 %v5375
        %6272 = vmatprep.subr.mxu0 %v5380
        %6273 = vmatpush1.msra.mxu0 %v5379
        %6274 = vmatprep.subr.mxu0 %v5384
        %6275 = vmatpush1.msra.mxu0 %v5383
        %6276 = vmatprep.subr.mxu0 %v5388
        %6277 = vmatpush1.msra.mxu0 %v5387
        %6278 = vmatprep.subr.mxu0 %v5392
        %6279 = vmatpush1.msra.mxu0 %v5391
        %6280 = vmatprep.subr.mxu0 %v5396
        %6281 = vmatpush1.msra.mxu0 %v5395
        %6282 = vmatprep.subr.mxu0 %v5400
        %6283 = vmatpush1.msra.mxu0 %v5399
        %6284 = vmatprep.subr.mxu0 %v5404
        %6285 = vmatpush1.msra.mxu0 %v5403
        %6286 = vmatprep.subr.mxu0 %v5408
        %6287 = vmatpush1.msra.mxu0 %v5407
        %6288 = vmatprep.subr.mxu0 %v5412
        %6289 = vmatpush1.msra.mxu0 %v5411
        %6290 = vmatprep.subr.mxu0 %v5416
        %6291 = vmatpush1.msra.mxu0 %v5415
        %6292 = vmatprep.subr.mxu0 %v5420
        %6293 = vmatpush1.msra.mxu0 %v5419
        %6294 = vmatprep.subr.mxu0 %v5424
        %6295 = vmatpush1.msra.mxu0 %v5423
        %6296 = vmatprep.subr.mxu0 %v5428
        %6297 = vmatpush1.msra.mxu0 %v5427
        %6298 = vmatprep.subr.mxu0 %v5432
        %6299 = vmatpush1.msra.mxu0 %v5431
        %6300 = vmatprep.subr.mxu0 %v5436
        %6301 = vmatpush1.msra.mxu0 %v5435
        %6302 = vmatprep.subr.mxu0 %v5440
        %6303 = vmatpush1.msra.mxu0 %v5439
        %6304 = vmatprep.subr.mxu0 %v5444
        %6305 = vmatpush1.msra.mxu0 %v5443
        %6306 = vmatprep.subr.mxu0 %v5448
        %6307 = vmatpush1.msra.mxu0 %v5447
        %6308 = vmatprep.subr.mxu0 %v5452
        %6309 = vmatpush1.msra.mxu0 %v5451
        %6310 = vmatprep.subr.mxu0 %v5456
        %6311 = vmatpush1.msra.mxu0 %v5455
        %6312 = vmatprep.subr.mxu0 %v5460
        %6313 = vmatpush1.msra.mxu0 %v5459
        %6314 = vmatprep.subr.mxu0 %v5464
        %6315 = vmatpush1.msra.mxu0 %v5463
        %6316 = vmatprep.subr.mxu0 %v5468
        %6317 = vmatpush1.msra.mxu0 %v5467
        %6318 = vmatprep.subr.mxu0 %v5472
        %6319 = vmatpush1.msra.mxu0 %v5471
        %6320 = vmatprep.subr.mxu0 %v5476
        %6321 = vmatpush1.msra.mxu0 %v5475
        %6322 = vmatprep.subr.mxu0 %v5480
        %6323 = vmatpush1.msra.mxu0 %v5479
        %6324 = vmatprep.subr.mxu0 %v5484
        %6325 = vmatpush1.msra.mxu0 %v5483
        %6326 = vmatprep.subr.mxu0 %v5488
        %6327 = vmatpush1.msra.mxu0 %v5487
        %6328 = vmatprep.subr.mxu0 %v5492
        %6329 = vmatpush1.msra.mxu0 %v5491
        %6330 = vmatprep.subr.mxu0 %v5496
        %6331 = vmatpush1.msra.mxu0 %v5495
        %6332 = vmatprep.mubr.f32.mxu0 %v5116
        %6333 = vmatmul.mubr.f32.gmra.mrb[0].mxu0 %v5115
        %v6334 = vpop.f32.mrb[0].mxu0
        %v6335 = vadd.f32 %v6078, %v6334
        %v6336 = vpop.f32.mrb[0].mxu0
        %v6337 = vadd.f32 %v6080, %v6336
        %6338 = vmatprep.mubr.f32.mxu0 %v5120
        %6339 = vmatmul.mubr.f32.gmra.mrb[0].mxu0 %v5119
        %v6340 = vpop.f32.mrb[0].mxu0
        %v6341 = vadd.f32 %v6084, %v6340
        %v6342 = vpop.f32.mrb[0].mxu0
        %v6343 = vadd.f32 %v6086, %v6342
        %6344 = vmatprep.mubr.f32.mxu0 %v5124
        %6345 = vmatmul.mubr.f32.gmra.mrb[0].mxu0 %v5123
        %v6346 = vpop.f32.mrb[0].mxu0
        %v6347 = vadd.f32 %v6090, %v6346
        %v6348 = vpop.f32.mrb[0].mxu0
        %v6349 = vadd.f32 %v6092, %v6348
        %6350 = vmatprep.mubr.f32.mxu0 %v5128
        %6351 = vmatmul.mubr.f32.gmra.mrb[0].mxu0 %v5127
        %v6352 = vpop.f32.mrb[0].mxu0
        %v6353 = vadd.f32 %v6096, %v6352
        %v6354 = vpop.f32.mrb[0].mxu0
        %v6355 = vadd.f32 %v6098, %v6354
        %6356 = vmatprep.mubr.f32.mxu0 %v5132
        %6357 = vmatmul.mubr.f32.gmra.mrb[0].mxu0 %v5131
        %v6358 = vpop.f32.mrb[0].mxu0
        %v6359 = vadd.f32 %v6102, %v6358
        %v6360 = vpop.f32.mrb[0].mxu0
        %v6361 = vadd.f32 %v6104, %v6360
        %6362 = vmatprep.mubr.f32.mxu0 %v5136
        %6363 = vmatmul.mubr.f32.gmra.mrb[0].mxu0 %v5135
        %v6364 = vpop.f32.mrb[0].mxu0
        %v6365 = vadd.f32 %v6108, %v6364
        %v6366 = vpop.f32.mrb[0].mxu0
        %v6367 = vadd.f32 %v6110, %v6366
        %6368 = vmatprep.mubr.f32.mxu0 %v5140
        %6369 = vmatmul.mubr.f32.gmra.mrb[0].mxu0 %v5139
        %v6370 = vpop.f32.mrb[0].mxu0
        %v6371 = vadd.f32 %v6114, %v6370
        %v6372 = vpop.f32.mrb[0].mxu0
        %v6373 = vadd.f32 %v6116, %v6372
        %6374 = vmatprep.mubr.f32.mxu0 %v5144
        %6375 = vmatmul.mubr.f32.gmra.mrb[0].mxu0 %v5143
        %v6376 = vpop.f32.mrb[0].mxu0
        %v6377 = vadd.f32 %v6120, %v6376
        %v6378 = vpop.f32.mrb[0].mxu0
        %v6379 = vadd.f32 %v6122, %v6378
        %6380 = vmatprep.mubr.f32.mxu0 %v5148
        %6381 = vmatmul.mubr.f32.gmra.mrb[0].mxu0 %v5147
        %v6382 = vpop.f32.mrb[0].mxu0
        %v6383 = vadd.f32 %v6126, %v6382
        %v6384 = vpop.f32.mrb[0].mxu0
        %v6385 = vadd.f32 %v6128, %v6384
        %6386 = vmatprep.mubr.f32.mxu0 %v5152
        %6387 = vmatmul.mubr.f32.gmra.mrb[0].mxu0 %v5151
        %v6388 = vpop.f32.mrb[0].mxu0
        %v6389 = vadd.f32 %v6132, %v6388
        %v6390 = vpop.f32.mrb[0].mxu0
        %v6391 = vadd.f32 %v6134, %v6390
        %6392 = vmatprep.mubr.f32.mxu0 %v5156
        %6393 = vmatmul.mubr.f32.gmra.mrb[0].mxu0 %v5155
        %v6394 = vpop.f32.mrb[0].mxu0
        %v6395 = vadd.f32 %v6138, %v6394
        %v6396 = vpop.f32.mrb[0].mxu0
        %v6397 = vadd.f32 %v6140, %v6396
        %6398 = vmatprep.mubr.f32.mxu0 %v5160
        %6399 = vmatmul.mubr.f32.gmra.mrb[0].mxu0 %v5159
        %v6400 = vpop.f32.mrb[0].mxu0
        %v6401 = vadd.f32 %v6144, %v6400
        %v6402 = vpop.f32.mrb[0].mxu0
        %v6403 = vadd.f32 %v6146, %v6402
        %6404 = vmatprep.mubr.f32.mxu0 %v5164
        %6405 = vmatmul.mubr.f32.gmra.mrb[0].mxu0 %v5163
        %v6406 = vpop.f32.mrb[0].mxu0
        %v6407 = vadd.f32 %v6150, %v6406
        %v6408 = vpop.f32.mrb[0].mxu0
        %v6409 = vadd.f32 %v6152, %v6408
        %6410 = vmatprep.mubr.f32.mxu0 %v5168
        %6411 = vmatmul.mubr.f32.gmra.mrb[0].mxu0 %v5167
        %v6412 = vpop.f32.mrb[0].mxu0
        %v6413 = vadd.f32 %v6156, %v6412
        %v6414 = vpop.f32.mrb[0].mxu0
        %v6415 = vadd.f32 %v6158, %v6414
        %6416 = vmatprep.mubr.f32.mxu0 %v5172
        %6417 = vmatmul.mubr.f32.gmra.mrb[0].mxu0 %v5171
        %v6418 = vpop.f32.mrb[0].mxu0
        %v6419 = vadd.f32 %v6162, %v6418
        %v6420 = vpop.f32.mrb[0].mxu0
        %v6421 = vadd.f32 %v6164, %v6420
        %6422 = vmatprep.mubr.f32.mxu0 %v5176
        %6423 = vmatmul.mubr.f32.gmra.mrb[0].mxu0 %v5175
        %v6424 = vpop.f32.mrb[0].mxu0
        %v6425 = vadd.f32 %v6168, %v6424
        %v6426 = vpop.f32.mrb[0].mxu0
        %v6427 = vadd.f32 %v6170, %v6426
        %6428 = vmatprep.mubr.f32.mxu0 %v5180
        %6429 = vmatmul.mubr.f32.gmra.mrb[0].mxu0 %v5179
        %v6430 = vpop.f32.mrb[0].mxu0
        %v6431 = vadd.f32 %v6174, %v6430
        %v6432 = vpop.f32.mrb[0].mxu0
        %v6433 = vadd.f32 %v6176, %v6432
        %6434 = vmatprep.mubr.f32.mxu0 %v5184
        %6435 = vmatmul.mubr.f32.gmra.mrb[0].mxu0 %v5183
        %v6436 = vpop.f32.mrb[0].mxu0
        %v6437 = vadd.f32 %v6180, %v6436
        %v6438 = vpop.f32.mrb[0].mxu0
        %v6439 = vadd.f32 %v6182, %v6438
        %6440 = vmatprep.mubr.f32.mxu0 %v5188
        %6441 = vmatmul.mubr.f32.gmra.mrb[0].mxu0 %v5187
        %v6442 = vpop.f32.mrb[0].mxu0
        %v6443 = vadd.f32 %v6186, %v6442
        %v6444 = vpop.f32.mrb[0].mxu0
        %v6445 = vadd.f32 %v6188, %v6444
        %6446 = vmatprep.mubr.f32.mxu0 %v5192
        %6447 = vmatmul.mubr.f32.gmra.mrb[0].mxu0 %v5191
        %v6448 = vpop.f32.mrb[0].mxu0
        %v6449 = vadd.f32 %v6192, %v6448
        %v6450 = vpop.f32.mrb[0].mxu0
        %v6451 = vadd.f32 %v6194, %v6450
        %6452 = vmatprep.mubr.f32.mxu0 %v5196
        %6453 = vmatmul.mubr.f32.gmra.mrb[0].mxu0 %v5195
        %v6454 = vpop.f32.mrb[0].mxu0
        %v6455 = vadd.f32 %v6198, %v6454
        %v6456 = vpop.f32.mrb[0].mxu0
        %v6457 = vadd.f32 %v6200, %v6456
        %6458 = vmatprep.mubr.f32.mxu0 %v5200
        %6459 = vmatmul.mubr.f32.gmra.mrb[0].mxu0 %v5199
        %v6460 = vpop.f32.mrb[0].mxu0
        %v6461 = vadd.f32 %v6204, %v6460
        %v6462 = vpop.f32.mrb[0].mxu0
        %v6463 = vadd.f32 %v6206, %v6462
        %6464 = vmatprep.mubr.f32.mxu0 %v5204
        %6465 = vmatmul.mubr.f32.gmra.mrb[0].mxu0 %v5203
        %v6466 = vpop.f32.mrb[0].mxu0
        %v6467 = vadd.f32 %v6210, %v6466
        %v6468 = vpop.f32.mrb[0].mxu0
        %v6469 = vadd.f32 %v6212, %v6468
        %6470 = vmatprep.mubr.f32.mxu0 %v5208
        %6471 = vmatmul.mubr.f32.gmra.mrb[0].mxu0 %v5207
        %v6472 = vpop.f32.mrb[0].mxu0
        %v6473 = vadd.f32 %v6216, %v6472
        %v6474 = vpop.f32.mrb[0].mxu0
        %v6475 = vadd.f32 %v6218, %v6474
        %6476 = vmatprep.mubr.f32.mxu0 %v5212
        %6477 = vmatmul.mubr.f32.gmra.mrb[0].mxu0 %v5211
        %v6478 = vpop.f32.mrb[0].mxu0
        %v6479 = vadd.f32 %v6222, %v6478
        %v6480 = vpop.f32.mrb[0].mxu0
        %v6481 = vadd.f32 %v6224, %v6480
        %6482 = vmatprep.mubr.f32.mxu0 %v5216
        %6483 = vmatmul.mubr.f32.gmra.mrb[0].mxu0 %v5215
        %v6484 = vpop.f32.mrb[0].mxu0
        %v6485 = vadd.f32 %v6228, %v6484
        %v6486 = vpop.f32.mrb[0].mxu0
        %v6487 = vadd.f32 %v6230, %v6486
        %6488 = vmatprep.mubr.f32.mxu0 %v5220
        %6489 = vmatmul.mubr.f32.gmra.mrb[0].mxu0 %v5219
        %v6490 = vpop.f32.mrb[0].mxu0
        %v6491 = vadd.f32 %v6234, %v6490
        %v6492 = vpop.f32.mrb[0].mxu0
        %v6493 = vadd.f32 %v6236, %v6492
        %6494 = vmatprep.mubr.f32.mxu0 %v5224
        %6495 = vmatmul.mubr.f32.gmra.mrb[0].mxu0 %v5223
        %v6496 = vpop.f32.mrb[0].mxu0
        %v6497 = vadd.f32 %v6240, %v6496
        %v6498 = vpop.f32.mrb[0].mxu0
        %v6499 = vadd.f32 %v6242, %v6498
        %6500 = vmatprep.mubr.f32.mxu0 %v5228
        %6501 = vmatmul.mubr.f32.gmra.mrb[0].mxu0 %v5227
        %v6502 = vpop.f32.mrb[0].mxu0
        %v6503 = vadd.f32 %v6246, %v6502
        %v6504 = vpop.f32.mrb[0].mxu0
        %v6505 = vadd.f32 %v6248, %v6504
        %6506 = vmatprep.mubr.f32.mxu0 %v5232
        %6507 = vmatmul.mubr.f32.gmra.mrb[0].mxu0 %v5231
        %v6508 = vpop.f32.mrb[0].mxu0
        %v6509 = vadd.f32 %v6252, %v6508
        %v6510 = vpop.f32.mrb[0].mxu0
        %v6511 = vadd.f32 %v6254, %v6510
        %6512 = vmatprep.mubr.f32.mxu0 %v5236
        %6513 = vmatmul.mubr.f32.gmra.mrb[0].mxu0 %v5235
        %v6514 = vpop.f32.mrb[0].mxu0
        %v6515 = vadd.f32 %v6258, %v6514
        %v6516 = vpop.f32.mrb[0].mxu0
        %v6517 = vadd.f32 %v6260, %v6516
        %6518 = vmatprep.mubr.f32.mxu0 %v5240
        %6519 = vmatmul.mubr.f32.gmra.mrb[0].mxu0 %v5239
        %v6520 = vpop.f32.mrb[0].mxu0
        %v6521 = vadd.f32 %v6264, %v6520
        %v6522 = vpop.f32.mrb[0].mxu0
        %v6523 = vadd.f32 %v6266, %v6522
        %6524 = vdwg.mxu0
        %6525 = vst [vmem:[%s774] sm:$0xff] %v5821
        %6526 = vst [vmem:[%s774 + $0x8] sm:$0xff] %v5823
        %6527 = vst [vmem:[%s774 + $0x10] sm:$0xff] %v6335
        %6528 = vst [vmem:[%s774 + $0x18] sm:$0xff] %v6337
        %6529 = vst [vmem:[%s774 + $0x20] sm:$0xff] %v5827
        %6530 = vst [vmem:[%s774 + $0x28] sm:$0xff] %v5829
        %6531 = vst [vmem:[%s774 + $0x30] sm:$0xff] %v6341
        %6532 = vst [vmem:[%s774 + $0x38] sm:$0xff] %v6343
        %6533 = vst [vmem:[%s774 + $0x40] sm:$0xff] %v5833
        %6534 = vst [vmem:[%s774 + $0x48] sm:$0xff] %v5835
        %6535 = vst [vmem:[%s774 + $0x50] sm:$0xff] %v6347
        %6536 = vst [vmem:[%s774 + $0x58] sm:$0xff] %v6349
        %6537 = vst [vmem:[%s774 + $0x60] sm:$0xff] %v5839
        %6538 = vst [vmem:[%s774 + $0x68] sm:$0xff] %v5841
        %6539 = vst [vmem:[%s774 + $0x70] sm:$0xff] %v6353
        %6540 = vst [vmem:[%s774 + $0x78] sm:$0xff] %v6355
        %6541 = vst [vmem:[%s774 + $0x80] sm:$0xff] %v5845
        %6542 = vst [vmem:[%s774 + $0x88] sm:$0xff] %v5847
        %6543 = vst [vmem:[%s774 + $0x90] sm:$0xff] %v6359
        %6544 = vst [vmem:[%s774 + $0x98] sm:$0xff] %v6361
        %6545 = vst [vmem:[%s774 + $0xa0] sm:$0xff] %v5851
        %6546 = vst [vmem:[%s774 + $0xa8] sm:$0xff] %v5853
        %6547 = vst [vmem:[%s774 + $0xb0] sm:$0xff] %v6365
        %6548 = vst [vmem:[%s774 + $0xb8] sm:$0xff] %v6367
        %6549 = vst [vmem:[%s774 + $0xc0] sm:$0xff] %v5857
        %6550 = vst [vmem:[%s774 + $0xc8] sm:$0xff] %v5859
        %6551 = vst [vmem:[%s774 + $0xd0] sm:$0xff] %v6371
        %6552 = vst [vmem:[%s774 + $0xd8] sm:$0xff] %v6373
        %6553 = vst [vmem:[%s774 + $0xe0] sm:$0xff] %v5863
        %6554 = vst [vmem:[%s774 + $0xe8] sm:$0xff] %v5865
        %6555 = vst [vmem:[%s774 + $0xf0] sm:$0xff] %v6377
        %6556 = vst [vmem:[%s774 + $0xf8] sm:$0xff] %v6379
        %6557 = vst [vmem:[%s774 + $0x100] sm:$0xff] %v5869
        %6558 = vst [vmem:[%s774 + $0x108] sm:$0xff] %v5871
        %6559 = vst [vmem:[%s774 + $0x110] sm:$0xff] %v6383
        %6560 = vst [vmem:[%s774 + $0x118] sm:$0xff] %v6385
        %6561 = vst [vmem:[%s774 + $0x120] sm:$0xff] %v5875
        %6562 = vst [vmem:[%s774 + $0x128] sm:$0xff] %v5877
        %6563 = vst [vmem:[%s774 + $0x130] sm:$0xff] %v6389
        %6564 = vst [vmem:[%s774 + $0x138] sm:$0xff] %v6391
        %6565 = vst [vmem:[%s774 + $0x140] sm:$0xff] %v5881
        %6566 = vst [vmem:[%s774 + $0x148] sm:$0xff] %v5883
        %6567 = vst [vmem:[%s774 + $0x150] sm:$0xff] %v6395
        %6568 = vst [vmem:[%s774 + $0x158] sm:$0xff] %v6397
        %6569 = vst [vmem:[%s774 + $0x160] sm:$0xff] %v5887
        %6570 = vst [vmem:[%s774 + $0x168] sm:$0xff] %v5889
        %6571 = vst [vmem:[%s774 + $0x170] sm:$0xff] %v6401
        %6572 = vst [vmem:[%s774 + $0x178] sm:$0xff] %v6403
        %6573 = vst [vmem:[%s774 + $0x180] sm:$0xff] %v5893
        %6574 = vst [vmem:[%s774 + $0x188] sm:$0xff] %v5895
        %6575 = vst [vmem:[%s774 + $0x190] sm:$0xff] %v6407
        %6576 = vst [vmem:[%s774 + $0x198] sm:$0xff] %v6409
        %6577 = vst [vmem:[%s774 + $0x1a0] sm:$0xff] %v5899
        %6578 = vst [vmem:[%s774 + $0x1a8] sm:$0xff] %v5901
        %6579 = vst [vmem:[%s774 + $0x1b0] sm:$0xff] %v6413
        %6580 = vst [vmem:[%s774 + $0x1b8] sm:$0xff] %v6415
        %6581 = vst [vmem:[%s774 + $0x1c0] sm:$0xff] %v5905
        %6582 = vst [vmem:[%s774 + $0x1c8] sm:$0xff] %v5907
        %6583 = vst [vmem:[%s774 + $0x1d0] sm:$0xff] %v6419
        %6584 = vst [vmem:[%s774 + $0x1d8] sm:$0xff] %v6421
        %6585 = vst [vmem:[%s774 + $0x1e0] sm:$0xff] %v5911
        %6586 = vst [vmem:[%s774 + $0x1e8] sm:$0xff] %v5913
        %6587 = vst [vmem:[%s774 + $0x1f0] sm:$0xff] %v6425
        %6588 = vst [vmem:[%s774 + $0x1f8] sm:$0xff] %v6427
        %6589 = vst [vmem:[%s774 + $0x200] sm:$0xff] %v5917
        %6590 = vst [vmem:[%s774 + $0x208] sm:$0xff] %v5919
        %6591 = vst [vmem:[%s774 + $0x210] sm:$0xff] %v6431
        %6592 = vst [vmem:[%s774 + $0x218] sm:$0xff] %v6433
        %6593 = vst [vmem:[%s774 + $0x220] sm:$0xff] %v5923
        %6594 = vst [vmem:[%s774 + $0x228] sm:$0xff] %v5925
        %6595 = vst [vmem:[%s774 + $0x230] sm:$0xff] %v6437
        %6596 = vst [vmem:[%s774 + $0x238] sm:$0xff] %v6439
        %6597 = vst [vmem:[%s774 + $0x240] sm:$0xff] %v5929
        %6598 = vst [vmem:[%s774 + $0x248] sm:$0xff] %v5931
        %6599 = vst [vmem:[%s774 + $0x250] sm:$0xff] %v6443
        %6600 = vst [vmem:[%s774 + $0x258] sm:$0xff] %v6445
        %6601 = vst [vmem:[%s774 + $0x260] sm:$0xff] %v5935
        %6602 = vst [vmem:[%s774 + $0x268] sm:$0xff] %v5937
        %6603 = vst [vmem:[%s774 + $0x270] sm:$0xff] %v6449
        %6604 = vst [vmem:[%s774 + $0x278] sm:$0xff] %v6451
        %6605 = vst [vmem:[%s774 + $0x280] sm:$0xff] %v5941
        %6606 = vst [vmem:[%s774 + $0x288] sm:$0xff] %v5943
        %6607 = vst [vmem:[%s774 + $0x290] sm:$0xff] %v6455
        %6608 = vst [vmem:[%s774 + $0x298] sm:$0xff] %v6457
        %6609 = vst [vmem:[%s774 + $0x2a0] sm:$0xff] %v5947
        %6610 = vst [vmem:[%s774 + $0x2a8] sm:$0xff] %v5949
        %6611 = vst [vmem:[%s774 + $0x2b0] sm:$0xff] %v6461
        %6612 = vst [vmem:[%s774 + $0x2b8] sm:$0xff] %v6463
        %6613 = vst [vmem:[%s774 + $0x2c0] sm:$0xff] %v5953
        %6614 = vst [vmem:[%s774 + $0x2c8] sm:$0xff] %v5955
        %6615 = vst [vmem:[%s774 + $0x2d0] sm:$0xff] %v6467
        %6616 = vst [vmem:[%s774 + $0x2d8] sm:$0xff] %v6469
        %6617 = vst [vmem:[%s774 + $0x2e0] sm:$0xff] %v5959
        %6618 = vst [vmem:[%s774 + $0x2e8] sm:$0xff] %v5961
        %6619 = vst [vmem:[%s774 + $0x2f0] sm:$0xff] %v6473
        %6620 = vst [vmem:[%s774 + $0x2f8] sm:$0xff] %v6475
        %6621 = vst [vmem:[%s774 + $0x300] sm:$0xff] %v5965
        %6622 = vst [vmem:[%s774 + $0x308] sm:$0xff] %v5967
        %6623 = vst [vmem:[%s774 + $0x310] sm:$0xff] %v6479
        %6624 = vst [vmem:[%s774 + $0x318] sm:$0xff] %v6481
        %6625 = vst [vmem:[%s774 + $0x320] sm:$0xff] %v5971
        %6626 = vst [vmem:[%s774 + $0x328] sm:$0xff] %v5973
        %6627 = vst [vmem:[%s774 + $0x330] sm:$0xff] %v6485
        %6628 = vst [vmem:[%s774 + $0x338] sm:$0xff] %v6487
        %6629 = vst [vmem:[%s774 + $0x340] sm:$0xff] %v5977
        %6630 = vst [vmem:[%s774 + $0x348] sm:$0xff] %v5979
        %6631 = vst [vmem:[%s774 + $0x350] sm:$0xff] %v6491
        %6632 = vst [vmem:[%s774 + $0x358] sm:$0xff] %v6493
        %6633 = vst [vmem:[%s774 + $0x360] sm:$0xff] %v5983
        %6634 = vst [vmem:[%s774 + $0x368] sm:$0xff] %v5985
        %6635 = vst [vmem:[%s774 + $0x370] sm:$0xff] %v6497
        %6636 = vst [vmem:[%s774 + $0x378] sm:$0xff] %v6499
        %6637 = vst [vmem:[%s774 + $0x380] sm:$0xff] %v5989
        %6638 = vst [vmem:[%s774 + $0x388] sm:$0xff] %v5991
        %6639 = vst [vmem:[%s774 + $0x390] sm:$0xff] %v6503
        %6640 = vst [vmem:[%s774 + $0x398] sm:$0xff] %v6505
        %6641 = vst [vmem:[%s774 + $0x3a0] sm:$0xff] %v5995
        %6642 = vst [vmem:[%s774 + $0x3a8] sm:$0xff] %v5997
        %6643 = vst [vmem:[%s774 + $0x3b0] sm:$0xff] %v6509
        %6644 = vst [vmem:[%s774 + $0x3b8] sm:$0xff] %v6511
        %6645 = vst [vmem:[%s774 + $0x3c0] sm:$0xff] %v6001
        %6646 = vst [vmem:[%s774 + $0x3c8] sm:$0xff] %v6003
        %6647 = vst [vmem:[%s774 + $0x3d0] sm:$0xff] %v6515
        %6648 = vst [vmem:[%s774 + $0x3d8] sm:$0xff] %v6517
        %6649 = vst [vmem:[%s774 + $0x3e0] sm:$0xff] %v6007
        %6650 = vst [vmem:[%s774 + $0x3e8] sm:$0xff] %v6009
        %6651 = vst [vmem:[%s774 + $0x3f0] sm:$0xff] %v6521
        %6652 = vst [vmem:[%s774 + $0x3f8] sm:$0xff] %v6523
        %s6653 = sand.u32 %s363, 1
        %s6654 = scalar_lea.sflag [#allocation4], %s6653
        %s6655 = sand.u32 %s363, 1
        %s6656 = smul.addr %s6655, 1024
        %s6657 = scalar_lea.vmem [#allocation25], %s6656
        %s6658 = sand.u32 %s46, 1
        %s6659 = scalar_lea.sflag [#allocation27], %s6658
        %s6660 = sand.u32 %s389, 1
        %s6661 = smul.addr %s6660, 512
        %s6662 = scalar_lea.vmem [#allocation26], %s6661
        %s6663 = sand.u32 %s46, 1
        %s6664 = scalar_lea.sflag [#allocation27], %s6663
        %s6665 = sand.u32 %s415, 1
        %s6666 = smul.addr %s6665, 256
        %s6667 = scalar_lea.vmem [#allocation28], %s6666
        // Predicated region
        $region133: #{tpu_custom_call.1} parent=75 // pred_check
          %p6668 = pneg %p373
        $region134: #{tpu_custom_call.1} parent=75 // pred_check_branch
          %6670 = sbr.rel (%p6668) target = $region136
        $region135: #{tpu_custom_call.1} parent=75 // pred_region
          %s6671 = smul.u32 32, %s46
          %s6673 = ssub.s32 16384, 16384
          %6674 = vsyncadd %s6654, %s6673
          %s6675 = smul.addr %s6671, 4
          %s6676 = smul.addr %s6675, 128
          %s6677 = scalar_lea.hbm %s14, %s6676
          %s6678 = sshll.u32 %s6657, 4
          %s6679 = int_to_ptr.vmem [resolvable:$true] %s6678
          %6684 = dma.vmem_to_hbm [thread:$0]  %s6679, 16384, %s6677, %s6654, 512, 512, 32
        $region136: #{tpu_custom_call.1} parent=75 // pred_fallthru
          _
        // Predicated region
        $region137: #{tpu_custom_call.1} parent=75 // pred_check
          %p6685 = pneg %p399
        $region138: #{tpu_custom_call.1} parent=75 // pred_check_branch
          %6687 = sbr.rel (%p6685) target = $region140
        $region139: #{tpu_custom_call.1} parent=75 // pred_region
          %s6688 = smul.u32 32, %s46
          %s6690 = ssub.s32 8192, 8192
          %6691 = vsyncadd %s6659, %s6690
          %s6692 = smul.addr %s6688, 2
          %s6693 = smul.addr %s6692, 128
          %s6694 = scalar_lea.hbm %s15, %s6693
          %s6695 = sshll.u32 %s6662, 4
          %s6696 = int_to_ptr.vmem [resolvable:$true] %s6695
          %6701 = dma.vmem_to_hbm [thread:$0]  %s6696, 8192, %s6694, %s6659, 256, 256, 16
        $region140: #{tpu_custom_call.1} parent=75 // pred_fallthru
          _
        // Predicated region
        $region141: #{tpu_custom_call.1} parent=75 // pred_check
          %p6702 = pneg %p425
        $region142: #{tpu_custom_call.1} parent=75 // pred_check_branch
          %6704 = sbr.rel (%p6702) target = $region144
        $region143: #{tpu_custom_call.1} parent=75 // pred_region
          %s6705 = smul.u32 32, %s46
          %s6707 = ssub.s32 4096, 4096
          %6708 = vsyncadd %s6664, %s6707
          %s6709 = smul.addr %s6705, 128
          %s6710 = scalar_lea.hbm %s16, %s6709
          %s6711 = sshll.u32 %s6667, 4
          %s6712 = int_to_ptr.vmem [resolvable:$true] %s6711
          %6717 = dma.vmem_to_hbm [thread:$0]  %s6712, 4096, %s6710, %s6664, 128, 128, 8
        $region144: #{tpu_custom_call.1} parent=75 // pred_fallthru
          _
      $region76: #{tpu_custom_call.1} parent=5 // pred_fallthru
        _
      %p6718 = scmp.le.s32.totalorder 2, %s41
      // Predicated region
      $region145: #{tpu_custom_call.1} parent=5 // pred_check
        %p6719 = pneg %p6718
      $region146: #{tpu_custom_call.1} parent=5 // pred_check_branch
        %6721 = sbr.rel (%p6719) target = $region148
      $region147: #{tpu_custom_call.1} parent=5 // pred_region
        %s6722 = ssub.s32 %s41, 2
        // Predicated region
        $region149: #{tpu_custom_call.1} parent=147 // pred_check
          %p6723 = pneg %p379
        $region150: #{tpu_custom_call.1} parent=147 // pred_check_branch
          %6725 = sbr.rel (%p6723) target = $region152
        $region151: #{tpu_custom_call.1} parent=147 // pred_region
          %s6726 = sand.u32 %s364, 1
          %s6727 = scalar_lea.sflag [#allocation4], %s6726
          %s6728 = sand.u32 %s364, 1
          %s6729 = smul.addr %s6728, 1024
          %s6730 = scalar_lea.vmem [#allocation25], %s6729
          %6731 = dma.done %s6727, 16384
        $region152: #{tpu_custom_call.1} parent=147 // pred_fallthru
          _
        // Predicated region
        $region153: #{tpu_custom_call.1} parent=147 // pred_check
          %p6732 = pneg %p405
        $region154: #{tpu_custom_call.1} parent=147 // pred_check_branch
          %6734 = sbr.rel (%p6732) target = $region156
        $region155: #{tpu_custom_call.1} parent=147 // pred_region
          %s6735 = sand.u32 %s47, 1
          %s6736 = scalar_lea.sflag [#allocation27], %s6735
          %s6737 = sand.u32 %s390, 1
          %s6738 = smul.addr %s6737, 512
          %s6739 = scalar_lea.vmem [#allocation26], %s6738
          %6740 = dma.done %s6736, 8192
        $region156: #{tpu_custom_call.1} parent=147 // pred_fallthru
          _
        // Predicated region
        $region157: #{tpu_custom_call.1} parent=147 // pred_check
          %p6741 = pneg %p431
        $region158: #{tpu_custom_call.1} parent=147 // pred_check_branch
          %6743 = sbr.rel (%p6741) target = $region160
        $region159: #{tpu_custom_call.1} parent=147 // pred_region
          %s6744 = sand.u32 %s47, 1
          %s6745 = scalar_lea.sflag [#allocation27], %s6744
          %s6746 = sand.u32 %s416, 1
          %s6747 = smul.addr %s6746, 256
          %s6748 = scalar_lea.vmem [#allocation28], %s6747
          %6749 = dma.done %s6745, 4096
        $region160: #{tpu_custom_call.1} parent=147 // pred_fallthru
          _
      $region148: #{tpu_custom_call.1} parent=5 // pred_fallthru
        _
    $region6: #{tpu_custom_call.1} parent=1 // loop_footer
      %s45 = sadd.s32 1, %s41
    $region7: #{tpu_custom_call.1} parent=1 // loop_footer_branch
      %40 = sbr.rel target = $region3
    $region8: #{tpu_custom_call.1} parent=1 // loop_exit
      _
    %6750 = vsyncpa [#allocation3], 1
    %s6751 = scalar_lea.sflag [#allocation3], 1
    %6752 = vsyncpa %s6751, 1
    %6753 = vsyncpa [#allocation6], 1
    %s6754 = scalar_lea.sflag [#allocation6], 1
    %6755 = vsyncpa %s6754, 1
    %6756 = vsyncpa [#allocation9], 1
    %6757 = vsyncpa [#allocation12], 1
    %6758 = vsyncpa [#allocation15], 1
    %6759 = vsyncpa [#allocation18], 1
    %6760 = vsyncpa [#allocation21], 1
    %6761 = vsyncpa [#allocation24], 1
    %6762 = vsyncpa [#allocation4], 1
    %s6763 = scalar_lea.sflag [#allocation4], 1
    %6764 = vsyncpa %s6763, 1
    %6765 = vsyncpa [#allocation27], 1
    %s6766 = scalar_lea.sflag [#allocation27], 1
    %6767 = vsyncpa %s6766, 1

</llo_original>
